<compile_context>
chip_gen: v7x
topology: tpu7x:2x2x1
jax: 0.10.0
libtpu: 0.0.40
codegen_flags: <defaults>
</compile_context>

<pallas_src>
import functools
import math

import jax
import jax.numpy as jnp
from jax.experimental import pallas as pl
from jax.experimental.pallas import tpu as pltpu


# ------------------------- synthetic backbone config ------------------------

PATCH = 4
EMBED = 128            # lane-dense (multiple of 128)
HEADS = 4
HEAD_DIM = EMBED // HEADS
DEPTH = 2
MLP_HIDDEN = 256       # multiple of 128
LN_EPS = 1e-6
ROWS_TARGET = 256      # rows (tokens) per grid step: fills the MXU M dimension


def _round_up(x, m):
    return ((x + m - 1) // m) * m


# ------------------------------ fused kernel --------------------------------

def _vit_block_kernel(
    patches_ref, pos_ref, pw_ref, const_ref, vecs_ref,
    qkv_w_ref, proj_w_ref, fc1_w_ref, fc2_w_ref,
    out_ref,
    tok_ref, attn_ref,
    *, F, L, D, heads, head_dim, mlp, eps,
):
    """Grid step (i, d): transformer block d applied to frame-group i.

    tok_ref : VMEM scratch (R, D) f32 -- residual stream, carried over d.
    attn_ref: VMEM scratch (R, D) f32 -- per-head attention output staging.
    """
    d = pl.program_id(1)
    R = F * L

    def ln(x, g, b):
        mu = jnp.mean(x, axis=-1, keepdims=True)
        var = jnp.mean(jnp.square(x - mu), axis=-1, keepdims=True)
        return (x - mu) * jax.lax.rsqrt(var + eps) * g + b

    # ---- first depth step: patch embedding + positional embedding ----
    @pl.when(d == 0)
    def _():
        p = patches_ref[0]                                        # (R, KP) bf16
        tok0 = jnp.dot(p, pw_ref[...], preferred_element_type=jnp.float32)
        tok_ref[...] = tok0 + const_ref[0:1, :] + pos_ref[...]    # f32 residual stream

    # ---- unpack this block's packed bias / LN vectors ----
    vecs = vecs_ref[0]                                            # (8, 3D) f32
    ln1_g, ln1_b = vecs[0:1, :D], vecs[1:2, :D]
    qkv_b = vecs[2:3, :]                                          # (1, 3D)
    proj_b = vecs[3:4, :D]
    ln2_g, ln2_b = vecs[4:5, :D], vecs[5:6, :D]
    fc1_b = vecs[6:7, :mlp]
    fc2_b = vecs[7:8, :D]

    tok = tok_ref[...]                                            # (R, D) f32

    # ---- multi-head self-attention (1/sqrt(hd) pre-folded into Q weights) ----
    h = ln(tok, ln1_g, ln1_b).astype(jnp.bfloat16)
    qkv = jnp.dot(h, qkv_w_ref[0], preferred_element_type=jnp.float32) + qkv_b
    qkv = qkv.astype(jnp.bfloat16)                                # single cast per block
    q_all = qkv[:, 0 * D:1 * D].reshape(F, L, D)
    k_all = qkv[:, 1 * D:2 * D].reshape(F, L, D)
    v_all = qkv[:, 2 * D:3 * D].reshape(F, L, D)
    for hh in range(heads):
        lo = hh * head_dim
        q = q_all[:, :, lo:lo + head_dim]                         # (F, L, hd) bf16
        k = k_all[:, :, lo:lo + head_dim]
        v = v_all[:, :, lo:lo + head_dim]
        s = jax.lax.dot_general(                                  # QK^T, batched over F
            q, k, (((2,), (2,)), ((0,), (0,))),
            preferred_element_type=jnp.float32)                   # (F, L, L) f32
        s = s - jnp.max(s, axis=-1, keepdims=True)
        e = jnp.exp(s)
        pr = e * pl.reciprocal(jnp.sum(e, axis=-1, keepdims=True), approx=True)
        o = jax.lax.dot_general(                                  # P @ V, batched over F
            pr.astype(jnp.bfloat16), v, (((2,), (1,)), ((0,), (0,))),
            preferred_element_type=jnp.float32)                   # (F, L, hd)
        attn_ref[:, lo:lo + head_dim] = o.reshape(R, head_dim)    # lane-offset scratch write

    attn = attn_ref[...].astype(jnp.bfloat16)
    tok = tok + jnp.dot(attn, proj_w_ref[0],
                        preferred_element_type=jnp.float32) + proj_b

    # ---- MLP ----
    h = ln(tok, ln2_g, ln2_b).astype(jnp.bfloat16)
    h = jnp.dot(h, fc1_w_ref[0], preferred_element_type=jnp.float32) + fc1_b
    h = jax.nn.gelu(h, approximate=True).astype(jnp.bfloat16)
    h = jnp.dot(h, fc2_w_ref[0], preferred_element_type=jnp.float32) + fc2_b
    tok = tok + h
    tok_ref[...] = tok

    # ---- last depth step: final LayerNorm + AdaptiveAvgPool over L tokens ----
    @pl.when(d == pl.num_programs(1) - 1)
    def _():
        y = ln(tok, const_ref[1:2, :], const_ref[2:3, :])
        out_ref[0] = jnp.mean(y.reshape(F, L, D), axis=1).astype(out_ref.dtype)


# ------------------------------ params + wrapper ----------------------------

def init_params(key, C, H, W):
    Hp, Wp = H // PATCH, W // PATCH
    L = Hp * Wp
    K = C * PATCH * PATCH
    ks = jax.random.split(key, 2 + DEPTH)
    std = 0.02

    def nrm(k, shape):
        return std * jax.random.normal(k, shape, dtype=jnp.float32)

    params = {
        "patch_w": nrm(ks[0], (K, EMBED)),     # conv [D,C,p,p] flattened for im2col matmul
        "patch_b": jnp.zeros((EMBED,), jnp.float32),
        "pos_embed": nrm(ks[1], (L, EMBED)),
        "lnf_g": jnp.ones((EMBED,), jnp.float32),
        "lnf_b": jnp.zeros((EMBED,), jnp.float32),
        "blocks": [],
    }
    for d in range(DEPTH):
        bk = jax.random.split(ks[2 + d], 4)
        params["blocks"].append({
            "ln1_g": jnp.ones((EMBED,), jnp.float32),
            "ln1_b": jnp.zeros((EMBED,), jnp.float32),
            "qkv_w": nrm(bk[0], (EMBED, 3 * EMBED)),
            "qkv_b": jnp.zeros((3 * EMBED,), jnp.float32),
            "proj_w": nrm(bk[1], (EMBED, EMBED)),
            "proj_b": jnp.zeros((EMBED,), jnp.float32),
            "ln2_g": jnp.ones((EMBED,), jnp.float32),
            "ln2_b": jnp.zeros((EMBED,), jnp.float32),
            "fc1_w": nrm(bk[2], (EMBED, MLP_HIDDEN)),
            "fc1_b": jnp.zeros((MLP_HIDDEN,), jnp.float32),
            "fc2_w": nrm(bk[3], (MLP_HIDDEN, EMBED)),
            "fc2_b": jnp.zeros((EMBED,), jnp.float32),
        })
    return params


def vit_model_forward(x, params):
    """x: [B, T, C, H, W] float32 (PyTorch NCHW frames) -> [B, T, EMBED]."""
    B, T, C, H, W = x.shape
    N = B * T
    Hp, Wp = H // PATCH, W // PATCH
    L = Hp * Wp
    K = C * PATCH * PATCH
    KP = _round_up(K, 128)
    D = EMBED
    VW = _round_up(max(3 * D, MLP_HIDDEN), 128)          # packed-bias row width
    depth = len(params["blocks"])

    # ---- frame grouping: fill the MXU M-dim; pad N rather than shrinking R ----
    f_target = max(1, ROWS_TARGET // L)                  # frames to hit ~256 rows/step
    f_cap = _round_up(N, max(1, 128 // L))               # keep padding bounded at tiny N
    F = max(1, min(f_target, f_cap))
    Nb = -(-N // F)
    if Nb > 1 and Nb % 2 == 1:
        Nb += 1                                          # even grid length (v7x megacore)
    N_pad = Nb * F
    R = F * L

    # ---- im2col patch extraction (one-time XLA relayout), (C, ph, pw) order ----
    frames = x.reshape(N, C, H, W)
    patches = frames.reshape(N, C, Hp, PATCH, Wp, PATCH)
    patches = patches.transpose(0, 2, 4, 1, 3, 5).reshape(N, L, K)
    patches = jnp.pad(patches, ((0, N_pad - N), (0, 0), (0, KP - K)))
    patches = patches.reshape(Nb, R, KP).astype(jnp.bfloat16)

    pos_tiled = jnp.tile(params["pos_embed"].astype(jnp.float32), (F, 1))   # (R, D)
    patch_w = jnp.pad(params["patch_w"], ((0, KP - K), (0, 0))).astype(jnp.bfloat16)

    # patch_b / final-LN params packed into one resident (8, D) array.
    const_vecs = jnp.zeros((8, D), jnp.float32)
    const_vecs = const_vecs.at[0].set(params["patch_b"])
    const_vecs = const_vecs.at[1].set(params["lnf_g"])
    const_vecs = const_vecs.at[2].set(params["lnf_b"])

    # ---- stack per-block params into (depth, ...) arrays, streamed over the grid ----
    scale = 1.0 / math.sqrt(HEAD_DIM)
    blocks = params["blocks"]

    def stacked(name):
        return jnp.stack([b[name] for b in blocks])

    qkv_w = stacked("qkv_w").at[:, :, :D].multiply(scale).astype(jnp.bfloat16)
    proj_w = stacked("proj_w").astype(jnp.bfloat16)
    fc1_w = stacked("fc1_w").astype(jnp.bfloat16)
    fc2_w = stacked("fc2_w").astype(jnp.bfloat16)

    def row(v):
        return jnp.pad(v, (0, VW - v.shape[0]))

    blk_vecs = jnp.stack([
        jnp.stack([
            row(b["ln1_g"]), row(b["ln1_b"]),
            row(b["qkv_b"].at[:D].multiply(scale)),      # fold attention scale into Q bias
            row(b["proj_b"]),
            row(b["ln2_g"]), row(b["ln2_b"]),
            row(b["fc1_b"]), row(b["fc2_b"]),
        ]) for b in blocks
    ]).astype(jnp.float32)                               # (depth, 8, VW)

    kern = functools.partial(
        _vit_block_kernel, F=F, L=L, D=D, heads=HEADS, head_dim=HEAD_DIM,
        mlp=MLP_HIDDEN, eps=LN_EPS)

    out = pl.pallas_call(
        kern,
        out_shape=jax.ShapeDtypeStruct((Nb, F, D), jnp.float32),
        grid_spec=pltpu.PrefetchScalarGridSpec(
            num_scalar_prefetch=0,
            grid=(Nb, depth),                                      # depth innermost (carried)
            in_specs=[
                pl.BlockSpec((1, R, KP), lambda i, d: (i, 0, 0)),  # patch group i
                pl.BlockSpec((R, D), lambda i, d: (0, 0)),         # pos embed (resident)
                pl.BlockSpec((KP, D), lambda i, d: (0, 0)),        # patch_w   (resident)
                pl.BlockSpec((8, D), lambda i, d: (0, 0)),         # patch_b / final LN
                pl.BlockSpec((1, 8, VW), lambda i, d: (d, 0, 0)),  # block biases (streamed)
                pl.BlockSpec((1, D, 3 * D), lambda i, d: (d, 0, 0)),      # qkv_w
                pl.BlockSpec((1, D, D), lambda i, d: (d, 0, 0)),          # proj_w
                pl.BlockSpec((1, D, MLP_HIDDEN), lambda i, d: (d, 0, 0)), # fc1_w
                pl.BlockSpec((1, MLP_HIDDEN, D), lambda i, d: (d, 0, 0)), # fc2_w
            ],
            out_specs=pl.BlockSpec((1, F, D), lambda i, d: (i, 0, 0)),
            scratch_shapes=[
                pltpu.VMEM((R, D), jnp.float32),   # residual stream (carried over depth)
                pltpu.VMEM((R, D), jnp.float32),   # attention output staging
            ],
        ),
        compiler_params=pltpu.CompilerParams(
            dimension_semantics=("parallel", "arbitrary"),
            vmem_limit_bytes=32 * 1024 * 1024,     # safe on v5e/v6e (128 MiB) & v7x (64 MiB)
        ),
    )(patches, pos_tiled, patch_w, const_vecs, blk_vecs,
      qkv_w, proj_w, fc1_w, fc2_w)

    # Stack over time: [Nb, F, D] -> drop padded frames -> [B, T, D]
    return out.reshape(Nb * F, D)[:N].reshape(B, T, D)


if __name__ == "__main__":
    B, T, C, H, W = 2, 3, 4, 16, 16
    key = jax.random.PRNGKey(0)
    kx, kp = jax.random.split(key)
    x = jax.random.normal(kx, (B, T, C, H, W), dtype=jnp.float32)
    params = init_params(kp, C, H, W)

    out = jax.jit(vit_model_forward)(x, params)
    out = jax.block_until_ready(out)
    assert out.shape == (B, T, EMBED), out.shape
    assert bool(jnp.all(jnp.isfinite(out)))
    print("KERNEL_OK")
</pallas_src>

<mosaic_0001>
module attributes {stable_mosaic.version = 11 : i64} {
  func.func @_vit_block_kernel(%arg0: i32, %arg1: i32, %arg2: memref<1x128x128xbf16, #tpu.memory_space<vmem>>, %arg3: memref<128x128xf32, #tpu.memory_space<vmem>>, %arg4: memref<128x128xbf16, #tpu.memory_space<vmem>>, %arg5: memref<8x128xf32, #tpu.memory_space<vmem>>, %arg6: memref<1x8x384xf32, #tpu.memory_space<vmem>>, %arg7: memref<1x128x384xbf16, #tpu.memory_space<vmem>>, %arg8: memref<1x128x128xbf16, #tpu.memory_space<vmem>>, %arg9: memref<1x128x256xbf16, #tpu.memory_space<vmem>>, %arg10: memref<1x256x128xbf16, #tpu.memory_space<vmem>>, %arg11: memref<1x8x128xf32, #tpu.memory_space<vmem>>, %arg12: memref<128x128xf32, #tpu.memory_space<vmem>>, %arg13: memref<128x128xf32, #tpu.memory_space<vmem>>) attributes {dimension_semantics = [#tpu.dimension_semantics<parallel>, #tpu.dimension_semantics<arbitrary>], iteration_bounds = array<i64: 1, 2>, scalar_prefetch = 0 : i64, scratch_operands = 2 : i64, tpu.core_type = #tpu.core_type<tc>, window_params = [{transform_indices = @transform_0, window_bounds = array<i64: 1, 128, 128>}, {pipeline_mode = #tpu.pipeline_mode<synchronous>, transform_indices = @transform_1, window_bounds = array<i64: 128, 128>}, {pipeline_mode = #tpu.pipeline_mode<synchronous>, transform_indices = @transform_2, window_bounds = array<i64: 128, 128>}, {pipeline_mode = #tpu.pipeline_mode<synchronous>, transform_indices = @transform_3, window_bounds = array<i64: 8, 128>}, {transform_indices = @transform_4, window_bounds = array<i64: 1, 8, 384>}, {transform_indices = @transform_5, window_bounds = array<i64: 1, 128, 384>}, {transform_indices = @transform_6, window_bounds = array<i64: 1, 128, 128>}, {transform_indices = @transform_7, window_bounds = array<i64: 1, 128, 256>}, {transform_indices = @transform_8, window_bounds = array<i64: 1, 256, 128>}, {transform_indices = @transform_9, window_bounds = array<i64: 1, 8, 128>}]} {
    %c0_i32 = arith.constant 0 : i32
    %0 = arith.cmpi eq, %arg1, %c0_i32 : i32
    %1 = arith.extui %0 : i1 to i32
    %c0_i32_0 = arith.constant 0 : i32
    %2 = arith.cmpi ne, %1, %c0_i32_0 : i32
    scf.if %2 {
      %c0_60 = arith.constant 0 : index
      %c0_61 = arith.constant 0 : index
      %c0_62 = arith.constant 0 : index
      %181 = vector.load %arg2[%c0_60, %c0_61, %c0_62] : memref<1x128x128xbf16, #tpu.memory_space<vmem>>, vector<1x128x128xbf16>
      %182 = vector.shape_cast %181 : vector<1x128x128xbf16> to vector<128x128xbf16>
      %c0_63 = arith.constant 0 : index
      %c0_64 = arith.constant 0 : index
      %183 = vector.load %arg4[%c0_63, %c0_64] : memref<128x128xbf16, #tpu.memory_space<vmem>>, vector<128x128xbf16>
      %cst_65 = arith.constant dense<0.000000e+00> : vector<128x128xf32>
      %184 = tpu.matmul %182, %183, %cst_65 {dimension_numbers = #tpu.dot_dimension_numbers<[1], [0], [0], [1], [0, 0, 1, 1], [], []>} : vector<128x128xbf16>, vector<128x128xbf16>, vector<128x128xf32> -> vector<128x128xf32>
      %c0_66 = arith.constant 0 : index
      %c0_67 = arith.constant 0 : index
      %185 = vector.load %arg5[%c0_66, %c0_67] : memref<8x128xf32, #tpu.memory_space<vmem>>, vector<1x128xf32>
      %186 = vector.broadcast %185 : vector<1x128xf32> to vector<128x128xf32>
      %187 = arith.addf %184, %186 : vector<128x128xf32>
      %c0_68 = arith.constant 0 : index
      %c0_69 = arith.constant 0 : index
      %188 = vector.load %arg3[%c0_68, %c0_69] : memref<128x128xf32, #tpu.memory_space<vmem>>, vector<128x128xf32>
      %189 = arith.addf %187, %188 : vector<128x128xf32>
      %c0_70 = arith.constant 0 : index
      %c0_71 = arith.constant 0 : index
      %190 = vector.load %arg12[%c0_70, %c0_71] : memref<128x128xf32, #tpu.memory_space<vmem>>, vector<128x128xf32>
      tpu.vector_store %arg12[%c0_70, %c0_71], %189 {strides = array<i32>} : memref<128x128xf32, #tpu.memory_space<vmem>>, vector<128x128xf32>,
    } else {
    }
    %c0 = arith.constant 0 : index
    %c0_1 = arith.constant 0 : index
    %c0_2 = arith.constant 0 : index
    %3 = vector.load %arg6[%c0, %c0_1, %c0_2] : memref<1x8x384xf32, #tpu.memory_space<vmem>>, vector<1x8x384xf32>
    %4 = vector.shape_cast %3 : vector<1x8x384xf32> to vector<8x384xf32>
    %5 = vector.extract_strided_slice %4 {offsets = [0, 0], sizes = [1, 128], strides = [1, 1]} : vector<8x384xf32> to vector<1x128xf32>
    %6 = vector.extract_strided_slice %4 {offsets = [1, 0], sizes = [1, 128], strides = [1, 1]} : vector<8x384xf32> to vector<1x128xf32>
    %7 = vector.extract_strided_slice %4 {offsets = [2, 0], sizes = [1, 384], strides = [1, 1]} : vector<8x384xf32> to vector<1x384xf32>
    %8 = vector.extract_strided_slice %4 {offsets = [3, 0], sizes = [1, 128], strides = [1, 1]} : vector<8x384xf32> to vector<1x128xf32>
    %9 = vector.extract_strided_slice %4 {offsets = [4, 0], sizes = [1, 128], strides = [1, 1]} : vector<8x384xf32> to vector<1x128xf32>
    %10 = vector.extract_strided_slice %4 {offsets = [5, 0], sizes = [1, 128], strides = [1, 1]} : vector<8x384xf32> to vector<1x128xf32>
    %11 = vector.extract_strided_slice %4 {offsets = [6, 0], sizes = [1, 256], strides = [1, 1]} : vector<8x384xf32> to vector<1x256xf32>
    %12 = vector.extract_strided_slice %4 {offsets = [7, 0], sizes = [1, 128], strides = [1, 1]} : vector<8x384xf32> to vector<1x128xf32>
    %c0_3 = arith.constant 0 : index
    %c0_4 = arith.constant 0 : index
    %13 = vector.load %arg12[%c0_3, %c0_4] : memref<128x128xf32, #tpu.memory_space<vmem>>, vector<128x128xf32>
    %cst = arith.constant dense<0.000000e+00> : vector<128xf32>
    %14 = vector.multi_reduction <add>, %13, %cst [1] : vector<128x128xf32> to vector<128xf32>
    %15 = vector.shape_cast %14 : vector<128xf32> to vector<128x1xf32>
    %cst_5 = arith.constant 1.280000e+02 : f32
    %16 = vector.broadcast %cst_5 : f32 to vector<128x1xf32>
    %17 = arith.divf %15, %16 : vector<128x1xf32>
    %18 = vector.broadcast %17 : vector<128x1xf32> to vector<128x128xf32>
    %19 = arith.subf %13, %18 : vector<128x128xf32>
    %20 = arith.mulf %19, %19 : vector<128x128xf32>
    %cst_6 = arith.constant dense<0.000000e+00> : vector<128xf32>
    %21 = vector.multi_reduction <add>, %20, %cst_6 [1] : vector<128x128xf32> to vector<128xf32>
    %22 = vector.shape_cast %21 : vector<128xf32> to vector<128x1xf32>
    %cst_7 = arith.constant 1.280000e+02 : f32
    %23 = vector.broadcast %cst_7 : f32 to vector<128x1xf32>
    %24 = arith.divf %22, %23 : vector<128x1xf32>
    %25 = vector.broadcast %17 : vector<128x1xf32> to vector<128x128xf32>
    %26 = arith.subf %13, %25 : vector<128x128xf32>
    %cst_8 = arith.constant 9.99999997E-7 : f32
    %27 = vector.broadcast %cst_8 : f32 to vector<128x1xf32>
    %28 = arith.addf %24, %27 : vector<128x1xf32>
    %29 = math.rsqrt %28 : vector<128x1xf32>
    %30 = vector.broadcast %29 : vector<128x1xf32> to vector<128x128xf32>
    %31 = arith.mulf %26, %30 : vector<128x128xf32>
    %32 = vector.broadcast %5 : vector<1x128xf32> to vector<128x128xf32>
    %33 = arith.mulf %31, %32 : vector<128x128xf32>
    %34 = vector.broadcast %6 : vector<1x128xf32> to vector<128x128xf32>
    %35 = arith.addf %33, %34 : vector<128x128xf32>
    %36 = arith.truncf %35 : vector<128x128xf32> to vector<128x128xbf16>
    %c0_9 = arith.constant 0 : index
    %c0_10 = arith.constant 0 : index
    %c0_11 = arith.constant 0 : index
    %37 = vector.load %arg7[%c0_9, %c0_10, %c0_11] : memref<1x128x384xbf16, #tpu.memory_space<vmem>>, vector<1x128x384xbf16>
    %38 = vector.shape_cast %37 : vector<1x128x384xbf16> to vector<128x384xbf16>
    %cst_12 = arith.constant dense<0.000000e+00> : vector<128x384xf32>
    %39 = tpu.matmul %36, %38, %cst_12 {dimension_numbers = #tpu.dot_dimension_numbers<[1], [0], [0], [1], [0, 0, 1, 1], [], []>} : vector<128x128xbf16>, vector<128x384xbf16>, vector<128x384xf32> -> vector<128x384xf32>
    %40 = vector.broadcast %7 : vector<1x384xf32> to vector<128x384xf32>
    %41 = arith.addf %39, %40 : vector<128x384xf32>
    %42 = arith.truncf %41 : vector<128x384xf32> to vector<128x384xbf16>
    %43 = vector.extract_strided_slice %42 {offsets = [0, 0], sizes = [128, 128], strides = [1, 1]} : vector<128x384xbf16> to vector<128x128xbf16>
    %44 = vector.shape_cast %43 : vector<128x128xbf16> to vector<8x16x128xbf16>
    %45 = vector.extract_strided_slice %42 {offsets = [0, 128], sizes = [128, 128], strides = [1, 1]} : vector<128x384xbf16> to vector<128x128xbf16>
    %46 = vector.shape_cast %45 : vector<128x128xbf16> to vector<8x16x128xbf16>
    %47 = vector.extract_strided_slice %42 {offsets = [0, 256], sizes = [128, 128], strides = [1, 1]} : vector<128x384xbf16> to vector<128x128xbf16>
    %48 = vector.shape_cast %47 : vector<128x128xbf16> to vector<8x16x128xbf16>
    %49 = vector.extract_strided_slice %44 {offsets = [0, 0, 0], sizes = [8, 16, 32], strides = [1, 1, 1]} : vector<8x16x128xbf16> to vector<8x16x32xbf16>
    %50 = vector.extract_strided_slice %46 {offsets = [0, 0, 0], sizes = [8, 16, 32], strides = [1, 1, 1]} : vector<8x16x128xbf16> to vector<8x16x32xbf16>
    %51 = vector.extract_strided_slice %48 {offsets = [0, 0, 0], sizes = [8, 16, 32], strides = [1, 1, 1]} : vector<8x16x128xbf16> to vector<8x16x32xbf16>
    %cst_13 = arith.constant dense<0.000000e+00> : vector<8x16x16xf32>
    %52 = tpu.matmul %49, %50, %cst_13 {dimension_numbers = #tpu.dot_dimension_numbers<[2], [2], [1], [1], [0, 0, 0, 1, 1, 1], [0], [0]>} : vector<8x16x32xbf16>, vector<8x16x32xbf16>, vector<8x16x16xf32> -> vector<8x16x16xf32>
    %cst_14 = arith.constant dense<0xFF800000> : vector<8x16xf32>
    %53 = vector.multi_reduction <maximumf>, %52, %cst_14 [2] : vector<8x16x16xf32> to vector<8x16xf32>
    %54 = vector.shape_cast %53 : vector<8x16xf32> to vector<8x16x1xf32>
    %55 = vector.broadcast %54 : vector<8x16x1xf32> to vector<8x16x16xf32>
    %56 = arith.subf %52, %55 : vector<8x16x16xf32>
    %57 = math.exp %56 : vector<8x16x16xf32>
    %cst_15 = arith.constant dense<0.000000e+00> : vector<8x16xf32>
    %58 = vector.multi_reduction <add>, %57, %cst_15 [2] : vector<8x16x16xf32> to vector<8x16xf32>
    %59 = vector.shape_cast %58 : vector<8x16xf32> to vector<8x16x1xf32>
    %60 = tpu.reciprocal %59 {approx = true} : vector<8x16x1xf32> -> vector<8x16x1xf32>
    %61 = vector.broadcast %60 : vector<8x16x1xf32> to vector<8x16x16xf32>
    %62 = arith.mulf %57, %61 : vector<8x16x16xf32>
    %63 = arith.truncf %62 : vector<8x16x16xf32> to vector<8x16x16xbf16>
    %cst_16 = arith.constant dense<0.000000e+00> : vector<8x16x32xf32>
    %64 = tpu.matmul %63, %51, %cst_16 {dimension_numbers = #tpu.dot_dimension_numbers<[2], [1], [1], [2], [0, 0, 0, 1, 1, 2], [0], [0]>} : vector<8x16x16xbf16>, vector<8x16x32xbf16>, vector<8x16x32xf32> -> vector<8x16x32xf32>
    %65 = vector.shape_cast %64 : vector<8x16x32xf32> to vector<128x32xf32>
    %c0_17 = arith.constant 0 : index
    %c0_18 = arith.constant 0 : index
    %66 = vector.load %arg13[%c0_17, %c0_18] : memref<128x128xf32, #tpu.memory_space<vmem>>, vector<128x32xf32>
    tpu.vector_store %arg13[%c0_17, %c0_18], %65 {strides = array<i32>} : memref<128x128xf32, #tpu.memory_space<vmem>>, vector<128x32xf32>,
    %67 = vector.extract_strided_slice %44 {offsets = [0, 0, 32], sizes = [8, 16, 32], strides = [1, 1, 1]} : vector<8x16x128xbf16> to vector<8x16x32xbf16>
    %68 = vector.extract_strided_slice %46 {offsets = [0, 0, 32], sizes = [8, 16, 32], strides = [1, 1, 1]} : vector<8x16x128xbf16> to vector<8x16x32xbf16>
    %69 = vector.extract_strided_slice %48 {offsets = [0, 0, 32], sizes = [8, 16, 32], strides = [1, 1, 1]} : vector<8x16x128xbf16> to vector<8x16x32xbf16>
    %cst_19 = arith.constant dense<0.000000e+00> : vector<8x16x16xf32>
    %70 = tpu.matmul %67, %68, %cst_19 {dimension_numbers = #tpu.dot_dimension_numbers<[2], [2], [1], [1], [0, 0, 0, 1, 1, 1], [0], [0]>} : vector<8x16x32xbf16>, vector<8x16x32xbf16>, vector<8x16x16xf32> -> vector<8x16x16xf32>
    %cst_20 = arith.constant dense<0xFF800000> : vector<8x16xf32>
    %71 = vector.multi_reduction <maximumf>, %70, %cst_20 [2] : vector<8x16x16xf32> to vector<8x16xf32>
    %72 = vector.shape_cast %71 : vector<8x16xf32> to vector<8x16x1xf32>
    %73 = vector.broadcast %72 : vector<8x16x1xf32> to vector<8x16x16xf32>
    %74 = arith.subf %70, %73 : vector<8x16x16xf32>
    %75 = math.exp %74 : vector<8x16x16xf32>
    %cst_21 = arith.constant dense<0.000000e+00> : vector<8x16xf32>
    %76 = vector.multi_reduction <add>, %75, %cst_21 [2] : vector<8x16x16xf32> to vector<8x16xf32>
    %77 = vector.shape_cast %76 : vector<8x16xf32> to vector<8x16x1xf32>
    %78 = tpu.reciprocal %77 {approx = true} : vector<8x16x1xf32> -> vector<8x16x1xf32>
    %79 = vector.broadcast %78 : vector<8x16x1xf32> to vector<8x16x16xf32>
    %80 = arith.mulf %75, %79 : vector<8x16x16xf32>
    %81 = arith.truncf %80 : vector<8x16x16xf32> to vector<8x16x16xbf16>
    %cst_22 = arith.constant dense<0.000000e+00> : vector<8x16x32xf32>
    %82 = tpu.matmul %81, %69, %cst_22 {dimension_numbers = #tpu.dot_dimension_numbers<[2], [1], [1], [2], [0, 0, 0, 1, 1, 2], [0], [0]>} : vector<8x16x16xbf16>, vector<8x16x32xbf16>, vector<8x16x32xf32> -> vector<8x16x32xf32>
    %83 = vector.shape_cast %82 : vector<8x16x32xf32> to vector<128x32xf32>
    %c0_23 = arith.constant 0 : index
    %c32 = arith.constant 32 : index
    %84 = vector.load %arg13[%c0_23, %c32] : memref<128x128xf32, #tpu.memory_space<vmem>>, vector<128x32xf32>
    tpu.vector_store %arg13[%c0_23, %c32], %83 {strides = array<i32>} : memref<128x128xf32, #tpu.memory_space<vmem>>, vector<128x32xf32>,
    %85 = vector.extract_strided_slice %44 {offsets = [0, 0, 64], sizes = [8, 16, 32], strides = [1, 1, 1]} : vector<8x16x128xbf16> to vector<8x16x32xbf16>
    %86 = vector.extract_strided_slice %46 {offsets = [0, 0, 64], sizes = [8, 16, 32], strides = [1, 1, 1]} : vector<8x16x128xbf16> to vector<8x16x32xbf16>
    %87 = vector.extract_strided_slice %48 {offsets = [0, 0, 64], sizes = [8, 16, 32], strides = [1, 1, 1]} : vector<8x16x128xbf16> to vector<8x16x32xbf16>
    %cst_24 = arith.constant dense<0.000000e+00> : vector<8x16x16xf32>
    %88 = tpu.matmul %85, %86, %cst_24 {dimension_numbers = #tpu.dot_dimension_numbers<[2], [2], [1], [1], [0, 0, 0, 1, 1, 1], [0], [0]>} : vector<8x16x32xbf16>, vector<8x16x32xbf16>, vector<8x16x16xf32> -> vector<8x16x16xf32>
    %cst_25 = arith.constant dense<0xFF800000> : vector<8x16xf32>
    %89 = vector.multi_reduction <maximumf>, %88, %cst_25 [2] : vector<8x16x16xf32> to vector<8x16xf32>
    %90 = vector.shape_cast %89 : vector<8x16xf32> to vector<8x16x1xf32>
    %91 = vector.broadcast %90 : vector<8x16x1xf32> to vector<8x16x16xf32>
    %92 = arith.subf %88, %91 : vector<8x16x16xf32>
    %93 = math.exp %92 : vector<8x16x16xf32>
    %cst_26 = arith.constant dense<0.000000e+00> : vector<8x16xf32>
    %94 = vector.multi_reduction <add>, %93, %cst_26 [2] : vector<8x16x16xf32> to vector<8x16xf32>
    %95 = vector.shape_cast %94 : vector<8x16xf32> to vector<8x16x1xf32>
    %96 = tpu.reciprocal %95 {approx = true} : vector<8x16x1xf32> -> vector<8x16x1xf32>
    %97 = vector.broadcast %96 : vector<8x16x1xf32> to vector<8x16x16xf32>
    %98 = arith.mulf %93, %97 : vector<8x16x16xf32>
    %99 = arith.truncf %98 : vector<8x16x16xf32> to vector<8x16x16xbf16>
    %cst_27 = arith.constant dense<0.000000e+00> : vector<8x16x32xf32>
    %100 = tpu.matmul %99, %87, %cst_27 {dimension_numbers = #tpu.dot_dimension_numbers<[2], [1], [1], [2], [0, 0, 0, 1, 1, 2], [0], [0]>} : vector<8x16x16xbf16>, vector<8x16x32xbf16>, vector<8x16x32xf32> -> vector<8x16x32xf32>
    %101 = vector.shape_cast %100 : vector<8x16x32xf32> to vector<128x32xf32>
    %c0_28 = arith.constant 0 : index
    %c64 = arith.constant 64 : index
    %102 = vector.load %arg13[%c0_28, %c64] : memref<128x128xf32, #tpu.memory_space<vmem>>, vector<128x32xf32>
    tpu.vector_store %arg13[%c0_28, %c64], %101 {strides = array<i32>} : memref<128x128xf32, #tpu.memory_space<vmem>>, vector<128x32xf32>,
    %103 = vector.extract_strided_slice %44 {offsets = [0, 0, 96], sizes = [8, 16, 32], strides = [1, 1, 1]} : vector<8x16x128xbf16> to vector<8x16x32xbf16>
    %104 = vector.extract_strided_slice %46 {offsets = [0, 0, 96], sizes = [8, 16, 32], strides = [1, 1, 1]} : vector<8x16x128xbf16> to vector<8x16x32xbf16>
    %105 = vector.extract_strided_slice %48 {offsets = [0, 0, 96], sizes = [8, 16, 32], strides = [1, 1, 1]} : vector<8x16x128xbf16> to vector<8x16x32xbf16>
    %cst_29 = arith.constant dense<0.000000e+00> : vector<8x16x16xf32>
    %106 = tpu.matmul %103, %104, %cst_29 {dimension_numbers = #tpu.dot_dimension_numbers<[2], [2], [1], [1], [0, 0, 0, 1, 1, 1], [0], [0]>} : vector<8x16x32xbf16>, vector<8x16x32xbf16>, vector<8x16x16xf32> -> vector<8x16x16xf32>
    %cst_30 = arith.constant dense<0xFF800000> : vector<8x16xf32>
    %107 = vector.multi_reduction <maximumf>, %106, %cst_30 [2] : vector<8x16x16xf32> to vector<8x16xf32>
    %108 = vector.shape_cast %107 : vector<8x16xf32> to vector<8x16x1xf32>
    %109 = vector.broadcast %108 : vector<8x16x1xf32> to vector<8x16x16xf32>
    %110 = arith.subf %106, %109 : vector<8x16x16xf32>
    %111 = math.exp %110 : vector<8x16x16xf32>
    %cst_31 = arith.constant dense<0.000000e+00> : vector<8x16xf32>
    %112 = vector.multi_reduction <add>, %111, %cst_31 [2] : vector<8x16x16xf32> to vector<8x16xf32>
    %113 = vector.shape_cast %112 : vector<8x16xf32> to vector<8x16x1xf32>
    %114 = tpu.reciprocal %113 {approx = true} : vector<8x16x1xf32> -> vector<8x16x1xf32>
    %115 = vector.broadcast %114 : vector<8x16x1xf32> to vector<8x16x16xf32>
    %116 = arith.mulf %111, %115 : vector<8x16x16xf32>
    %117 = arith.truncf %116 : vector<8x16x16xf32> to vector<8x16x16xbf16>
    %cst_32 = arith.constant dense<0.000000e+00> : vector<8x16x32xf32>
    %118 = tpu.matmul %117, %105, %cst_32 {dimension_numbers = #tpu.dot_dimension_numbers<[2], [1], [1], [2], [0, 0, 0, 1, 1, 2], [0], [0]>} : vector<8x16x16xbf16>, vector<8x16x32xbf16>, vector<8x16x32xf32> -> vector<8x16x32xf32>
    %119 = vector.shape_cast %118 : vector<8x16x32xf32> to vector<128x32xf32>
    %c0_33 = arith.constant 0 : index
    %c96 = arith.constant 96 : index
    %120 = vector.load %arg13[%c0_33, %c96] : memref<128x128xf32, #tpu.memory_space<vmem>>, vector<128x32xf32>
    tpu.vector_store %arg13[%c0_33, %c96], %119 {strides = array<i32>} : memref<128x128xf32, #tpu.memory_space<vmem>>, vector<128x32xf32>,
    %c0_34 = arith.constant 0 : index
    %c0_35 = arith.constant 0 : index
    %121 = vector.load %arg13[%c0_34, %c0_35] : memref<128x128xf32, #tpu.memory_space<vmem>>, vector<128x128xf32>
    %122 = arith.truncf %121 : vector<128x128xf32> to vector<128x128xbf16>
    %c0_36 = arith.constant 0 : index
    %c0_37 = arith.constant 0 : index
    %c0_38 = arith.constant 0 : index
    %123 = vector.load %arg8[%c0_36, %c0_37, %c0_38] : memref<1x128x128xbf16, #tpu.memory_space<vmem>>, vector<1x128x128xbf16>
    %124 = vector.shape_cast %123 : vector<1x128x128xbf16> to vector<128x128xbf16>
    %cst_39 = arith.constant dense<0.000000e+00> : vector<128x128xf32>
    %125 = tpu.matmul %122, %124, %cst_39 {dimension_numbers = #tpu.dot_dimension_numbers<[1], [0], [0], [1], [0, 0, 1, 1], [], []>} : vector<128x128xbf16>, vector<128x128xbf16>, vector<128x128xf32> -> vector<128x128xf32>
    %126 = arith.addf %13, %125 : vector<128x128xf32>
    %127 = vector.broadcast %8 : vector<1x128xf32> to vector<128x128xf32>
    %128 = arith.addf %126, %127 : vector<128x128xf32>
    %cst_40 = arith.constant dense<0.000000e+00> : vector<128xf32>
    %129 = vector.multi_reduction <add>, %128, %cst_40 [1] : vector<128x128xf32> to vector<128xf32>
    %130 = vector.shape_cast %129 : vector<128xf32> to vector<128x1xf32>
    %cst_41 = arith.constant 1.280000e+02 : f32
    %131 = vector.broadcast %cst_41 : f32 to vector<128x1xf32>
    %132 = arith.divf %130, %131 : vector<128x1xf32>
    %133 = vector.broadcast %132 : vector<128x1xf32> to vector<128x128xf32>
    %134 = arith.subf %128, %133 : vector<128x128xf32>
    %135 = arith.mulf %134, %134 : vector<128x128xf32>
    %cst_42 = arith.constant dense<0.000000e+00> : vector<128xf32>
    %136 = vector.multi_reduction <add>, %135, %cst_42 [1] : vector<128x128xf32> to vector<128xf32>
    %137 = vector.shape_cast %136 : vector<128xf32> to vector<128x1xf32>
    %cst_43 = arith.constant 1.280000e+02 : f32
    %138 = vector.broadcast %cst_43 : f32 to vector<128x1xf32>
    %139 = arith.divf %137, %138 : vector<128x1xf32>
    %140 = vector.broadcast %132 : vector<128x1xf32> to vector<128x128xf32>
    %141 = arith.subf %128, %140 : vector<128x128xf32>
    %cst_44 = arith.constant 9.99999997E-7 : f32
    %142 = vector.broadcast %cst_44 : f32 to vector<128x1xf32>
    %143 = arith.addf %139, %142 : vector<128x1xf32>
    %144 = math.rsqrt %143 : vector<128x1xf32>
    %145 = vector.broadcast %144 : vector<128x1xf32> to vector<128x128xf32>
    %146 = arith.mulf %141, %145 : vector<128x128xf32>
    %147 = vector.broadcast %9 : vector<1x128xf32> to vector<128x128xf32>
    %148 = arith.mulf %146, %147 : vector<128x128xf32>
    %149 = vector.broadcast %10 : vector<1x128xf32> to vector<128x128xf32>
    %150 = arith.addf %148, %149 : vector<128x128xf32>
    %151 = arith.truncf %150 : vector<128x128xf32> to vector<128x128xbf16>
    %c0_45 = arith.constant 0 : index
    %c0_46 = arith.constant 0 : index
    %c0_47 = arith.constant 0 : index
    %152 = vector.load %arg9[%c0_45, %c0_46, %c0_47] : memref<1x128x256xbf16, #tpu.memory_space<vmem>>, vector<1x128x256xbf16>
    %153 = vector.shape_cast %152 : vector<1x128x256xbf16> to vector<128x256xbf16>
    %cst_48 = arith.constant dense<0.000000e+00> : vector<128x256xf32>
    %154 = tpu.matmul %151, %153, %cst_48 {dimension_numbers = #tpu.dot_dimension_numbers<[1], [0], [0], [1], [0, 0, 1, 1], [], []>} : vector<128x128xbf16>, vector<128x256xbf16>, vector<128x256xf32> -> vector<128x256xf32>
    %155 = vector.broadcast %11 : vector<1x256xf32> to vector<128x256xf32>
    %156 = arith.addf %154, %155 : vector<128x256xf32>
    %157 = arith.mulf %156, %156 : vector<128x256xf32>
    %158 = arith.mulf %156, %157 : vector<128x256xf32>
    %cst_49 = arith.constant 4.471500e-02 : f32
    %159 = vector.broadcast %cst_49 : f32 to vector<128x256xf32>
    %160 = arith.mulf %159, %158 : vector<128x256xf32>
    %161 = arith.addf %156, %160 : vector<128x256xf32>
    %cst_50 = arith.constant 0.797884583 : f32
    %162 = vector.broadcast %cst_50 : f32 to vector<128x256xf32>
    %163 = arith.mulf %162, %161 : vector<128x256xf32>
    %164 = math.tanh %163 : vector<128x256xf32>
    %cst_51 = arith.constant 1.000000e+00 : f32
    %165 = vector.broadcast %cst_51 : f32 to vector<128x256xf32>
    %166 = arith.addf %165, %164 : vector<128x256xf32>
    %cst_52 = arith.constant 5.000000e-01 : f32
    %167 = vector.broadcast %cst_52 : f32 to vector<128x256xf32>
    %168 = arith.mulf %167, %166 : vector<128x256xf32>
    %169 = arith.mulf %156, %168 : vector<128x256xf32>
    %170 = arith.truncf %169 : vector<128x256xf32> to vector<128x256xbf16>
    %c0_53 = arith.constant 0 : index
    %c0_54 = arith.constant 0 : index
    %c0_55 = arith.constant 0 : index
    %171 = vector.load %arg10[%c0_53, %c0_54, %c0_55] : memref<1x256x128xbf16, #tpu.memory_space<vmem>>, vector<1x256x128xbf16>
    %172 = vector.shape_cast %171 : vector<1x256x128xbf16> to vector<256x128xbf16>
    %cst_56 = arith.constant dense<0.000000e+00> : vector<128x128xf32>
    %173 = tpu.matmul %170, %172, %cst_56 {dimension_numbers = #tpu.dot_dimension_numbers<[1], [0], [0], [1], [0, 0, 1, 1], [], []>} : vector<128x256xbf16>, vector<256x128xbf16>, vector<128x128xf32> -> vector<128x128xf32>
    %174 = vector.broadcast %12 : vector<1x128xf32> to vector<128x128xf32>
    %175 = arith.addf %173, %174 : vector<128x128xf32>
    %176 = arith.addf %128, %175 : vector<128x128xf32>
    %c0_57 = arith.constant 0 : index
    %c0_58 = arith.constant 0 : index
    %177 = vector.load %arg12[%c0_57, %c0_58] : memref<128x128xf32, #tpu.memory_space<vmem>>, vector<128x128xf32>
    tpu.vector_store %arg12[%c0_57, %c0_58], %176 {strides = array<i32>} : memref<128x128xf32, #tpu.memory_space<vmem>>, vector<128x128xf32>,
    %c1_i32 = arith.constant 1 : i32
    %178 = arith.cmpi eq, %arg1, %c1_i32 : i32
    %179 = arith.extui %178 : i1 to i32
    %c0_i32_59 = arith.constant 0 : i32
    %180 = arith.cmpi ne, %179, %c0_i32_59 : i32
    scf.if %180 {
      %c1 = arith.constant 1 : index
      %c0_60 = arith.constant 0 : index
      %181 = vector.load %arg5[%c1, %c0_60] : memref<8x128xf32, #tpu.memory_space<vmem>>, vector<1x128xf32>
      %c2 = arith.constant 2 : index
      %c0_61 = arith.constant 0 : index
      %182 = vector.load %arg5[%c2, %c0_61] : memref<8x128xf32, #tpu.memory_space<vmem>>, vector<1x128xf32>
      %cst_62 = arith.constant dense<0.000000e+00> : vector<128xf32>
      %183 = vector.multi_reduction <add>, %176, %cst_62 [1] : vector<128x128xf32> to vector<128xf32>
      %184 = vector.shape_cast %183 : vector<128xf32> to vector<128x1xf32>
      %cst_63 = arith.constant 1.280000e+02 : f32
      %185 = vector.broadcast %cst_63 : f32 to vector<128x1xf32>
      %186 = arith.divf %184, %185 : vector<128x1xf32>
      %187 = vector.broadcast %186 : vector<128x1xf32> to vector<128x128xf32>
      %188 = arith.subf %176, %187 : vector<128x128xf32>
      %189 = arith.mulf %188, %188 : vector<128x128xf32>
      %cst_64 = arith.constant dense<0.000000e+00> : vector<128xf32>
      %190 = vector.multi_reduction <add>, %189, %cst_64 [1] : vector<128x128xf32> to vector<128xf32>
      %191 = vector.shape_cast %190 : vector<128xf32> to vector<128x1xf32>
      %cst_65 = arith.constant 1.280000e+02 : f32
      %192 = vector.broadcast %cst_65 : f32 to vector<128x1xf32>
      %193 = arith.divf %191, %192 : vector<128x1xf32>
      %194 = vector.broadcast %186 : vector<128x1xf32> to vector<128x128xf32>
      %195 = arith.subf %176, %194 : vector<128x128xf32>
      %cst_66 = arith.constant 9.99999997E-7 : f32
      %196 = vector.broadcast %cst_66 : f32 to vector<128x1xf32>
      %197 = arith.addf %193, %196 : vector<128x1xf32>
      %198 = math.rsqrt %197 : vector<128x1xf32>
      %199 = vector.broadcast %198 : vector<128x1xf32> to vector<128x128xf32>
      %200 = arith.mulf %195, %199 : vector<128x128xf32>
      %201 = vector.broadcast %181 : vector<1x128xf32> to vector<128x128xf32>
      %202 = arith.mulf %200, %201 : vector<128x128xf32>
      %203 = vector.broadcast %182 : vector<1x128xf32> to vector<128x128xf32>
      %204 = arith.addf %202, %203 : vector<128x128xf32>
      %205 = vector.shape_cast %204 : vector<128x128xf32> to vector<8x16x128xf32>
      %cst_67 = arith.constant dense<0.000000e+00> : vector<8x128xf32>
      %206 = vector.multi_reduction <add>, %205, %cst_67 [1] : vector<8x16x128xf32> to vector<8x128xf32>
      %cst_68 = arith.constant 1.600000e+01 : f32
      %207 = vector.broadcast %cst_68 : f32 to vector<8x128xf32>
      %208 = arith.divf %206, %207 : vector<8x128xf32>
      %c0_69 = arith.constant 0 : index
      %c0_70 = arith.constant 0 : index
      %c0_71 = arith.constant 0 : index
      %209 = vector.load %arg11[%c0_69, %c0_70, %c0_71] : memref<1x8x128xf32, #tpu.memory_space<vmem>>, vector<1x8x128xf32>
      %210 = vector.shape_cast %209 : vector<1x8x128xf32> to vector<8x128xf32>
      %211 = vector.shape_cast %208 : vector<8x128xf32> to vector<1x8x128xf32>
      tpu.vector_store %arg11[%c0_69, %c0_70, %c0_71], %211 {strides = array<i32>} : memref<1x8x128xf32, #tpu.memory_space<vmem>>, vector<1x8x128xf32>,
    } else {
    }
    return
  }
  func.func @transform_0(%arg0: i32, %arg1: i32) -> (i32, i32, i32) {
    %c0_i32 = arith.constant 0 : i32
    %c0_i32_0 = arith.constant 0 : i32
    %c0_i32_1 = arith.constant 0 : i32
    return %arg0, %c0_i32, %c0_i32_0 : i32, i32, i32
  }
  func.func @transform_1(%arg0: i32, %arg1: i32) -> (i32, i32) {
    %c0_i32 = arith.constant 0 : i32
    %c0_i32_0 = arith.constant 0 : i32
    %c0_i32_1 = arith.constant 0 : i32
    return %c0_i32, %c0_i32_0 : i32, i32
  }
  func.func @transform_2(%arg0: i32, %arg1: i32) -> (i32, i32) {
    %c0_i32 = arith.constant 0 : i32
    %c0_i32_0 = arith.constant 0 : i32
    %c0_i32_1 = arith.constant 0 : i32
    return %c0_i32, %c0_i32_0 : i32, i32
  }
  func.func @transform_3(%arg0: i32, %arg1: i32) -> (i32, i32) {
    %c0_i32 = arith.constant 0 : i32
    %c0_i32_0 = arith.constant 0 : i32
    %c0_i32_1 = arith.constant 0 : i32
    return %c0_i32, %c0_i32_0 : i32, i32
  }
  func.func @transform_4(%arg0: i32, %arg1: i32) -> (i32, i32, i32) {
    %c0_i32 = arith.constant 0 : i32
    %c0_i32_0 = arith.constant 0 : i32
    %c0_i32_1 = arith.constant 0 : i32
    return %arg1, %c0_i32, %c0_i32_0 : i32, i32, i32
  }
  func.func @transform_5(%arg0: i32, %arg1: i32) -> (i32, i32, i32) {
    %c0_i32 = arith.constant 0 : i32
    %c0_i32_0 = arith.constant 0 : i32
    %c0_i32_1 = arith.constant 0 : i32
    return %arg1, %c0_i32, %c0_i32_0 : i32, i32, i32
  }
  func.func @transform_6(%arg0: i32, %arg1: i32) -> (i32, i32, i32) {
    %c0_i32 = arith.constant 0 : i32
    %c0_i32_0 = arith.constant 0 : i32
    %c0_i32_1 = arith.constant 0 : i32
    return %arg1, %c0_i32, %c0_i32_0 : i32, i32, i32
  }
  func.func @transform_7(%arg0: i32, %arg1: i32) -> (i32, i32, i32) {
    %c0_i32 = arith.constant 0 : i32
    %c0_i32_0 = arith.constant 0 : i32
    %c0_i32_1 = arith.constant 0 : i32
    return %arg1, %c0_i32, %c0_i32_0 : i32, i32, i32
  }
  func.func @transform_8(%arg0: i32, %arg1: i32) -> (i32, i32, i32) {
    %c0_i32 = arith.constant 0 : i32
    %c0_i32_0 = arith.constant 0 : i32
    %c0_i32_1 = arith.constant 0 : i32
    return %arg1, %c0_i32, %c0_i32_0 : i32, i32, i32
  }
  func.func @transform_9(%arg0: i32, %arg1: i32) -> (i32, i32, i32) {
    %c0_i32 = arith.constant 0 : i32
    %c0_i32_0 = arith.constant 0 : i32
    %c0_i32_1 = arith.constant 0 : i32
    return %arg0, %c0_i32, %c0_i32_0 : i32, i32, i32
  }
}

</mosaic_0001>

<llo_original>
// kernel: vit_model_forward.1
$region0: #{vit_model_forward.1}
  #allocation0 [shape = 'u32[]', space=smem, size = 0x4, offset = 0x4, fixed_abs, tag = 'smem constant byte address 0x4 - core index']
  #allocation1 [shape = 'u32[144,128]{1,0:T(1,128)}', space=vmem, size = 0x12000, scoped, tag = 'internal scratch']
  #allocation2 [shape = 'f32[128,128]{1,0:T(8,128)}', space=vmem, size = 0x10000, scoped, tag = 'scratch operand']
  #allocation3 [shape = 'f32[128,128]{1,0:T(8,128)}', space=vmem, size = 0x10000, scoped, tag = 'scratch operand']
  %s0 = inlined_call_operand.vmem [shape: bf16[1,128,128], index: 0, kind: input, shape index: {}]
  %s1 = inlined_call_operand.vmem [shape: f32[128,128], index: 1, kind: input, shape index: {}]
  %s2 = inlined_call_operand.vmem [shape: bf16[128,128], index: 2, kind: input, shape index: {}]
  %s3 = inlined_call_operand.vmem [shape: f32[8,128], index: 3, kind: input, shape index: {}]
  %s4 = inlined_call_operand.vmem [shape: f32[2,8,384], index: 4, kind: input, shape index: {}]
  %s5 = inlined_call_operand.vmem [shape: bf16[2,128,384], index: 5, kind: input, shape index: {}]
  %s6 = inlined_call_operand.vmem [shape: bf16[2,128,128], index: 6, kind: input, shape index: {}]
  %s7 = inlined_call_operand.vmem [shape: bf16[2,128,256], index: 7, kind: input, shape index: {}]
  %s8 = inlined_call_operand.vmem [shape: bf16[2,256,128], index: 8, kind: input, shape index: {}]
  %s9 = inlined_call_operand.vmem [shape: f32[1,8,128], index: 9, kind: output, shape index: {}]
  %s10 = sld [smem:[#allocation0]]
  $region77: #{vit_model_forward.1} parent=0
    _
  %s12 = ssub.s32 1, %s10
  %s13 = scalar_select 0, %s12, %s10
  loop: start=0, step=1, limit=4
  $region2: #{vit_model_forward.1} parent=0 // loop_pre_header
    _
  $region3: #{vit_model_forward.1} parent=0 // loop_header
    %s15 = sphi 0, %s19
    %p16 = scmp.ge.s32.totalorder %s15, 4
    %s22 = sphi 0, %s34
    %s23 = sphi 0, %s30
    %s24 = sphi 0, %s22
    %s25 = sphi 0, %s23
    %s26 = sphi 0, %s24
    %s27 = sphi 0, %s25
    %s37 = sphi 0, %s39
    %s40 = sphi 0, %s37
    %s41 = sphi 0, %s40
    %s57 = sphi 0, %s41
    %s61 = sphi 0, %s61
    %s63 = sphi 0, %s61
    %s64 = sphi 0, %s63
    %s78 = sphi 0, %s64
    %s82 = sphi 0, %s82
    %s84 = sphi 0, %s82
    %s85 = sphi 0, %s84
    %s99 = sphi 0, %s85
    %s103 = sphi 0, %s103
    %s105 = sphi 0, %s103
    %s106 = sphi 0, %s105
    %s120 = sphi 0, %s106
    %s126 = sphi 0, %s128
    %s129 = sphi 0, %s126
    %s130 = sphi 0, %s129
    %s146 = sphi 0, %s130
    %s152 = sphi 0, %s154
    %s155 = sphi 0, %s152
    %s156 = sphi 0, %s155
    %s172 = sphi 0, %s156
    %s178 = sphi 0, %s180
    %s181 = sphi 0, %s178
    %s182 = sphi 0, %s181
    %s198 = sphi 0, %s182
    %s204 = sphi 0, %s206
    %s207 = sphi 0, %s204
    %s208 = sphi 0, %s207
    %s224 = sphi 0, %s208
    %s230 = sphi 0, %s232
    %s233 = sphi 0, %s230
    %s234 = sphi 0, %s233
    %s250 = sphi 0, %s234
    %s256 = sphi 0, %s258
    %s259 = sphi 0, %s256
    %s260 = sphi 0, %s259
    %s276 = sphi 0, %s260
  $region4: #{vit_model_forward.1} parent=0 // loop_header_branch
    %18 = sbr.rel (%p16) target = $region8
  $region5: #{vit_model_forward.1} parent=0 // loop_body
    %s20 = ssub.s32 %s15, 1
    %s21 = ssub.s32 %s15, 2
    %s28 = sadd.s32 1, %s23
    %p29 = scmp.ge.s32.totalorder %s28, 2
    %s30 = scalar_select %p29, 0, %s28
    %s31 = sadd.s32 1, %s22
    %s32 = scalar_select %p29, %s31, %s22
    %p33 = scmp.ge.s32.totalorder %s32, 1
    %s34 = scalar_select %p33, 0, %s32
    %s35 = ssub.s32 %s22, %s34
    %p36 = scmp.eq.s32.totalorder %s35, 0
    %s38 = sadd.s32 %s37, 1
    %s39 = scalar_select %p36, %s37, %s38
    %p42 = pneg %p36
    %p43 = scmp.eq.s32.totalorder %s15, 1
    %p44 = por %p42, %p43
    %p45 = scmp.ne.s32.totalorder %s37, %s40
    %p46 = scmp.eq.s32.totalorder %s15, 0
    %p47 = por %p45, %p46
    %p48 = scmp.ne.s32.totalorder %s37, %s40
    %p49 = scmp.eq.s32.totalorder %s20, 1
    %p50 = por %p48, %p49
    %p51 = scmp.ne.s32.totalorder %s40, %s41
    %p52 = scmp.eq.s32.totalorder %s20, 0
    %p53 = por %p51, %p52
    %p54 = scmp.ne.s32.totalorder %s40, %s41
    %p55 = scmp.eq.s32.totalorder %s21, 1
    %p56 = por %p54, %p55
    %p58 = scmp.ne.s32.totalorder %s41, %s57
    %p59 = scmp.eq.s32.totalorder %s21, 0
    %p60 = por %p58, %p59
    %s62 = sadd.s32 %s61, 1
    %p65 = scmp.eq.s32.totalorder %s15, 1
    %p66 = scmp.ne.s32.totalorder %s61, %s63
    %p67 = scmp.eq.s32.totalorder %s15, 0
    %p68 = por %p66, %p67
    %p69 = scmp.ne.s32.totalorder %s61, %s63
    %p70 = scmp.eq.s32.totalorder %s20, 1
    %p71 = por %p69, %p70
    %p72 = scmp.ne.s32.totalorder %s63, %s64
    %p73 = scmp.eq.s32.totalorder %s20, 0
    %p74 = por %p72, %p73
    %p75 = scmp.ne.s32.totalorder %s63, %s64
    %p76 = scmp.eq.s32.totalorder %s21, 1
    %p77 = por %p75, %p76
    %p79 = scmp.ne.s32.totalorder %s64, %s78
    %p80 = scmp.eq.s32.totalorder %s21, 0
    %p81 = por %p79, %p80
    %s83 = sadd.s32 %s82, 1
    %p86 = scmp.eq.s32.totalorder %s15, 1
    %p87 = scmp.ne.s32.totalorder %s82, %s84
    %p88 = scmp.eq.s32.totalorder %s15, 0
    %p89 = por %p87, %p88
    %p90 = scmp.ne.s32.totalorder %s82, %s84
    %p91 = scmp.eq.s32.totalorder %s20, 1
    %p92 = por %p90, %p91
    %p93 = scmp.ne.s32.totalorder %s84, %s85
    %p94 = scmp.eq.s32.totalorder %s20, 0
    %p95 = por %p93, %p94
    %p96 = scmp.ne.s32.totalorder %s84, %s85
    %p97 = scmp.eq.s32.totalorder %s21, 1
    %p98 = por %p96, %p97
    %p100 = scmp.ne.s32.totalorder %s85, %s99
    %p101 = scmp.eq.s32.totalorder %s21, 0
    %p102 = por %p100, %p101
    %s104 = sadd.s32 %s103, 1
    %p107 = scmp.eq.s32.totalorder %s15, 1
    %p108 = scmp.ne.s32.totalorder %s103, %s105
    %p109 = scmp.eq.s32.totalorder %s15, 0
    %p110 = por %p108, %p109
    %p111 = scmp.ne.s32.totalorder %s103, %s105
    %p112 = scmp.eq.s32.totalorder %s20, 1
    %p113 = por %p111, %p112
    %p114 = scmp.ne.s32.totalorder %s105, %s106
    %p115 = scmp.eq.s32.totalorder %s20, 0
    %p116 = por %p114, %p115
    %p117 = scmp.ne.s32.totalorder %s105, %s106
    %p118 = scmp.eq.s32.totalorder %s21, 1
    %p119 = por %p117, %p118
    %p121 = scmp.ne.s32.totalorder %s106, %s120
    %p122 = scmp.eq.s32.totalorder %s21, 0
    %p123 = por %p121, %p122
    %s124 = ssub.s32 %s23, %s30
    %p125 = scmp.eq.s32.totalorder %s124, 0
    %s127 = sadd.s32 %s126, 1
    %s128 = scalar_select %p125, %s126, %s127
    %p131 = pneg %p125
    %p132 = scmp.eq.s32.totalorder %s15, 1
    %p133 = por %p131, %p132
    %p134 = scmp.ne.s32.totalorder %s126, %s129
    %p135 = scmp.eq.s32.totalorder %s15, 0
    %p136 = por %p134, %p135
    %p137 = scmp.ne.s32.totalorder %s126, %s129
    %p138 = scmp.eq.s32.totalorder %s20, 1
    %p139 = por %p137, %p138
    %p140 = scmp.ne.s32.totalorder %s129, %s130
    %p141 = scmp.eq.s32.totalorder %s20, 0
    %p142 = por %p140, %p141
    %p143 = scmp.ne.s32.totalorder %s129, %s130
    %p144 = scmp.eq.s32.totalorder %s21, 1
    %p145 = por %p143, %p144
    %p147 = scmp.ne.s32.totalorder %s130, %s146
    %p148 = scmp.eq.s32.totalorder %s21, 0
    %p149 = por %p147, %p148
    %s150 = ssub.s32 %s23, %s30
    %p151 = scmp.eq.s32.totalorder %s150, 0
    %s153 = sadd.s32 %s152, 1
    %s154 = scalar_select %p151, %s152, %s153
    %p157 = pneg %p151
    %p158 = scmp.eq.s32.totalorder %s15, 1
    %p159 = por %p157, %p158
    %p160 = scmp.ne.s32.totalorder %s152, %s155
    %p161 = scmp.eq.s32.totalorder %s15, 0
    %p162 = por %p160, %p161
    %p163 = scmp.ne.s32.totalorder %s152, %s155
    %p164 = scmp.eq.s32.totalorder %s20, 1
    %p165 = por %p163, %p164
    %p166 = scmp.ne.s32.totalorder %s155, %s156
    %p167 = scmp.eq.s32.totalorder %s20, 0
    %p168 = por %p166, %p167
    %p169 = scmp.ne.s32.totalorder %s155, %s156
    %p170 = scmp.eq.s32.totalorder %s21, 1
    %p171 = por %p169, %p170
    %p173 = scmp.ne.s32.totalorder %s156, %s172
    %p174 = scmp.eq.s32.totalorder %s21, 0
    %p175 = por %p173, %p174
    %s176 = ssub.s32 %s23, %s30
    %p177 = scmp.eq.s32.totalorder %s176, 0
    %s179 = sadd.s32 %s178, 1
    %s180 = scalar_select %p177, %s178, %s179
    %p183 = pneg %p177
    %p184 = scmp.eq.s32.totalorder %s15, 1
    %p185 = por %p183, %p184
    %p186 = scmp.ne.s32.totalorder %s178, %s181
    %p187 = scmp.eq.s32.totalorder %s15, 0
    %p188 = por %p186, %p187
    %p189 = scmp.ne.s32.totalorder %s178, %s181
    %p190 = scmp.eq.s32.totalorder %s20, 1
    %p191 = por %p189, %p190
    %p192 = scmp.ne.s32.totalorder %s181, %s182
    %p193 = scmp.eq.s32.totalorder %s20, 0
    %p194 = por %p192, %p193
    %p195 = scmp.ne.s32.totalorder %s181, %s182
    %p196 = scmp.eq.s32.totalorder %s21, 1
    %p197 = por %p195, %p196
    %p199 = scmp.ne.s32.totalorder %s182, %s198
    %p200 = scmp.eq.s32.totalorder %s21, 0
    %p201 = por %p199, %p200
    %s202 = ssub.s32 %s23, %s30
    %p203 = scmp.eq.s32.totalorder %s202, 0
    %s205 = sadd.s32 %s204, 1
    %s206 = scalar_select %p203, %s204, %s205
    %p209 = pneg %p203
    %p210 = scmp.eq.s32.totalorder %s15, 1
    %p211 = por %p209, %p210
    %p212 = scmp.ne.s32.totalorder %s204, %s207
    %p213 = scmp.eq.s32.totalorder %s15, 0
    %p214 = por %p212, %p213
    %p215 = scmp.ne.s32.totalorder %s204, %s207
    %p216 = scmp.eq.s32.totalorder %s20, 1
    %p217 = por %p215, %p216
    %p218 = scmp.ne.s32.totalorder %s207, %s208
    %p219 = scmp.eq.s32.totalorder %s20, 0
    %p220 = por %p218, %p219
    %p221 = scmp.ne.s32.totalorder %s207, %s208
    %p222 = scmp.eq.s32.totalorder %s21, 1
    %p223 = por %p221, %p222
    %p225 = scmp.ne.s32.totalorder %s208, %s224
    %p226 = scmp.eq.s32.totalorder %s21, 0
    %p227 = por %p225, %p226
    %s228 = ssub.s32 %s23, %s30
    %p229 = scmp.eq.s32.totalorder %s228, 0
    %s231 = sadd.s32 %s230, 1
    %s232 = scalar_select %p229, %s230, %s231
    %p235 = pneg %p229
    %p236 = scmp.eq.s32.totalorder %s15, 1
    %p237 = por %p235, %p236
    %p238 = scmp.ne.s32.totalorder %s230, %s233
    %p239 = scmp.eq.s32.totalorder %s15, 0
    %p240 = por %p238, %p239
    %p241 = scmp.ne.s32.totalorder %s230, %s233
    %p242 = scmp.eq.s32.totalorder %s20, 1
    %p243 = por %p241, %p242
    %p244 = scmp.ne.s32.totalorder %s233, %s234
    %p245 = scmp.eq.s32.totalorder %s20, 0
    %p246 = por %p244, %p245
    %p247 = scmp.ne.s32.totalorder %s233, %s234
    %p248 = scmp.eq.s32.totalorder %s21, 1
    %p249 = por %p247, %p248
    %p251 = scmp.ne.s32.totalorder %s234, %s250
    %p252 = scmp.eq.s32.totalorder %s21, 0
    %p253 = por %p251, %p252
    %s254 = ssub.s32 %s22, %s34
    %p255 = scmp.eq.s32.totalorder %s254, 0
    %s257 = sadd.s32 %s256, 1
    %s258 = scalar_select %p255, %s256, %s257
    %p261 = pneg %p255
    %p262 = scmp.eq.s32.totalorder %s15, 1
    %p263 = por %p261, %p262
    %p264 = scmp.ne.s32.totalorder %s256, %s259
    %p265 = scmp.eq.s32.totalorder %s15, 0
    %p266 = por %p264, %p265
    %p267 = scmp.ne.s32.totalorder %s256, %s259
    %p268 = scmp.eq.s32.totalorder %s20, 1
    %p269 = por %p267, %p268
    %p270 = scmp.ne.s32.totalorder %s259, %s260
    %p271 = scmp.eq.s32.totalorder %s20, 0
    %p272 = por %p270, %p271
    %p273 = scmp.ne.s32.totalorder %s259, %s260
    %p274 = scmp.eq.s32.totalorder %s21, 1
    %p275 = por %p273, %p274
    %p277 = scmp.ne.s32.totalorder %s260, %s276
    %p278 = scmp.eq.s32.totalorder %s21, 0
    %p279 = por %p277, %p278
    %p280 = scmp.le.s32.totalorder 1, %s15
    %p281 = scmp.lt.s32.totalorder %s15, 3
    %p282 = pnand %p280, %p281
    %p283 = pneg %p282
    // Predicated region
    $region9: #{vit_model_forward.1} parent=5 // pred_check
      _
    $region10: #{vit_model_forward.1} parent=5 // pred_check_branch
      %285 = sbr.rel (%p282) target = $region12
    $region11: #{vit_model_forward.1} parent=5 // pred_region
      %s286 = ssub.s32 %s15, 1
      // Predicated region
      $region13: #{vit_model_forward.1} parent=11 // pred_check
        %p287 = pneg %p53
      $region14: #{vit_model_forward.1} parent=11 // pred_check_branch
        %289 = sbr.rel (%p287) target = $region16
      $region15: #{vit_model_forward.1} parent=11 // pred_region
        %p290 = scmp.lt.s32.totalorder %s24, 0
        %s291 = scalar_select %p290, %s24, 0
        %s292 = smul.addr %s291, 16
        %s293 = smul.addr %s292, 4
        %s294 = scalar_lea.vmem %s0, %s293
      $region16: #{vit_model_forward.1} parent=11 // pred_fallthru
        _
      // Predicated region
      $region17: #{vit_model_forward.1} parent=11 // pred_check
        %p295 = pneg %p74
      $region18: #{vit_model_forward.1} parent=11 // pred_check_branch
        %297 = sbr.rel (%p295) target = $region20
      $region19: #{vit_model_forward.1} parent=11 // pred_region
        _
      $region20: #{vit_model_forward.1} parent=11 // pred_fallthru
        _
      // Predicated region
      $region21: #{vit_model_forward.1} parent=11 // pred_check
        %p298 = pneg %p95
      $region22: #{vit_model_forward.1} parent=11 // pred_check_branch
        %300 = sbr.rel (%p298) target = $region24
      $region23: #{vit_model_forward.1} parent=11 // pred_region
        _
      $region24: #{vit_model_forward.1} parent=11 // pred_fallthru
        _
      // Predicated region
      $region25: #{vit_model_forward.1} parent=11 // pred_check
        %p301 = pneg %p116
      $region26: #{vit_model_forward.1} parent=11 // pred_check_branch
        %303 = sbr.rel (%p301) target = $region28
      $region27: #{vit_model_forward.1} parent=11 // pred_region
        _
      $region28: #{vit_model_forward.1} parent=11 // pred_fallthru
        _
    $region12: #{vit_model_forward.1} parent=5 // pred_fallthru
      _
    %p304 = scmp.lt.s32.totalorder %s15, 2
    // Predicated region
    $region29: #{vit_model_forward.1} parent=5 // pred_check
      %p305 = pneg %p304
    $region30: #{vit_model_forward.1} parent=5 // pred_check_branch
      %307 = sbr.rel (%p305) target = $region32
    $region31: #{vit_model_forward.1} parent=5 // pred_region
      // Predicated region
      $region33: #{vit_model_forward.1} parent=31 // pred_check
        %p308 = pneg %p136
      $region34: #{vit_model_forward.1} parent=31 // pred_check_branch
        %310 = sbr.rel (%p308) target = $region36
      $region35: #{vit_model_forward.1} parent=31 // pred_region
        %p311 = scmp.lt.s32.totalorder %s23, 1
        %s312 = scalar_select %p311, %s23, 1
        %s313 = smul.addr %s312, 3
        %s314 = smul.addr %s313, 8
        %s315 = scalar_lea.vmem %s4, %s314
      $region36: #{vit_model_forward.1} parent=31 // pred_fallthru
        _
      // Predicated region
      $region37: #{vit_model_forward.1} parent=31 // pred_check
        %p316 = pneg %p162
      $region38: #{vit_model_forward.1} parent=31 // pred_check_branch
        %318 = sbr.rel (%p316) target = $region40
      $region39: #{vit_model_forward.1} parent=31 // pred_region
        %p319 = scmp.lt.s32.totalorder %s23, 1
        %s320 = scalar_select %p319, %s23, 1
        %s321 = smul.addr %s320, 48
        %s322 = smul.addr %s321, 4
        %s323 = scalar_lea.vmem %s5, %s322
      $region40: #{vit_model_forward.1} parent=31 // pred_fallthru
        _
      // Predicated region
      $region41: #{vit_model_forward.1} parent=31 // pred_check
        %p324 = pneg %p188
      $region42: #{vit_model_forward.1} parent=31 // pred_check_branch
        %326 = sbr.rel (%p324) target = $region44
      $region43: #{vit_model_forward.1} parent=31 // pred_region
        %p327 = scmp.lt.s32.totalorder %s23, 1
        %s328 = scalar_select %p327, %s23, 1
        %s329 = smul.addr %s328, 16
        %s330 = smul.addr %s329, 4
        %s331 = scalar_lea.vmem %s6, %s330
      $region44: #{vit_model_forward.1} parent=31 // pred_fallthru
        _
      // Predicated region
      $region45: #{vit_model_forward.1} parent=31 // pred_check
        %p332 = pneg %p214
      $region46: #{vit_model_forward.1} parent=31 // pred_check_branch
        %334 = sbr.rel (%p332) target = $region48
      $region47: #{vit_model_forward.1} parent=31 // pred_region
        %p335 = scmp.lt.s32.totalorder %s23, 1
        %s336 = scalar_select %p335, %s23, 1
        %s337 = smul.addr %s336, 32
        %s338 = smul.addr %s337, 4
        %s339 = scalar_lea.vmem %s7, %s338
      $region48: #{vit_model_forward.1} parent=31 // pred_fallthru
        _
      // Predicated region
      $region49: #{vit_model_forward.1} parent=31 // pred_check
        %p340 = pneg %p240
      $region50: #{vit_model_forward.1} parent=31 // pred_check_branch
        %342 = sbr.rel (%p340) target = $region52
      $region51: #{vit_model_forward.1} parent=31 // pred_region
        %p343 = scmp.lt.s32.totalorder %s23, 1
        %s344 = scalar_select %p343, %s23, 1
        %s345 = smul.addr %s344, 32
        %s346 = smul.addr %s345, 4
        %s347 = scalar_lea.vmem %s8, %s346
      $region52: #{vit_model_forward.1} parent=31 // pred_fallthru
        _
    $region32: #{vit_model_forward.1} parent=5 // pred_fallthru
      _
    %p348 = scmp.le.s32.totalorder 1, %s15
    %p349 = scmp.lt.s32.totalorder %s15, 3
    %p350 = pnand %p348, %p349
    %p351 = pneg %p350
    // Predicated region
    $region53: #{vit_model_forward.1} parent=5 // pred_check
      _
    $region54: #{vit_model_forward.1} parent=5 // pred_check_branch
      %353 = sbr.rel (%p350) target = $region56
    $region55: #{vit_model_forward.1} parent=5 // pred_region
      %s354 = ssub.s32 %s15, 1
      %p355 = scmp.lt.s32.totalorder %s24, 0
      %s356 = scalar_select %p355, %s24, 0
      %s357 = smul.addr %s356, 16
      %s358 = smul.addr %s357, 4
      %s359 = scalar_lea.vmem %s0, %s358
      %p360 = pneg %p53
      %p361 = pneg %p50
      %p362 = pneg %p74
      %p363 = pneg %p71
      %p364 = pneg %p95
      %p365 = pneg %p92
      %p366 = pneg %p116
      %p367 = pneg %p113
      %p368 = scmp.lt.s32.totalorder %s25, 1
      %s369 = scalar_select %p368, %s25, 1
      %s370 = smul.addr %s369, 3
      %s371 = smul.addr %s370, 8
      %s372 = scalar_lea.vmem %s4, %s371
      %p373 = pneg %p142
      %p374 = pneg %p139
      %p375 = scmp.lt.s32.totalorder %s25, 1
      %s376 = scalar_select %p375, %s25, 1
      %s377 = smul.addr %s376, 48
      %s378 = smul.addr %s377, 4
      %s379 = scalar_lea.vmem %s5, %s378
      %p380 = pneg %p168
      %p381 = pneg %p165
      %p382 = scmp.lt.s32.totalorder %s25, 1
      %s383 = scalar_select %p382, %s25, 1
      %s384 = smul.addr %s383, 16
      %s385 = smul.addr %s384, 4
      %s386 = scalar_lea.vmem %s6, %s385
      %p387 = pneg %p194
      %p388 = pneg %p191
      %p389 = scmp.lt.s32.totalorder %s25, 1
      %s390 = scalar_select %p389, %s25, 1
      %s391 = smul.addr %s390, 32
      %s392 = smul.addr %s391, 4
      %s393 = scalar_lea.vmem %s7, %s392
      %p394 = pneg %p220
      %p395 = pneg %p217
      %p396 = scmp.lt.s32.totalorder %s25, 1
      %s397 = scalar_select %p396, %s25, 1
      %s398 = smul.addr %s397, 32
      %s399 = smul.addr %s398, 4
      %s400 = scalar_lea.vmem %s8, %s399
      %p401 = pneg %p246
      %p402 = pneg %p243
      %p403 = pneg %p272
      %p404 = pneg %p269
      %p405 = scmp.lt.s32.totalorder %s24, 0
      %s406 = scalar_select %p405, %s24, 0
      %s407 = smul.addr %s406, 8
      %s408 = scalar_lea.vmem %s9, %s407
      %p409 = scmp.lt.s32.totalorder %s24, 0
      %s410 = scalar_select %p409, %s24, 0
      %s411 = smul.addr %s410, 16
      %s412 = smul.addr %s411, 4
      %s413 = scalar_lea.vmem %s0, %s412
      %p414 = scmp.lt.s32.totalorder %s25, 1
      %s415 = scalar_select %p414, %s25, 1
      %s416 = smul.addr %s415, 3
      %s417 = smul.addr %s416, 8
      %s418 = scalar_lea.vmem %s4, %s417
      %p419 = scmp.lt.s32.totalorder %s25, 1
      %s420 = scalar_select %p419, %s25, 1
      %s421 = smul.addr %s420, 48
      %s422 = smul.addr %s421, 4
      %s423 = scalar_lea.vmem %s5, %s422
      %p424 = scmp.lt.s32.totalorder %s25, 1
      %s425 = scalar_select %p424, %s25, 1
      %s426 = smul.addr %s425, 16
      %s427 = smul.addr %s426, 4
      %s428 = scalar_lea.vmem %s6, %s427
      %p429 = scmp.lt.s32.totalorder %s25, 1
      %s430 = scalar_select %p429, %s25, 1
      %s431 = smul.addr %s430, 32
      %s432 = smul.addr %s431, 4
      %s433 = scalar_lea.vmem %s7, %s432
      %p434 = scmp.lt.s32.totalorder %s25, 1
      %s435 = scalar_select %p434, %s25, 1
      %s436 = smul.addr %s435, 32
      %s437 = smul.addr %s436, 4
      %s438 = scalar_lea.vmem %s8, %s437
      %p439 = scmp.lt.s32.totalorder %s24, 0
      %s440 = scalar_select %p439, %s24, 0
      %s441 = smul.addr %s440, 8
      %s442 = scalar_lea.vmem %s9, %s441
      %p444 = scmp.eq.s32.totalorder %s25, 0
      // Predicated region
      $region57: #{vit_model_forward.1} parent=55 // pred_check
        %p445 = pneg %p444
      $region58: #{vit_model_forward.1} parent=55 // pred_check_branch
        %447 = sbr.rel (%p445) target = $region60
      $region59: #{vit_model_forward.1} parent=55 // pred_region
        %v448 = vld [vmem:[%s413] sm:$0xf]
        %v449 = vld [vmem:[%s413 + $0x4] sm:$0xf]
        %v450 = vld [vmem:[%s413 + $0x8] sm:$0xf]
        %v451 = vld [vmem:[%s413 + $0xc] sm:$0xf]
        %v452 = vld [vmem:[%s413 + $0x10] sm:$0xf]
        %v453 = vld [vmem:[%s413 + $0x14] sm:$0xf]
        %v454 = vld [vmem:[%s413 + $0x18] sm:$0xf]
        %v455 = vld [vmem:[%s413 + $0x1c] sm:$0xf]
        %v456 = vld [vmem:[%s413 + $0x20] sm:$0xf]
        %v457 = vld [vmem:[%s413 + $0x24] sm:$0xf]
        %v458 = vld [vmem:[%s413 + $0x28] sm:$0xf]
        %v459 = vld [vmem:[%s413 + $0x2c] sm:$0xf]
        %v460 = vld [vmem:[%s413 + $0x30] sm:$0xf]
        %v461 = vld [vmem:[%s413 + $0x34] sm:$0xf]
        %v462 = vld [vmem:[%s413 + $0x38] sm:$0xf]
        %v463 = vld [vmem:[%s413 + $0x3c] sm:$0xf]
        %v464 = vld [vmem:[%s2] sm:$0xf]
        %v465 = vld [vmem:[%s2 + $0x4] sm:$0xf]
        %v466 = vld [vmem:[%s2 + $0x8] sm:$0xf]
        %v467 = vld [vmem:[%s2 + $0xc] sm:$0xf]
        %v468 = vld [vmem:[%s2 + $0x10] sm:$0xf]
        %v469 = vld [vmem:[%s2 + $0x14] sm:$0xf]
        %v470 = vld [vmem:[%s2 + $0x18] sm:$0xf]
        %v471 = vld [vmem:[%s2 + $0x1c] sm:$0xf]
        %v472 = vld [vmem:[%s2 + $0x20] sm:$0xf]
        %v473 = vld [vmem:[%s2 + $0x24] sm:$0xf]
        %v474 = vld [vmem:[%s2 + $0x28] sm:$0xf]
        %v475 = vld [vmem:[%s2 + $0x2c] sm:$0xf]
        %v476 = vld [vmem:[%s2 + $0x30] sm:$0xf]
        %v477 = vld [vmem:[%s2 + $0x34] sm:$0xf]
        %v478 = vld [vmem:[%s2 + $0x38] sm:$0xf]
        %v479 = vld [vmem:[%s2 + $0x3c] sm:$0xf]
        %v480 = vld [vmem:[%s3] sm:$0x1]
        %v481 = vlaneseq
        %v482 = vshrl.u32 %v481, 7
        %v483 = vsub.s32 0, %v482
        %v484 = vrot.slane %v480, %v483
        %v501 = vunpack.c.l.b16 %v448
        %v502 = vunpack.c.l.b16 %v449
        %v503 = vunpack.c.l.b16 %v450
        %v504 = vunpack.c.l.b16 %v451
        %v505 = vunpack.c.l.b16 %v452
        %v506 = vunpack.c.l.b16 %v453
        %v507 = vunpack.c.l.b16 %v454
        %v508 = vunpack.c.l.b16 %v455
        %v509 = vunpack.c.l.b16 %v456
        %v510 = vunpack.c.l.b16 %v457
        %v511 = vunpack.c.l.b16 %v458
        %v512 = vunpack.c.l.b16 %v459
        %v513 = vunpack.c.l.b16 %v460
        %v514 = vunpack.c.l.b16 %v461
        %v515 = vunpack.c.l.b16 %v462
        %v516 = vunpack.c.l.b16 %v463
        %v517 = vpack.c.b16 %v502, %v501
        %v518 = vpack.c.b16 %v504, %v503
        %v519 = vpack.c.b16 %v506, %v505
        %v520 = vpack.c.b16 %v508, %v507
        %v521 = vpack.c.b16 %v510, %v509
        %v522 = vpack.c.b16 %v512, %v511
        %v523 = vpack.c.b16 %v514, %v513
        %v524 = vpack.c.b16 %v516, %v515
        %v549 = vunpack.c.l.b16 %v464
        %v550 = vunpack.c.l.b16 %v465
        %v551 = vunpack.c.l.b16 %v466
        %v552 = vunpack.c.l.b16 %v467
        %v553 = vunpack.c.l.b16 %v468
        %v554 = vunpack.c.l.b16 %v469
        %v555 = vunpack.c.l.b16 %v470
        %v556 = vunpack.c.l.b16 %v471
        %v557 = vunpack.c.l.b16 %v472
        %v558 = vunpack.c.l.b16 %v473
        %v559 = vunpack.c.l.b16 %v474
        %v560 = vunpack.c.l.b16 %v475
        %v561 = vunpack.c.l.b16 %v476
        %v562 = vunpack.c.l.b16 %v477
        %v563 = vunpack.c.l.b16 %v478
        %v564 = vunpack.c.l.b16 %v479
        %v565 = vpack.c.b16 %v550, %v549
        %v566 = vpack.c.b16 %v552, %v551
        %v567 = vpack.c.b16 %v554, %v553
        %v568 = vpack.c.b16 %v556, %v555
        %v569 = vpack.c.b16 %v558, %v557
        %v570 = vpack.c.b16 %v560, %v559
        %v571 = vpack.c.b16 %v562, %v561
        %v572 = vpack.c.b16 %v564, %v563
        %581 = vmatprep.subr.bf16.mxu0 0
        %582 = vmatpush1.bf16.msra.mxu0 %v565
        %583 = vmatprep.subr.bf16.mxu0 0
        %584 = vmatpush1.bf16.msra.mxu0 %v566
        %585 = vmatprep.subr.bf16.mxu0 0
        %586 = vmatpush1.bf16.msra.mxu0 %v567
        %587 = vmatprep.subr.bf16.mxu0 0
        %588 = vmatpush1.bf16.msra.mxu0 %v568
        %589 = vmatprep.subr.bf16.mxu0 0
        %590 = vmatpush1.bf16.msra.mxu0 %v569
        %591 = vmatprep.subr.bf16.mxu0 0
        %592 = vmatpush1.bf16.msra.mxu0 %v570
        %593 = vmatprep.subr.bf16.mxu0 0
        %594 = vmatpush1.bf16.msra.mxu0 %v571
        %595 = vmatprep.subr.bf16.mxu0 0
        %596 = vmatpush1.bf16.msra.mxu0 %v572
        %597 = vmatprep.subr.bf16.mxu0 0
        %598 = vmatpush1.bf16.msra.mxu0 0
        %599 = vmatprep.subr.bf16.mxu0 0
        %600 = vmatpush1.bf16.msra.mxu0 0
        %601 = vmatprep.subr.bf16.mxu0 0
        %602 = vmatpush1.bf16.msra.mxu0 0
        %603 = vmatprep.subr.bf16.mxu0 0
        %604 = vmatpush1.bf16.msra.mxu0 0
        %605 = vmatprep.subr.bf16.mxu0 0
        %606 = vmatpush1.bf16.msra.mxu0 0
        %607 = vmatprep.subr.bf16.mxu0 0
        %608 = vmatpush1.bf16.msra.mxu0 0
        %609 = vmatprep.subr.bf16.mxu0 0
        %610 = vmatpush1.bf16.msra.mxu0 0
        %611 = vmatprep.subr.bf16.mxu0 0
        %612 = vmatpush1.bf16.msra.mxu0 0
        %613 = vmatprep.mubr.bf16.mxu0 0
        %614 = vmatmul.mubr.bf16.gmra.mrb[0].mxu0 %v517
        %v615 = vpop.f32.mrb[0].mxu0
        %v616 = vadd.f32 %v484, %v615
        %v617 = vpop.f32.mrb[0].mxu0
        %v618 = vpop.f32.mrb[0].mxu0
        %v619 = vadd.f32 %v484, %v618
        %v620 = vpop.f32.mrb[0].mxu0
        %621 = vmatprep.mubr.bf16.mxu0 0
        %622 = vmatmul.mubr.bf16.gmra.mrb[0].mxu0 %v518
        %v623 = vpop.f32.mrb[0].mxu0
        %v624 = vadd.f32 %v484, %v623
        %v625 = vpop.f32.mrb[0].mxu0
        %v626 = vpop.f32.mrb[0].mxu0
        %v627 = vadd.f32 %v484, %v626
        %v628 = vpop.f32.mrb[0].mxu0
        %629 = vmatprep.mubr.bf16.mxu0 0
        %630 = vmatmul.mubr.bf16.gmra.mrb[0].mxu0 %v519
        %v631 = vpop.f32.mrb[0].mxu0
        %v632 = vadd.f32 %v484, %v631
        %v633 = vpop.f32.mrb[0].mxu0
        %v634 = vpop.f32.mrb[0].mxu0
        %v635 = vadd.f32 %v484, %v634
        %v636 = vpop.f32.mrb[0].mxu0
        %637 = vmatprep.mubr.bf16.mxu0 0
        %638 = vmatmul.mubr.bf16.gmra.mrb[0].mxu0 %v520
        %v639 = vpop.f32.mrb[0].mxu0
        %v640 = vadd.f32 %v484, %v639
        %v641 = vpop.f32.mrb[0].mxu0
        %v642 = vpop.f32.mrb[0].mxu0
        %v643 = vadd.f32 %v484, %v642
        %v644 = vpop.f32.mrb[0].mxu0
        %645 = vmatprep.mubr.bf16.mxu0 0
        %646 = vmatmul.mubr.bf16.gmra.mrb[0].mxu0 %v521
        %v647 = vpop.f32.mrb[0].mxu0
        %v648 = vadd.f32 %v484, %v647
        %v649 = vpop.f32.mrb[0].mxu0
        %v650 = vpop.f32.mrb[0].mxu0
        %v651 = vadd.f32 %v484, %v650
        %v652 = vpop.f32.mrb[0].mxu0
        %653 = vmatprep.mubr.bf16.mxu0 0
        %654 = vmatmul.mubr.bf16.gmra.mrb[0].mxu0 %v522
        %v655 = vpop.f32.mrb[0].mxu0
        %v656 = vadd.f32 %v484, %v655
        %v657 = vpop.f32.mrb[0].mxu0
        %v658 = vpop.f32.mrb[0].mxu0
        %v659 = vadd.f32 %v484, %v658
        %v660 = vpop.f32.mrb[0].mxu0
        %661 = vmatprep.mubr.bf16.mxu0 0
        %662 = vmatmul.mubr.bf16.gmra.mrb[0].mxu0 %v523
        %v663 = vpop.f32.mrb[0].mxu0
        %v664 = vadd.f32 %v484, %v663
        %v665 = vpop.f32.mrb[0].mxu0
        %v666 = vpop.f32.mrb[0].mxu0
        %v667 = vadd.f32 %v484, %v666
        %v668 = vpop.f32.mrb[0].mxu0
        %669 = vmatprep.mubr.bf16.mxu0 0
        %670 = vmatmul.mubr.bf16.gmra.mrb[0].mxu0 %v524
        %v671 = vpop.f32.mrb[0].mxu0
        %v672 = vadd.f32 %v484, %v671
        %v673 = vpop.f32.mrb[0].mxu0
        %v674 = vpop.f32.mrb[0].mxu0
        %v675 = vadd.f32 %v484, %v674
        %v676 = vpop.f32.mrb[0].mxu0
        %677 = vdwg.mxu0
        %v678 = vld [vmem:[%s1] sm:$0xff]
        %v679 = vld [vmem:[%s1 + $0x8] sm:$0xff]
        %v680 = vld [vmem:[%s1 + $0x10] sm:$0xff]
        %v681 = vld [vmem:[%s1 + $0x18] sm:$0xff]
        %v682 = vld [vmem:[%s1 + $0x20] sm:$0xff]
        %v683 = vld [vmem:[%s1 + $0x28] sm:$0xff]
        %v684 = vld [vmem:[%s1 + $0x30] sm:$0xff]
        %v685 = vld [vmem:[%s1 + $0x38] sm:$0xff]
        %v686 = vld [vmem:[%s1 + $0x40] sm:$0xff]
        %v687 = vld [vmem:[%s1 + $0x48] sm:$0xff]
        %v688 = vld [vmem:[%s1 + $0x50] sm:$0xff]
        %v689 = vld [vmem:[%s1 + $0x58] sm:$0xff]
        %v690 = vld [vmem:[%s1 + $0x60] sm:$0xff]
        %v691 = vld [vmem:[%s1 + $0x68] sm:$0xff]
        %v692 = vld [vmem:[%s1 + $0x70] sm:$0xff]
        %v693 = vld [vmem:[%s1 + $0x78] sm:$0xff]
        %v694 = vadd.f32 %v616, %v678
        %v695 = vadd.f32 %v619, %v679
        %v696 = vadd.f32 %v624, %v680
        %v697 = vadd.f32 %v627, %v681
        %v698 = vadd.f32 %v632, %v682
        %v699 = vadd.f32 %v635, %v683
        %v700 = vadd.f32 %v640, %v684
        %v701 = vadd.f32 %v643, %v685
        %v702 = vadd.f32 %v648, %v686
        %v703 = vadd.f32 %v651, %v687
        %v704 = vadd.f32 %v656, %v688
        %v705 = vadd.f32 %v659, %v689
        %v706 = vadd.f32 %v664, %v690
        %v707 = vadd.f32 %v667, %v691
        %v708 = vadd.f32 %v672, %v692
        %v709 = vadd.f32 %v675, %v693
        %710 = vst [vmem:[#allocation2] sm:$0xff] %v694
        %711 = vst [vmem:[#allocation2 + $0x8] sm:$0xff] %v695
        %712 = vst [vmem:[#allocation2 + $0x10] sm:$0xff] %v696
        %713 = vst [vmem:[#allocation2 + $0x18] sm:$0xff] %v697
        %714 = vst [vmem:[#allocation2 + $0x20] sm:$0xff] %v698
        %715 = vst [vmem:[#allocation2 + $0x28] sm:$0xff] %v699
        %716 = vst [vmem:[#allocation2 + $0x30] sm:$0xff] %v700
        %717 = vst [vmem:[#allocation2 + $0x38] sm:$0xff] %v701
        %718 = vst [vmem:[#allocation2 + $0x40] sm:$0xff] %v702
        %719 = vst [vmem:[#allocation2 + $0x48] sm:$0xff] %v703
        %720 = vst [vmem:[#allocation2 + $0x50] sm:$0xff] %v704
        %721 = vst [vmem:[#allocation2 + $0x58] sm:$0xff] %v705
        %722 = vst [vmem:[#allocation2 + $0x60] sm:$0xff] %v706
        %723 = vst [vmem:[#allocation2 + $0x68] sm:$0xff] %v707
        %724 = vst [vmem:[#allocation2 + $0x70] sm:$0xff] %v708
        %725 = vst [vmem:[#allocation2 + $0x78] sm:$0xff] %v709
      $region60: #{vit_model_forward.1} parent=55 // pred_fallthru
        _
      %v726 = vld [vmem:[%s418] sm:$0xff]
      %v727 = vld [vmem:[%s418 + $0x8] sm:$0xff]
      %v728 = vld [vmem:[%s418 + $0x10] sm:$0xff]
      %v729 = vld [vmem:[#allocation2] sm:$0xff]
      %v730 = vld [vmem:[#allocation2 + $0x8] sm:$0xff]
      %v731 = vld [vmem:[#allocation2 + $0x10] sm:$0xff]
      %v732 = vld [vmem:[#allocation2 + $0x18] sm:$0xff]
      %v733 = vld [vmem:[#allocation2 + $0x20] sm:$0xff]
      %v734 = vld [vmem:[#allocation2 + $0x28] sm:$0xff]
      %v735 = vld [vmem:[#allocation2 + $0x30] sm:$0xff]
      %v736 = vld [vmem:[#allocation2 + $0x38] sm:$0xff]
      %v737 = vld [vmem:[#allocation2 + $0x40] sm:$0xff]
      %v738 = vld [vmem:[#allocation2 + $0x48] sm:$0xff]
      %v739 = vld [vmem:[#allocation2 + $0x50] sm:$0xff]
      %v740 = vld [vmem:[#allocation2 + $0x58] sm:$0xff]
      %v741 = vld [vmem:[#allocation2 + $0x60] sm:$0xff]
      %v742 = vld [vmem:[#allocation2 + $0x68] sm:$0xff]
      %v743 = vld [vmem:[#allocation2 + $0x70] sm:$0xff]
      %v744 = vld [vmem:[#allocation2 + $0x78] sm:$0xff]
      %745 = vadd.xlane.f32.xlu0 %v729
      %v746 = vpop.xlane.xlu0 %745
      %747 = vadd.xlane.f32.xlu0 %v730
      %v748 = vpop.xlane.xlu0 %747
      %749 = vadd.xlane.f32.xlu0 %v731
      %v750 = vpop.xlane.xlu0 %749
      %751 = vadd.xlane.f32.xlu0 %v732
      %v752 = vpop.xlane.xlu0 %751
      %753 = vadd.xlane.f32.xlu0 %v733
      %v754 = vpop.xlane.xlu0 %753
      %755 = vadd.xlane.f32.xlu0 %v734
      %v756 = vpop.xlane.xlu0 %755
      %757 = vadd.xlane.f32.xlu0 %v735
      %v758 = vpop.xlane.xlu0 %757
      %759 = vadd.xlane.f32.xlu0 %v736
      %v760 = vpop.xlane.xlu0 %759
      %761 = vadd.xlane.f32.xlu0 %v737
      %v762 = vpop.xlane.xlu0 %761
      %763 = vadd.xlane.f32.xlu0 %v738
      %v764 = vpop.xlane.xlu0 %763
      %765 = vadd.xlane.f32.xlu0 %v739
      %v766 = vpop.xlane.xlu0 %765
      %767 = vadd.xlane.f32.xlu0 %v740
      %v768 = vpop.xlane.xlu0 %767
      %769 = vadd.xlane.f32.xlu0 %v741
      %v770 = vpop.xlane.xlu0 %769
      %771 = vadd.xlane.f32.xlu0 %v742
      %v772 = vpop.xlane.xlu0 %771
      %773 = vadd.xlane.f32.xlu0 %v743
      %v774 = vpop.xlane.xlu0 %773
      %775 = vadd.xlane.f32.xlu0 %v744
      %v776 = vpop.xlane.xlu0 %775
      %v777 = vrcp.pop 128.0
      %v778 = vmul.f32 %v746, %v777
      %v779 = vmul.f32 %v748, %v777
      %v780 = vmul.f32 %v750, %v777
      %v781 = vmul.f32 %v752, %v777
      %v782 = vmul.f32 %v754, %v777
      %v783 = vmul.f32 %v756, %v777
      %v784 = vmul.f32 %v758, %v777
      %v785 = vmul.f32 %v760, %v777
      %v786 = vmul.f32 %v762, %v777
      %v787 = vmul.f32 %v764, %v777
      %v788 = vmul.f32 %v766, %v777
      %v789 = vmul.f32 %v768, %v777
      %v790 = vmul.f32 %v770, %v777
      %v791 = vmul.f32 %v772, %v777
      %v792 = vmul.f32 %v774, %v777
      %v793 = vmul.f32 %v776, %v777
      %v794 = vsub.f32 %v729, %v778
      %v795 = vsub.f32 %v730, %v779
      %v796 = vsub.f32 %v731, %v780
      %v797 = vsub.f32 %v732, %v781
      %v798 = vsub.f32 %v733, %v782
      %v799 = vsub.f32 %v734, %v783
      %v800 = vsub.f32 %v735, %v784
      %v801 = vsub.f32 %v736, %v785
      %v802 = vsub.f32 %v737, %v786
      %v803 = vsub.f32 %v738, %v787
      %v804 = vsub.f32 %v739, %v788
      %v805 = vsub.f32 %v740, %v789
      %v806 = vsub.f32 %v741, %v790
      %v807 = vsub.f32 %v742, %v791
      %v808 = vsub.f32 %v743, %v792
      %v809 = vsub.f32 %v744, %v793
      %v810 = vmul.f32 %v794, %v794
      %v811 = vmul.f32 %v795, %v795
      %v812 = vmul.f32 %v796, %v796
      %v813 = vmul.f32 %v797, %v797
      %v814 = vmul.f32 %v798, %v798
      %v815 = vmul.f32 %v799, %v799
      %v816 = vmul.f32 %v800, %v800
      %v817 = vmul.f32 %v801, %v801
      %v818 = vmul.f32 %v802, %v802
      %v819 = vmul.f32 %v803, %v803
      %v820 = vmul.f32 %v804, %v804
      %v821 = vmul.f32 %v805, %v805
      %v822 = vmul.f32 %v806, %v806
      %v823 = vmul.f32 %v807, %v807
      %v824 = vmul.f32 %v808, %v808
      %v825 = vmul.f32 %v809, %v809
      %826 = vadd.xlane.f32.xlu0 %v810
      %v827 = vpop.xlane.xlu0 %826
      %828 = vadd.xlane.f32.xlu0 %v811
      %v829 = vpop.xlane.xlu0 %828
      %830 = vadd.xlane.f32.xlu0 %v812
      %v831 = vpop.xlane.xlu0 %830
      %832 = vadd.xlane.f32.xlu0 %v813
      %v833 = vpop.xlane.xlu0 %832
      %834 = vadd.xlane.f32.xlu0 %v814
      %v835 = vpop.xlane.xlu0 %834
      %836 = vadd.xlane.f32.xlu0 %v815
      %v837 = vpop.xlane.xlu0 %836
      %838 = vadd.xlane.f32.xlu0 %v816
      %v839 = vpop.xlane.xlu0 %838
      %840 = vadd.xlane.f32.xlu0 %v817
      %v841 = vpop.xlane.xlu0 %840
      %842 = vadd.xlane.f32.xlu0 %v818
      %v843 = vpop.xlane.xlu0 %842
      %844 = vadd.xlane.f32.xlu0 %v819
      %v845 = vpop.xlane.xlu0 %844
      %846 = vadd.xlane.f32.xlu0 %v820
      %v847 = vpop.xlane.xlu0 %846
      %848 = vadd.xlane.f32.xlu0 %v821
      %v849 = vpop.xlane.xlu0 %848
      %850 = vadd.xlane.f32.xlu0 %v822
      %v851 = vpop.xlane.xlu0 %850
      %852 = vadd.xlane.f32.xlu0 %v823
      %v853 = vpop.xlane.xlu0 %852
      %854 = vadd.xlane.f32.xlu0 %v824
      %v855 = vpop.xlane.xlu0 %854
      %856 = vadd.xlane.f32.xlu0 %v825
      %v857 = vpop.xlane.xlu0 %856
      %v858 = vmul.f32 %v827, %v777
      %v859 = vmul.f32 %v829, %v777
      %v860 = vmul.f32 %v831, %v777
      %v861 = vmul.f32 %v833, %v777
      %v862 = vmul.f32 %v835, %v777
      %v863 = vmul.f32 %v837, %v777
      %v864 = vmul.f32 %v839, %v777
      %v865 = vmul.f32 %v841, %v777
      %v866 = vmul.f32 %v843, %v777
      %v867 = vmul.f32 %v845, %v777
      %v868 = vmul.f32 %v847, %v777
      %v869 = vmul.f32 %v849, %v777
      %v870 = vmul.f32 %v851, %v777
      %v871 = vmul.f32 %v853, %v777
      %v872 = vmul.f32 %v855, %v777
      %v873 = vmul.f32 %v857, %v777
      %v874 = vadd.f32 %v858, 1e-06
      %v875 = vadd.f32 %v859, 1e-06
      %v876 = vadd.f32 %v860, 1e-06
      %v877 = vadd.f32 %v861, 1e-06
      %v878 = vadd.f32 %v862, 1e-06
      %v879 = vadd.f32 %v863, 1e-06
      %v880 = vadd.f32 %v864, 1e-06
      %v881 = vadd.f32 %v865, 1e-06
      %v882 = vadd.f32 %v866, 1e-06
      %v883 = vadd.f32 %v867, 1e-06
      %v884 = vadd.f32 %v868, 1e-06
      %v885 = vadd.f32 %v869, 1e-06
      %v886 = vadd.f32 %v870, 1e-06
      %v887 = vadd.f32 %v871, 1e-06
      %v888 = vadd.f32 %v872, 1e-06
      %v889 = vadd.f32 %v873, 1e-06
      %v890 = vrsqrt.pop %v874
      %v891 = vrsqrt.pop %v875
      %v892 = vrsqrt.pop %v876
      %v893 = vrsqrt.pop %v877
      %v894 = vrsqrt.pop %v878
      %v895 = vrsqrt.pop %v879
      %v896 = vrsqrt.pop %v880
      %v897 = vrsqrt.pop %v881
      %v898 = vrsqrt.pop %v882
      %v899 = vrsqrt.pop %v883
      %v900 = vrsqrt.pop %v884
      %v901 = vrsqrt.pop %v885
      %v902 = vrsqrt.pop %v886
      %v903 = vrsqrt.pop %v887
      %v904 = vrsqrt.pop %v888
      %v905 = vrsqrt.pop %v889
      %v906 = vmul.f32 %v794, %v890
      %v907 = vmul.f32 %v795, %v891
      %v908 = vmul.f32 %v796, %v892
      %v909 = vmul.f32 %v797, %v893
      %v910 = vmul.f32 %v798, %v894
      %v911 = vmul.f32 %v799, %v895
      %v912 = vmul.f32 %v800, %v896
      %v913 = vmul.f32 %v801, %v897
      %v914 = vmul.f32 %v802, %v898
      %v915 = vmul.f32 %v803, %v899
      %v916 = vmul.f32 %v804, %v900
      %v917 = vmul.f32 %v805, %v901
      %v918 = vmul.f32 %v806, %v902
      %v919 = vmul.f32 %v807, %v903
      %v920 = vmul.f32 %v808, %v904
      %v921 = vmul.f32 %v809, %v905
      %v922 = vlaneseq
      %v923 = vshrl.u32 %v922, 7
      %v924 = vsub.s32 0, %v923
      %v925 = vrot.slane %v726, %v924
      %v926 = vmul.f32 %v906, %v925
      %v927 = vmul.f32 %v907, %v925
      %v928 = vmul.f32 %v908, %v925
      %v929 = vmul.f32 %v909, %v925
      %v930 = vmul.f32 %v910, %v925
      %v931 = vmul.f32 %v911, %v925
      %v932 = vmul.f32 %v912, %v925
      %v933 = vmul.f32 %v913, %v925
      %v934 = vmul.f32 %v914, %v925
      %v935 = vmul.f32 %v915, %v925
      %v936 = vmul.f32 %v916, %v925
      %v937 = vmul.f32 %v917, %v925
      %v938 = vmul.f32 %v918, %v925
      %v939 = vmul.f32 %v919, %v925
      %v940 = vmul.f32 %v920, %v925
      %v941 = vmul.f32 %v921, %v925
      %v942 = vlaneseq
      %v943 = vshrl.u32 %v942, 7
      %v944 = vsub.s32 1, %v943
      %v945 = vrot.slane %v726, %v944
      %v946 = vadd.f32 %v926, %v945
      %v947 = vadd.f32 %v927, %v945
      %v948 = vadd.f32 %v928, %v945
      %v949 = vadd.f32 %v929, %v945
      %v950 = vadd.f32 %v930, %v945
      %v951 = vadd.f32 %v931, %v945
      %v952 = vadd.f32 %v932, %v945
      %v953 = vadd.f32 %v933, %v945
      %v954 = vadd.f32 %v934, %v945
      %v955 = vadd.f32 %v935, %v945
      %v956 = vadd.f32 %v936, %v945
      %v957 = vadd.f32 %v937, %v945
      %v958 = vadd.f32 %v938, %v945
      %v959 = vadd.f32 %v939, %v945
      %v960 = vadd.f32 %v940, %v945
      %v961 = vadd.f32 %v941, %v945
      %v962 = vpack.c.bf16 %v947, %v946
      %v963 = vpack.c.bf16 %v949, %v948
      %v964 = vpack.c.bf16 %v951, %v950
      %v965 = vpack.c.bf16 %v953, %v952
      %v966 = vpack.c.bf16 %v955, %v954
      %v967 = vpack.c.bf16 %v957, %v956
      %v968 = vpack.c.bf16 %v959, %v958
      %v969 = vpack.c.bf16 %v961, %v960
      %v970 = vld [vmem:[%s423] sm:$0xff]
      %v971 = vld [vmem:[%s423 + $0x8] sm:$0xf]
      %v972 = vld [vmem:[%s423 + $0xc] sm:$0xff]
      %v973 = vld [vmem:[%s423 + $0x14] sm:$0xf]
      %v974 = vld [vmem:[%s423 + $0x18] sm:$0xff]
      %v975 = vld [vmem:[%s423 + $0x20] sm:$0xf]
      %v976 = vld [vmem:[%s423 + $0x24] sm:$0xff]
      %v977 = vld [vmem:[%s423 + $0x2c] sm:$0xf]
      %v978 = vld [vmem:[%s423 + $0x30] sm:$0xff]
      %v979 = vld [vmem:[%s423 + $0x38] sm:$0xf]
      %v980 = vld [vmem:[%s423 + $0x3c] sm:$0xff]
      %v981 = vld [vmem:[%s423 + $0x44] sm:$0xf]
      %v982 = vld [vmem:[%s423 + $0x48] sm:$0xff]
      %v983 = vld [vmem:[%s423 + $0x50] sm:$0xf]
      %v984 = vld [vmem:[%s423 + $0x54] sm:$0xff]
      %v985 = vld [vmem:[%s423 + $0x5c] sm:$0xf]
      %v986 = vld [vmem:[%s423 + $0x60] sm:$0xff]
      %v987 = vld [vmem:[%s423 + $0x68] sm:$0xf]
      %v988 = vld [vmem:[%s423 + $0x6c] sm:$0xff]
      %v989 = vld [vmem:[%s423 + $0x74] sm:$0xf]
      %v990 = vld [vmem:[%s423 + $0x78] sm:$0xff]
      %v991 = vld [vmem:[%s423 + $0x80] sm:$0xf]
      %v992 = vld [vmem:[%s423 + $0x84] sm:$0xff]
      %v993 = vld [vmem:[%s423 + $0x8c] sm:$0xf]
      %v994 = vld [vmem:[%s423 + $0x90] sm:$0xff]
      %v995 = vld [vmem:[%s423 + $0x98] sm:$0xf]
      %v996 = vld [vmem:[%s423 + $0x9c] sm:$0xff]
      %v997 = vld [vmem:[%s423 + $0xa4] sm:$0xf]
      %v998 = vld [vmem:[%s423 + $0xa8] sm:$0xff]
      %v999 = vld [vmem:[%s423 + $0xb0] sm:$0xf]
      %v1000 = vld [vmem:[%s423 + $0xb4] sm:$0xff]
      %v1001 = vld [vmem:[%s423 + $0xbc] sm:$0xf]
      %v1002 = vlaneseq
      %v1003 = vshrl.u32 %v1002, 7
      %v1004 = vsub.s32 2, %v1003
      %v1005 = vrot.slane %v726, %v1004
      %v1006 = vlaneseq
      %v1007 = vshrl.u32 %v1006, 7
      %v1008 = vsub.s32 2, %v1007
      %v1009 = vrot.slane %v727, %v1008
      %v1010 = vlaneseq
      %v1011 = vshrl.u32 %v1010, 7
      %v1012 = vsub.s32 2, %v1011
      %v1013 = vrot.slane %v728, %v1012
      %v1046 = vunpack.c.l.b16 %v970
      %v1047 = vunpack.c.h.b16 %v970
      %v1048 = vunpack.c.l.b16 %v971
      %v1049 = vunpack.c.l.b16 %v972
      %v1050 = vunpack.c.h.b16 %v972
      %v1051 = vunpack.c.l.b16 %v973
      %v1052 = vunpack.c.l.b16 %v974
      %v1053 = vunpack.c.h.b16 %v974
      %v1054 = vunpack.c.l.b16 %v975
      %v1055 = vunpack.c.l.b16 %v976
      %v1056 = vunpack.c.h.b16 %v976
      %v1057 = vunpack.c.l.b16 %v977
      %v1058 = vunpack.c.l.b16 %v978
      %v1059 = vunpack.c.h.b16 %v978
      %v1060 = vunpack.c.l.b16 %v979
      %v1061 = vunpack.c.l.b16 %v980
      %v1062 = vunpack.c.h.b16 %v980
      %v1063 = vunpack.c.l.b16 %v981
      %v1064 = vunpack.c.l.b16 %v982
      %v1065 = vunpack.c.h.b16 %v982
      %v1066 = vunpack.c.l.b16 %v983
      %v1067 = vunpack.c.l.b16 %v984
      %v1068 = vunpack.c.h.b16 %v984
      %v1069 = vunpack.c.l.b16 %v985
      %v1070 = vunpack.c.l.b16 %v986
      %v1071 = vunpack.c.h.b16 %v986
      %v1072 = vunpack.c.l.b16 %v987
      %v1073 = vunpack.c.l.b16 %v988
      %v1074 = vunpack.c.h.b16 %v988
      %v1075 = vunpack.c.l.b16 %v989
      %v1076 = vunpack.c.l.b16 %v990
      %v1077 = vunpack.c.h.b16 %v990
      %v1078 = vunpack.c.l.b16 %v991
      %v1079 = vunpack.c.l.b16 %v992
      %v1080 = vunpack.c.h.b16 %v992
      %v1081 = vunpack.c.l.b16 %v993
      %v1082 = vunpack.c.l.b16 %v994
      %v1083 = vunpack.c.h.b16 %v994
      %v1084 = vunpack.c.l.b16 %v995
      %v1085 = vunpack.c.l.b16 %v996
      %v1086 = vunpack.c.h.b16 %v996
      %v1087 = vunpack.c.l.b16 %v997
      %v1088 = vunpack.c.l.b16 %v998
      %v1089 = vunpack.c.h.b16 %v998
      %v1090 = vunpack.c.l.b16 %v999
      %v1091 = vunpack.c.l.b16 %v1000
      %v1092 = vunpack.c.h.b16 %v1000
      %v1093 = vunpack.c.l.b16 %v1001
      %v1094 = vpack.c.b16 %v1049, %v1046
      %v1095 = vpack.c.b16 %v1050, %v1047
      %v1096 = vpack.c.b16 %v1051, %v1048
      %v1097 = vpack.c.b16 %v1055, %v1052
      %v1098 = vpack.c.b16 %v1056, %v1053
      %v1099 = vpack.c.b16 %v1057, %v1054
      %v1100 = vpack.c.b16 %v1061, %v1058
      %v1101 = vpack.c.b16 %v1062, %v1059
      %v1102 = vpack.c.b16 %v1063, %v1060
      %v1103 = vpack.c.b16 %v1067, %v1064
      %v1104 = vpack.c.b16 %v1068, %v1065
      %v1105 = vpack.c.b16 %v1069, %v1066
      %v1106 = vpack.c.b16 %v1073, %v1070
      %v1107 = vpack.c.b16 %v1074, %v1071
      %v1108 = vpack.c.b16 %v1075, %v1072
      %v1109 = vpack.c.b16 %v1079, %v1076
      %v1110 = vpack.c.b16 %v1080, %v1077
      %v1111 = vpack.c.b16 %v1081, %v1078
      %v1112 = vpack.c.b16 %v1085, %v1082
      %v1113 = vpack.c.b16 %v1086, %v1083
      %v1114 = vpack.c.b16 %v1087, %v1084
      %v1115 = vpack.c.b16 %v1091, %v1088
      %v1116 = vpack.c.b16 %v1092, %v1089
      %v1117 = vpack.c.b16 %v1093, %v1090
      %1142 = vmatprep.subr.bf16.mxu0 %v1095
      %1143 = vmatpush1.bf16.msra.mxu0 %v1094
      %1144 = vmatprep.subr.bf16.mxu0 %v1098
      %1145 = vmatpush1.bf16.msra.mxu0 %v1097
      %1146 = vmatprep.subr.bf16.mxu0 %v1101
      %1147 = vmatpush1.bf16.msra.mxu0 %v1100
      %1148 = vmatprep.subr.bf16.mxu0 %v1104
      %1149 = vmatpush1.bf16.msra.mxu0 %v1103
      %1150 = vmatprep.subr.bf16.mxu0 %v1107
      %1151 = vmatpush1.bf16.msra.mxu0 %v1106
      %1152 = vmatprep.subr.bf16.mxu0 %v1110
      %1153 = vmatpush1.bf16.msra.mxu0 %v1109
      %1154 = vmatprep.subr.bf16.mxu0 %v1113
      %1155 = vmatpush1.bf16.msra.mxu0 %v1112
      %1156 = vmatprep.subr.bf16.mxu0 %v1116
      %1157 = vmatpush1.bf16.msra.mxu0 %v1115
      %1158 = vmatprep.subr.bf16.mxu0 0
      %1159 = vmatpush1.bf16.msra.mxu0 0
      %1160 = vmatprep.subr.bf16.mxu0 0
      %1161 = vmatpush1.bf16.msra.mxu0 0
      %1162 = vmatprep.subr.bf16.mxu0 0
      %1163 = vmatpush1.bf16.msra.mxu0 0
      %1164 = vmatprep.subr.bf16.mxu0 0
      %1165 = vmatpush1.bf16.msra.mxu0 0
      %1166 = vmatprep.subr.bf16.mxu0 0
      %1167 = vmatpush1.bf16.msra.mxu0 0
      %1168 = vmatprep.subr.bf16.mxu0 0
      %1169 = vmatpush1.bf16.msra.mxu0 0
      %1170 = vmatprep.subr.bf16.mxu0 0
      %1171 = vmatpush1.bf16.msra.mxu0 0
      %1172 = vmatprep.subr.bf16.mxu0 0
      %1173 = vmatpush1.bf16.msra.mxu0 0
      %1174 = vmatprep.mubr.bf16.mxu0 0
      %1175 = vmatmul.mubr.bf16.gmra.mrb[0].mxu0 %v962
      %v1176 = vpop.f32.mrb[0].mxu0
      %v1177 = vadd.f32 %v1005, %v1176
      %v1178 = vpop.f32.mrb[0].mxu0
      %v1179 = vadd.f32 %v1009, %v1178
      %v1180 = vpop.f32.mrb[0].mxu0
      %v1181 = vadd.f32 %v1005, %v1180
      %v1182 = vpop.f32.mrb[0].mxu0
      %v1183 = vadd.f32 %v1009, %v1182
      %1184 = vmatprep.mubr.bf16.mxu0 0
      %1185 = vmatmul.mubr.bf16.gmra.mrb[0].mxu0 %v963
      %v1186 = vpop.f32.mrb[0].mxu0
      %v1187 = vadd.f32 %v1005, %v1186
      %v1188 = vpop.f32.mrb[0].mxu0
      %v1189 = vadd.f32 %v1009, %v1188
      %v1190 = vpop.f32.mrb[0].mxu0
      %v1191 = vadd.f32 %v1005, %v1190
      %v1192 = vpop.f32.mrb[0].mxu0
      %v1193 = vadd.f32 %v1009, %v1192
      %1194 = vmatprep.mubr.bf16.mxu0 0
      %1195 = vmatmul.mubr.bf16.gmra.mrb[0].mxu0 %v964
      %v1196 = vpop.f32.mrb[0].mxu0
      %v1197 = vadd.f32 %v1005, %v1196
      %v1198 = vpop.f32.mrb[0].mxu0
      %v1199 = vadd.f32 %v1009, %v1198
      %v1200 = vpop.f32.mrb[0].mxu0
      %v1201 = vadd.f32 %v1005, %v1200
      %v1202 = vpop.f32.mrb[0].mxu0
      %v1203 = vadd.f32 %v1009, %v1202
      %1204 = vmatprep.mubr.bf16.mxu0 0
      %1205 = vmatmul.mubr.bf16.gmra.mrb[0].mxu0 %v965
      %v1206 = vpop.f32.mrb[0].mxu0
      %v1207 = vadd.f32 %v1005, %v1206
      %v1208 = vpop.f32.mrb[0].mxu0
      %v1209 = vadd.f32 %v1009, %v1208
      %v1210 = vpop.f32.mrb[0].mxu0
      %v1211 = vadd.f32 %v1005, %v1210
      %v1212 = vpop.f32.mrb[0].mxu0
      %v1213 = vadd.f32 %v1009, %v1212
      %1214 = vmatprep.mubr.bf16.mxu0 0
      %1215 = vmatmul.mubr.bf16.gmra.mrb[0].mxu0 %v966
      %v1216 = vpop.f32.mrb[0].mxu0
      %v1217 = vadd.f32 %v1005, %v1216
      %v1218 = vpop.f32.mrb[0].mxu0
      %v1219 = vadd.f32 %v1009, %v1218
      %v1220 = vpop.f32.mrb[0].mxu0
      %v1221 = vadd.f32 %v1005, %v1220
      %v1222 = vpop.f32.mrb[0].mxu0
      %v1223 = vadd.f32 %v1009, %v1222
      %1224 = vmatprep.mubr.bf16.mxu0 0
      %1225 = vmatmul.mubr.bf16.gmra.mrb[0].mxu0 %v967
      %v1226 = vpop.f32.mrb[0].mxu0
      %v1227 = vadd.f32 %v1005, %v1226
      %v1228 = vpop.f32.mrb[0].mxu0
      %v1229 = vadd.f32 %v1009, %v1228
      %v1230 = vpop.f32.mrb[0].mxu0
      %v1231 = vadd.f32 %v1005, %v1230
      %v1232 = vpop.f32.mrb[0].mxu0
      %v1233 = vadd.f32 %v1009, %v1232
      %1234 = vmatprep.mubr.bf16.mxu0 0
      %1235 = vmatmul.mubr.bf16.gmra.mrb[0].mxu0 %v968
      %v1236 = vpop.f32.mrb[0].mxu0
      %v1237 = vadd.f32 %v1005, %v1236
      %v1238 = vpop.f32.mrb[0].mxu0
      %v1239 = vadd.f32 %v1009, %v1238
      %v1240 = vpop.f32.mrb[0].mxu0
      %v1241 = vadd.f32 %v1005, %v1240
      %v1242 = vpop.f32.mrb[0].mxu0
      %v1243 = vadd.f32 %v1009, %v1242
      %1244 = vmatprep.mubr.bf16.mxu0 0
      %1245 = vmatmul.mubr.bf16.gmra.mrb[0].mxu0 %v969
      %v1246 = vpop.f32.mrb[0].mxu0
      %v1247 = vadd.f32 %v1005, %v1246
      %v1248 = vpop.f32.mrb[0].mxu0
      %v1249 = vadd.f32 %v1009, %v1248
      %v1250 = vpop.f32.mrb[0].mxu0
      %v1251 = vadd.f32 %v1005, %v1250
      %v1252 = vpop.f32.mrb[0].mxu0
      %v1253 = vadd.f32 %v1009, %v1252
      %1254 = vdwg.mxu0
      %1255 = vmatprep.subr.bf16.mxu0 0
      %1256 = vmatpush1.bf16.msra.mxu0 %v1096
      %1257 = vmatprep.subr.bf16.mxu0 0
      %1258 = vmatpush1.bf16.msra.mxu0 %v1099
      %1259 = vmatprep.subr.bf16.mxu0 0
      %1260 = vmatpush1.bf16.msra.mxu0 %v1102
      %1261 = vmatprep.subr.bf16.mxu0 0
      %1262 = vmatpush1.bf16.msra.mxu0 %v1105
      %1263 = vmatprep.subr.bf16.mxu0 0
      %1264 = vmatpush1.bf16.msra.mxu0 %v1108
      %1265 = vmatprep.subr.bf16.mxu0 0
      %1266 = vmatpush1.bf16.msra.mxu0 %v1111
      %1267 = vmatprep.subr.bf16.mxu0 0
      %1268 = vmatpush1.bf16.msra.mxu0 %v1114
      %1269 = vmatprep.subr.bf16.mxu0 0
      %1270 = vmatpush1.bf16.msra.mxu0 %v1117
      %1271 = vmatprep.subr.bf16.mxu0 0
      %1272 = vmatpush1.bf16.msra.mxu0 0
      %1273 = vmatprep.subr.bf16.mxu0 0
      %1274 = vmatpush1.bf16.msra.mxu0 0
      %1275 = vmatprep.subr.bf16.mxu0 0
      %1276 = vmatpush1.bf16.msra.mxu0 0
      %1277 = vmatprep.subr.bf16.mxu0 0
      %1278 = vmatpush1.bf16.msra.mxu0 0
      %1279 = vmatprep.subr.bf16.mxu0 0
      %1280 = vmatpush1.bf16.msra.mxu0 0
      %1281 = vmatprep.subr.bf16.mxu0 0
      %1282 = vmatpush1.bf16.msra.mxu0 0
      %1283 = vmatprep.subr.bf16.mxu0 0
      %1284 = vmatpush1.bf16.msra.mxu0 0
      %1285 = vmatprep.subr.bf16.mxu0 0
      %1286 = vmatpush1.bf16.msra.mxu0 0
      %1287 = vmatprep.mubr.bf16.mxu0 0
      %1288 = vmatmul.mubr.bf16.gmra.mrb[0].mxu0 %v962
      %v1289 = vpop.f32.mrb[0].mxu0
      %v1290 = vadd.f32 %v1013, %v1289
      %v1291 = vpop.f32.mrb[0].mxu0
      %v1292 = vpop.f32.mrb[0].mxu0
      %v1293 = vadd.f32 %v1013, %v1292
      %v1294 = vpop.f32.mrb[0].mxu0
      %1295 = vmatprep.mubr.bf16.mxu0 0
      %1296 = vmatmul.mubr.bf16.gmra.mrb[0].mxu0 %v963
      %v1297 = vpop.f32.mrb[0].mxu0
      %v1298 = vadd.f32 %v1013, %v1297
      %v1299 = vpop.f32.mrb[0].mxu0
      %v1300 = vpop.f32.mrb[0].mxu0
      %v1301 = vadd.f32 %v1013, %v1300
      %v1302 = vpop.f32.mrb[0].mxu0
      %1303 = vmatprep.mubr.bf16.mxu0 0
      %1304 = vmatmul.mubr.bf16.gmra.mrb[0].mxu0 %v964
      %v1305 = vpop.f32.mrb[0].mxu0
      %v1306 = vadd.f32 %v1013, %v1305
      %v1307 = vpop.f32.mrb[0].mxu0
      %v1308 = vpop.f32.mrb[0].mxu0
      %v1309 = vadd.f32 %v1013, %v1308
      %v1310 = vpop.f32.mrb[0].mxu0
      %1311 = vmatprep.mubr.bf16.mxu0 0
      %1312 = vmatmul.mubr.bf16.gmra.mrb[0].mxu0 %v965
      %v1313 = vpop.f32.mrb[0].mxu0
      %v1314 = vadd.f32 %v1013, %v1313
      %v1315 = vpop.f32.mrb[0].mxu0
      %v1316 = vpop.f32.mrb[0].mxu0
      %v1317 = vadd.f32 %v1013, %v1316
      %v1318 = vpop.f32.mrb[0].mxu0
      %1319 = vmatprep.mubr.bf16.mxu0 0
      %1320 = vmatmul.mubr.bf16.gmra.mrb[0].mxu0 %v966
      %v1321 = vpop.f32.mrb[0].mxu0
      %v1322 = vadd.f32 %v1013, %v1321
      %v1323 = vpop.f32.mrb[0].mxu0
      %v1324 = vpop.f32.mrb[0].mxu0
      %v1325 = vadd.f32 %v1013, %v1324
      %v1326 = vpop.f32.mrb[0].mxu0
      %1327 = vmatprep.mubr.bf16.mxu0 0
      %1328 = vmatmul.mubr.bf16.gmra.mrb[0].mxu0 %v967
      %v1329 = vpop.f32.mrb[0].mxu0
      %v1330 = vadd.f32 %v1013, %v1329
      %v1331 = vpop.f32.mrb[0].mxu0
      %v1332 = vpop.f32.mrb[0].mxu0
      %v1333 = vadd.f32 %v1013, %v1332
      %v1334 = vpop.f32.mrb[0].mxu0
      %1335 = vmatprep.mubr.bf16.mxu0 0
      %1336 = vmatmul.mubr.bf16.gmra.mrb[0].mxu0 %v968
      %v1337 = vpop.f32.mrb[0].mxu0
      %v1338 = vadd.f32 %v1013, %v1337
      %v1339 = vpop.f32.mrb[0].mxu0
      %v1340 = vpop.f32.mrb[0].mxu0
      %v1341 = vadd.f32 %v1013, %v1340
      %v1342 = vpop.f32.mrb[0].mxu0
      %1343 = vmatprep.mubr.bf16.mxu0 0
      %1344 = vmatmul.mubr.bf16.gmra.mrb[0].mxu0 %v969
      %v1345 = vpop.f32.mrb[0].mxu0
      %v1346 = vadd.f32 %v1013, %v1345
      %v1347 = vpop.f32.mrb[0].mxu0
      %v1348 = vpop.f32.mrb[0].mxu0
      %v1349 = vadd.f32 %v1013, %v1348
      %v1350 = vpop.f32.mrb[0].mxu0
      %1351 = vdwg.mxu0
      %v1352 = vpack.c.bf16 %v1181, %v1177
      %v1353 = vpack.c.bf16 %v1183, %v1179
      %v1354 = vpack.c.bf16 %v1293, %v1290
      %v1355 = vpack.c.bf16 %v1191, %v1187
      %v1356 = vpack.c.bf16 %v1193, %v1189
      %v1357 = vpack.c.bf16 %v1301, %v1298
      %v1358 = vpack.c.bf16 %v1201, %v1197
      %v1359 = vpack.c.bf16 %v1203, %v1199
      %v1360 = vpack.c.bf16 %v1309, %v1306
      %v1361 = vpack.c.bf16 %v1211, %v1207
      %v1362 = vpack.c.bf16 %v1213, %v1209
      %v1363 = vpack.c.bf16 %v1317, %v1314
      %v1364 = vpack.c.bf16 %v1221, %v1217
      %v1365 = vpack.c.bf16 %v1223, %v1219
      %v1366 = vpack.c.bf16 %v1325, %v1322
      %v1367 = vpack.c.bf16 %v1231, %v1227
      %v1368 = vpack.c.bf16 %v1233, %v1229
      %v1369 = vpack.c.bf16 %v1333, %v1330
      %v1370 = vpack.c.bf16 %v1241, %v1237
      %v1371 = vpack.c.bf16 %v1243, %v1239
      %v1372 = vpack.c.bf16 %v1341, %v1338
      %v1373 = vpack.c.bf16 %v1251, %v1247
      %v1374 = vpack.c.bf16 %v1253, %v1249
      %v1375 = vpack.c.bf16 %v1349, %v1346
      %vm1376 = vcmask 261120
      %v1378 = vsel %vm1376, %v1352, 0
      %v1381 = vsel %vm1376, %v1353, 0
      %1383 = vmatprep.subr.bf16.mxu0 0
      %1384 = vmatpush1.bf16.xpose.msra.mxu0 %v1381
      %1385 = vmatprep.subr.bf16.mxu0 0
      %1386 = vmatpush1.bf16.xpose.msra.mxu0 0
      %1387 = vmatprep.subr.bf16.mxu0 0
      %1388 = vmatpush1.bf16.xpose.msra.mxu0 0
      %1389 = vmatprep.subr.bf16.mxu0 0
      %1390 = vmatpush1.bf16.xpose.msra.mxu0 0
      %1391 = vmatprep.subr.bf16.mxu0 0
      %1392 = vmatpush1.bf16.xpose.msra.mxu0 0
      %1393 = vmatprep.subr.bf16.mxu0 0
      %1394 = vmatpush1.bf16.xpose.msra.mxu0 0
      %1395 = vmatprep.subr.bf16.mxu0 0
      %1396 = vmatpush1.bf16.xpose.msra.mxu0 0
      %1397 = vmatprep.subr.bf16.mxu0 0
      %1398 = vmatpush1.bf16.xpose.msra.mxu0 0
      %1399 = vmatprep.subr.bf16.mxu0 0
      %1400 = vmatpush1.bf16.xpose.msra.mxu0 0
      %1401 = vmatprep.subr.bf16.mxu0 0
      %1402 = vmatpush1.bf16.xpose.msra.mxu0 0
      %1403 = vmatprep.subr.bf16.mxu0 0
      %1404 = vmatpush1.bf16.xpose.msra.mxu0 0
      %1405 = vmatprep.subr.bf16.mxu0 0
      %1406 = vmatpush1.bf16.xpose.msra.mxu0 0
      %1407 = vmatprep.subr.bf16.mxu0 0
      %1408 = vmatpush1.bf16.xpose.msra.mxu0 0
      %1409 = vmatprep.subr.bf16.mxu0 0
      %1410 = vmatpush1.bf16.xpose.msra.mxu0 0
      %1411 = vmatprep.subr.bf16.mxu0 0
      %1412 = vmatpush1.bf16.xpose.msra.mxu0 0
      %1413 = vmatprep.subr.bf16.mxu0 0
      %1414 = vmatpush1.bf16.xpose.msra.mxu0 0
      %1415 = vmatprep.mubr.bf16.mxu0 0
      %1416 = vmatmul.mubr.bf16.gmra.mrb[0].mxu0 %v1378
      %v1417 = vpop.f32.mrb[0].mxu0
      %v1418 = vadd.f32 0.0, %v1417
      %v1419 = vpop.f32.mrb[0].mxu0
      %v1420 = vpop.f32.mrb[0].mxu0
      %v1421 = vadd.f32 0.0, %v1420
      %v1422 = vpop.f32.mrb[0].mxu0
      %1423 = vdwg.mxu0
      %v1425 = vsel %vm1376, %v1355, 0
      %v1428 = vsel %vm1376, %v1356, 0
      %1430 = vmatprep.subr.bf16.mxu0 0
      %1431 = vmatpush1.bf16.xpose.msra.mxu0 %v1428
      %1432 = vmatprep.subr.bf16.mxu0 0
      %1433 = vmatpush1.bf16.xpose.msra.mxu0 0
      %1434 = vmatprep.subr.bf16.mxu0 0
      %1435 = vmatpush1.bf16.xpose.msra.mxu0 0
      %1436 = vmatprep.subr.bf16.mxu0 0
      %1437 = vmatpush1.bf16.xpose.msra.mxu0 0
      %1438 = vmatprep.subr.bf16.mxu0 0
      %1439 = vmatpush1.bf16.xpose.msra.mxu0 0
      %1440 = vmatprep.subr.bf16.mxu0 0
      %1441 = vmatpush1.bf16.xpose.msra.mxu0 0
      %1442 = vmatprep.subr.bf16.mxu0 0
      %1443 = vmatpush1.bf16.xpose.msra.mxu0 0
      %1444 = vmatprep.subr.bf16.mxu0 0
      %1445 = vmatpush1.bf16.xpose.msra.mxu0 0
      %1446 = vmatprep.subr.bf16.mxu0 0
      %1447 = vmatpush1.bf16.xpose.msra.mxu0 0
      %1448 = vmatprep.subr.bf16.mxu0 0
      %1449 = vmatpush1.bf16.xpose.msra.mxu0 0
      %1450 = vmatprep.subr.bf16.mxu0 0
      %1451 = vmatpush1.bf16.xpose.msra.mxu0 0
      %1452 = vmatprep.subr.bf16.mxu0 0
      %1453 = vmatpush1.bf16.xpose.msra.mxu0 0
      %1454 = vmatprep.subr.bf16.mxu0 0
      %1455 = vmatpush1.bf16.xpose.msra.mxu0 0
      %1456 = vmatprep.subr.bf16.mxu0 0
      %1457 = vmatpush1.bf16.xpose.msra.mxu0 0
      %1458 = vmatprep.subr.bf16.mxu0 0
      %1459 = vmatpush1.bf16.xpose.msra.mxu0 0
      %1460 = vmatprep.subr.bf16.mxu0 0
      %1461 = vmatpush1.bf16.xpose.msra.mxu0 0
      %1462 = vmatprep.mubr.bf16.mxu0 0
      %1463 = vmatmul.mubr.bf16.gmra.mrb[0].mxu0 %v1425
      %v1464 = vpop.f32.mrb[0].mxu0
      %v1465 = vadd.f32 0.0, %v1464
      %v1466 = vpop.f32.mrb[0].mxu0
      %v1467 = vpop.f32.mrb[0].mxu0
      %v1468 = vadd.f32 0.0, %v1467
      %v1469 = vpop.f32.mrb[0].mxu0
      %1470 = vdwg.mxu0
      %v1472 = vsel %vm1376, %v1358, 0
      %v1475 = vsel %vm1376, %v1359, 0
      %1477 = vmatprep.subr.bf16.mxu0 0
      %1478 = vmatpush1.bf16.xpose.msra.mxu0 %v1475
      %1479 = vmatprep.subr.bf16.mxu0 0
      %1480 = vmatpush1.bf16.xpose.msra.mxu0 0
      %1481 = vmatprep.subr.bf16.mxu0 0
      %1482 = vmatpush1.bf16.xpose.msra.mxu0 0
      %1483 = vmatprep.subr.bf16.mxu0 0
      %1484 = vmatpush1.bf16.xpose.msra.mxu0 0
      %1485 = vmatprep.subr.bf16.mxu0 0
      %1486 = vmatpush1.bf16.xpose.msra.mxu0 0
      %1487 = vmatprep.subr.bf16.mxu0 0
      %1488 = vmatpush1.bf16.xpose.msra.mxu0 0
      %1489 = vmatprep.subr.bf16.mxu0 0
      %1490 = vmatpush1.bf16.xpose.msra.mxu0 0
      %1491 = vmatprep.subr.bf16.mxu0 0
      %1492 = vmatpush1.bf16.xpose.msra.mxu0 0
      %1493 = vmatprep.subr.bf16.mxu0 0
      %1494 = vmatpush1.bf16.xpose.msra.mxu0 0
      %1495 = vmatprep.subr.bf16.mxu0 0
      %1496 = vmatpush1.bf16.xpose.msra.mxu0 0
      %1497 = vmatprep.subr.bf16.mxu0 0
      %1498 = vmatpush1.bf16.xpose.msra.mxu0 0
      %1499 = vmatprep.subr.bf16.mxu0 0
      %1500 = vmatpush1.bf16.xpose.msra.mxu0 0
      %1501 = vmatprep.subr.bf16.mxu0 0
      %1502 = vmatpush1.bf16.xpose.msra.mxu0 0
      %1503 = vmatprep.subr.bf16.mxu0 0
      %1504 = vmatpush1.bf16.xpose.msra.mxu0 0
      %1505 = vmatprep.subr.bf16.mxu0 0
      %1506 = vmatpush1.bf16.xpose.msra.mxu0 0
      %1507 = vmatprep.subr.bf16.mxu0 0
      %1508 = vmatpush1.bf16.xpose.msra.mxu0 0
      %1509 = vmatprep.mubr.bf16.mxu0 0
      %1510 = vmatmul.mubr.bf16.gmra.mrb[0].mxu0 %v1472
      %v1511 = vpop.f32.mrb[0].mxu0
      %v1512 = vadd.f32 0.0, %v1511
      %v1513 = vpop.f32.mrb[0].mxu0
      %v1514 = vpop.f32.mrb[0].mxu0
      %v1515 = vadd.f32 0.0, %v1514
      %v1516 = vpop.f32.mrb[0].mxu0
      %1517 = vdwg.mxu0
      %v1519 = vsel %vm1376, %v1361, 0
      %v1522 = vsel %vm1376, %v1362, 0
      %1524 = vmatprep.subr.bf16.mxu0 0
      %1525 = vmatpush1.bf16.xpose.msra.mxu0 %v1522
      %1526 = vmatprep.subr.bf16.mxu0 0
      %1527 = vmatpush1.bf16.xpose.msra.mxu0 0
      %1528 = vmatprep.subr.bf16.mxu0 0
      %1529 = vmatpush1.bf16.xpose.msra.mxu0 0
      %1530 = vmatprep.subr.bf16.mxu0 0
      %1531 = vmatpush1.bf16.xpose.msra.mxu0 0
      %1532 = vmatprep.subr.bf16.mxu0 0
      %1533 = vmatpush1.bf16.xpose.msra.mxu0 0
      %1534 = vmatprep.subr.bf16.mxu0 0
      %1535 = vmatpush1.bf16.xpose.msra.mxu0 0
      %1536 = vmatprep.subr.bf16.mxu0 0
      %1537 = vmatpush1.bf16.xpose.msra.mxu0 0
      %1538 = vmatprep.subr.bf16.mxu0 0
      %1539 = vmatpush1.bf16.xpose.msra.mxu0 0
      %1540 = vmatprep.subr.bf16.mxu0 0
      %1541 = vmatpush1.bf16.xpose.msra.mxu0 0
      %1542 = vmatprep.subr.bf16.mxu0 0
      %1543 = vmatpush1.bf16.xpose.msra.mxu0 0
      %1544 = vmatprep.subr.bf16.mxu0 0
      %1545 = vmatpush1.bf16.xpose.msra.mxu0 0
      %1546 = vmatprep.subr.bf16.mxu0 0
      %1547 = vmatpush1.bf16.xpose.msra.mxu0 0
      %1548 = vmatprep.subr.bf16.mxu0 0
      %1549 = vmatpush1.bf16.xpose.msra.mxu0 0
      %1550 = vmatprep.subr.bf16.mxu0 0
      %1551 = vmatpush1.bf16.xpose.msra.mxu0 0
      %1552 = vmatprep.subr.bf16.mxu0 0
      %1553 = vmatpush1.bf16.xpose.msra.mxu0 0
      %1554 = vmatprep.subr.bf16.mxu0 0
      %1555 = vmatpush1.bf16.xpose.msra.mxu0 0
      %1556 = vmatprep.mubr.bf16.mxu0 0
      %1557 = vmatmul.mubr.bf16.gmra.mrb[0].mxu0 %v1519
      %v1558 = vpop.f32.mrb[0].mxu0
      %v1559 = vadd.f32 0.0, %v1558
      %v1560 = vpop.f32.mrb[0].mxu0
      %v1561 = vpop.f32.mrb[0].mxu0
      %v1562 = vadd.f32 0.0, %v1561
      %v1563 = vpop.f32.mrb[0].mxu0
      %1564 = vdwg.mxu0
      %v1566 = vsel %vm1376, %v1364, 0
      %v1569 = vsel %vm1376, %v1365, 0
      %1571 = vmatprep.subr.bf16.mxu0 0
      %1572 = vmatpush1.bf16.xpose.msra.mxu0 %v1569
      %1573 = vmatprep.subr.bf16.mxu0 0
      %1574 = vmatpush1.bf16.xpose.msra.mxu0 0
      %1575 = vmatprep.subr.bf16.mxu0 0
      %1576 = vmatpush1.bf16.xpose.msra.mxu0 0
      %1577 = vmatprep.subr.bf16.mxu0 0
      %1578 = vmatpush1.bf16.xpose.msra.mxu0 0
      %1579 = vmatprep.subr.bf16.mxu0 0
      %1580 = vmatpush1.bf16.xpose.msra.mxu0 0
      %1581 = vmatprep.subr.bf16.mxu0 0
      %1582 = vmatpush1.bf16.xpose.msra.mxu0 0
      %1583 = vmatprep.subr.bf16.mxu0 0
      %1584 = vmatpush1.bf16.xpose.msra.mxu0 0
      %1585 = vmatprep.subr.bf16.mxu0 0
      %1586 = vmatpush1.bf16.xpose.msra.mxu0 0
      %1587 = vmatprep.subr.bf16.mxu0 0
      %1588 = vmatpush1.bf16.xpose.msra.mxu0 0
      %1589 = vmatprep.subr.bf16.mxu0 0
      %1590 = vmatpush1.bf16.xpose.msra.mxu0 0
      %1591 = vmatprep.subr.bf16.mxu0 0
      %1592 = vmatpush1.bf16.xpose.msra.mxu0 0
      %1593 = vmatprep.subr.bf16.mxu0 0
      %1594 = vmatpush1.bf16.xpose.msra.mxu0 0
      %1595 = vmatprep.subr.bf16.mxu0 0
      %1596 = vmatpush1.bf16.xpose.msra.mxu0 0
      %1597 = vmatprep.subr.bf16.mxu0 0
      %1598 = vmatpush1.bf16.xpose.msra.mxu0 0
      %1599 = vmatprep.subr.bf16.mxu0 0
      %1600 = vmatpush1.bf16.xpose.msra.mxu0 0
      %1601 = vmatprep.subr.bf16.mxu0 0
      %1602 = vmatpush1.bf16.xpose.msra.mxu0 0
      %1603 = vmatprep.mubr.bf16.mxu0 0
      %1604 = vmatmul.mubr.bf16.gmra.mrb[0].mxu0 %v1566
      %v1605 = vpop.f32.mrb[0].mxu0
      %v1606 = vadd.f32 0.0, %v1605
      %v1607 = vpop.f32.mrb[0].mxu0
      %v1608 = vpop.f32.mrb[0].mxu0
      %v1609 = vadd.f32 0.0, %v1608
      %v1610 = vpop.f32.mrb[0].mxu0
      %1611 = vdwg.mxu0
      %v1613 = vsel %vm1376, %v1367, 0
      %v1616 = vsel %vm1376, %v1368, 0
      %1618 = vmatprep.subr.bf16.mxu0 0
      %1619 = vmatpush1.bf16.xpose.msra.mxu0 %v1616
      %1620 = vmatprep.subr.bf16.mxu0 0
      %1621 = vmatpush1.bf16.xpose.msra.mxu0 0
      %1622 = vmatprep.subr.bf16.mxu0 0
      %1623 = vmatpush1.bf16.xpose.msra.mxu0 0
      %1624 = vmatprep.subr.bf16.mxu0 0
      %1625 = vmatpush1.bf16.xpose.msra.mxu0 0
      %1626 = vmatprep.subr.bf16.mxu0 0
      %1627 = vmatpush1.bf16.xpose.msra.mxu0 0
      %1628 = vmatprep.subr.bf16.mxu0 0
      %1629 = vmatpush1.bf16.xpose.msra.mxu0 0
      %1630 = vmatprep.subr.bf16.mxu0 0
      %1631 = vmatpush1.bf16.xpose.msra.mxu0 0
      %1632 = vmatprep.subr.bf16.mxu0 0
      %1633 = vmatpush1.bf16.xpose.msra.mxu0 0
      %1634 = vmatprep.subr.bf16.mxu0 0
      %1635 = vmatpush1.bf16.xpose.msra.mxu0 0
      %1636 = vmatprep.subr.bf16.mxu0 0
      %1637 = vmatpush1.bf16.xpose.msra.mxu0 0
      %1638 = vmatprep.subr.bf16.mxu0 0
      %1639 = vmatpush1.bf16.xpose.msra.mxu0 0
      %1640 = vmatprep.subr.bf16.mxu0 0
      %1641 = vmatpush1.bf16.xpose.msra.mxu0 0
      %1642 = vmatprep.subr.bf16.mxu0 0
      %1643 = vmatpush1.bf16.xpose.msra.mxu0 0
      %1644 = vmatprep.subr.bf16.mxu0 0
      %1645 = vmatpush1.bf16.xpose.msra.mxu0 0
      %1646 = vmatprep.subr.bf16.mxu0 0
      %1647 = vmatpush1.bf16.xpose.msra.mxu0 0
      %1648 = vmatprep.subr.bf16.mxu0 0
      %1649 = vmatpush1.bf16.xpose.msra.mxu0 0
      %1650 = vmatprep.mubr.bf16.mxu0 0
      %1651 = vmatmul.mubr.bf16.gmra.mrb[0].mxu0 %v1613
      %v1652 = vpop.f32.mrb[0].mxu0
      %v1653 = vadd.f32 0.0, %v1652
      %v1654 = vpop.f32.mrb[0].mxu0
      %v1655 = vpop.f32.mrb[0].mxu0
      %v1656 = vadd.f32 0.0, %v1655
      %v1657 = vpop.f32.mrb[0].mxu0
      %1658 = vdwg.mxu0
      %v1660 = vsel %vm1376, %v1370, 0
      %v1663 = vsel %vm1376, %v1371, 0
      %1665 = vmatprep.subr.bf16.mxu0 0
      %1666 = vmatpush1.bf16.xpose.msra.mxu0 %v1663
      %1667 = vmatprep.subr.bf16.mxu0 0
      %1668 = vmatpush1.bf16.xpose.msra.mxu0 0
      %1669 = vmatprep.subr.bf16.mxu0 0
      %1670 = vmatpush1.bf16.xpose.msra.mxu0 0
      %1671 = vmatprep.subr.bf16.mxu0 0
      %1672 = vmatpush1.bf16.xpose.msra.mxu0 0
      %1673 = vmatprep.subr.bf16.mxu0 0
      %1674 = vmatpush1.bf16.xpose.msra.mxu0 0
      %1675 = vmatprep.subr.bf16.mxu0 0
      %1676 = vmatpush1.bf16.xpose.msra.mxu0 0
      %1677 = vmatprep.subr.bf16.mxu0 0
      %1678 = vmatpush1.bf16.xpose.msra.mxu0 0
      %1679 = vmatprep.subr.bf16.mxu0 0
      %1680 = vmatpush1.bf16.xpose.msra.mxu0 0
      %1681 = vmatprep.subr.bf16.mxu0 0
      %1682 = vmatpush1.bf16.xpose.msra.mxu0 0
      %1683 = vmatprep.subr.bf16.mxu0 0
      %1684 = vmatpush1.bf16.xpose.msra.mxu0 0
      %1685 = vmatprep.subr.bf16.mxu0 0
      %1686 = vmatpush1.bf16.xpose.msra.mxu0 0
      %1687 = vmatprep.subr.bf16.mxu0 0
      %1688 = vmatpush1.bf16.xpose.msra.mxu0 0
      %1689 = vmatprep.subr.bf16.mxu0 0
      %1690 = vmatpush1.bf16.xpose.msra.mxu0 0
      %1691 = vmatprep.subr.bf16.mxu0 0
      %1692 = vmatpush1.bf16.xpose.msra.mxu0 0
      %1693 = vmatprep.subr.bf16.mxu0 0
      %1694 = vmatpush1.bf16.xpose.msra.mxu0 0
      %1695 = vmatprep.subr.bf16.mxu0 0
      %1696 = vmatpush1.bf16.xpose.msra.mxu0 0
      %1697 = vmatprep.mubr.bf16.mxu0 0
      %1698 = vmatmul.mubr.bf16.gmra.mrb[0].mxu0 %v1660
      %v1699 = vpop.f32.mrb[0].mxu0
      %v1700 = vadd.f32 0.0, %v1699
      %v1701 = vpop.f32.mrb[0].mxu0
      %v1702 = vpop.f32.mrb[0].mxu0
      %v1703 = vadd.f32 0.0, %v1702
      %v1704 = vpop.f32.mrb[0].mxu0
      %1705 = vdwg.mxu0
      %v1707 = vsel %vm1376, %v1373, 0
      %v1710 = vsel %vm1376, %v1374, 0
      %1712 = vmatprep.subr.bf16.mxu0 0
      %1713 = vmatpush1.bf16.xpose.msra.mxu0 %v1710
      %1714 = vmatprep.subr.bf16.mxu0 0
      %1715 = vmatpush1.bf16.xpose.msra.mxu0 0
      %1716 = vmatprep.subr.bf16.mxu0 0
      %1717 = vmatpush1.bf16.xpose.msra.mxu0 0
      %1718 = vmatprep.subr.bf16.mxu0 0
      %1719 = vmatpush1.bf16.xpose.msra.mxu0 0
      %1720 = vmatprep.subr.bf16.mxu0 0
      %1721 = vmatpush1.bf16.xpose.msra.mxu0 0
      %1722 = vmatprep.subr.bf16.mxu0 0
      %1723 = vmatpush1.bf16.xpose.msra.mxu0 0
      %1724 = vmatprep.subr.bf16.mxu0 0
      %1725 = vmatpush1.bf16.xpose.msra.mxu0 0
      %1726 = vmatprep.subr.bf16.mxu0 0
      %1727 = vmatpush1.bf16.xpose.msra.mxu0 0
      %1728 = vmatprep.subr.bf16.mxu0 0
      %1729 = vmatpush1.bf16.xpose.msra.mxu0 0
      %1730 = vmatprep.subr.bf16.mxu0 0
      %1731 = vmatpush1.bf16.xpose.msra.mxu0 0
      %1732 = vmatprep.subr.bf16.mxu0 0
      %1733 = vmatpush1.bf16.xpose.msra.mxu0 0
      %1734 = vmatprep.subr.bf16.mxu0 0
      %1735 = vmatpush1.bf16.xpose.msra.mxu0 0
      %1736 = vmatprep.subr.bf16.mxu0 0
      %1737 = vmatpush1.bf16.xpose.msra.mxu0 0
      %1738 = vmatprep.subr.bf16.mxu0 0
      %1739 = vmatpush1.bf16.xpose.msra.mxu0 0
      %1740 = vmatprep.subr.bf16.mxu0 0
      %1741 = vmatpush1.bf16.xpose.msra.mxu0 0
      %1742 = vmatprep.subr.bf16.mxu0 0
      %1743 = vmatpush1.bf16.xpose.msra.mxu0 0
      %1744 = vmatprep.mubr.bf16.mxu0 0
      %1745 = vmatmul.mubr.bf16.gmra.mrb[0].mxu0 %v1707
      %v1746 = vpop.f32.mrb[0].mxu0
      %v1747 = vadd.f32 0.0, %v1746
      %v1748 = vpop.f32.mrb[0].mxu0
      %v1749 = vpop.f32.mrb[0].mxu0
      %v1750 = vadd.f32 0.0, %v1749
      %v1751 = vpop.f32.mrb[0].mxu0
      %1752 = vdwg.mxu0
      %vm1753 = vcmask 130048
      %v1754 = vsel %vm1753, %v1418, -inf
      %1755 = vmax.xlane.f32.xlu0 %v1754
      %v1756 = vpop.xlane.xlu0 %1755
      %v1757 = vsel %vm1753, %v1421, -inf
      %1758 = vmax.xlane.f32.xlu0 %v1757
      %v1759 = vpop.xlane.xlu0 %1758
      %v1760 = vsel %vm1753, %v1465, -inf
      %1761 = vmax.xlane.f32.xlu0 %v1760
      %v1762 = vpop.xlane.xlu0 %1761
      %v1763 = vsel %vm1753, %v1468, -inf
      %1764 = vmax.xlane.f32.xlu0 %v1763
      %v1765 = vpop.xlane.xlu0 %1764
      %v1766 = vsel %vm1753, %v1512, -inf
      %1767 = vmax.xlane.f32.xlu0 %v1766
      %v1768 = vpop.xlane.xlu0 %1767
      %v1769 = vsel %vm1753, %v1515, -inf
      %1770 = vmax.xlane.f32.xlu0 %v1769
      %v1771 = vpop.xlane.xlu0 %1770
      %v1772 = vsel %vm1753, %v1559, -inf
      %1773 = vmax.xlane.f32.xlu0 %v1772
      %v1774 = vpop.xlane.xlu0 %1773
      %v1775 = vsel %vm1753, %v1562, -inf
      %1776 = vmax.xlane.f32.xlu0 %v1775
      %v1777 = vpop.xlane.xlu0 %1776
      %v1778 = vsel %vm1753, %v1606, -inf
      %1779 = vmax.xlane.f32.xlu0 %v1778
      %v1780 = vpop.xlane.xlu0 %1779
      %v1781 = vsel %vm1753, %v1609, -inf
      %1782 = vmax.xlane.f32.xlu0 %v1781
      %v1783 = vpop.xlane.xlu0 %1782
      %v1784 = vsel %vm1753, %v1653, -inf
      %1785 = vmax.xlane.f32.xlu0 %v1784
      %v1786 = vpop.xlane.xlu0 %1785
      %v1787 = vsel %vm1753, %v1656, -inf
      %1788 = vmax.xlane.f32.xlu0 %v1787
      %v1789 = vpop.xlane.xlu0 %1788
      %v1790 = vsel %vm1753, %v1700, -inf
      %1791 = vmax.xlane.f32.xlu0 %v1790
      %v1792 = vpop.xlane.xlu0 %1791
      %v1793 = vsel %vm1753, %v1703, -inf
      %1794 = vmax.xlane.f32.xlu0 %v1793
      %v1795 = vpop.xlane.xlu0 %1794
      %v1796 = vsel %vm1753, %v1747, -inf
      %1797 = vmax.xlane.f32.xlu0 %v1796
      %v1798 = vpop.xlane.xlu0 %1797
      %v1799 = vsel %vm1753, %v1750, -inf
      %1800 = vmax.xlane.f32.xlu0 %v1799
      %v1801 = vpop.xlane.xlu0 %1800
      %v1802 = vsub.f32 %v1418, %v1756
      %v1803 = vsub.f32 %v1421, %v1759
      %v1804 = vsub.f32 %v1465, %v1762
      %v1805 = vsub.f32 %v1468, %v1765
      %v1806 = vsub.f32 %v1512, %v1768
      %v1807 = vsub.f32 %v1515, %v1771
      %v1808 = vsub.f32 %v1559, %v1774
      %v1809 = vsub.f32 %v1562, %v1777
      %v1810 = vsub.f32 %v1606, %v1780
      %v1811 = vsub.f32 %v1609, %v1783
      %v1812 = vsub.f32 %v1653, %v1786
      %v1813 = vsub.f32 %v1656, %v1789
      %v1814 = vsub.f32 %v1700, %v1792
      %v1815 = vsub.f32 %v1703, %v1795
      %v1816 = vsub.f32 %v1747, %v1798
      %v1817 = vsub.f32 %v1750, %v1801
      %v1818 = vmul.f32 %v1802, 1.442695
      %v1819 = vpow.pop %v1818
      %v1820 = vmul.f32 %v1803, 1.442695
      %v1821 = vpow.pop %v1820
      %v1822 = vmul.f32 %v1804, 1.442695
      %v1823 = vpow.pop %v1822
      %v1824 = vmul.f32 %v1805, 1.442695
      %v1825 = vpow.pop %v1824
      %v1826 = vmul.f32 %v1806, 1.442695
      %v1827 = vpow.pop %v1826
      %v1828 = vmul.f32 %v1807, 1.442695
      %v1829 = vpow.pop %v1828
      %v1830 = vmul.f32 %v1808, 1.442695
      %v1831 = vpow.pop %v1830
      %v1832 = vmul.f32 %v1809, 1.442695
      %v1833 = vpow.pop %v1832
      %v1834 = vmul.f32 %v1810, 1.442695
      %v1835 = vpow.pop %v1834
      %v1836 = vmul.f32 %v1811, 1.442695
      %v1837 = vpow.pop %v1836
      %v1838 = vmul.f32 %v1812, 1.442695
      %v1839 = vpow.pop %v1838
      %v1840 = vmul.f32 %v1813, 1.442695
      %v1841 = vpow.pop %v1840
      %v1842 = vmul.f32 %v1814, 1.442695
      %v1843 = vpow.pop %v1842
      %v1844 = vmul.f32 %v1815, 1.442695
      %v1845 = vpow.pop %v1844
      %v1846 = vmul.f32 %v1816, 1.442695
      %v1847 = vpow.pop %v1846
      %v1848 = vmul.f32 %v1817, 1.442695
      %v1849 = vpow.pop %v1848
      %v1850 = vsel %vm1753, %v1819, 0.0
      %1851 = vadd.xlane.f32.xlu0 %v1850
      %v1852 = vpop.xlane.xlu0 %1851
      %v1853 = vsel %vm1753, %v1821, 0.0
      %1854 = vadd.xlane.f32.xlu0 %v1853
      %v1855 = vpop.xlane.xlu0 %1854
      %v1856 = vsel %vm1753, %v1823, 0.0
      %1857 = vadd.xlane.f32.xlu0 %v1856
      %v1858 = vpop.xlane.xlu0 %1857
      %v1859 = vsel %vm1753, %v1825, 0.0
      %1860 = vadd.xlane.f32.xlu0 %v1859
      %v1861 = vpop.xlane.xlu0 %1860
      %v1862 = vsel %vm1753, %v1827, 0.0
      %1863 = vadd.xlane.f32.xlu0 %v1862
      %v1864 = vpop.xlane.xlu0 %1863
      %v1865 = vsel %vm1753, %v1829, 0.0
      %1866 = vadd.xlane.f32.xlu0 %v1865
      %v1867 = vpop.xlane.xlu0 %1866
      %v1868 = vsel %vm1753, %v1831, 0.0
      %1869 = vadd.xlane.f32.xlu0 %v1868
      %v1870 = vpop.xlane.xlu0 %1869
      %v1871 = vsel %vm1753, %v1833, 0.0
      %1872 = vadd.xlane.f32.xlu0 %v1871
      %v1873 = vpop.xlane.xlu0 %1872
      %v1874 = vsel %vm1753, %v1835, 0.0
      %1875 = vadd.xlane.f32.xlu0 %v1874
      %v1876 = vpop.xlane.xlu0 %1875
      %v1877 = vsel %vm1753, %v1837, 0.0
      %1878 = vadd.xlane.f32.xlu0 %v1877
      %v1879 = vpop.xlane.xlu0 %1878
      %v1880 = vsel %vm1753, %v1839, 0.0
      %1881 = vadd.xlane.f32.xlu0 %v1880
      %v1882 = vpop.xlane.xlu0 %1881
      %v1883 = vsel %vm1753, %v1841, 0.0
      %1884 = vadd.xlane.f32.xlu0 %v1883
      %v1885 = vpop.xlane.xlu0 %1884
      %v1886 = vsel %vm1753, %v1843, 0.0
      %1887 = vadd.xlane.f32.xlu0 %v1886
      %v1888 = vpop.xlane.xlu0 %1887
      %v1889 = vsel %vm1753, %v1845, 0.0
      %1890 = vadd.xlane.f32.xlu0 %v1889
      %v1891 = vpop.xlane.xlu0 %1890
      %v1892 = vsel %vm1753, %v1847, 0.0
      %1893 = vadd.xlane.f32.xlu0 %v1892
      %v1894 = vpop.xlane.xlu0 %1893
      %v1895 = vsel %vm1753, %v1849, 0.0
      %1896 = vadd.xlane.f32.xlu0 %v1895
      %v1897 = vpop.xlane.xlu0 %1896
      %v1898 = vrcp.pop %v1852
      %v1899 = vrcp.pop %v1855
      %v1900 = vrcp.pop %v1858
      %v1901 = vrcp.pop %v1861
      %v1902 = vrcp.pop %v1864
      %v1903 = vrcp.pop %v1867
      %v1904 = vrcp.pop %v1870
      %v1905 = vrcp.pop %v1873
      %v1906 = vrcp.pop %v1876
      %v1907 = vrcp.pop %v1879
      %v1908 = vrcp.pop %v1882
      %v1909 = vrcp.pop %v1885
      %v1910 = vrcp.pop %v1888
      %v1911 = vrcp.pop %v1891
      %v1912 = vrcp.pop %v1894
      %v1913 = vrcp.pop %v1897
      %v1914 = vmul.f32 %v1819, %v1898
      %v1915 = vmul.f32 %v1821, %v1899
      %v1916 = vmul.f32 %v1823, %v1900
      %v1917 = vmul.f32 %v1825, %v1901
      %v1918 = vmul.f32 %v1827, %v1902
      %v1919 = vmul.f32 %v1829, %v1903
      %v1920 = vmul.f32 %v1831, %v1904
      %v1921 = vmul.f32 %v1833, %v1905
      %v1922 = vmul.f32 %v1835, %v1906
      %v1923 = vmul.f32 %v1837, %v1907
      %v1924 = vmul.f32 %v1839, %v1908
      %v1925 = vmul.f32 %v1841, %v1909
      %v1926 = vmul.f32 %v1843, %v1910
      %v1927 = vmul.f32 %v1845, %v1911
      %v1928 = vmul.f32 %v1847, %v1912
      %v1929 = vmul.f32 %v1849, %v1913
      %v1930 = vpack.c.bf16 %v1915, %v1914
      %v1931 = vpack.c.bf16 %v1917, %v1916
      %v1932 = vpack.c.bf16 %v1919, %v1918
      %v1933 = vpack.c.bf16 %v1921, %v1920
      %v1934 = vpack.c.bf16 %v1923, %v1922
      %v1935 = vpack.c.bf16 %v1925, %v1924
      %v1936 = vpack.c.bf16 %v1927, %v1926
      %v1937 = vpack.c.bf16 %v1929, %v1928
      %v1939 = vsel %vm1753, %v1930, 0
      %1941 = vmatprep.subr.bf16.mxu0 0
      %1942 = vmatpush1.bf16.msra.mxu0 %v1354
      %1943 = vmatprep.subr.bf16.mxu0 0
      %1944 = vmatpush1.bf16.msra.mxu0 0
      %1945 = vmatprep.subr.bf16.mxu0 0
      %1946 = vmatpush1.bf16.msra.mxu0 0
      %1947 = vmatprep.subr.bf16.mxu0 0
      %1948 = vmatpush1.bf16.msra.mxu0 0
      %1949 = vmatprep.subr.bf16.mxu0 0
      %1950 = vmatpush1.bf16.msra.mxu0 0
      %1951 = vmatprep.subr.bf16.mxu0 0
      %1952 = vmatpush1.bf16.msra.mxu0 0
      %1953 = vmatprep.subr.bf16.mxu0 0
      %1954 = vmatpush1.bf16.msra.mxu0 0
      %1955 = vmatprep.subr.bf16.mxu0 0
      %1956 = vmatpush1.bf16.msra.mxu0 0
      %1957 = vmatprep.subr.bf16.mxu0 0
      %1958 = vmatpush1.bf16.msra.mxu0 0
      %1959 = vmatprep.subr.bf16.mxu0 0
      %1960 = vmatpush1.bf16.msra.mxu0 0
      %1961 = vmatprep.subr.bf16.mxu0 0
      %1962 = vmatpush1.bf16.msra.mxu0 0
      %1963 = vmatprep.subr.bf16.mxu0 0
      %1964 = vmatpush1.bf16.msra.mxu0 0
      %1965 = vmatprep.subr.bf16.mxu0 0
      %1966 = vmatpush1.bf16.msra.mxu0 0
      %1967 = vmatprep.subr.bf16.mxu0 0
      %1968 = vmatpush1.bf16.msra.mxu0 0
      %1969 = vmatprep.subr.bf16.mxu0 0
      %1970 = vmatpush1.bf16.msra.mxu0 0
      %1971 = vmatprep.subr.bf16.mxu0 0
      %1972 = vmatpush1.bf16.msra.mxu0 0
      %1973 = vmatprep.mubr.bf16.mxu0 0
      %1974 = vmatmul.mubr.bf16.gmra.mrb[0].mxu0 %v1939
      %v1975 = vpop.f32.mrb[0].mxu0
      %v1976 = vadd.f32 0.0, %v1975
      %v1977 = vpop.f32.mrb[0].mxu0
      %v1978 = vpop.f32.mrb[0].mxu0
      %v1979 = vadd.f32 0.0, %v1978
      %v1980 = vpop.f32.mrb[0].mxu0
      %1981 = vdwg.mxu0
      %v1983 = vsel %vm1753, %v1931, 0
      %1985 = vmatprep.subr.bf16.mxu0 0
      %1986 = vmatpush1.bf16.msra.mxu0 %v1357
      %1987 = vmatprep.subr.bf16.mxu0 0
      %1988 = vmatpush1.bf16.msra.mxu0 0
      %1989 = vmatprep.subr.bf16.mxu0 0
      %1990 = vmatpush1.bf16.msra.mxu0 0
      %1991 = vmatprep.subr.bf16.mxu0 0
      %1992 = vmatpush1.bf16.msra.mxu0 0
      %1993 = vmatprep.subr.bf16.mxu0 0
      %1994 = vmatpush1.bf16.msra.mxu0 0
      %1995 = vmatprep.subr.bf16.mxu0 0
      %1996 = vmatpush1.bf16.msra.mxu0 0
      %1997 = vmatprep.subr.bf16.mxu0 0
      %1998 = vmatpush1.bf16.msra.mxu0 0
      %1999 = vmatprep.subr.bf16.mxu0 0
      %2000 = vmatpush1.bf16.msra.mxu0 0
      %2001 = vmatprep.subr.bf16.mxu0 0
      %2002 = vmatpush1.bf16.msra.mxu0 0
      %2003 = vmatprep.subr.bf16.mxu0 0
      %2004 = vmatpush1.bf16.msra.mxu0 0
      %2005 = vmatprep.subr.bf16.mxu0 0
      %2006 = vmatpush1.bf16.msra.mxu0 0
      %2007 = vmatprep.subr.bf16.mxu0 0
      %2008 = vmatpush1.bf16.msra.mxu0 0
      %2009 = vmatprep.subr.bf16.mxu0 0
      %2010 = vmatpush1.bf16.msra.mxu0 0
      %2011 = vmatprep.subr.bf16.mxu0 0
      %2012 = vmatpush1.bf16.msra.mxu0 0
      %2013 = vmatprep.subr.bf16.mxu0 0
      %2014 = vmatpush1.bf16.msra.mxu0 0
      %2015 = vmatprep.subr.bf16.mxu0 0
      %2016 = vmatpush1.bf16.msra.mxu0 0
      %2017 = vmatprep.mubr.bf16.mxu0 0
      %2018 = vmatmul.mubr.bf16.gmra.mrb[0].mxu0 %v1983
      %v2019 = vpop.f32.mrb[0].mxu0
      %v2020 = vadd.f32 0.0, %v2019
      %v2021 = vpop.f32.mrb[0].mxu0
      %v2022 = vpop.f32.mrb[0].mxu0
      %v2023 = vadd.f32 0.0, %v2022
      %v2024 = vpop.f32.mrb[0].mxu0
      %2025 = vdwg.mxu0
      %v2027 = vsel %vm1753, %v1932, 0
      %2029 = vmatprep.subr.bf16.mxu0 0
      %2030 = vmatpush1.bf16.msra.mxu0 %v1360
      %2031 = vmatprep.subr.bf16.mxu0 0
      %2032 = vmatpush1.bf16.msra.mxu0 0
      %2033 = vmatprep.subr.bf16.mxu0 0
      %2034 = vmatpush1.bf16.msra.mxu0 0
      %2035 = vmatprep.subr.bf16.mxu0 0
      %2036 = vmatpush1.bf16.msra.mxu0 0
      %2037 = vmatprep.subr.bf16.mxu0 0
      %2038 = vmatpush1.bf16.msra.mxu0 0
      %2039 = vmatprep.subr.bf16.mxu0 0
      %2040 = vmatpush1.bf16.msra.mxu0 0
      %2041 = vmatprep.subr.bf16.mxu0 0
      %2042 = vmatpush1.bf16.msra.mxu0 0
      %2043 = vmatprep.subr.bf16.mxu0 0
      %2044 = vmatpush1.bf16.msra.mxu0 0
      %2045 = vmatprep.subr.bf16.mxu0 0
      %2046 = vmatpush1.bf16.msra.mxu0 0
      %2047 = vmatprep.subr.bf16.mxu0 0
      %2048 = vmatpush1.bf16.msra.mxu0 0
      %2049 = vmatprep.subr.bf16.mxu0 0
      %2050 = vmatpush1.bf16.msra.mxu0 0
      %2051 = vmatprep.subr.bf16.mxu0 0
      %2052 = vmatpush1.bf16.msra.mxu0 0
      %2053 = vmatprep.subr.bf16.mxu0 0
      %2054 = vmatpush1.bf16.msra.mxu0 0
      %2055 = vmatprep.subr.bf16.mxu0 0
      %2056 = vmatpush1.bf16.msra.mxu0 0
      %2057 = vmatprep.subr.bf16.mxu0 0
      %2058 = vmatpush1.bf16.msra.mxu0 0
      %2059 = vmatprep.subr.bf16.mxu0 0
      %2060 = vmatpush1.bf16.msra.mxu0 0
      %2061 = vmatprep.mubr.bf16.mxu0 0
      %2062 = vmatmul.mubr.bf16.gmra.mrb[0].mxu0 %v2027
      %v2063 = vpop.f32.mrb[0].mxu0
      %v2064 = vadd.f32 0.0, %v2063
      %v2065 = vpop.f32.mrb[0].mxu0
      %v2066 = vpop.f32.mrb[0].mxu0
      %v2067 = vadd.f32 0.0, %v2066
      %v2068 = vpop.f32.mrb[0].mxu0
      %2069 = vdwg.mxu0
      %v2071 = vsel %vm1753, %v1933, 0
      %2073 = vmatprep.subr.bf16.mxu0 0
      %2074 = vmatpush1.bf16.msra.mxu0 %v1363
      %2075 = vmatprep.subr.bf16.mxu0 0
      %2076 = vmatpush1.bf16.msra.mxu0 0
      %2077 = vmatprep.subr.bf16.mxu0 0
      %2078 = vmatpush1.bf16.msra.mxu0 0
      %2079 = vmatprep.subr.bf16.mxu0 0
      %2080 = vmatpush1.bf16.msra.mxu0 0
      %2081 = vmatprep.subr.bf16.mxu0 0
      %2082 = vmatpush1.bf16.msra.mxu0 0
      %2083 = vmatprep.subr.bf16.mxu0 0
      %2084 = vmatpush1.bf16.msra.mxu0 0
      %2085 = vmatprep.subr.bf16.mxu0 0
      %2086 = vmatpush1.bf16.msra.mxu0 0
      %2087 = vmatprep.subr.bf16.mxu0 0
      %2088 = vmatpush1.bf16.msra.mxu0 0
      %2089 = vmatprep.subr.bf16.mxu0 0
      %2090 = vmatpush1.bf16.msra.mxu0 0
      %2091 = vmatprep.subr.bf16.mxu0 0
      %2092 = vmatpush1.bf16.msra.mxu0 0
      %2093 = vmatprep.subr.bf16.mxu0 0
      %2094 = vmatpush1.bf16.msra.mxu0 0
      %2095 = vmatprep.subr.bf16.mxu0 0
      %2096 = vmatpush1.bf16.msra.mxu0 0
      %2097 = vmatprep.subr.bf16.mxu0 0
      %2098 = vmatpush1.bf16.msra.mxu0 0
      %2099 = vmatprep.subr.bf16.mxu0 0
      %2100 = vmatpush1.bf16.msra.mxu0 0
      %2101 = vmatprep.subr.bf16.mxu0 0
      %2102 = vmatpush1.bf16.msra.mxu0 0
      %2103 = vmatprep.subr.bf16.mxu0 0
      %2104 = vmatpush1.bf16.msra.mxu0 0
      %2105 = vmatprep.mubr.bf16.mxu0 0
      %2106 = vmatmul.mubr.bf16.gmra.mrb[0].mxu0 %v2071
      %v2107 = vpop.f32.mrb[0].mxu0
      %v2108 = vadd.f32 0.0, %v2107
      %v2109 = vpop.f32.mrb[0].mxu0
      %v2110 = vpop.f32.mrb[0].mxu0
      %v2111 = vadd.f32 0.0, %v2110
      %v2112 = vpop.f32.mrb[0].mxu0
      %2113 = vdwg.mxu0
      %v2115 = vsel %vm1753, %v1934, 0
      %2117 = vmatprep.subr.bf16.mxu0 0
      %2118 = vmatpush1.bf16.msra.mxu0 %v1366
      %2119 = vmatprep.subr.bf16.mxu0 0
      %2120 = vmatpush1.bf16.msra.mxu0 0
      %2121 = vmatprep.subr.bf16.mxu0 0
      %2122 = vmatpush1.bf16.msra.mxu0 0
      %2123 = vmatprep.subr.bf16.mxu0 0
      %2124 = vmatpush1.bf16.msra.mxu0 0
      %2125 = vmatprep.subr.bf16.mxu0 0
      %2126 = vmatpush1.bf16.msra.mxu0 0
      %2127 = vmatprep.subr.bf16.mxu0 0
      %2128 = vmatpush1.bf16.msra.mxu0 0
      %2129 = vmatprep.subr.bf16.mxu0 0
      %2130 = vmatpush1.bf16.msra.mxu0 0
      %2131 = vmatprep.subr.bf16.mxu0 0
      %2132 = vmatpush1.bf16.msra.mxu0 0
      %2133 = vmatprep.subr.bf16.mxu0 0
      %2134 = vmatpush1.bf16.msra.mxu0 0
      %2135 = vmatprep.subr.bf16.mxu0 0
      %2136 = vmatpush1.bf16.msra.mxu0 0
      %2137 = vmatprep.subr.bf16.mxu0 0
      %2138 = vmatpush1.bf16.msra.mxu0 0
      %2139 = vmatprep.subr.bf16.mxu0 0
      %2140 = vmatpush1.bf16.msra.mxu0 0
      %2141 = vmatprep.subr.bf16.mxu0 0
      %2142 = vmatpush1.bf16.msra.mxu0 0
      %2143 = vmatprep.subr.bf16.mxu0 0
      %2144 = vmatpush1.bf16.msra.mxu0 0
      %2145 = vmatprep.subr.bf16.mxu0 0
      %2146 = vmatpush1.bf16.msra.mxu0 0
      %2147 = vmatprep.subr.bf16.mxu0 0
      %2148 = vmatpush1.bf16.msra.mxu0 0
      %2149 = vmatprep.mubr.bf16.mxu0 0
      %2150 = vmatmul.mubr.bf16.gmra.mrb[0].mxu0 %v2115
      %v2151 = vpop.f32.mrb[0].mxu0
      %v2152 = vadd.f32 0.0, %v2151
      %v2153 = vpop.f32.mrb[0].mxu0
      %v2154 = vpop.f32.mrb[0].mxu0
      %v2155 = vadd.f32 0.0, %v2154
      %v2156 = vpop.f32.mrb[0].mxu0
      %2157 = vdwg.mxu0
      %v2159 = vsel %vm1753, %v1935, 0
      %2161 = vmatprep.subr.bf16.mxu0 0
      %2162 = vmatpush1.bf16.msra.mxu0 %v1369
      %2163 = vmatprep.subr.bf16.mxu0 0
      %2164 = vmatpush1.bf16.msra.mxu0 0
      %2165 = vmatprep.subr.bf16.mxu0 0
      %2166 = vmatpush1.bf16.msra.mxu0 0
      %2167 = vmatprep.subr.bf16.mxu0 0
      %2168 = vmatpush1.bf16.msra.mxu0 0
      %2169 = vmatprep.subr.bf16.mxu0 0
      %2170 = vmatpush1.bf16.msra.mxu0 0
      %2171 = vmatprep.subr.bf16.mxu0 0
      %2172 = vmatpush1.bf16.msra.mxu0 0
      %2173 = vmatprep.subr.bf16.mxu0 0
      %2174 = vmatpush1.bf16.msra.mxu0 0
      %2175 = vmatprep.subr.bf16.mxu0 0
      %2176 = vmatpush1.bf16.msra.mxu0 0
      %2177 = vmatprep.subr.bf16.mxu0 0
      %2178 = vmatpush1.bf16.msra.mxu0 0
      %2179 = vmatprep.subr.bf16.mxu0 0
      %2180 = vmatpush1.bf16.msra.mxu0 0
      %2181 = vmatprep.subr.bf16.mxu0 0
      %2182 = vmatpush1.bf16.msra.mxu0 0
      %2183 = vmatprep.subr.bf16.mxu0 0
      %2184 = vmatpush1.bf16.msra.mxu0 0
      %2185 = vmatprep.subr.bf16.mxu0 0
      %2186 = vmatpush1.bf16.msra.mxu0 0
      %2187 = vmatprep.subr.bf16.mxu0 0
      %2188 = vmatpush1.bf16.msra.mxu0 0
      %2189 = vmatprep.subr.bf16.mxu0 0
      %2190 = vmatpush1.bf16.msra.mxu0 0
      %2191 = vmatprep.subr.bf16.mxu0 0
      %2192 = vmatpush1.bf16.msra.mxu0 0
      %2193 = vmatprep.mubr.bf16.mxu0 0
      %2194 = vmatmul.mubr.bf16.gmra.mrb[0].mxu0 %v2159
      %v2195 = vpop.f32.mrb[0].mxu0
      %v2196 = vadd.f32 0.0, %v2195
      %v2197 = vpop.f32.mrb[0].mxu0
      %v2198 = vpop.f32.mrb[0].mxu0
      %v2199 = vadd.f32 0.0, %v2198
      %v2200 = vpop.f32.mrb[0].mxu0
      %2201 = vdwg.mxu0
      %v2203 = vsel %vm1753, %v1936, 0
      %2205 = vmatprep.subr.bf16.mxu0 0
      %2206 = vmatpush1.bf16.msra.mxu0 %v1372
      %2207 = vmatprep.subr.bf16.mxu0 0
      %2208 = vmatpush1.bf16.msra.mxu0 0
      %2209 = vmatprep.subr.bf16.mxu0 0
      %2210 = vmatpush1.bf16.msra.mxu0 0
      %2211 = vmatprep.subr.bf16.mxu0 0
      %2212 = vmatpush1.bf16.msra.mxu0 0
      %2213 = vmatprep.subr.bf16.mxu0 0
      %2214 = vmatpush1.bf16.msra.mxu0 0
      %2215 = vmatprep.subr.bf16.mxu0 0
      %2216 = vmatpush1.bf16.msra.mxu0 0
      %2217 = vmatprep.subr.bf16.mxu0 0
      %2218 = vmatpush1.bf16.msra.mxu0 0
      %2219 = vmatprep.subr.bf16.mxu0 0
      %2220 = vmatpush1.bf16.msra.mxu0 0
      %2221 = vmatprep.subr.bf16.mxu0 0
      %2222 = vmatpush1.bf16.msra.mxu0 0
      %2223 = vmatprep.subr.bf16.mxu0 0
      %2224 = vmatpush1.bf16.msra.mxu0 0
      %2225 = vmatprep.subr.bf16.mxu0 0
      %2226 = vmatpush1.bf16.msra.mxu0 0
      %2227 = vmatprep.subr.bf16.mxu0 0
      %2228 = vmatpush1.bf16.msra.mxu0 0
      %2229 = vmatprep.subr.bf16.mxu0 0
      %2230 = vmatpush1.bf16.msra.mxu0 0
      %2231 = vmatprep.subr.bf16.mxu0 0
      %2232 = vmatpush1.bf16.msra.mxu0 0
      %2233 = vmatprep.subr.bf16.mxu0 0
      %2234 = vmatpush1.bf16.msra.mxu0 0
      %2235 = vmatprep.subr.bf16.mxu0 0
      %2236 = vmatpush1.bf16.msra.mxu0 0
      %2237 = vmatprep.mubr.bf16.mxu0 0
      %2238 = vmatmul.mubr.bf16.gmra.mrb[0].mxu0 %v2203
      %v2239 = vpop.f32.mrb[0].mxu0
      %v2240 = vadd.f32 0.0, %v2239
      %v2241 = vpop.f32.mrb[0].mxu0
      %v2242 = vpop.f32.mrb[0].mxu0
      %v2243 = vadd.f32 0.0, %v2242
      %v2244 = vpop.f32.mrb[0].mxu0
      %2245 = vdwg.mxu0
      %v2247 = vsel %vm1753, %v1937, 0
      %2249 = vmatprep.subr.bf16.mxu0 0
      %2250 = vmatpush1.bf16.msra.mxu0 %v1375
      %2251 = vmatprep.subr.bf16.mxu0 0
      %2252 = vmatpush1.bf16.msra.mxu0 0
      %2253 = vmatprep.subr.bf16.mxu0 0
      %2254 = vmatpush1.bf16.msra.mxu0 0
      %2255 = vmatprep.subr.bf16.mxu0 0
      %2256 = vmatpush1.bf16.msra.mxu0 0
      %2257 = vmatprep.subr.bf16.mxu0 0
      %2258 = vmatpush1.bf16.msra.mxu0 0
      %2259 = vmatprep.subr.bf16.mxu0 0
      %2260 = vmatpush1.bf16.msra.mxu0 0
      %2261 = vmatprep.subr.bf16.mxu0 0
      %2262 = vmatpush1.bf16.msra.mxu0 0
      %2263 = vmatprep.subr.bf16.mxu0 0
      %2264 = vmatpush1.bf16.msra.mxu0 0
      %2265 = vmatprep.subr.bf16.mxu0 0
      %2266 = vmatpush1.bf16.msra.mxu0 0
      %2267 = vmatprep.subr.bf16.mxu0 0
      %2268 = vmatpush1.bf16.msra.mxu0 0
      %2269 = vmatprep.subr.bf16.mxu0 0
      %2270 = vmatpush1.bf16.msra.mxu0 0
      %2271 = vmatprep.subr.bf16.mxu0 0
      %2272 = vmatpush1.bf16.msra.mxu0 0
      %2273 = vmatprep.subr.bf16.mxu0 0
      %2274 = vmatpush1.bf16.msra.mxu0 0
      %2275 = vmatprep.subr.bf16.mxu0 0
      %2276 = vmatpush1.bf16.msra.mxu0 0
      %2277 = vmatprep.subr.bf16.mxu0 0
      %2278 = vmatpush1.bf16.msra.mxu0 0
      %2279 = vmatprep.subr.bf16.mxu0 0
      %2280 = vmatpush1.bf16.msra.mxu0 0
      %2281 = vmatprep.mubr.bf16.mxu0 0
      %2282 = vmatmul.mubr.bf16.gmra.mrb[0].mxu0 %v2247
      %v2283 = vpop.f32.mrb[0].mxu0
      %v2284 = vadd.f32 0.0, %v2283
      %v2285 = vpop.f32.mrb[0].mxu0
      %v2286 = vpop.f32.mrb[0].mxu0
      %v2287 = vadd.f32 0.0, %v2286
      %v2288 = vpop.f32.mrb[0].mxu0
      %2289 = vdwg.mxu0
      %2290 = vst.msk [vmem:[#allocation3] sm:$0xff] %vm1376, %v1976
      %2291 = vst.msk [vmem:[#allocation3 + $0x8] sm:$0xff] %vm1376, %v1979
      %2292 = vst.msk [vmem:[#allocation3 + $0x10] sm:$0xff] %vm1376, %v2020
      %2293 = vst.msk [vmem:[#allocation3 + $0x18] sm:$0xff] %vm1376, %v2023
      %2294 = vst.msk [vmem:[#allocation3 + $0x20] sm:$0xff] %vm1376, %v2064
      %2295 = vst.msk [vmem:[#allocation3 + $0x28] sm:$0xff] %vm1376, %v2067
      %2296 = vst.msk [vmem:[#allocation3 + $0x30] sm:$0xff] %vm1376, %v2108
      %2297 = vst.msk [vmem:[#allocation3 + $0x38] sm:$0xff] %vm1376, %v2111
      %2298 = vst.msk [vmem:[#allocation3 + $0x40] sm:$0xff] %vm1376, %v2152
      %2299 = vst.msk [vmem:[#allocation3 + $0x48] sm:$0xff] %vm1376, %v2155
      %2300 = vst.msk [vmem:[#allocation3 + $0x50] sm:$0xff] %vm1376, %v2196
      %2301 = vst.msk [vmem:[#allocation3 + $0x58] sm:$0xff] %vm1376, %v2199
      %2302 = vst.msk [vmem:[#allocation3 + $0x60] sm:$0xff] %vm1376, %v2240
      %2303 = vst.msk [vmem:[#allocation3 + $0x68] sm:$0xff] %vm1376, %v2243
      %2304 = vst.msk [vmem:[#allocation3 + $0x70] sm:$0xff] %vm1376, %v2284
      %2305 = vst.msk [vmem:[#allocation3 + $0x78] sm:$0xff] %vm1376, %v2287
      %2307 = vrot.lane.b32.xlu0 %v1352, 96
      %v2308 = vpop.permute.xlu0 %2307
      %2310 = vrot.lane.b32.xlu0 %v1353, 96
      %v2311 = vpop.permute.xlu0 %2310
      %v2313 = vsel %vm1376, %v2308, 0
      %v2316 = vsel %vm1376, %v2311, 0
      %2318 = vmatprep.subr.bf16.mxu0 0
      %2319 = vmatpush1.bf16.xpose.msra.mxu0 %v2316
      %2320 = vmatprep.subr.bf16.mxu0 0
      %2321 = vmatpush1.bf16.xpose.msra.mxu0 0
      %2322 = vmatprep.subr.bf16.mxu0 0
      %2323 = vmatpush1.bf16.xpose.msra.mxu0 0
      %2324 = vmatprep.subr.bf16.mxu0 0
      %2325 = vmatpush1.bf16.xpose.msra.mxu0 0
      %2326 = vmatprep.subr.bf16.mxu0 0
      %2327 = vmatpush1.bf16.xpose.msra.mxu0 0
      %2328 = vmatprep.subr.bf16.mxu0 0
      %2329 = vmatpush1.bf16.xpose.msra.mxu0 0
      %2330 = vmatprep.subr.bf16.mxu0 0
      %2331 = vmatpush1.bf16.xpose.msra.mxu0 0
      %2332 = vmatprep.subr.bf16.mxu0 0
      %2333 = vmatpush1.bf16.xpose.msra.mxu0 0
      %2334 = vmatprep.subr.bf16.mxu0 0
      %2335 = vmatpush1.bf16.xpose.msra.mxu0 0
      %2336 = vmatprep.subr.bf16.mxu0 0
      %2337 = vmatpush1.bf16.xpose.msra.mxu0 0
      %2338 = vmatprep.subr.bf16.mxu0 0
      %2339 = vmatpush1.bf16.xpose.msra.mxu0 0
      %2340 = vmatprep.subr.bf16.mxu0 0
      %2341 = vmatpush1.bf16.xpose.msra.mxu0 0
      %2342 = vmatprep.subr.bf16.mxu0 0
      %2343 = vmatpush1.bf16.xpose.msra.mxu0 0
      %2344 = vmatprep.subr.bf16.mxu0 0
      %2345 = vmatpush1.bf16.xpose.msra.mxu0 0
      %2346 = vmatprep.subr.bf16.mxu0 0
      %2347 = vmatpush1.bf16.xpose.msra.mxu0 0
      %2348 = vmatprep.subr.bf16.mxu0 0
      %2349 = vmatpush1.bf16.xpose.msra.mxu0 0
      %2350 = vmatprep.mubr.bf16.mxu0 0
      %2351 = vmatmul.mubr.bf16.gmra.mrb[0].mxu0 %v2313
      %v2352 = vpop.f32.mrb[0].mxu0
      %v2353 = vadd.f32 0.0, %v2352
      %v2354 = vpop.f32.mrb[0].mxu0
      %v2355 = vpop.f32.mrb[0].mxu0
      %v2356 = vadd.f32 0.0, %v2355
      %v2357 = vpop.f32.mrb[0].mxu0
      %2358 = vdwg.mxu0
      %2360 = vrot.lane.b32.xlu0 %v1355, 96
      %v2361 = vpop.permute.xlu0 %2360
      %2363 = vrot.lane.b32.xlu0 %v1356, 96
      %v2364 = vpop.permute.xlu0 %2363
      %v2366 = vsel %vm1376, %v2361, 0
      %v2369 = vsel %vm1376, %v2364, 0
      %2371 = vmatprep.subr.bf16.mxu0 0
      %2372 = vmatpush1.bf16.xpose.msra.mxu0 %v2369
      %2373 = vmatprep.subr.bf16.mxu0 0
      %2374 = vmatpush1.bf16.xpose.msra.mxu0 0
      %2375 = vmatprep.subr.bf16.mxu0 0
      %2376 = vmatpush1.bf16.xpose.msra.mxu0 0
      %2377 = vmatprep.subr.bf16.mxu0 0
      %2378 = vmatpush1.bf16.xpose.msra.mxu0 0
      %2379 = vmatprep.subr.bf16.mxu0 0
      %2380 = vmatpush1.bf16.xpose.msra.mxu0 0
      %2381 = vmatprep.subr.bf16.mxu0 0
      %2382 = vmatpush1.bf16.xpose.msra.mxu0 0
      %2383 = vmatprep.subr.bf16.mxu0 0
      %2384 = vmatpush1.bf16.xpose.msra.mxu0 0
      %2385 = vmatprep.subr.bf16.mxu0 0
      %2386 = vmatpush1.bf16.xpose.msra.mxu0 0
      %2387 = vmatprep.subr.bf16.mxu0 0
      %2388 = vmatpush1.bf16.xpose.msra.mxu0 0
      %2389 = vmatprep.subr.bf16.mxu0 0
      %2390 = vmatpush1.bf16.xpose.msra.mxu0 0
      %2391 = vmatprep.subr.bf16.mxu0 0
      %2392 = vmatpush1.bf16.xpose.msra.mxu0 0
      %2393 = vmatprep.subr.bf16.mxu0 0
      %2394 = vmatpush1.bf16.xpose.msra.mxu0 0
      %2395 = vmatprep.subr.bf16.mxu0 0
      %2396 = vmatpush1.bf16.xpose.msra.mxu0 0
      %2397 = vmatprep.subr.bf16.mxu0 0
      %2398 = vmatpush1.bf16.xpose.msra.mxu0 0
      %2399 = vmatprep.subr.bf16.mxu0 0
      %2400 = vmatpush1.bf16.xpose.msra.mxu0 0
      %2401 = vmatprep.subr.bf16.mxu0 0
      %2402 = vmatpush1.bf16.xpose.msra.mxu0 0
      %2403 = vmatprep.mubr.bf16.mxu0 0
      %2404 = vmatmul.mubr.bf16.gmra.mrb[0].mxu0 %v2366
      %v2405 = vpop.f32.mrb[0].mxu0
      %v2406 = vadd.f32 0.0, %v2405
      %v2407 = vpop.f32.mrb[0].mxu0
      %v2408 = vpop.f32.mrb[0].mxu0
      %v2409 = vadd.f32 0.0, %v2408
      %v2410 = vpop.f32.mrb[0].mxu0
      %2411 = vdwg.mxu0
      %2413 = vrot.lane.b32.xlu0 %v1358, 96
      %v2414 = vpop.permute.xlu0 %2413
      %2416 = vrot.lane.b32.xlu0 %v1359, 96
      %v2417 = vpop.permute.xlu0 %2416
      %v2419 = vsel %vm1376, %v2414, 0
      %v2422 = vsel %vm1376, %v2417, 0
      %2424 = vmatprep.subr.bf16.mxu0 0
      %2425 = vmatpush1.bf16.xpose.msra.mxu0 %v2422
      %2426 = vmatprep.subr.bf16.mxu0 0
      %2427 = vmatpush1.bf16.xpose.msra.mxu0 0
      %2428 = vmatprep.subr.bf16.mxu0 0
      %2429 = vmatpush1.bf16.xpose.msra.mxu0 0
      %2430 = vmatprep.subr.bf16.mxu0 0
      %2431 = vmatpush1.bf16.xpose.msra.mxu0 0
      %2432 = vmatprep.subr.bf16.mxu0 0
      %2433 = vmatpush1.bf16.xpose.msra.mxu0 0
      %2434 = vmatprep.subr.bf16.mxu0 0
      %2435 = vmatpush1.bf16.xpose.msra.mxu0 0
      %2436 = vmatprep.subr.bf16.mxu0 0
      %2437 = vmatpush1.bf16.xpose.msra.mxu0 0
      %2438 = vmatprep.subr.bf16.mxu0 0
      %2439 = vmatpush1.bf16.xpose.msra.mxu0 0
      %2440 = vmatprep.subr.bf16.mxu0 0
      %2441 = vmatpush1.bf16.xpose.msra.mxu0 0
      %2442 = vmatprep.subr.bf16.mxu0 0
      %2443 = vmatpush1.bf16.xpose.msra.mxu0 0
      %2444 = vmatprep.subr.bf16.mxu0 0
      %2445 = vmatpush1.bf16.xpose.msra.mxu0 0
      %2446 = vmatprep.subr.bf16.mxu0 0
      %2447 = vmatpush1.bf16.xpose.msra.mxu0 0
      %2448 = vmatprep.subr.bf16.mxu0 0
      %2449 = vmatpush1.bf16.xpose.msra.mxu0 0
      %2450 = vmatprep.subr.bf16.mxu0 0
      %2451 = vmatpush1.bf16.xpose.msra.mxu0 0
      %2452 = vmatprep.subr.bf16.mxu0 0
      %2453 = vmatpush1.bf16.xpose.msra.mxu0 0
      %2454 = vmatprep.subr.bf16.mxu0 0
      %2455 = vmatpush1.bf16.xpose.msra.mxu0 0
      %2456 = vmatprep.mubr.bf16.mxu0 0
      %2457 = vmatmul.mubr.bf16.gmra.mrb[0].mxu0 %v2419
      %v2458 = vpop.f32.mrb[0].mxu0
      %v2459 = vadd.f32 0.0, %v2458
      %v2460 = vpop.f32.mrb[0].mxu0
      %v2461 = vpop.f32.mrb[0].mxu0
      %v2462 = vadd.f32 0.0, %v2461
      %v2463 = vpop.f32.mrb[0].mxu0
      %2464 = vdwg.mxu0
      %2466 = vrot.lane.b32.xlu0 %v1361, 96
      %v2467 = vpop.permute.xlu0 %2466
      %2469 = vrot.lane.b32.xlu0 %v1362, 96
      %v2470 = vpop.permute.xlu0 %2469
      %v2472 = vsel %vm1376, %v2467, 0
      %v2475 = vsel %vm1376, %v2470, 0
      %2477 = vmatprep.subr.bf16.mxu0 0
      %2478 = vmatpush1.bf16.xpose.msra.mxu0 %v2475
      %2479 = vmatprep.subr.bf16.mxu0 0
      %2480 = vmatpush1.bf16.xpose.msra.mxu0 0
      %2481 = vmatprep.subr.bf16.mxu0 0
      %2482 = vmatpush1.bf16.xpose.msra.mxu0 0
      %2483 = vmatprep.subr.bf16.mxu0 0
      %2484 = vmatpush1.bf16.xpose.msra.mxu0 0
      %2485 = vmatprep.subr.bf16.mxu0 0
      %2486 = vmatpush1.bf16.xpose.msra.mxu0 0
      %2487 = vmatprep.subr.bf16.mxu0 0
      %2488 = vmatpush1.bf16.xpose.msra.mxu0 0
      %2489 = vmatprep.subr.bf16.mxu0 0
      %2490 = vmatpush1.bf16.xpose.msra.mxu0 0
      %2491 = vmatprep.subr.bf16.mxu0 0
      %2492 = vmatpush1.bf16.xpose.msra.mxu0 0
      %2493 = vmatprep.subr.bf16.mxu0 0
      %2494 = vmatpush1.bf16.xpose.msra.mxu0 0
      %2495 = vmatprep.subr.bf16.mxu0 0
      %2496 = vmatpush1.bf16.xpose.msra.mxu0 0
      %2497 = vmatprep.subr.bf16.mxu0 0
      %2498 = vmatpush1.bf16.xpose.msra.mxu0 0
      %2499 = vmatprep.subr.bf16.mxu0 0
      %2500 = vmatpush1.bf16.xpose.msra.mxu0 0
      %2501 = vmatprep.subr.bf16.mxu0 0
      %2502 = vmatpush1.bf16.xpose.msra.mxu0 0
      %2503 = vmatprep.subr.bf16.mxu0 0
      %2504 = vmatpush1.bf16.xpose.msra.mxu0 0
      %2505 = vmatprep.subr.bf16.mxu0 0
      %2506 = vmatpush1.bf16.xpose.msra.mxu0 0
      %2507 = vmatprep.subr.bf16.mxu0 0
      %2508 = vmatpush1.bf16.xpose.msra.mxu0 0
      %2509 = vmatprep.mubr.bf16.mxu0 0
      %2510 = vmatmul.mubr.bf16.gmra.mrb[0].mxu0 %v2472
      %v2511 = vpop.f32.mrb[0].mxu0
      %v2512 = vadd.f32 0.0, %v2511
      %v2513 = vpop.f32.mrb[0].mxu0
      %v2514 = vpop.f32.mrb[0].mxu0
      %v2515 = vadd.f32 0.0, %v2514
      %v2516 = vpop.f32.mrb[0].mxu0
      %2517 = vdwg.mxu0
      %2519 = vrot.lane.b32.xlu0 %v1364, 96
      %v2520 = vpop.permute.xlu0 %2519
      %2522 = vrot.lane.b32.xlu0 %v1365, 96
      %v2523 = vpop.permute.xlu0 %2522
      %v2525 = vsel %vm1376, %v2520, 0
      %v2528 = vsel %vm1376, %v2523, 0
      %2530 = vmatprep.subr.bf16.mxu0 0
      %2531 = vmatpush1.bf16.xpose.msra.mxu0 %v2528
      %2532 = vmatprep.subr.bf16.mxu0 0
      %2533 = vmatpush1.bf16.xpose.msra.mxu0 0
      %2534 = vmatprep.subr.bf16.mxu0 0
      %2535 = vmatpush1.bf16.xpose.msra.mxu0 0
      %2536 = vmatprep.subr.bf16.mxu0 0
      %2537 = vmatpush1.bf16.xpose.msra.mxu0 0
      %2538 = vmatprep.subr.bf16.mxu0 0
      %2539 = vmatpush1.bf16.xpose.msra.mxu0 0
      %2540 = vmatprep.subr.bf16.mxu0 0
      %2541 = vmatpush1.bf16.xpose.msra.mxu0 0
      %2542 = vmatprep.subr.bf16.mxu0 0
      %2543 = vmatpush1.bf16.xpose.msra.mxu0 0
      %2544 = vmatprep.subr.bf16.mxu0 0
      %2545 = vmatpush1.bf16.xpose.msra.mxu0 0
      %2546 = vmatprep.subr.bf16.mxu0 0
      %2547 = vmatpush1.bf16.xpose.msra.mxu0 0
      %2548 = vmatprep.subr.bf16.mxu0 0
      %2549 = vmatpush1.bf16.xpose.msra.mxu0 0
      %2550 = vmatprep.subr.bf16.mxu0 0
      %2551 = vmatpush1.bf16.xpose.msra.mxu0 0
      %2552 = vmatprep.subr.bf16.mxu0 0
      %2553 = vmatpush1.bf16.xpose.msra.mxu0 0
      %2554 = vmatprep.subr.bf16.mxu0 0
      %2555 = vmatpush1.bf16.xpose.msra.mxu0 0
      %2556 = vmatprep.subr.bf16.mxu0 0
      %2557 = vmatpush1.bf16.xpose.msra.mxu0 0
      %2558 = vmatprep.subr.bf16.mxu0 0
      %2559 = vmatpush1.bf16.xpose.msra.mxu0 0
      %2560 = vmatprep.subr.bf16.mxu0 0
      %2561 = vmatpush1.bf16.xpose.msra.mxu0 0
      %2562 = vmatprep.mubr.bf16.mxu0 0
      %2563 = vmatmul.mubr.bf16.gmra.mrb[0].mxu0 %v2525
      %v2564 = vpop.f32.mrb[0].mxu0
      %v2565 = vadd.f32 0.0, %v2564
      %v2566 = vpop.f32.mrb[0].mxu0
      %v2567 = vpop.f32.mrb[0].mxu0
      %v2568 = vadd.f32 0.0, %v2567
      %v2569 = vpop.f32.mrb[0].mxu0
      %2570 = vdwg.mxu0
      %2572 = vrot.lane.b32.xlu0 %v1367, 96
      %v2573 = vpop.permute.xlu0 %2572
      %2575 = vrot.lane.b32.xlu0 %v1368, 96
      %v2576 = vpop.permute.xlu0 %2575
      %v2578 = vsel %vm1376, %v2573, 0
      %v2581 = vsel %vm1376, %v2576, 0
      %2583 = vmatprep.subr.bf16.mxu0 0
      %2584 = vmatpush1.bf16.xpose.msra.mxu0 %v2581
      %2585 = vmatprep.subr.bf16.mxu0 0
      %2586 = vmatpush1.bf16.xpose.msra.mxu0 0
      %2587 = vmatprep.subr.bf16.mxu0 0
      %2588 = vmatpush1.bf16.xpose.msra.mxu0 0
      %2589 = vmatprep.subr.bf16.mxu0 0
      %2590 = vmatpush1.bf16.xpose.msra.mxu0 0
      %2591 = vmatprep.subr.bf16.mxu0 0
      %2592 = vmatpush1.bf16.xpose.msra.mxu0 0
      %2593 = vmatprep.subr.bf16.mxu0 0
      %2594 = vmatpush1.bf16.xpose.msra.mxu0 0
      %2595 = vmatprep.subr.bf16.mxu0 0
      %2596 = vmatpush1.bf16.xpose.msra.mxu0 0
      %2597 = vmatprep.subr.bf16.mxu0 0
      %2598 = vmatpush1.bf16.xpose.msra.mxu0 0
      %2599 = vmatprep.subr.bf16.mxu0 0
      %2600 = vmatpush1.bf16.xpose.msra.mxu0 0
      %2601 = vmatprep.subr.bf16.mxu0 0
      %2602 = vmatpush1.bf16.xpose.msra.mxu0 0
      %2603 = vmatprep.subr.bf16.mxu0 0
      %2604 = vmatpush1.bf16.xpose.msra.mxu0 0
      %2605 = vmatprep.subr.bf16.mxu0 0
      %2606 = vmatpush1.bf16.xpose.msra.mxu0 0
      %2607 = vmatprep.subr.bf16.mxu0 0
      %2608 = vmatpush1.bf16.xpose.msra.mxu0 0
      %2609 = vmatprep.subr.bf16.mxu0 0
      %2610 = vmatpush1.bf16.xpose.msra.mxu0 0
      %2611 = vmatprep.subr.bf16.mxu0 0
      %2612 = vmatpush1.bf16.xpose.msra.mxu0 0
      %2613 = vmatprep.subr.bf16.mxu0 0
      %2614 = vmatpush1.bf16.xpose.msra.mxu0 0
      %2615 = vmatprep.mubr.bf16.mxu0 0
      %2616 = vmatmul.mubr.bf16.gmra.mrb[0].mxu0 %v2578
      %v2617 = vpop.f32.mrb[0].mxu0
      %v2618 = vadd.f32 0.0, %v2617
      %v2619 = vpop.f32.mrb[0].mxu0
      %v2620 = vpop.f32.mrb[0].mxu0
      %v2621 = vadd.f32 0.0, %v2620
      %v2622 = vpop.f32.mrb[0].mxu0
      %2623 = vdwg.mxu0
      %2625 = vrot.lane.b32.xlu0 %v1370, 96
      %v2626 = vpop.permute.xlu0 %2625
      %2628 = vrot.lane.b32.xlu0 %v1371, 96
      %v2629 = vpop.permute.xlu0 %2628
      %v2631 = vsel %vm1376, %v2626, 0
      %v2634 = vsel %vm1376, %v2629, 0
      %2636 = vmatprep.subr.bf16.mxu0 0
      %2637 = vmatpush1.bf16.xpose.msra.mxu0 %v2634
      %2638 = vmatprep.subr.bf16.mxu0 0
      %2639 = vmatpush1.bf16.xpose.msra.mxu0 0
      %2640 = vmatprep.subr.bf16.mxu0 0
      %2641 = vmatpush1.bf16.xpose.msra.mxu0 0
      %2642 = vmatprep.subr.bf16.mxu0 0
      %2643 = vmatpush1.bf16.xpose.msra.mxu0 0
      %2644 = vmatprep.subr.bf16.mxu0 0
      %2645 = vmatpush1.bf16.xpose.msra.mxu0 0
      %2646 = vmatprep.subr.bf16.mxu0 0
      %2647 = vmatpush1.bf16.xpose.msra.mxu0 0
      %2648 = vmatprep.subr.bf16.mxu0 0
      %2649 = vmatpush1.bf16.xpose.msra.mxu0 0
      %2650 = vmatprep.subr.bf16.mxu0 0
      %2651 = vmatpush1.bf16.xpose.msra.mxu0 0
      %2652 = vmatprep.subr.bf16.mxu0 0
      %2653 = vmatpush1.bf16.xpose.msra.mxu0 0
      %2654 = vmatprep.subr.bf16.mxu0 0
      %2655 = vmatpush1.bf16.xpose.msra.mxu0 0
      %2656 = vmatprep.subr.bf16.mxu0 0
      %2657 = vmatpush1.bf16.xpose.msra.mxu0 0
      %2658 = vmatprep.subr.bf16.mxu0 0
      %2659 = vmatpush1.bf16.xpose.msra.mxu0 0
      %2660 = vmatprep.subr.bf16.mxu0 0
      %2661 = vmatpush1.bf16.xpose.msra.mxu0 0
      %2662 = vmatprep.subr.bf16.mxu0 0
      %2663 = vmatpush1.bf16.xpose.msra.mxu0 0
      %2664 = vmatprep.subr.bf16.mxu0 0
      %2665 = vmatpush1.bf16.xpose.msra.mxu0 0
      %2666 = vmatprep.subr.bf16.mxu0 0
      %2667 = vmatpush1.bf16.xpose.msra.mxu0 0
      %2668 = vmatprep.mubr.bf16.mxu0 0
      %2669 = vmatmul.mubr.bf16.gmra.mrb[0].mxu0 %v2631
      %v2670 = vpop.f32.mrb[0].mxu0
      %v2671 = vadd.f32 0.0, %v2670
      %v2672 = vpop.f32.mrb[0].mxu0
      %v2673 = vpop.f32.mrb[0].mxu0
      %v2674 = vadd.f32 0.0, %v2673
      %v2675 = vpop.f32.mrb[0].mxu0
      %2676 = vdwg.mxu0
      %2678 = vrot.lane.b32.xlu0 %v1373, 96
      %v2679 = vpop.permute.xlu0 %2678
      %2681 = vrot.lane.b32.xlu0 %v1374, 96
      %v2682 = vpop.permute.xlu0 %2681
      %v2684 = vsel %vm1376, %v2679, 0
      %v2687 = vsel %vm1376, %v2682, 0
      %2689 = vmatprep.subr.bf16.mxu0 0
      %2690 = vmatpush1.bf16.xpose.msra.mxu0 %v2687
      %2691 = vmatprep.subr.bf16.mxu0 0
      %2692 = vmatpush1.bf16.xpose.msra.mxu0 0
      %2693 = vmatprep.subr.bf16.mxu0 0
      %2694 = vmatpush1.bf16.xpose.msra.mxu0 0
      %2695 = vmatprep.subr.bf16.mxu0 0
      %2696 = vmatpush1.bf16.xpose.msra.mxu0 0
      %2697 = vmatprep.subr.bf16.mxu0 0
      %2698 = vmatpush1.bf16.xpose.msra.mxu0 0
      %2699 = vmatprep.subr.bf16.mxu0 0
      %2700 = vmatpush1.bf16.xpose.msra.mxu0 0
      %2701 = vmatprep.subr.bf16.mxu0 0
      %2702 = vmatpush1.bf16.xpose.msra.mxu0 0
      %2703 = vmatprep.subr.bf16.mxu0 0
      %2704 = vmatpush1.bf16.xpose.msra.mxu0 0
      %2705 = vmatprep.subr.bf16.mxu0 0
      %2706 = vmatpush1.bf16.xpose.msra.mxu0 0
      %2707 = vmatprep.subr.bf16.mxu0 0
      %2708 = vmatpush1.bf16.xpose.msra.mxu0 0
      %2709 = vmatprep.subr.bf16.mxu0 0
      %2710 = vmatpush1.bf16.xpose.msra.mxu0 0
      %2711 = vmatprep.subr.bf16.mxu0 0
      %2712 = vmatpush1.bf16.xpose.msra.mxu0 0
      %2713 = vmatprep.subr.bf16.mxu0 0
      %2714 = vmatpush1.bf16.xpose.msra.mxu0 0
      %2715 = vmatprep.subr.bf16.mxu0 0
      %2716 = vmatpush1.bf16.xpose.msra.mxu0 0
      %2717 = vmatprep.subr.bf16.mxu0 0
      %2718 = vmatpush1.bf16.xpose.msra.mxu0 0
      %2719 = vmatprep.subr.bf16.mxu0 0
      %2720 = vmatpush1.bf16.xpose.msra.mxu0 0
      %2721 = vmatprep.mubr.bf16.mxu0 0
      %2722 = vmatmul.mubr.bf16.gmra.mrb[0].mxu0 %v2684
      %v2723 = vpop.f32.mrb[0].mxu0
      %v2724 = vadd.f32 0.0, %v2723
      %v2725 = vpop.f32.mrb[0].mxu0
      %v2726 = vpop.f32.mrb[0].mxu0
      %v2727 = vadd.f32 0.0, %v2726
      %v2728 = vpop.f32.mrb[0].mxu0
      %2729 = vdwg.mxu0
      %v2730 = vsel %vm1753, %v2353, -inf
      %2731 = vmax.xlane.f32.xlu0 %v2730
      %v2732 = vpop.xlane.xlu0 %2731
      %v2733 = vsel %vm1753, %v2356, -inf
      %2734 = vmax.xlane.f32.xlu0 %v2733
      %v2735 = vpop.xlane.xlu0 %2734
      %v2736 = vsel %vm1753, %v2406, -inf
      %2737 = vmax.xlane.f32.xlu0 %v2736
      %v2738 = vpop.xlane.xlu0 %2737
      %v2739 = vsel %vm1753, %v2409, -inf
      %2740 = vmax.xlane.f32.xlu0 %v2739
      %v2741 = vpop.xlane.xlu0 %2740
      %v2742 = vsel %vm1753, %v2459, -inf
      %2743 = vmax.xlane.f32.xlu0 %v2742
      %v2744 = vpop.xlane.xlu0 %2743
      %v2745 = vsel %vm1753, %v2462, -inf
      %2746 = vmax.xlane.f32.xlu0 %v2745
      %v2747 = vpop.xlane.xlu0 %2746
      %v2748 = vsel %vm1753, %v2512, -inf
      %2749 = vmax.xlane.f32.xlu0 %v2748
      %v2750 = vpop.xlane.xlu0 %2749
      %v2751 = vsel %vm1753, %v2515, -inf
      %2752 = vmax.xlane.f32.xlu0 %v2751
      %v2753 = vpop.xlane.xlu0 %2752
      %v2754 = vsel %vm1753, %v2565, -inf
      %2755 = vmax.xlane.f32.xlu0 %v2754
      %v2756 = vpop.xlane.xlu0 %2755
      %v2757 = vsel %vm1753, %v2568, -inf
      %2758 = vmax.xlane.f32.xlu0 %v2757
      %v2759 = vpop.xlane.xlu0 %2758
      %v2760 = vsel %vm1753, %v2618, -inf
      %2761 = vmax.xlane.f32.xlu0 %v2760
      %v2762 = vpop.xlane.xlu0 %2761
      %v2763 = vsel %vm1753, %v2621, -inf
      %2764 = vmax.xlane.f32.xlu0 %v2763
      %v2765 = vpop.xlane.xlu0 %2764
      %v2766 = vsel %vm1753, %v2671, -inf
      %2767 = vmax.xlane.f32.xlu0 %v2766
      %v2768 = vpop.xlane.xlu0 %2767
      %v2769 = vsel %vm1753, %v2674, -inf
      %2770 = vmax.xlane.f32.xlu0 %v2769
      %v2771 = vpop.xlane.xlu0 %2770
      %v2772 = vsel %vm1753, %v2724, -inf
      %2773 = vmax.xlane.f32.xlu0 %v2772
      %v2774 = vpop.xlane.xlu0 %2773
      %v2775 = vsel %vm1753, %v2727, -inf
      %2776 = vmax.xlane.f32.xlu0 %v2775
      %v2777 = vpop.xlane.xlu0 %2776
      %v2778 = vsub.f32 %v2353, %v2732
      %v2779 = vsub.f32 %v2356, %v2735
      %v2780 = vsub.f32 %v2406, %v2738
      %v2781 = vsub.f32 %v2409, %v2741
      %v2782 = vsub.f32 %v2459, %v2744
      %v2783 = vsub.f32 %v2462, %v2747
      %v2784 = vsub.f32 %v2512, %v2750
      %v2785 = vsub.f32 %v2515, %v2753
      %v2786 = vsub.f32 %v2565, %v2756
      %v2787 = vsub.f32 %v2568, %v2759
      %v2788 = vsub.f32 %v2618, %v2762
      %v2789 = vsub.f32 %v2621, %v2765
      %v2790 = vsub.f32 %v2671, %v2768
      %v2791 = vsub.f32 %v2674, %v2771
      %v2792 = vsub.f32 %v2724, %v2774
      %v2793 = vsub.f32 %v2727, %v2777
      %v2794 = vmul.f32 %v2778, 1.442695
      %v2795 = vpow.pop %v2794
      %v2796 = vmul.f32 %v2779, 1.442695
      %v2797 = vpow.pop %v2796
      %v2798 = vmul.f32 %v2780, 1.442695
      %v2799 = vpow.pop %v2798
      %v2800 = vmul.f32 %v2781, 1.442695
      %v2801 = vpow.pop %v2800
      %v2802 = vmul.f32 %v2782, 1.442695
      %v2803 = vpow.pop %v2802
      %v2804 = vmul.f32 %v2783, 1.442695
      %v2805 = vpow.pop %v2804
      %v2806 = vmul.f32 %v2784, 1.442695
      %v2807 = vpow.pop %v2806
      %v2808 = vmul.f32 %v2785, 1.442695
      %v2809 = vpow.pop %v2808
      %v2810 = vmul.f32 %v2786, 1.442695
      %v2811 = vpow.pop %v2810
      %v2812 = vmul.f32 %v2787, 1.442695
      %v2813 = vpow.pop %v2812
      %v2814 = vmul.f32 %v2788, 1.442695
      %v2815 = vpow.pop %v2814
      %v2816 = vmul.f32 %v2789, 1.442695
      %v2817 = vpow.pop %v2816
      %v2818 = vmul.f32 %v2790, 1.442695
      %v2819 = vpow.pop %v2818
      %v2820 = vmul.f32 %v2791, 1.442695
      %v2821 = vpow.pop %v2820
      %v2822 = vmul.f32 %v2792, 1.442695
      %v2823 = vpow.pop %v2822
      %v2824 = vmul.f32 %v2793, 1.442695
      %v2825 = vpow.pop %v2824
      %v2826 = vsel %vm1753, %v2795, 0.0
      %2827 = vadd.xlane.f32.xlu0 %v2826
      %v2828 = vpop.xlane.xlu0 %2827
      %v2829 = vsel %vm1753, %v2797, 0.0
      %2830 = vadd.xlane.f32.xlu0 %v2829
      %v2831 = vpop.xlane.xlu0 %2830
      %v2832 = vsel %vm1753, %v2799, 0.0
      %2833 = vadd.xlane.f32.xlu0 %v2832
      %v2834 = vpop.xlane.xlu0 %2833
      %v2835 = vsel %vm1753, %v2801, 0.0
      %2836 = vadd.xlane.f32.xlu0 %v2835
      %v2837 = vpop.xlane.xlu0 %2836
      %v2838 = vsel %vm1753, %v2803, 0.0
      %2839 = vadd.xlane.f32.xlu0 %v2838
      %v2840 = vpop.xlane.xlu0 %2839
      %v2841 = vsel %vm1753, %v2805, 0.0
      %2842 = vadd.xlane.f32.xlu0 %v2841
      %v2843 = vpop.xlane.xlu0 %2842
      %v2844 = vsel %vm1753, %v2807, 0.0
      %2845 = vadd.xlane.f32.xlu0 %v2844
      %v2846 = vpop.xlane.xlu0 %2845
      %v2847 = vsel %vm1753, %v2809, 0.0
      %2848 = vadd.xlane.f32.xlu0 %v2847
      %v2849 = vpop.xlane.xlu0 %2848
      %v2850 = vsel %vm1753, %v2811, 0.0
      %2851 = vadd.xlane.f32.xlu0 %v2850
      %v2852 = vpop.xlane.xlu0 %2851
      %v2853 = vsel %vm1753, %v2813, 0.0
      %2854 = vadd.xlane.f32.xlu0 %v2853
      %v2855 = vpop.xlane.xlu0 %2854
      %v2856 = vsel %vm1753, %v2815, 0.0
      %2857 = vadd.xlane.f32.xlu0 %v2856
      %v2858 = vpop.xlane.xlu0 %2857
      %v2859 = vsel %vm1753, %v2817, 0.0
      %2860 = vadd.xlane.f32.xlu0 %v2859
      %v2861 = vpop.xlane.xlu0 %2860
      %v2862 = vsel %vm1753, %v2819, 0.0
      %2863 = vadd.xlane.f32.xlu0 %v2862
      %v2864 = vpop.xlane.xlu0 %2863
      %v2865 = vsel %vm1753, %v2821, 0.0
      %2866 = vadd.xlane.f32.xlu0 %v2865
      %v2867 = vpop.xlane.xlu0 %2866
      %v2868 = vsel %vm1753, %v2823, 0.0
      %2869 = vadd.xlane.f32.xlu0 %v2868
      %v2870 = vpop.xlane.xlu0 %2869
      %v2871 = vsel %vm1753, %v2825, 0.0
      %2872 = vadd.xlane.f32.xlu0 %v2871
      %v2873 = vpop.xlane.xlu0 %2872
      %v2874 = vrcp.pop %v2828
      %v2875 = vrcp.pop %v2831
      %v2876 = vrcp.pop %v2834
      %v2877 = vrcp.pop %v2837
      %v2878 = vrcp.pop %v2840
      %v2879 = vrcp.pop %v2843
      %v2880 = vrcp.pop %v2846
      %v2881 = vrcp.pop %v2849
      %v2882 = vrcp.pop %v2852
      %v2883 = vrcp.pop %v2855
      %v2884 = vrcp.pop %v2858
      %v2885 = vrcp.pop %v2861
      %v2886 = vrcp.pop %v2864
      %v2887 = vrcp.pop %v2867
      %v2888 = vrcp.pop %v2870
      %v2889 = vrcp.pop %v2873
      %v2890 = vmul.f32 %v2795, %v2874
      %v2891 = vmul.f32 %v2797, %v2875
      %v2892 = vmul.f32 %v2799, %v2876
      %v2893 = vmul.f32 %v2801, %v2877
      %v2894 = vmul.f32 %v2803, %v2878
      %v2895 = vmul.f32 %v2805, %v2879
      %v2896 = vmul.f32 %v2807, %v2880
      %v2897 = vmul.f32 %v2809, %v2881
      %v2898 = vmul.f32 %v2811, %v2882
      %v2899 = vmul.f32 %v2813, %v2883
      %v2900 = vmul.f32 %v2815, %v2884
      %v2901 = vmul.f32 %v2817, %v2885
      %v2902 = vmul.f32 %v2819, %v2886
      %v2903 = vmul.f32 %v2821, %v2887
      %v2904 = vmul.f32 %v2823, %v2888
      %v2905 = vmul.f32 %v2825, %v2889
      %v2906 = vpack.c.bf16 %v2891, %v2890
      %v2907 = vpack.c.bf16 %v2893, %v2892
      %v2908 = vpack.c.bf16 %v2895, %v2894
      %v2909 = vpack.c.bf16 %v2897, %v2896
      %v2910 = vpack.c.bf16 %v2899, %v2898
      %v2911 = vpack.c.bf16 %v2901, %v2900
      %v2912 = vpack.c.bf16 %v2903, %v2902
      %v2913 = vpack.c.bf16 %v2905, %v2904
      %2915 = vrot.lane.b32.xlu0 %v1354, 96
      %v2916 = vpop.permute.xlu0 %2915
      %v2919 = vsel %vm1753, %v2906, 0
      %2921 = vmatprep.subr.bf16.mxu0 0
      %2922 = vmatpush1.bf16.msra.mxu0 %v2916
      %2923 = vmatprep.subr.bf16.mxu0 0
      %2924 = vmatpush1.bf16.msra.mxu0 0
      %2925 = vmatprep.subr.bf16.mxu0 0
      %2926 = vmatpush1.bf16.msra.mxu0 0
      %2927 = vmatprep.subr.bf16.mxu0 0
      %2928 = vmatpush1.bf16.msra.mxu0 0
      %2929 = vmatprep.subr.bf16.mxu0 0
      %2930 = vmatpush1.bf16.msra.mxu0 0
      %2931 = vmatprep.subr.bf16.mxu0 0
      %2932 = vmatpush1.bf16.msra.mxu0 0
      %2933 = vmatprep.subr.bf16.mxu0 0
      %2934 = vmatpush1.bf16.msra.mxu0 0
      %2935 = vmatprep.subr.bf16.mxu0 0
      %2936 = vmatpush1.bf16.msra.mxu0 0
      %2937 = vmatprep.subr.bf16.mxu0 0
      %2938 = vmatpush1.bf16.msra.mxu0 0
      %2939 = vmatprep.subr.bf16.mxu0 0
      %2940 = vmatpush1.bf16.msra.mxu0 0
      %2941 = vmatprep.subr.bf16.mxu0 0
      %2942 = vmatpush1.bf16.msra.mxu0 0
      %2943 = vmatprep.subr.bf16.mxu0 0
      %2944 = vmatpush1.bf16.msra.mxu0 0
      %2945 = vmatprep.subr.bf16.mxu0 0
      %2946 = vmatpush1.bf16.msra.mxu0 0
      %2947 = vmatprep.subr.bf16.mxu0 0
      %2948 = vmatpush1.bf16.msra.mxu0 0
      %2949 = vmatprep.subr.bf16.mxu0 0
      %2950 = vmatpush1.bf16.msra.mxu0 0
      %2951 = vmatprep.subr.bf16.mxu0 0
      %2952 = vmatpush1.bf16.msra.mxu0 0
      %2953 = vmatprep.mubr.bf16.mxu0 0
      %2954 = vmatmul.mubr.bf16.gmra.mrb[0].mxu0 %v2919
      %v2955 = vpop.f32.mrb[0].mxu0
      %v2956 = vadd.f32 0.0, %v2955
      %v2957 = vpop.f32.mrb[0].mxu0
      %v2958 = vpop.f32.mrb[0].mxu0
      %v2959 = vadd.f32 0.0, %v2958
      %v2960 = vpop.f32.mrb[0].mxu0
      %2961 = vdwg.mxu0
      %2963 = vrot.lane.b32.xlu0 %v1357, 96
      %v2964 = vpop.permute.xlu0 %2963
      %v2967 = vsel %vm1753, %v2907, 0
      %2969 = vmatprep.subr.bf16.mxu0 0
      %2970 = vmatpush1.bf16.msra.mxu0 %v2964
      %2971 = vmatprep.subr.bf16.mxu0 0
      %2972 = vmatpush1.bf16.msra.mxu0 0
      %2973 = vmatprep.subr.bf16.mxu0 0
      %2974 = vmatpush1.bf16.msra.mxu0 0
      %2975 = vmatprep.subr.bf16.mxu0 0
      %2976 = vmatpush1.bf16.msra.mxu0 0
      %2977 = vmatprep.subr.bf16.mxu0 0
      %2978 = vmatpush1.bf16.msra.mxu0 0
      %2979 = vmatprep.subr.bf16.mxu0 0
      %2980 = vmatpush1.bf16.msra.mxu0 0
      %2981 = vmatprep.subr.bf16.mxu0 0
      %2982 = vmatpush1.bf16.msra.mxu0 0
      %2983 = vmatprep.subr.bf16.mxu0 0
      %2984 = vmatpush1.bf16.msra.mxu0 0
      %2985 = vmatprep.subr.bf16.mxu0 0
      %2986 = vmatpush1.bf16.msra.mxu0 0
      %2987 = vmatprep.subr.bf16.mxu0 0
      %2988 = vmatpush1.bf16.msra.mxu0 0
      %2989 = vmatprep.subr.bf16.mxu0 0
      %2990 = vmatpush1.bf16.msra.mxu0 0
      %2991 = vmatprep.subr.bf16.mxu0 0
      %2992 = vmatpush1.bf16.msra.mxu0 0
      %2993 = vmatprep.subr.bf16.mxu0 0
      %2994 = vmatpush1.bf16.msra.mxu0 0
      %2995 = vmatprep.subr.bf16.mxu0 0
      %2996 = vmatpush1.bf16.msra.mxu0 0
      %2997 = vmatprep.subr.bf16.mxu0 0
      %2998 = vmatpush1.bf16.msra.mxu0 0
      %2999 = vmatprep.subr.bf16.mxu0 0
      %3000 = vmatpush1.bf16.msra.mxu0 0
      %3001 = vmatprep.mubr.bf16.mxu0 0
      %3002 = vmatmul.mubr.bf16.gmra.mrb[0].mxu0 %v2967
      %v3003 = vpop.f32.mrb[0].mxu0
      %v3004 = vadd.f32 0.0, %v3003
      %v3005 = vpop.f32.mrb[0].mxu0
      %v3006 = vpop.f32.mrb[0].mxu0
      %v3007 = vadd.f32 0.0, %v3006
      %v3008 = vpop.f32.mrb[0].mxu0
      %3009 = vdwg.mxu0
      %3011 = vrot.lane.b32.xlu0 %v1360, 96
      %v3012 = vpop.permute.xlu0 %3011
      %v3015 = vsel %vm1753, %v2908, 0
      %3017 = vmatprep.subr.bf16.mxu0 0
      %3018 = vmatpush1.bf16.msra.mxu0 %v3012
      %3019 = vmatprep.subr.bf16.mxu0 0
      %3020 = vmatpush1.bf16.msra.mxu0 0
      %3021 = vmatprep.subr.bf16.mxu0 0
      %3022 = vmatpush1.bf16.msra.mxu0 0
      %3023 = vmatprep.subr.bf16.mxu0 0
      %3024 = vmatpush1.bf16.msra.mxu0 0
      %3025 = vmatprep.subr.bf16.mxu0 0
      %3026 = vmatpush1.bf16.msra.mxu0 0
      %3027 = vmatprep.subr.bf16.mxu0 0
      %3028 = vmatpush1.bf16.msra.mxu0 0
      %3029 = vmatprep.subr.bf16.mxu0 0
      %3030 = vmatpush1.bf16.msra.mxu0 0
      %3031 = vmatprep.subr.bf16.mxu0 0
      %3032 = vmatpush1.bf16.msra.mxu0 0
      %3033 = vmatprep.subr.bf16.mxu0 0
      %3034 = vmatpush1.bf16.msra.mxu0 0
      %3035 = vmatprep.subr.bf16.mxu0 0
      %3036 = vmatpush1.bf16.msra.mxu0 0
      %3037 = vmatprep.subr.bf16.mxu0 0
      %3038 = vmatpush1.bf16.msra.mxu0 0
      %3039 = vmatprep.subr.bf16.mxu0 0
      %3040 = vmatpush1.bf16.msra.mxu0 0
      %3041 = vmatprep.subr.bf16.mxu0 0
      %3042 = vmatpush1.bf16.msra.mxu0 0
      %3043 = vmatprep.subr.bf16.mxu0 0
      %3044 = vmatpush1.bf16.msra.mxu0 0
      %3045 = vmatprep.subr.bf16.mxu0 0
      %3046 = vmatpush1.bf16.msra.mxu0 0
      %3047 = vmatprep.subr.bf16.mxu0 0
      %3048 = vmatpush1.bf16.msra.mxu0 0
      %3049 = vmatprep.mubr.bf16.mxu0 0
      %3050 = vmatmul.mubr.bf16.gmra.mrb[0].mxu0 %v3015
      %v3051 = vpop.f32.mrb[0].mxu0
      %v3052 = vadd.f32 0.0, %v3051
      %v3053 = vpop.f32.mrb[0].mxu0
      %v3054 = vpop.f32.mrb[0].mxu0
      %v3055 = vadd.f32 0.0, %v3054
      %v3056 = vpop.f32.mrb[0].mxu0
      %3057 = vdwg.mxu0
      %3059 = vrot.lane.b32.xlu0 %v1363, 96
      %v3060 = vpop.permute.xlu0 %3059
      %v3063 = vsel %vm1753, %v2909, 0
      %3065 = vmatprep.subr.bf16.mxu0 0
      %3066 = vmatpush1.bf16.msra.mxu0 %v3060
      %3067 = vmatprep.subr.bf16.mxu0 0
      %3068 = vmatpush1.bf16.msra.mxu0 0
      %3069 = vmatprep.subr.bf16.mxu0 0
      %3070 = vmatpush1.bf16.msra.mxu0 0
      %3071 = vmatprep.subr.bf16.mxu0 0
      %3072 = vmatpush1.bf16.msra.mxu0 0
      %3073 = vmatprep.subr.bf16.mxu0 0
      %3074 = vmatpush1.bf16.msra.mxu0 0
      %3075 = vmatprep.subr.bf16.mxu0 0
      %3076 = vmatpush1.bf16.msra.mxu0 0
      %3077 = vmatprep.subr.bf16.mxu0 0
      %3078 = vmatpush1.bf16.msra.mxu0 0
      %3079 = vmatprep.subr.bf16.mxu0 0
      %3080 = vmatpush1.bf16.msra.mxu0 0
      %3081 = vmatprep.subr.bf16.mxu0 0
      %3082 = vmatpush1.bf16.msra.mxu0 0
      %3083 = vmatprep.subr.bf16.mxu0 0
      %3084 = vmatpush1.bf16.msra.mxu0 0
      %3085 = vmatprep.subr.bf16.mxu0 0
      %3086 = vmatpush1.bf16.msra.mxu0 0
      %3087 = vmatprep.subr.bf16.mxu0 0
      %3088 = vmatpush1.bf16.msra.mxu0 0
      %3089 = vmatprep.subr.bf16.mxu0 0
      %3090 = vmatpush1.bf16.msra.mxu0 0
      %3091 = vmatprep.subr.bf16.mxu0 0
      %3092 = vmatpush1.bf16.msra.mxu0 0
      %3093 = vmatprep.subr.bf16.mxu0 0
      %3094 = vmatpush1.bf16.msra.mxu0 0
      %3095 = vmatprep.subr.bf16.mxu0 0
      %3096 = vmatpush1.bf16.msra.mxu0 0
      %3097 = vmatprep.mubr.bf16.mxu0 0
      %3098 = vmatmul.mubr.bf16.gmra.mrb[0].mxu0 %v3063
      %v3099 = vpop.f32.mrb[0].mxu0
      %v3100 = vadd.f32 0.0, %v3099
      %v3101 = vpop.f32.mrb[0].mxu0
      %v3102 = vpop.f32.mrb[0].mxu0
      %v3103 = vadd.f32 0.0, %v3102
      %v3104 = vpop.f32.mrb[0].mxu0
      %3105 = vdwg.mxu0
      %3107 = vrot.lane.b32.xlu0 %v1366, 96
      %v3108 = vpop.permute.xlu0 %3107
      %v3111 = vsel %vm1753, %v2910, 0
      %3113 = vmatprep.subr.bf16.mxu0 0
      %3114 = vmatpush1.bf16.msra.mxu0 %v3108
      %3115 = vmatprep.subr.bf16.mxu0 0
      %3116 = vmatpush1.bf16.msra.mxu0 0
      %3117 = vmatprep.subr.bf16.mxu0 0
      %3118 = vmatpush1.bf16.msra.mxu0 0
      %3119 = vmatprep.subr.bf16.mxu0 0
      %3120 = vmatpush1.bf16.msra.mxu0 0
      %3121 = vmatprep.subr.bf16.mxu0 0
      %3122 = vmatpush1.bf16.msra.mxu0 0
      %3123 = vmatprep.subr.bf16.mxu0 0
      %3124 = vmatpush1.bf16.msra.mxu0 0
      %3125 = vmatprep.subr.bf16.mxu0 0
      %3126 = vmatpush1.bf16.msra.mxu0 0
      %3127 = vmatprep.subr.bf16.mxu0 0
      %3128 = vmatpush1.bf16.msra.mxu0 0
      %3129 = vmatprep.subr.bf16.mxu0 0
      %3130 = vmatpush1.bf16.msra.mxu0 0
      %3131 = vmatprep.subr.bf16.mxu0 0
      %3132 = vmatpush1.bf16.msra.mxu0 0
      %3133 = vmatprep.subr.bf16.mxu0 0
      %3134 = vmatpush1.bf16.msra.mxu0 0
      %3135 = vmatprep.subr.bf16.mxu0 0
      %3136 = vmatpush1.bf16.msra.mxu0 0
      %3137 = vmatprep.subr.bf16.mxu0 0
      %3138 = vmatpush1.bf16.msra.mxu0 0
      %3139 = vmatprep.subr.bf16.mxu0 0
      %3140 = vmatpush1.bf16.msra.mxu0 0
      %3141 = vmatprep.subr.bf16.mxu0 0
      %3142 = vmatpush1.bf16.msra.mxu0 0
      %3143 = vmatprep.subr.bf16.mxu0 0
      %3144 = vmatpush1.bf16.msra.mxu0 0
      %3145 = vmatprep.mubr.bf16.mxu0 0
      %3146 = vmatmul.mubr.bf16.gmra.mrb[0].mxu0 %v3111
      %v3147 = vpop.f32.mrb[0].mxu0
      %v3148 = vadd.f32 0.0, %v3147
      %v3149 = vpop.f32.mrb[0].mxu0
      %v3150 = vpop.f32.mrb[0].mxu0
      %v3151 = vadd.f32 0.0, %v3150
      %v3152 = vpop.f32.mrb[0].mxu0
      %3153 = vdwg.mxu0
      %3155 = vrot.lane.b32.xlu0 %v1369, 96
      %v3156 = vpop.permute.xlu0 %3155
      %v3159 = vsel %vm1753, %v2911, 0
      %3161 = vmatprep.subr.bf16.mxu0 0
      %3162 = vmatpush1.bf16.msra.mxu0 %v3156
      %3163 = vmatprep.subr.bf16.mxu0 0
      %3164 = vmatpush1.bf16.msra.mxu0 0
      %3165 = vmatprep.subr.bf16.mxu0 0
      %3166 = vmatpush1.bf16.msra.mxu0 0
      %3167 = vmatprep.subr.bf16.mxu0 0
      %3168 = vmatpush1.bf16.msra.mxu0 0
      %3169 = vmatprep.subr.bf16.mxu0 0
      %3170 = vmatpush1.bf16.msra.mxu0 0
      %3171 = vmatprep.subr.bf16.mxu0 0
      %3172 = vmatpush1.bf16.msra.mxu0 0
      %3173 = vmatprep.subr.bf16.mxu0 0
      %3174 = vmatpush1.bf16.msra.mxu0 0
      %3175 = vmatprep.subr.bf16.mxu0 0
      %3176 = vmatpush1.bf16.msra.mxu0 0
      %3177 = vmatprep.subr.bf16.mxu0 0
      %3178 = vmatpush1.bf16.msra.mxu0 0
      %3179 = vmatprep.subr.bf16.mxu0 0
      %3180 = vmatpush1.bf16.msra.mxu0 0
      %3181 = vmatprep.subr.bf16.mxu0 0
      %3182 = vmatpush1.bf16.msra.mxu0 0
      %3183 = vmatprep.subr.bf16.mxu0 0
      %3184 = vmatpush1.bf16.msra.mxu0 0
      %3185 = vmatprep.subr.bf16.mxu0 0
      %3186 = vmatpush1.bf16.msra.mxu0 0
      %3187 = vmatprep.subr.bf16.mxu0 0
      %3188 = vmatpush1.bf16.msra.mxu0 0
      %3189 = vmatprep.subr.bf16.mxu0 0
      %3190 = vmatpush1.bf16.msra.mxu0 0
      %3191 = vmatprep.subr.bf16.mxu0 0
      %3192 = vmatpush1.bf16.msra.mxu0 0
      %3193 = vmatprep.mubr.bf16.mxu0 0
      %3194 = vmatmul.mubr.bf16.gmra.mrb[0].mxu0 %v3159
      %v3195 = vpop.f32.mrb[0].mxu0
      %v3196 = vadd.f32 0.0, %v3195
      %v3197 = vpop.f32.mrb[0].mxu0
      %v3198 = vpop.f32.mrb[0].mxu0
      %v3199 = vadd.f32 0.0, %v3198
      %v3200 = vpop.f32.mrb[0].mxu0
      %3201 = vdwg.mxu0
      %3203 = vrot.lane.b32.xlu0 %v1372, 96
      %v3204 = vpop.permute.xlu0 %3203
      %v3207 = vsel %vm1753, %v2912, 0
      %3209 = vmatprep.subr.bf16.mxu0 0
      %3210 = vmatpush1.bf16.msra.mxu0 %v3204
      %3211 = vmatprep.subr.bf16.mxu0 0
      %3212 = vmatpush1.bf16.msra.mxu0 0
      %3213 = vmatprep.subr.bf16.mxu0 0
      %3214 = vmatpush1.bf16.msra.mxu0 0
      %3215 = vmatprep.subr.bf16.mxu0 0
      %3216 = vmatpush1.bf16.msra.mxu0 0
      %3217 = vmatprep.subr.bf16.mxu0 0
      %3218 = vmatpush1.bf16.msra.mxu0 0
      %3219 = vmatprep.subr.bf16.mxu0 0
      %3220 = vmatpush1.bf16.msra.mxu0 0
      %3221 = vmatprep.subr.bf16.mxu0 0
      %3222 = vmatpush1.bf16.msra.mxu0 0
      %3223 = vmatprep.subr.bf16.mxu0 0
      %3224 = vmatpush1.bf16.msra.mxu0 0
      %3225 = vmatprep.subr.bf16.mxu0 0
      %3226 = vmatpush1.bf16.msra.mxu0 0
      %3227 = vmatprep.subr.bf16.mxu0 0
      %3228 = vmatpush1.bf16.msra.mxu0 0
      %3229 = vmatprep.subr.bf16.mxu0 0
      %3230 = vmatpush1.bf16.msra.mxu0 0
      %3231 = vmatprep.subr.bf16.mxu0 0
      %3232 = vmatpush1.bf16.msra.mxu0 0
      %3233 = vmatprep.subr.bf16.mxu0 0
      %3234 = vmatpush1.bf16.msra.mxu0 0
      %3235 = vmatprep.subr.bf16.mxu0 0
      %3236 = vmatpush1.bf16.msra.mxu0 0
      %3237 = vmatprep.subr.bf16.mxu0 0
      %3238 = vmatpush1.bf16.msra.mxu0 0
      %3239 = vmatprep.subr.bf16.mxu0 0
      %3240 = vmatpush1.bf16.msra.mxu0 0
      %3241 = vmatprep.mubr.bf16.mxu0 0
      %3242 = vmatmul.mubr.bf16.gmra.mrb[0].mxu0 %v3207
      %v3243 = vpop.f32.mrb[0].mxu0
      %v3244 = vadd.f32 0.0, %v3243
      %v3245 = vpop.f32.mrb[0].mxu0
      %v3246 = vpop.f32.mrb[0].mxu0
      %v3247 = vadd.f32 0.0, %v3246
      %v3248 = vpop.f32.mrb[0].mxu0
      %3249 = vdwg.mxu0
      %3251 = vrot.lane.b32.xlu0 %v1375, 96
      %v3252 = vpop.permute.xlu0 %3251
      %v3255 = vsel %vm1753, %v2913, 0
      %3257 = vmatprep.subr.bf16.mxu0 0
      %3258 = vmatpush1.bf16.msra.mxu0 %v3252
      %3259 = vmatprep.subr.bf16.mxu0 0
      %3260 = vmatpush1.bf16.msra.mxu0 0
      %3261 = vmatprep.subr.bf16.mxu0 0
      %3262 = vmatpush1.bf16.msra.mxu0 0
      %3263 = vmatprep.subr.bf16.mxu0 0
      %3264 = vmatpush1.bf16.msra.mxu0 0
      %3265 = vmatprep.subr.bf16.mxu0 0
      %3266 = vmatpush1.bf16.msra.mxu0 0
      %3267 = vmatprep.subr.bf16.mxu0 0
      %3268 = vmatpush1.bf16.msra.mxu0 0
      %3269 = vmatprep.subr.bf16.mxu0 0
      %3270 = vmatpush1.bf16.msra.mxu0 0
      %3271 = vmatprep.subr.bf16.mxu0 0
      %3272 = vmatpush1.bf16.msra.mxu0 0
      %3273 = vmatprep.subr.bf16.mxu0 0
      %3274 = vmatpush1.bf16.msra.mxu0 0
      %3275 = vmatprep.subr.bf16.mxu0 0
      %3276 = vmatpush1.bf16.msra.mxu0 0
      %3277 = vmatprep.subr.bf16.mxu0 0
      %3278 = vmatpush1.bf16.msra.mxu0 0
      %3279 = vmatprep.subr.bf16.mxu0 0
      %3280 = vmatpush1.bf16.msra.mxu0 0
      %3281 = vmatprep.subr.bf16.mxu0 0
      %3282 = vmatpush1.bf16.msra.mxu0 0
      %3283 = vmatprep.subr.bf16.mxu0 0
      %3284 = vmatpush1.bf16.msra.mxu0 0
      %3285 = vmatprep.subr.bf16.mxu0 0
      %3286 = vmatpush1.bf16.msra.mxu0 0
      %3287 = vmatprep.subr.bf16.mxu0 0
      %3288 = vmatpush1.bf16.msra.mxu0 0
      %3289 = vmatprep.mubr.bf16.mxu0 0
      %3290 = vmatmul.mubr.bf16.gmra.mrb[0].mxu0 %v3255
      %v3291 = vpop.f32.mrb[0].mxu0
      %v3292 = vadd.f32 0.0, %v3291
      %v3293 = vpop.f32.mrb[0].mxu0
      %v3294 = vpop.f32.mrb[0].mxu0
      %v3295 = vadd.f32 0.0, %v3294
      %v3296 = vpop.f32.mrb[0].mxu0
      %3297 = vdwg.mxu0
      %3314 = vrot.lane.b32.xlu0 %v2956, 32
      %v3315 = vpop.permute.xlu0 %3314
      %3316 = vrot.lane.b32.xlu0 %v2959, 32
      %v3317 = vpop.permute.xlu0 %3316
      %3318 = vrot.lane.b32.xlu0 %v3004, 32
      %v3319 = vpop.permute.xlu0 %3318
      %3320 = vrot.lane.b32.xlu0 %v3007, 32
      %v3321 = vpop.permute.xlu0 %3320
      %3322 = vrot.lane.b32.xlu0 %v3052, 32
      %v3323 = vpop.permute.xlu0 %3322
      %3324 = vrot.lane.b32.xlu0 %v3055, 32
      %v3325 = vpop.permute.xlu0 %3324
      %3326 = vrot.lane.b32.xlu0 %v3100, 32
      %v3327 = vpop.permute.xlu0 %3326
      %3328 = vrot.lane.b32.xlu0 %v3103, 32
      %v3329 = vpop.permute.xlu0 %3328
      %3330 = vrot.lane.b32.xlu0 %v3148, 32
      %v3331 = vpop.permute.xlu0 %3330
      %3332 = vrot.lane.b32.xlu0 %v3151, 32
      %v3333 = vpop.permute.xlu0 %3332
      %3334 = vrot.lane.b32.xlu0 %v3196, 32
      %v3335 = vpop.permute.xlu0 %3334
      %3336 = vrot.lane.b32.xlu0 %v3199, 32
      %v3337 = vpop.permute.xlu0 %3336
      %3338 = vrot.lane.b32.xlu0 %v3244, 32
      %v3339 = vpop.permute.xlu0 %3338
      %3340 = vrot.lane.b32.xlu0 %v3247, 32
      %v3341 = vpop.permute.xlu0 %3340
      %3342 = vrot.lane.b32.xlu0 %v3292, 32
      %v3343 = vpop.permute.xlu0 %3342
      %3344 = vrot.lane.b32.xlu0 %v3295, 32
      %v3345 = vpop.permute.xlu0 %3344
      %vm3362 = vcmask 523520
      %3363 = vst.msk [vmem:[#allocation3] sm:$0xff] %vm3362, %v3315
      %3364 = vst.msk [vmem:[#allocation3 + $0x8] sm:$0xff] %vm3362, %v3317
      %3365 = vst.msk [vmem:[#allocation3 + $0x10] sm:$0xff] %vm3362, %v3319
      %3366 = vst.msk [vmem:[#allocation3 + $0x18] sm:$0xff] %vm3362, %v3321
      %3367 = vst.msk [vmem:[#allocation3 + $0x20] sm:$0xff] %vm3362, %v3323
      %3368 = vst.msk [vmem:[#allocation3 + $0x28] sm:$0xff] %vm3362, %v3325
      %3369 = vst.msk [vmem:[#allocation3 + $0x30] sm:$0xff] %vm3362, %v3327
      %3370 = vst.msk [vmem:[#allocation3 + $0x38] sm:$0xff] %vm3362, %v3329
      %3371 = vst.msk [vmem:[#allocation3 + $0x40] sm:$0xff] %vm3362, %v3331
      %3372 = vst.msk [vmem:[#allocation3 + $0x48] sm:$0xff] %vm3362, %v3333
      %3373 = vst.msk [vmem:[#allocation3 + $0x50] sm:$0xff] %vm3362, %v3335
      %3374 = vst.msk [vmem:[#allocation3 + $0x58] sm:$0xff] %vm3362, %v3337
      %3375 = vst.msk [vmem:[#allocation3 + $0x60] sm:$0xff] %vm3362, %v3339
      %3376 = vst.msk [vmem:[#allocation3 + $0x68] sm:$0xff] %vm3362, %v3341
      %3377 = vst.msk [vmem:[#allocation3 + $0x70] sm:$0xff] %vm3362, %v3343
      %3378 = vst.msk [vmem:[#allocation3 + $0x78] sm:$0xff] %vm3362, %v3345
      %3379 = vrot.lane.b32.xlu0 %v1352, 64
      %v3380 = vpop.permute.xlu0 %3379
      %3381 = vrot.lane.b32.xlu0 %v1353, 64
      %v3382 = vpop.permute.xlu0 %3381
      %v3384 = vsel %vm1376, %v3380, 0
      %v3387 = vsel %vm1376, %v3382, 0
      %3389 = vmatprep.subr.bf16.mxu0 0
      %3390 = vmatpush1.bf16.xpose.msra.mxu0 %v3387
      %3391 = vmatprep.subr.bf16.mxu0 0
      %3392 = vmatpush1.bf16.xpose.msra.mxu0 0
      %3393 = vmatprep.subr.bf16.mxu0 0
      %3394 = vmatpush1.bf16.xpose.msra.mxu0 0
      %3395 = vmatprep.subr.bf16.mxu0 0
      %3396 = vmatpush1.bf16.xpose.msra.mxu0 0
      %3397 = vmatprep.subr.bf16.mxu0 0
      %3398 = vmatpush1.bf16.xpose.msra.mxu0 0
      %3399 = vmatprep.subr.bf16.mxu0 0
      %3400 = vmatpush1.bf16.xpose.msra.mxu0 0
      %3401 = vmatprep.subr.bf16.mxu0 0
      %3402 = vmatpush1.bf16.xpose.msra.mxu0 0
      %3403 = vmatprep.subr.bf16.mxu0 0
      %3404 = vmatpush1.bf16.xpose.msra.mxu0 0
      %3405 = vmatprep.subr.bf16.mxu0 0
      %3406 = vmatpush1.bf16.xpose.msra.mxu0 0
      %3407 = vmatprep.subr.bf16.mxu0 0
      %3408 = vmatpush1.bf16.xpose.msra.mxu0 0
      %3409 = vmatprep.subr.bf16.mxu0 0
      %3410 = vmatpush1.bf16.xpose.msra.mxu0 0
      %3411 = vmatprep.subr.bf16.mxu0 0
      %3412 = vmatpush1.bf16.xpose.msra.mxu0 0
      %3413 = vmatprep.subr.bf16.mxu0 0
      %3414 = vmatpush1.bf16.xpose.msra.mxu0 0
      %3415 = vmatprep.subr.bf16.mxu0 0
      %3416 = vmatpush1.bf16.xpose.msra.mxu0 0
      %3417 = vmatprep.subr.bf16.mxu0 0
      %3418 = vmatpush1.bf16.xpose.msra.mxu0 0
      %3419 = vmatprep.subr.bf16.mxu0 0
      %3420 = vmatpush1.bf16.xpose.msra.mxu0 0
      %3421 = vmatprep.mubr.bf16.mxu0 0
      %3422 = vmatmul.mubr.bf16.gmra.mrb[0].mxu0 %v3384
      %v3423 = vpop.f32.mrb[0].mxu0
      %v3424 = vadd.f32 0.0, %v3423
      %v3425 = vpop.f32.mrb[0].mxu0
      %v3426 = vpop.f32.mrb[0].mxu0
      %v3427 = vadd.f32 0.0, %v3426
      %v3428 = vpop.f32.mrb[0].mxu0
      %3429 = vdwg.mxu0
      %3430 = vrot.lane.b32.xlu0 %v1355, 64
      %v3431 = vpop.permute.xlu0 %3430
      %3432 = vrot.lane.b32.xlu0 %v1356, 64
      %v3433 = vpop.permute.xlu0 %3432
      %v3435 = vsel %vm1376, %v3431, 0
      %v3438 = vsel %vm1376, %v3433, 0
      %3440 = vmatprep.subr.bf16.mxu0 0
      %3441 = vmatpush1.bf16.xpose.msra.mxu0 %v3438
      %3442 = vmatprep.subr.bf16.mxu0 0
      %3443 = vmatpush1.bf16.xpose.msra.mxu0 0
      %3444 = vmatprep.subr.bf16.mxu0 0
      %3445 = vmatpush1.bf16.xpose.msra.mxu0 0
      %3446 = vmatprep.subr.bf16.mxu0 0
      %3447 = vmatpush1.bf16.xpose.msra.mxu0 0
      %3448 = vmatprep.subr.bf16.mxu0 0
      %3449 = vmatpush1.bf16.xpose.msra.mxu0 0
      %3450 = vmatprep.subr.bf16.mxu0 0
      %3451 = vmatpush1.bf16.xpose.msra.mxu0 0
      %3452 = vmatprep.subr.bf16.mxu0 0
      %3453 = vmatpush1.bf16.xpose.msra.mxu0 0
      %3454 = vmatprep.subr.bf16.mxu0 0
      %3455 = vmatpush1.bf16.xpose.msra.mxu0 0
      %3456 = vmatprep.subr.bf16.mxu0 0
      %3457 = vmatpush1.bf16.xpose.msra.mxu0 0
      %3458 = vmatprep.subr.bf16.mxu0 0
      %3459 = vmatpush1.bf16.xpose.msra.mxu0 0
      %3460 = vmatprep.subr.bf16.mxu0 0
      %3461 = vmatpush1.bf16.xpose.msra.mxu0 0
      %3462 = vmatprep.subr.bf16.mxu0 0
      %3463 = vmatpush1.bf16.xpose.msra.mxu0 0
      %3464 = vmatprep.subr.bf16.mxu0 0
      %3465 = vmatpush1.bf16.xpose.msra.mxu0 0
      %3466 = vmatprep.subr.bf16.mxu0 0
      %3467 = vmatpush1.bf16.xpose.msra.mxu0 0
      %3468 = vmatprep.subr.bf16.mxu0 0
      %3469 = vmatpush1.bf16.xpose.msra.mxu0 0
      %3470 = vmatprep.subr.bf16.mxu0 0
      %3471 = vmatpush1.bf16.xpose.msra.mxu0 0
      %3472 = vmatprep.mubr.bf16.mxu0 0
      %3473 = vmatmul.mubr.bf16.gmra.mrb[0].mxu0 %v3435
      %v3474 = vpop.f32.mrb[0].mxu0
      %v3475 = vadd.f32 0.0, %v3474
      %v3476 = vpop.f32.mrb[0].mxu0
      %v3477 = vpop.f32.mrb[0].mxu0
      %v3478 = vadd.f32 0.0, %v3477
      %v3479 = vpop.f32.mrb[0].mxu0
      %3480 = vdwg.mxu0
      %3481 = vrot.lane.b32.xlu0 %v1358, 64
      %v3482 = vpop.permute.xlu0 %3481
      %3483 = vrot.lane.b32.xlu0 %v1359, 64
      %v3484 = vpop.permute.xlu0 %3483
      %v3486 = vsel %vm1376, %v3482, 0
      %v3489 = vsel %vm1376, %v3484, 0
      %3491 = vmatprep.subr.bf16.mxu0 0
      %3492 = vmatpush1.bf16.xpose.msra.mxu0 %v3489
      %3493 = vmatprep.subr.bf16.mxu0 0
      %3494 = vmatpush1.bf16.xpose.msra.mxu0 0
      %3495 = vmatprep.subr.bf16.mxu0 0
      %3496 = vmatpush1.bf16.xpose.msra.mxu0 0
      %3497 = vmatprep.subr.bf16.mxu0 0
      %3498 = vmatpush1.bf16.xpose.msra.mxu0 0
      %3499 = vmatprep.subr.bf16.mxu0 0
      %3500 = vmatpush1.bf16.xpose.msra.mxu0 0
      %3501 = vmatprep.subr.bf16.mxu0 0
      %3502 = vmatpush1.bf16.xpose.msra.mxu0 0
      %3503 = vmatprep.subr.bf16.mxu0 0
      %3504 = vmatpush1.bf16.xpose.msra.mxu0 0
      %3505 = vmatprep.subr.bf16.mxu0 0
      %3506 = vmatpush1.bf16.xpose.msra.mxu0 0
      %3507 = vmatprep.subr.bf16.mxu0 0
      %3508 = vmatpush1.bf16.xpose.msra.mxu0 0
      %3509 = vmatprep.subr.bf16.mxu0 0
      %3510 = vmatpush1.bf16.xpose.msra.mxu0 0
      %3511 = vmatprep.subr.bf16.mxu0 0
      %3512 = vmatpush1.bf16.xpose.msra.mxu0 0
      %3513 = vmatprep.subr.bf16.mxu0 0
      %3514 = vmatpush1.bf16.xpose.msra.mxu0 0
      %3515 = vmatprep.subr.bf16.mxu0 0
      %3516 = vmatpush1.bf16.xpose.msra.mxu0 0
      %3517 = vmatprep.subr.bf16.mxu0 0
      %3518 = vmatpush1.bf16.xpose.msra.mxu0 0
      %3519 = vmatprep.subr.bf16.mxu0 0
      %3520 = vmatpush1.bf16.xpose.msra.mxu0 0
      %3521 = vmatprep.subr.bf16.mxu0 0
      %3522 = vmatpush1.bf16.xpose.msra.mxu0 0
      %3523 = vmatprep.mubr.bf16.mxu0 0
      %3524 = vmatmul.mubr.bf16.gmra.mrb[0].mxu0 %v3486
      %v3525 = vpop.f32.mrb[0].mxu0
      %v3526 = vadd.f32 0.0, %v3525
      %v3527 = vpop.f32.mrb[0].mxu0
      %v3528 = vpop.f32.mrb[0].mxu0
      %v3529 = vadd.f32 0.0, %v3528
      %v3530 = vpop.f32.mrb[0].mxu0
      %3531 = vdwg.mxu0
      %3532 = vrot.lane.b32.xlu0 %v1361, 64
      %v3533 = vpop.permute.xlu0 %3532
      %3534 = vrot.lane.b32.xlu0 %v1362, 64
      %v3535 = vpop.permute.xlu0 %3534
      %v3537 = vsel %vm1376, %v3533, 0
      %v3540 = vsel %vm1376, %v3535, 0
      %3542 = vmatprep.subr.bf16.mxu0 0
      %3543 = vmatpush1.bf16.xpose.msra.mxu0 %v3540
      %3544 = vmatprep.subr.bf16.mxu0 0
      %3545 = vmatpush1.bf16.xpose.msra.mxu0 0
      %3546 = vmatprep.subr.bf16.mxu0 0
      %3547 = vmatpush1.bf16.xpose.msra.mxu0 0
      %3548 = vmatprep.subr.bf16.mxu0 0
      %3549 = vmatpush1.bf16.xpose.msra.mxu0 0
      %3550 = vmatprep.subr.bf16.mxu0 0
      %3551 = vmatpush1.bf16.xpose.msra.mxu0 0
      %3552 = vmatprep.subr.bf16.mxu0 0
      %3553 = vmatpush1.bf16.xpose.msra.mxu0 0
      %3554 = vmatprep.subr.bf16.mxu0 0
      %3555 = vmatpush1.bf16.xpose.msra.mxu0 0
      %3556 = vmatprep.subr.bf16.mxu0 0
      %3557 = vmatpush1.bf16.xpose.msra.mxu0 0
      %3558 = vmatprep.subr.bf16.mxu0 0
      %3559 = vmatpush1.bf16.xpose.msra.mxu0 0
      %3560 = vmatprep.subr.bf16.mxu0 0
      %3561 = vmatpush1.bf16.xpose.msra.mxu0 0
      %3562 = vmatprep.subr.bf16.mxu0 0
      %3563 = vmatpush1.bf16.xpose.msra.mxu0 0
      %3564 = vmatprep.subr.bf16.mxu0 0
      %3565 = vmatpush1.bf16.xpose.msra.mxu0 0
      %3566 = vmatprep.subr.bf16.mxu0 0
      %3567 = vmatpush1.bf16.xpose.msra.mxu0 0
      %3568 = vmatprep.subr.bf16.mxu0 0
      %3569 = vmatpush1.bf16.xpose.msra.mxu0 0
      %3570 = vmatprep.subr.bf16.mxu0 0
      %3571 = vmatpush1.bf16.xpose.msra.mxu0 0
      %3572 = vmatprep.subr.bf16.mxu0 0
      %3573 = vmatpush1.bf16.xpose.msra.mxu0 0
      %3574 = vmatprep.mubr.bf16.mxu0 0
      %3575 = vmatmul.mubr.bf16.gmra.mrb[0].mxu0 %v3537
      %v3576 = vpop.f32.mrb[0].mxu0
      %v3577 = vadd.f32 0.0, %v3576
      %v3578 = vpop.f32.mrb[0].mxu0
      %v3579 = vpop.f32.mrb[0].mxu0
      %v3580 = vadd.f32 0.0, %v3579
      %v3581 = vpop.f32.mrb[0].mxu0
      %3582 = vdwg.mxu0
      %3583 = vrot.lane.b32.xlu0 %v1364, 64
      %v3584 = vpop.permute.xlu0 %3583
      %3585 = vrot.lane.b32.xlu0 %v1365, 64
      %v3586 = vpop.permute.xlu0 %3585
      %v3588 = vsel %vm1376, %v3584, 0
      %v3591 = vsel %vm1376, %v3586, 0
      %3593 = vmatprep.subr.bf16.mxu0 0
      %3594 = vmatpush1.bf16.xpose.msra.mxu0 %v3591
      %3595 = vmatprep.subr.bf16.mxu0 0
      %3596 = vmatpush1.bf16.xpose.msra.mxu0 0
      %3597 = vmatprep.subr.bf16.mxu0 0
      %3598 = vmatpush1.bf16.xpose.msra.mxu0 0
      %3599 = vmatprep.subr.bf16.mxu0 0
      %3600 = vmatpush1.bf16.xpose.msra.mxu0 0
      %3601 = vmatprep.subr.bf16.mxu0 0
      %3602 = vmatpush1.bf16.xpose.msra.mxu0 0
      %3603 = vmatprep.subr.bf16.mxu0 0
      %3604 = vmatpush1.bf16.xpose.msra.mxu0 0
      %3605 = vmatprep.subr.bf16.mxu0 0
      %3606 = vmatpush1.bf16.xpose.msra.mxu0 0
      %3607 = vmatprep.subr.bf16.mxu0 0
      %3608 = vmatpush1.bf16.xpose.msra.mxu0 0
      %3609 = vmatprep.subr.bf16.mxu0 0
      %3610 = vmatpush1.bf16.xpose.msra.mxu0 0
      %3611 = vmatprep.subr.bf16.mxu0 0
      %3612 = vmatpush1.bf16.xpose.msra.mxu0 0
      %3613 = vmatprep.subr.bf16.mxu0 0
      %3614 = vmatpush1.bf16.xpose.msra.mxu0 0
      %3615 = vmatprep.subr.bf16.mxu0 0
      %3616 = vmatpush1.bf16.xpose.msra.mxu0 0
      %3617 = vmatprep.subr.bf16.mxu0 0
      %3618 = vmatpush1.bf16.xpose.msra.mxu0 0
      %3619 = vmatprep.subr.bf16.mxu0 0
      %3620 = vmatpush1.bf16.xpose.msra.mxu0 0
      %3621 = vmatprep.subr.bf16.mxu0 0
      %3622 = vmatpush1.bf16.xpose.msra.mxu0 0
      %3623 = vmatprep.subr.bf16.mxu0 0
      %3624 = vmatpush1.bf16.xpose.msra.mxu0 0
      %3625 = vmatprep.mubr.bf16.mxu0 0
      %3626 = vmatmul.mubr.bf16.gmra.mrb[0].mxu0 %v3588
      %v3627 = vpop.f32.mrb[0].mxu0
      %v3628 = vadd.f32 0.0, %v3627
      %v3629 = vpop.f32.mrb[0].mxu0
      %v3630 = vpop.f32.mrb[0].mxu0
      %v3631 = vadd.f32 0.0, %v3630
      %v3632 = vpop.f32.mrb[0].mxu0
      %3633 = vdwg.mxu0
      %3634 = vrot.lane.b32.xlu0 %v1367, 64
      %v3635 = vpop.permute.xlu0 %3634
      %3636 = vrot.lane.b32.xlu0 %v1368, 64
      %v3637 = vpop.permute.xlu0 %3636
      %v3639 = vsel %vm1376, %v3635, 0
      %v3642 = vsel %vm1376, %v3637, 0
      %3644 = vmatprep.subr.bf16.mxu0 0
      %3645 = vmatpush1.bf16.xpose.msra.mxu0 %v3642
      %3646 = vmatprep.subr.bf16.mxu0 0
      %3647 = vmatpush1.bf16.xpose.msra.mxu0 0
      %3648 = vmatprep.subr.bf16.mxu0 0
      %3649 = vmatpush1.bf16.xpose.msra.mxu0 0
      %3650 = vmatprep.subr.bf16.mxu0 0
      %3651 = vmatpush1.bf16.xpose.msra.mxu0 0
      %3652 = vmatprep.subr.bf16.mxu0 0
      %3653 = vmatpush1.bf16.xpose.msra.mxu0 0
      %3654 = vmatprep.subr.bf16.mxu0 0
      %3655 = vmatpush1.bf16.xpose.msra.mxu0 0
      %3656 = vmatprep.subr.bf16.mxu0 0
      %3657 = vmatpush1.bf16.xpose.msra.mxu0 0
      %3658 = vmatprep.subr.bf16.mxu0 0
      %3659 = vmatpush1.bf16.xpose.msra.mxu0 0
      %3660 = vmatprep.subr.bf16.mxu0 0
      %3661 = vmatpush1.bf16.xpose.msra.mxu0 0
      %3662 = vmatprep.subr.bf16.mxu0 0
      %3663 = vmatpush1.bf16.xpose.msra.mxu0 0
      %3664 = vmatprep.subr.bf16.mxu0 0
      %3665 = vmatpush1.bf16.xpose.msra.mxu0 0
      %3666 = vmatprep.subr.bf16.mxu0 0
      %3667 = vmatpush1.bf16.xpose.msra.mxu0 0
      %3668 = vmatprep.subr.bf16.mxu0 0
      %3669 = vmatpush1.bf16.xpose.msra.mxu0 0
      %3670 = vmatprep.subr.bf16.mxu0 0
      %3671 = vmatpush1.bf16.xpose.msra.mxu0 0
      %3672 = vmatprep.subr.bf16.mxu0 0
      %3673 = vmatpush1.bf16.xpose.msra.mxu0 0
      %3674 = vmatprep.subr.bf16.mxu0 0
      %3675 = vmatpush1.bf16.xpose.msra.mxu0 0
      %3676 = vmatprep.mubr.bf16.mxu0 0
      %3677 = vmatmul.mubr.bf16.gmra.mrb[0].mxu0 %v3639
      %v3678 = vpop.f32.mrb[0].mxu0
      %v3679 = vadd.f32 0.0, %v3678
      %v3680 = vpop.f32.mrb[0].mxu0
      %v3681 = vpop.f32.mrb[0].mxu0
      %v3682 = vadd.f32 0.0, %v3681
      %v3683 = vpop.f32.mrb[0].mxu0
      %3684 = vdwg.mxu0
      %3685 = vrot.lane.b32.xlu0 %v1370, 64
      %v3686 = vpop.permute.xlu0 %3685
      %3687 = vrot.lane.b32.xlu0 %v1371, 64
      %v3688 = vpop.permute.xlu0 %3687
      %v3690 = vsel %vm1376, %v3686, 0
      %v3693 = vsel %vm1376, %v3688, 0
      %3695 = vmatprep.subr.bf16.mxu0 0
      %3696 = vmatpush1.bf16.xpose.msra.mxu0 %v3693
      %3697 = vmatprep.subr.bf16.mxu0 0
      %3698 = vmatpush1.bf16.xpose.msra.mxu0 0
      %3699 = vmatprep.subr.bf16.mxu0 0
      %3700 = vmatpush1.bf16.xpose.msra.mxu0 0
      %3701 = vmatprep.subr.bf16.mxu0 0
      %3702 = vmatpush1.bf16.xpose.msra.mxu0 0
      %3703 = vmatprep.subr.bf16.mxu0 0
      %3704 = vmatpush1.bf16.xpose.msra.mxu0 0
      %3705 = vmatprep.subr.bf16.mxu0 0
      %3706 = vmatpush1.bf16.xpose.msra.mxu0 0
      %3707 = vmatprep.subr.bf16.mxu0 0
      %3708 = vmatpush1.bf16.xpose.msra.mxu0 0
      %3709 = vmatprep.subr.bf16.mxu0 0
      %3710 = vmatpush1.bf16.xpose.msra.mxu0 0
      %3711 = vmatprep.subr.bf16.mxu0 0
      %3712 = vmatpush1.bf16.xpose.msra.mxu0 0
      %3713 = vmatprep.subr.bf16.mxu0 0
      %3714 = vmatpush1.bf16.xpose.msra.mxu0 0
      %3715 = vmatprep.subr.bf16.mxu0 0
      %3716 = vmatpush1.bf16.xpose.msra.mxu0 0
      %3717 = vmatprep.subr.bf16.mxu0 0
      %3718 = vmatpush1.bf16.xpose.msra.mxu0 0
      %3719 = vmatprep.subr.bf16.mxu0 0
      %3720 = vmatpush1.bf16.xpose.msra.mxu0 0
      %3721 = vmatprep.subr.bf16.mxu0 0
      %3722 = vmatpush1.bf16.xpose.msra.mxu0 0
      %3723 = vmatprep.subr.bf16.mxu0 0
      %3724 = vmatpush1.bf16.xpose.msra.mxu0 0
      %3725 = vmatprep.subr.bf16.mxu0 0
      %3726 = vmatpush1.bf16.xpose.msra.mxu0 0
      %3727 = vmatprep.mubr.bf16.mxu0 0
      %3728 = vmatmul.mubr.bf16.gmra.mrb[0].mxu0 %v3690
      %v3729 = vpop.f32.mrb[0].mxu0
      %v3730 = vadd.f32 0.0, %v3729
      %v3731 = vpop.f32.mrb[0].mxu0
      %v3732 = vpop.f32.mrb[0].mxu0
      %v3733 = vadd.f32 0.0, %v3732
      %v3734 = vpop.f32.mrb[0].mxu0
      %3735 = vdwg.mxu0
      %3736 = vrot.lane.b32.xlu0 %v1373, 64
      %v3737 = vpop.permute.xlu0 %3736
      %3738 = vrot.lane.b32.xlu0 %v1374, 64
      %v3739 = vpop.permute.xlu0 %3738
      %v3741 = vsel %vm1376, %v3737, 0
      %v3744 = vsel %vm1376, %v3739, 0
      %3746 = vmatprep.subr.bf16.mxu0 0
      %3747 = vmatpush1.bf16.xpose.msra.mxu0 %v3744
      %3748 = vmatprep.subr.bf16.mxu0 0
      %3749 = vmatpush1.bf16.xpose.msra.mxu0 0
      %3750 = vmatprep.subr.bf16.mxu0 0
      %3751 = vmatpush1.bf16.xpose.msra.mxu0 0
      %3752 = vmatprep.subr.bf16.mxu0 0
      %3753 = vmatpush1.bf16.xpose.msra.mxu0 0
      %3754 = vmatprep.subr.bf16.mxu0 0
      %3755 = vmatpush1.bf16.xpose.msra.mxu0 0
      %3756 = vmatprep.subr.bf16.mxu0 0
      %3757 = vmatpush1.bf16.xpose.msra.mxu0 0
      %3758 = vmatprep.subr.bf16.mxu0 0
      %3759 = vmatpush1.bf16.xpose.msra.mxu0 0
      %3760 = vmatprep.subr.bf16.mxu0 0
      %3761 = vmatpush1.bf16.xpose.msra.mxu0 0
      %3762 = vmatprep.subr.bf16.mxu0 0
      %3763 = vmatpush1.bf16.xpose.msra.mxu0 0
      %3764 = vmatprep.subr.bf16.mxu0 0
      %3765 = vmatpush1.bf16.xpose.msra.mxu0 0
      %3766 = vmatprep.subr.bf16.mxu0 0
      %3767 = vmatpush1.bf16.xpose.msra.mxu0 0
      %3768 = vmatprep.subr.bf16.mxu0 0
      %3769 = vmatpush1.bf16.xpose.msra.mxu0 0
      %3770 = vmatprep.subr.bf16.mxu0 0
      %3771 = vmatpush1.bf16.xpose.msra.mxu0 0
      %3772 = vmatprep.subr.bf16.mxu0 0
      %3773 = vmatpush1.bf16.xpose.msra.mxu0 0
      %3774 = vmatprep.subr.bf16.mxu0 0
      %3775 = vmatpush1.bf16.xpose.msra.mxu0 0
      %3776 = vmatprep.subr.bf16.mxu0 0
      %3777 = vmatpush1.bf16.xpose.msra.mxu0 0
      %3778 = vmatprep.mubr.bf16.mxu0 0
      %3779 = vmatmul.mubr.bf16.gmra.mrb[0].mxu0 %v3741
      %v3780 = vpop.f32.mrb[0].mxu0
      %v3781 = vadd.f32 0.0, %v3780
      %v3782 = vpop.f32.mrb[0].mxu0
      %v3783 = vpop.f32.mrb[0].mxu0
      %v3784 = vadd.f32 0.0, %v3783
      %v3785 = vpop.f32.mrb[0].mxu0
      %3786 = vdwg.mxu0
      %v3787 = vsel %vm1753, %v3424, -inf
      %3788 = vmax.xlane.f32.xlu0 %v3787
      %v3789 = vpop.xlane.xlu0 %3788
      %v3790 = vsel %vm1753, %v3427, -inf
      %3791 = vmax.xlane.f32.xlu0 %v3790
      %v3792 = vpop.xlane.xlu0 %3791
      %v3793 = vsel %vm1753, %v3475, -inf
      %3794 = vmax.xlane.f32.xlu0 %v3793
      %v3795 = vpop.xlane.xlu0 %3794
      %v3796 = vsel %vm1753, %v3478, -inf
      %3797 = vmax.xlane.f32.xlu0 %v3796
      %v3798 = vpop.xlane.xlu0 %3797
      %v3799 = vsel %vm1753, %v3526, -inf
      %3800 = vmax.xlane.f32.xlu0 %v3799
      %v3801 = vpop.xlane.xlu0 %3800
      %v3802 = vsel %vm1753, %v3529, -inf
      %3803 = vmax.xlane.f32.xlu0 %v3802
      %v3804 = vpop.xlane.xlu0 %3803
      %v3805 = vsel %vm1753, %v3577, -inf
      %3806 = vmax.xlane.f32.xlu0 %v3805
      %v3807 = vpop.xlane.xlu0 %3806
      %v3808 = vsel %vm1753, %v3580, -inf
      %3809 = vmax.xlane.f32.xlu0 %v3808
      %v3810 = vpop.xlane.xlu0 %3809
      %v3811 = vsel %vm1753, %v3628, -inf
      %3812 = vmax.xlane.f32.xlu0 %v3811
      %v3813 = vpop.xlane.xlu0 %3812
      %v3814 = vsel %vm1753, %v3631, -inf
      %3815 = vmax.xlane.f32.xlu0 %v3814
      %v3816 = vpop.xlane.xlu0 %3815
      %v3817 = vsel %vm1753, %v3679, -inf
      %3818 = vmax.xlane.f32.xlu0 %v3817
      %v3819 = vpop.xlane.xlu0 %3818
      %v3820 = vsel %vm1753, %v3682, -inf
      %3821 = vmax.xlane.f32.xlu0 %v3820
      %v3822 = vpop.xlane.xlu0 %3821
      %v3823 = vsel %vm1753, %v3730, -inf
      %3824 = vmax.xlane.f32.xlu0 %v3823
      %v3825 = vpop.xlane.xlu0 %3824
      %v3826 = vsel %vm1753, %v3733, -inf
      %3827 = vmax.xlane.f32.xlu0 %v3826
      %v3828 = vpop.xlane.xlu0 %3827
      %v3829 = vsel %vm1753, %v3781, -inf
      %3830 = vmax.xlane.f32.xlu0 %v3829
      %v3831 = vpop.xlane.xlu0 %3830
      %v3832 = vsel %vm1753, %v3784, -inf
      %3833 = vmax.xlane.f32.xlu0 %v3832
      %v3834 = vpop.xlane.xlu0 %3833
      %v3835 = vsub.f32 %v3424, %v3789
      %v3836 = vsub.f32 %v3427, %v3792
      %v3837 = vsub.f32 %v3475, %v3795
      %v3838 = vsub.f32 %v3478, %v3798
      %v3839 = vsub.f32 %v3526, %v3801
      %v3840 = vsub.f32 %v3529, %v3804
      %v3841 = vsub.f32 %v3577, %v3807
      %v3842 = vsub.f32 %v3580, %v3810
      %v3843 = vsub.f32 %v3628, %v3813
      %v3844 = vsub.f32 %v3631, %v3816
      %v3845 = vsub.f32 %v3679, %v3819
      %v3846 = vsub.f32 %v3682, %v3822
      %v3847 = vsub.f32 %v3730, %v3825
      %v3848 = vsub.f32 %v3733, %v3828
      %v3849 = vsub.f32 %v3781, %v3831
      %v3850 = vsub.f32 %v3784, %v3834
      %v3851 = vmul.f32 %v3835, 1.442695
      %v3852 = vpow.pop %v3851
      %v3853 = vmul.f32 %v3836, 1.442695
      %v3854 = vpow.pop %v3853
      %v3855 = vmul.f32 %v3837, 1.442695
      %v3856 = vpow.pop %v3855
      %v3857 = vmul.f32 %v3838, 1.442695
      %v3858 = vpow.pop %v3857
      %v3859 = vmul.f32 %v3839, 1.442695
      %v3860 = vpow.pop %v3859
      %v3861 = vmul.f32 %v3840, 1.442695
      %v3862 = vpow.pop %v3861
      %v3863 = vmul.f32 %v3841, 1.442695
      %v3864 = vpow.pop %v3863
      %v3865 = vmul.f32 %v3842, 1.442695
      %v3866 = vpow.pop %v3865
      %v3867 = vmul.f32 %v3843, 1.442695
      %v3868 = vpow.pop %v3867
      %v3869 = vmul.f32 %v3844, 1.442695
      %v3870 = vpow.pop %v3869
      %v3871 = vmul.f32 %v3845, 1.442695
      %v3872 = vpow.pop %v3871
      %v3873 = vmul.f32 %v3846, 1.442695
      %v3874 = vpow.pop %v3873
      %v3875 = vmul.f32 %v3847, 1.442695
      %v3876 = vpow.pop %v3875
      %v3877 = vmul.f32 %v3848, 1.442695
      %v3878 = vpow.pop %v3877
      %v3879 = vmul.f32 %v3849, 1.442695
      %v3880 = vpow.pop %v3879
      %v3881 = vmul.f32 %v3850, 1.442695
      %v3882 = vpow.pop %v3881
      %v3883 = vsel %vm1753, %v3852, 0.0
      %3884 = vadd.xlane.f32.xlu0 %v3883
      %v3885 = vpop.xlane.xlu0 %3884
      %v3886 = vsel %vm1753, %v3854, 0.0
      %3887 = vadd.xlane.f32.xlu0 %v3886
      %v3888 = vpop.xlane.xlu0 %3887
      %v3889 = vsel %vm1753, %v3856, 0.0
      %3890 = vadd.xlane.f32.xlu0 %v3889
      %v3891 = vpop.xlane.xlu0 %3890
      %v3892 = vsel %vm1753, %v3858, 0.0
      %3893 = vadd.xlane.f32.xlu0 %v3892
      %v3894 = vpop.xlane.xlu0 %3893
      %v3895 = vsel %vm1753, %v3860, 0.0
      %3896 = vadd.xlane.f32.xlu0 %v3895
      %v3897 = vpop.xlane.xlu0 %3896
      %v3898 = vsel %vm1753, %v3862, 0.0
      %3899 = vadd.xlane.f32.xlu0 %v3898
      %v3900 = vpop.xlane.xlu0 %3899
      %v3901 = vsel %vm1753, %v3864, 0.0
      %3902 = vadd.xlane.f32.xlu0 %v3901
      %v3903 = vpop.xlane.xlu0 %3902
      %v3904 = vsel %vm1753, %v3866, 0.0
      %3905 = vadd.xlane.f32.xlu0 %v3904
      %v3906 = vpop.xlane.xlu0 %3905
      %v3907 = vsel %vm1753, %v3868, 0.0
      %3908 = vadd.xlane.f32.xlu0 %v3907
      %v3909 = vpop.xlane.xlu0 %3908
      %v3910 = vsel %vm1753, %v3870, 0.0
      %3911 = vadd.xlane.f32.xlu0 %v3910
      %v3912 = vpop.xlane.xlu0 %3911
      %v3913 = vsel %vm1753, %v3872, 0.0
      %3914 = vadd.xlane.f32.xlu0 %v3913
      %v3915 = vpop.xlane.xlu0 %3914
      %v3916 = vsel %vm1753, %v3874, 0.0
      %3917 = vadd.xlane.f32.xlu0 %v3916
      %v3918 = vpop.xlane.xlu0 %3917
      %v3919 = vsel %vm1753, %v3876, 0.0
      %3920 = vadd.xlane.f32.xlu0 %v3919
      %v3921 = vpop.xlane.xlu0 %3920
      %v3922 = vsel %vm1753, %v3878, 0.0
      %3923 = vadd.xlane.f32.xlu0 %v3922
      %v3924 = vpop.xlane.xlu0 %3923
      %v3925 = vsel %vm1753, %v3880, 0.0
      %3926 = vadd.xlane.f32.xlu0 %v3925
      %v3927 = vpop.xlane.xlu0 %3926
      %v3928 = vsel %vm1753, %v3882, 0.0
      %3929 = vadd.xlane.f32.xlu0 %v3928
      %v3930 = vpop.xlane.xlu0 %3929
      %v3931 = vrcp.pop %v3885
      %v3932 = vrcp.pop %v3888
      %v3933 = vrcp.pop %v3891
      %v3934 = vrcp.pop %v3894
      %v3935 = vrcp.pop %v3897
      %v3936 = vrcp.pop %v3900
      %v3937 = vrcp.pop %v3903
      %v3938 = vrcp.pop %v3906
      %v3939 = vrcp.pop %v3909
      %v3940 = vrcp.pop %v3912
      %v3941 = vrcp.pop %v3915
      %v3942 = vrcp.pop %v3918
      %v3943 = vrcp.pop %v3921
      %v3944 = vrcp.pop %v3924
      %v3945 = vrcp.pop %v3927
      %v3946 = vrcp.pop %v3930
      %v3947 = vmul.f32 %v3852, %v3931
      %v3948 = vmul.f32 %v3854, %v3932
      %v3949 = vmul.f32 %v3856, %v3933
      %v3950 = vmul.f32 %v3858, %v3934
      %v3951 = vmul.f32 %v3860, %v3935
      %v3952 = vmul.f32 %v3862, %v3936
      %v3953 = vmul.f32 %v3864, %v3937
      %v3954 = vmul.f32 %v3866, %v3938
      %v3955 = vmul.f32 %v3868, %v3939
      %v3956 = vmul.f32 %v3870, %v3940
      %v3957 = vmul.f32 %v3872, %v3941
      %v3958 = vmul.f32 %v3874, %v3942
      %v3959 = vmul.f32 %v3876, %v3943
      %v3960 = vmul.f32 %v3878, %v3944
      %v3961 = vmul.f32 %v3880, %v3945
      %v3962 = vmul.f32 %v3882, %v3946
      %v3963 = vpack.c.bf16 %v3948, %v3947
      %v3964 = vpack.c.bf16 %v3950, %v3949
      %v3965 = vpack.c.bf16 %v3952, %v3951
      %v3966 = vpack.c.bf16 %v3954, %v3953
      %v3967 = vpack.c.bf16 %v3956, %v3955
      %v3968 = vpack.c.bf16 %v3958, %v3957
      %v3969 = vpack.c.bf16 %v3960, %v3959
      %v3970 = vpack.c.bf16 %v3962, %v3961
      %3971 = vrot.lane.b32.xlu0 %v1354, 64
      %v3972 = vpop.permute.xlu0 %3971
      %v3975 = vsel %vm1753, %v3963, 0
      %3977 = vmatprep.subr.bf16.mxu0 0
      %3978 = vmatpush1.bf16.msra.mxu0 %v3972
      %3979 = vmatprep.subr.bf16.mxu0 0
      %3980 = vmatpush1.bf16.msra.mxu0 0
      %3981 = vmatprep.subr.bf16.mxu0 0
      %3982 = vmatpush1.bf16.msra.mxu0 0
      %3983 = vmatprep.subr.bf16.mxu0 0
      %3984 = vmatpush1.bf16.msra.mxu0 0
      %3985 = vmatprep.subr.bf16.mxu0 0
      %3986 = vmatpush1.bf16.msra.mxu0 0
      %3987 = vmatprep.subr.bf16.mxu0 0
      %3988 = vmatpush1.bf16.msra.mxu0 0
      %3989 = vmatprep.subr.bf16.mxu0 0
      %3990 = vmatpush1.bf16.msra.mxu0 0
      %3991 = vmatprep.subr.bf16.mxu0 0
      %3992 = vmatpush1.bf16.msra.mxu0 0
      %3993 = vmatprep.subr.bf16.mxu0 0
      %3994 = vmatpush1.bf16.msra.mxu0 0
      %3995 = vmatprep.subr.bf16.mxu0 0
      %3996 = vmatpush1.bf16.msra.mxu0 0
      %3997 = vmatprep.subr.bf16.mxu0 0
      %3998 = vmatpush1.bf16.msra.mxu0 0
      %3999 = vmatprep.subr.bf16.mxu0 0
      %4000 = vmatpush1.bf16.msra.mxu0 0
      %4001 = vmatprep.subr.bf16.mxu0 0
      %4002 = vmatpush1.bf16.msra.mxu0 0
      %4003 = vmatprep.subr.bf16.mxu0 0
      %4004 = vmatpush1.bf16.msra.mxu0 0
      %4005 = vmatprep.subr.bf16.mxu0 0
      %4006 = vmatpush1.bf16.msra.mxu0 0
      %4007 = vmatprep.subr.bf16.mxu0 0
      %4008 = vmatpush1.bf16.msra.mxu0 0
      %4009 = vmatprep.mubr.bf16.mxu0 0
      %4010 = vmatmul.mubr.bf16.gmra.mrb[0].mxu0 %v3975
      %v4011 = vpop.f32.mrb[0].mxu0
      %v4012 = vadd.f32 0.0, %v4011
      %v4013 = vpop.f32.mrb[0].mxu0
      %v4014 = vpop.f32.mrb[0].mxu0
      %v4015 = vadd.f32 0.0, %v4014
      %v4016 = vpop.f32.mrb[0].mxu0
      %4017 = vdwg.mxu0
      %4018 = vrot.lane.b32.xlu0 %v1357, 64
      %v4019 = vpop.permute.xlu0 %4018
      %v4022 = vsel %vm1753, %v3964, 0
      %4024 = vmatprep.subr.bf16.mxu0 0
      %4025 = vmatpush1.bf16.msra.mxu0 %v4019
      %4026 = vmatprep.subr.bf16.mxu0 0
      %4027 = vmatpush1.bf16.msra.mxu0 0
      %4028 = vmatprep.subr.bf16.mxu0 0
      %4029 = vmatpush1.bf16.msra.mxu0 0
      %4030 = vmatprep.subr.bf16.mxu0 0
      %4031 = vmatpush1.bf16.msra.mxu0 0
      %4032 = vmatprep.subr.bf16.mxu0 0
      %4033 = vmatpush1.bf16.msra.mxu0 0
      %4034 = vmatprep.subr.bf16.mxu0 0
      %4035 = vmatpush1.bf16.msra.mxu0 0
      %4036 = vmatprep.subr.bf16.mxu0 0
      %4037 = vmatpush1.bf16.msra.mxu0 0
      %4038 = vmatprep.subr.bf16.mxu0 0
      %4039 = vmatpush1.bf16.msra.mxu0 0
      %4040 = vmatprep.subr.bf16.mxu0 0
      %4041 = vmatpush1.bf16.msra.mxu0 0
      %4042 = vmatprep.subr.bf16.mxu0 0
      %4043 = vmatpush1.bf16.msra.mxu0 0
      %4044 = vmatprep.subr.bf16.mxu0 0
      %4045 = vmatpush1.bf16.msra.mxu0 0
      %4046 = vmatprep.subr.bf16.mxu0 0
      %4047 = vmatpush1.bf16.msra.mxu0 0
      %4048 = vmatprep.subr.bf16.mxu0 0
      %4049 = vmatpush1.bf16.msra.mxu0 0
      %4050 = vmatprep.subr.bf16.mxu0 0
      %4051 = vmatpush1.bf16.msra.mxu0 0
      %4052 = vmatprep.subr.bf16.mxu0 0
      %4053 = vmatpush1.bf16.msra.mxu0 0
      %4054 = vmatprep.subr.bf16.mxu0 0
      %4055 = vmatpush1.bf16.msra.mxu0 0
      %4056 = vmatprep.mubr.bf16.mxu0 0
      %4057 = vmatmul.mubr.bf16.gmra.mrb[0].mxu0 %v4022
      %v4058 = vpop.f32.mrb[0].mxu0
      %v4059 = vadd.f32 0.0, %v4058
      %v4060 = vpop.f32.mrb[0].mxu0
      %v4061 = vpop.f32.mrb[0].mxu0
      %v4062 = vadd.f32 0.0, %v4061
      %v4063 = vpop.f32.mrb[0].mxu0
      %4064 = vdwg.mxu0
      %4065 = vrot.lane.b32.xlu0 %v1360, 64
      %v4066 = vpop.permute.xlu0 %4065
      %v4069 = vsel %vm1753, %v3965, 0
      %4071 = vmatprep.subr.bf16.mxu0 0
      %4072 = vmatpush1.bf16.msra.mxu0 %v4066
      %4073 = vmatprep.subr.bf16.mxu0 0
      %4074 = vmatpush1.bf16.msra.mxu0 0
      %4075 = vmatprep.subr.bf16.mxu0 0
      %4076 = vmatpush1.bf16.msra.mxu0 0
      %4077 = vmatprep.subr.bf16.mxu0 0
      %4078 = vmatpush1.bf16.msra.mxu0 0
      %4079 = vmatprep.subr.bf16.mxu0 0
      %4080 = vmatpush1.bf16.msra.mxu0 0
      %4081 = vmatprep.subr.bf16.mxu0 0
      %4082 = vmatpush1.bf16.msra.mxu0 0
      %4083 = vmatprep.subr.bf16.mxu0 0
      %4084 = vmatpush1.bf16.msra.mxu0 0
      %4085 = vmatprep.subr.bf16.mxu0 0
      %4086 = vmatpush1.bf16.msra.mxu0 0
      %4087 = vmatprep.subr.bf16.mxu0 0
      %4088 = vmatpush1.bf16.msra.mxu0 0
      %4089 = vmatprep.subr.bf16.mxu0 0
      %4090 = vmatpush1.bf16.msra.mxu0 0
      %4091 = vmatprep.subr.bf16.mxu0 0
      %4092 = vmatpush1.bf16.msra.mxu0 0
      %4093 = vmatprep.subr.bf16.mxu0 0
      %4094 = vmatpush1.bf16.msra.mxu0 0
      %4095 = vmatprep.subr.bf16.mxu0 0
      %4096 = vmatpush1.bf16.msra.mxu0 0
      %4097 = vmatprep.subr.bf16.mxu0 0
      %4098 = vmatpush1.bf16.msra.mxu0 0
      %4099 = vmatprep.subr.bf16.mxu0 0
      %4100 = vmatpush1.bf16.msra.mxu0 0
      %4101 = vmatprep.subr.bf16.mxu0 0
      %4102 = vmatpush1.bf16.msra.mxu0 0
      %4103 = vmatprep.mubr.bf16.mxu0 0
      %4104 = vmatmul.mubr.bf16.gmra.mrb[0].mxu0 %v4069
      %v4105 = vpop.f32.mrb[0].mxu0
      %v4106 = vadd.f32 0.0, %v4105
      %v4107 = vpop.f32.mrb[0].mxu0
      %v4108 = vpop.f32.mrb[0].mxu0
      %v4109 = vadd.f32 0.0, %v4108
      %v4110 = vpop.f32.mrb[0].mxu0
      %4111 = vdwg.mxu0
      %4112 = vrot.lane.b32.xlu0 %v1363, 64
      %v4113 = vpop.permute.xlu0 %4112
      %v4116 = vsel %vm1753, %v3966, 0
      %4118 = vmatprep.subr.bf16.mxu0 0
      %4119 = vmatpush1.bf16.msra.mxu0 %v4113
      %4120 = vmatprep.subr.bf16.mxu0 0
      %4121 = vmatpush1.bf16.msra.mxu0 0
      %4122 = vmatprep.subr.bf16.mxu0 0
      %4123 = vmatpush1.bf16.msra.mxu0 0
      %4124 = vmatprep.subr.bf16.mxu0 0
      %4125 = vmatpush1.bf16.msra.mxu0 0
      %4126 = vmatprep.subr.bf16.mxu0 0
      %4127 = vmatpush1.bf16.msra.mxu0 0
      %4128 = vmatprep.subr.bf16.mxu0 0
      %4129 = vmatpush1.bf16.msra.mxu0 0
      %4130 = vmatprep.subr.bf16.mxu0 0
      %4131 = vmatpush1.bf16.msra.mxu0 0
      %4132 = vmatprep.subr.bf16.mxu0 0
      %4133 = vmatpush1.bf16.msra.mxu0 0
      %4134 = vmatprep.subr.bf16.mxu0 0
      %4135 = vmatpush1.bf16.msra.mxu0 0
      %4136 = vmatprep.subr.bf16.mxu0 0
      %4137 = vmatpush1.bf16.msra.mxu0 0
      %4138 = vmatprep.subr.bf16.mxu0 0
      %4139 = vmatpush1.bf16.msra.mxu0 0
      %4140 = vmatprep.subr.bf16.mxu0 0
      %4141 = vmatpush1.bf16.msra.mxu0 0
      %4142 = vmatprep.subr.bf16.mxu0 0
      %4143 = vmatpush1.bf16.msra.mxu0 0
      %4144 = vmatprep.subr.bf16.mxu0 0
      %4145 = vmatpush1.bf16.msra.mxu0 0
      %4146 = vmatprep.subr.bf16.mxu0 0
      %4147 = vmatpush1.bf16.msra.mxu0 0
      %4148 = vmatprep.subr.bf16.mxu0 0
      %4149 = vmatpush1.bf16.msra.mxu0 0
      %4150 = vmatprep.mubr.bf16.mxu0 0
      %4151 = vmatmul.mubr.bf16.gmra.mrb[0].mxu0 %v4116
      %v4152 = vpop.f32.mrb[0].mxu0
      %v4153 = vadd.f32 0.0, %v4152
      %v4154 = vpop.f32.mrb[0].mxu0
      %v4155 = vpop.f32.mrb[0].mxu0
      %v4156 = vadd.f32 0.0, %v4155
      %v4157 = vpop.f32.mrb[0].mxu0
      %4158 = vdwg.mxu0
      %4159 = vrot.lane.b32.xlu0 %v1366, 64
      %v4160 = vpop.permute.xlu0 %4159
      %v4163 = vsel %vm1753, %v3967, 0
      %4165 = vmatprep.subr.bf16.mxu0 0
      %4166 = vmatpush1.bf16.msra.mxu0 %v4160
      %4167 = vmatprep.subr.bf16.mxu0 0
      %4168 = vmatpush1.bf16.msra.mxu0 0
      %4169 = vmatprep.subr.bf16.mxu0 0
      %4170 = vmatpush1.bf16.msra.mxu0 0
      %4171 = vmatprep.subr.bf16.mxu0 0
      %4172 = vmatpush1.bf16.msra.mxu0 0
      %4173 = vmatprep.subr.bf16.mxu0 0
      %4174 = vmatpush1.bf16.msra.mxu0 0
      %4175 = vmatprep.subr.bf16.mxu0 0
      %4176 = vmatpush1.bf16.msra.mxu0 0
      %4177 = vmatprep.subr.bf16.mxu0 0
      %4178 = vmatpush1.bf16.msra.mxu0 0
      %4179 = vmatprep.subr.bf16.mxu0 0
      %4180 = vmatpush1.bf16.msra.mxu0 0
      %4181 = vmatprep.subr.bf16.mxu0 0
      %4182 = vmatpush1.bf16.msra.mxu0 0
      %4183 = vmatprep.subr.bf16.mxu0 0
      %4184 = vmatpush1.bf16.msra.mxu0 0
      %4185 = vmatprep.subr.bf16.mxu0 0
      %4186 = vmatpush1.bf16.msra.mxu0 0
      %4187 = vmatprep.subr.bf16.mxu0 0
      %4188 = vmatpush1.bf16.msra.mxu0 0
      %4189 = vmatprep.subr.bf16.mxu0 0
      %4190 = vmatpush1.bf16.msra.mxu0 0
      %4191 = vmatprep.subr.bf16.mxu0 0
      %4192 = vmatpush1.bf16.msra.mxu0 0
      %4193 = vmatprep.subr.bf16.mxu0 0
      %4194 = vmatpush1.bf16.msra.mxu0 0
      %4195 = vmatprep.subr.bf16.mxu0 0
      %4196 = vmatpush1.bf16.msra.mxu0 0
      %4197 = vmatprep.mubr.bf16.mxu0 0
      %4198 = vmatmul.mubr.bf16.gmra.mrb[0].mxu0 %v4163
      %v4199 = vpop.f32.mrb[0].mxu0
      %v4200 = vadd.f32 0.0, %v4199
      %v4201 = vpop.f32.mrb[0].mxu0
      %v4202 = vpop.f32.mrb[0].mxu0
      %v4203 = vadd.f32 0.0, %v4202
      %v4204 = vpop.f32.mrb[0].mxu0
      %4205 = vdwg.mxu0
      %4206 = vrot.lane.b32.xlu0 %v1369, 64
      %v4207 = vpop.permute.xlu0 %4206
      %v4210 = vsel %vm1753, %v3968, 0
      %4212 = vmatprep.subr.bf16.mxu0 0
      %4213 = vmatpush1.bf16.msra.mxu0 %v4207
      %4214 = vmatprep.subr.bf16.mxu0 0
      %4215 = vmatpush1.bf16.msra.mxu0 0
      %4216 = vmatprep.subr.bf16.mxu0 0
      %4217 = vmatpush1.bf16.msra.mxu0 0
      %4218 = vmatprep.subr.bf16.mxu0 0
      %4219 = vmatpush1.bf16.msra.mxu0 0
      %4220 = vmatprep.subr.bf16.mxu0 0
      %4221 = vmatpush1.bf16.msra.mxu0 0
      %4222 = vmatprep.subr.bf16.mxu0 0
      %4223 = vmatpush1.bf16.msra.mxu0 0
      %4224 = vmatprep.subr.bf16.mxu0 0
      %4225 = vmatpush1.bf16.msra.mxu0 0
      %4226 = vmatprep.subr.bf16.mxu0 0
      %4227 = vmatpush1.bf16.msra.mxu0 0
      %4228 = vmatprep.subr.bf16.mxu0 0
      %4229 = vmatpush1.bf16.msra.mxu0 0
      %4230 = vmatprep.subr.bf16.mxu0 0
      %4231 = vmatpush1.bf16.msra.mxu0 0
      %4232 = vmatprep.subr.bf16.mxu0 0
      %4233 = vmatpush1.bf16.msra.mxu0 0
      %4234 = vmatprep.subr.bf16.mxu0 0
      %4235 = vmatpush1.bf16.msra.mxu0 0
      %4236 = vmatprep.subr.bf16.mxu0 0
      %4237 = vmatpush1.bf16.msra.mxu0 0
      %4238 = vmatprep.subr.bf16.mxu0 0
      %4239 = vmatpush1.bf16.msra.mxu0 0
      %4240 = vmatprep.subr.bf16.mxu0 0
      %4241 = vmatpush1.bf16.msra.mxu0 0
      %4242 = vmatprep.subr.bf16.mxu0 0
      %4243 = vmatpush1.bf16.msra.mxu0 0
      %4244 = vmatprep.mubr.bf16.mxu0 0
      %4245 = vmatmul.mubr.bf16.gmra.mrb[0].mxu0 %v4210
      %v4246 = vpop.f32.mrb[0].mxu0
      %v4247 = vadd.f32 0.0, %v4246
      %v4248 = vpop.f32.mrb[0].mxu0
      %v4249 = vpop.f32.mrb[0].mxu0
      %v4250 = vadd.f32 0.0, %v4249
      %v4251 = vpop.f32.mrb[0].mxu0
      %4252 = vdwg.mxu0
      %4253 = vrot.lane.b32.xlu0 %v1372, 64
      %v4254 = vpop.permute.xlu0 %4253
      %v4257 = vsel %vm1753, %v3969, 0
      %4259 = vmatprep.subr.bf16.mxu0 0
      %4260 = vmatpush1.bf16.msra.mxu0 %v4254
      %4261 = vmatprep.subr.bf16.mxu0 0
      %4262 = vmatpush1.bf16.msra.mxu0 0
      %4263 = vmatprep.subr.bf16.mxu0 0
      %4264 = vmatpush1.bf16.msra.mxu0 0
      %4265 = vmatprep.subr.bf16.mxu0 0
      %4266 = vmatpush1.bf16.msra.mxu0 0
      %4267 = vmatprep.subr.bf16.mxu0 0
      %4268 = vmatpush1.bf16.msra.mxu0 0
      %4269 = vmatprep.subr.bf16.mxu0 0
      %4270 = vmatpush1.bf16.msra.mxu0 0
      %4271 = vmatprep.subr.bf16.mxu0 0
      %4272 = vmatpush1.bf16.msra.mxu0 0
      %4273 = vmatprep.subr.bf16.mxu0 0
      %4274 = vmatpush1.bf16.msra.mxu0 0
      %4275 = vmatprep.subr.bf16.mxu0 0
      %4276 = vmatpush1.bf16.msra.mxu0 0
      %4277 = vmatprep.subr.bf16.mxu0 0
      %4278 = vmatpush1.bf16.msra.mxu0 0
      %4279 = vmatprep.subr.bf16.mxu0 0
      %4280 = vmatpush1.bf16.msra.mxu0 0
      %4281 = vmatprep.subr.bf16.mxu0 0
      %4282 = vmatpush1.bf16.msra.mxu0 0
      %4283 = vmatprep.subr.bf16.mxu0 0
      %4284 = vmatpush1.bf16.msra.mxu0 0
      %4285 = vmatprep.subr.bf16.mxu0 0
      %4286 = vmatpush1.bf16.msra.mxu0 0
      %4287 = vmatprep.subr.bf16.mxu0 0
      %4288 = vmatpush1.bf16.msra.mxu0 0
      %4289 = vmatprep.subr.bf16.mxu0 0
      %4290 = vmatpush1.bf16.msra.mxu0 0
      %4291 = vmatprep.mubr.bf16.mxu0 0
      %4292 = vmatmul.mubr.bf16.gmra.mrb[0].mxu0 %v4257
      %v4293 = vpop.f32.mrb[0].mxu0
      %v4294 = vadd.f32 0.0, %v4293
      %v4295 = vpop.f32.mrb[0].mxu0
      %v4296 = vpop.f32.mrb[0].mxu0
      %v4297 = vadd.f32 0.0, %v4296
      %v4298 = vpop.f32.mrb[0].mxu0
      %4299 = vdwg.mxu0
      %4300 = vrot.lane.b32.xlu0 %v1375, 64
      %v4301 = vpop.permute.xlu0 %4300
      %v4304 = vsel %vm1753, %v3970, 0
      %4306 = vmatprep.subr.bf16.mxu0 0
      %4307 = vmatpush1.bf16.msra.mxu0 %v4301
      %4308 = vmatprep.subr.bf16.mxu0 0
      %4309 = vmatpush1.bf16.msra.mxu0 0
      %4310 = vmatprep.subr.bf16.mxu0 0
      %4311 = vmatpush1.bf16.msra.mxu0 0
      %4312 = vmatprep.subr.bf16.mxu0 0
      %4313 = vmatpush1.bf16.msra.mxu0 0
      %4314 = vmatprep.subr.bf16.mxu0 0
      %4315 = vmatpush1.bf16.msra.mxu0 0
      %4316 = vmatprep.subr.bf16.mxu0 0
      %4317 = vmatpush1.bf16.msra.mxu0 0
      %4318 = vmatprep.subr.bf16.mxu0 0
      %4319 = vmatpush1.bf16.msra.mxu0 0
      %4320 = vmatprep.subr.bf16.mxu0 0
      %4321 = vmatpush1.bf16.msra.mxu0 0
      %4322 = vmatprep.subr.bf16.mxu0 0
      %4323 = vmatpush1.bf16.msra.mxu0 0
      %4324 = vmatprep.subr.bf16.mxu0 0
      %4325 = vmatpush1.bf16.msra.mxu0 0
      %4326 = vmatprep.subr.bf16.mxu0 0
      %4327 = vmatpush1.bf16.msra.mxu0 0
      %4328 = vmatprep.subr.bf16.mxu0 0
      %4329 = vmatpush1.bf16.msra.mxu0 0
      %4330 = vmatprep.subr.bf16.mxu0 0
      %4331 = vmatpush1.bf16.msra.mxu0 0
      %4332 = vmatprep.subr.bf16.mxu0 0
      %4333 = vmatpush1.bf16.msra.mxu0 0
      %4334 = vmatprep.subr.bf16.mxu0 0
      %4335 = vmatpush1.bf16.msra.mxu0 0
      %4336 = vmatprep.subr.bf16.mxu0 0
      %4337 = vmatpush1.bf16.msra.mxu0 0
      %4338 = vmatprep.mubr.bf16.mxu0 0
      %4339 = vmatmul.mubr.bf16.gmra.mrb[0].mxu0 %v4304
      %v4340 = vpop.f32.mrb[0].mxu0
      %v4341 = vadd.f32 0.0, %v4340
      %v4342 = vpop.f32.mrb[0].mxu0
      %v4343 = vpop.f32.mrb[0].mxu0
      %v4344 = vadd.f32 0.0, %v4343
      %v4345 = vpop.f32.mrb[0].mxu0
      %4346 = vdwg.mxu0
      %4363 = vrot.lane.b32.xlu0 %v4012, 64
      %v4364 = vpop.permute.xlu0 %4363
      %4365 = vrot.lane.b32.xlu0 %v4015, 64
      %v4366 = vpop.permute.xlu0 %4365
      %4367 = vrot.lane.b32.xlu0 %v4059, 64
      %v4368 = vpop.permute.xlu0 %4367
      %4369 = vrot.lane.b32.xlu0 %v4062, 64
      %v4370 = vpop.permute.xlu0 %4369
      %4371 = vrot.lane.b32.xlu0 %v4106, 64
      %v4372 = vpop.permute.xlu0 %4371
      %4373 = vrot.lane.b32.xlu0 %v4109, 64
      %v4374 = vpop.permute.xlu0 %4373
      %4375 = vrot.lane.b32.xlu0 %v4153, 64
      %v4376 = vpop.permute.xlu0 %4375
      %4377 = vrot.lane.b32.xlu0 %v4156, 64
      %v4378 = vpop.permute.xlu0 %4377
      %4379 = vrot.lane.b32.xlu0 %v4200, 64
      %v4380 = vpop.permute.xlu0 %4379
      %4381 = vrot.lane.b32.xlu0 %v4203, 64
      %v4382 = vpop.permute.xlu0 %4381
      %4383 = vrot.lane.b32.xlu0 %v4247, 64
      %v4384 = vpop.permute.xlu0 %4383
      %4385 = vrot.lane.b32.xlu0 %v4250, 64
      %v4386 = vpop.permute.xlu0 %4385
      %4387 = vrot.lane.b32.xlu0 %v4294, 64
      %v4388 = vpop.permute.xlu0 %4387
      %4389 = vrot.lane.b32.xlu0 %v4297, 64
      %v4390 = vpop.permute.xlu0 %4389
      %4391 = vrot.lane.b32.xlu0 %v4341, 64
      %v4392 = vpop.permute.xlu0 %4391
      %4393 = vrot.lane.b32.xlu0 %v4344, 64
      %v4394 = vpop.permute.xlu0 %4393
      %vm4411 = vcmask 785920
      %4412 = vst.msk [vmem:[#allocation3] sm:$0xff] %vm4411, %v4364
      %4413 = vst.msk [vmem:[#allocation3 + $0x8] sm:$0xff] %vm4411, %v4366
      %4414 = vst.msk [vmem:[#allocation3 + $0x10] sm:$0xff] %vm4411, %v4368
      %4415 = vst.msk [vmem:[#allocation3 + $0x18] sm:$0xff] %vm4411, %v4370
      %4416 = vst.msk [vmem:[#allocation3 + $0x20] sm:$0xff] %vm4411, %v4372
      %4417 = vst.msk [vmem:[#allocation3 + $0x28] sm:$0xff] %vm4411, %v4374
      %4418 = vst.msk [vmem:[#allocation3 + $0x30] sm:$0xff] %vm4411, %v4376
      %4419 = vst.msk [vmem:[#allocation3 + $0x38] sm:$0xff] %vm4411, %v4378
      %4420 = vst.msk [vmem:[#allocation3 + $0x40] sm:$0xff] %vm4411, %v4380
      %4421 = vst.msk [vmem:[#allocation3 + $0x48] sm:$0xff] %vm4411, %v4382
      %4422 = vst.msk [vmem:[#allocation3 + $0x50] sm:$0xff] %vm4411, %v4384
      %4423 = vst.msk [vmem:[#allocation3 + $0x58] sm:$0xff] %vm4411, %v4386
      %4424 = vst.msk [vmem:[#allocation3 + $0x60] sm:$0xff] %vm4411, %v4388
      %4425 = vst.msk [vmem:[#allocation3 + $0x68] sm:$0xff] %vm4411, %v4390
      %4426 = vst.msk [vmem:[#allocation3 + $0x70] sm:$0xff] %vm4411, %v4392
      %4427 = vst.msk [vmem:[#allocation3 + $0x78] sm:$0xff] %vm4411, %v4394
      %4428 = vrot.lane.b32.xlu0 %v1352, 32
      %v4429 = vpop.permute.xlu0 %4428
      %4430 = vrot.lane.b32.xlu0 %v1353, 32
      %v4431 = vpop.permute.xlu0 %4430
      %v4433 = vsel %vm1376, %v4429, 0
      %v4436 = vsel %vm1376, %v4431, 0
      %4438 = vmatprep.subr.bf16.mxu0 0
      %4439 = vmatpush1.bf16.xpose.msra.mxu0 %v4436
      %4440 = vmatprep.subr.bf16.mxu0 0
      %4441 = vmatpush1.bf16.xpose.msra.mxu0 0
      %4442 = vmatprep.subr.bf16.mxu0 0
      %4443 = vmatpush1.bf16.xpose.msra.mxu0 0
      %4444 = vmatprep.subr.bf16.mxu0 0
      %4445 = vmatpush1.bf16.xpose.msra.mxu0 0
      %4446 = vmatprep.subr.bf16.mxu0 0
      %4447 = vmatpush1.bf16.xpose.msra.mxu0 0
      %4448 = vmatprep.subr.bf16.mxu0 0
      %4449 = vmatpush1.bf16.xpose.msra.mxu0 0
      %4450 = vmatprep.subr.bf16.mxu0 0
      %4451 = vmatpush1.bf16.xpose.msra.mxu0 0
      %4452 = vmatprep.subr.bf16.mxu0 0
      %4453 = vmatpush1.bf16.xpose.msra.mxu0 0
      %4454 = vmatprep.subr.bf16.mxu0 0
      %4455 = vmatpush1.bf16.xpose.msra.mxu0 0
      %4456 = vmatprep.subr.bf16.mxu0 0
      %4457 = vmatpush1.bf16.xpose.msra.mxu0 0
      %4458 = vmatprep.subr.bf16.mxu0 0
      %4459 = vmatpush1.bf16.xpose.msra.mxu0 0
      %4460 = vmatprep.subr.bf16.mxu0 0
      %4461 = vmatpush1.bf16.xpose.msra.mxu0 0
      %4462 = vmatprep.subr.bf16.mxu0 0
      %4463 = vmatpush1.bf16.xpose.msra.mxu0 0
      %4464 = vmatprep.subr.bf16.mxu0 0
      %4465 = vmatpush1.bf16.xpose.msra.mxu0 0
      %4466 = vmatprep.subr.bf16.mxu0 0
      %4467 = vmatpush1.bf16.xpose.msra.mxu0 0
      %4468 = vmatprep.subr.bf16.mxu0 0
      %4469 = vmatpush1.bf16.xpose.msra.mxu0 0
      %4470 = vmatprep.mubr.bf16.mxu0 0
      %4471 = vmatmul.mubr.bf16.gmra.mrb[0].mxu0 %v4433
      %v4472 = vpop.f32.mrb[0].mxu0
      %v4473 = vadd.f32 0.0, %v4472
      %v4474 = vpop.f32.mrb[0].mxu0
      %v4475 = vpop.f32.mrb[0].mxu0
      %v4476 = vadd.f32 0.0, %v4475
      %v4477 = vpop.f32.mrb[0].mxu0
      %4478 = vdwg.mxu0
      %4479 = vrot.lane.b32.xlu0 %v1355, 32
      %v4480 = vpop.permute.xlu0 %4479
      %4481 = vrot.lane.b32.xlu0 %v1356, 32
      %v4482 = vpop.permute.xlu0 %4481
      %v4484 = vsel %vm1376, %v4480, 0
      %v4487 = vsel %vm1376, %v4482, 0
      %4489 = vmatprep.subr.bf16.mxu0 0
      %4490 = vmatpush1.bf16.xpose.msra.mxu0 %v4487
      %4491 = vmatprep.subr.bf16.mxu0 0
      %4492 = vmatpush1.bf16.xpose.msra.mxu0 0
      %4493 = vmatprep.subr.bf16.mxu0 0
      %4494 = vmatpush1.bf16.xpose.msra.mxu0 0
      %4495 = vmatprep.subr.bf16.mxu0 0
      %4496 = vmatpush1.bf16.xpose.msra.mxu0 0
      %4497 = vmatprep.subr.bf16.mxu0 0
      %4498 = vmatpush1.bf16.xpose.msra.mxu0 0
      %4499 = vmatprep.subr.bf16.mxu0 0
      %4500 = vmatpush1.bf16.xpose.msra.mxu0 0
      %4501 = vmatprep.subr.bf16.mxu0 0
      %4502 = vmatpush1.bf16.xpose.msra.mxu0 0
      %4503 = vmatprep.subr.bf16.mxu0 0
      %4504 = vmatpush1.bf16.xpose.msra.mxu0 0
      %4505 = vmatprep.subr.bf16.mxu0 0
      %4506 = vmatpush1.bf16.xpose.msra.mxu0 0
      %4507 = vmatprep.subr.bf16.mxu0 0
      %4508 = vmatpush1.bf16.xpose.msra.mxu0 0
      %4509 = vmatprep.subr.bf16.mxu0 0
      %4510 = vmatpush1.bf16.xpose.msra.mxu0 0
      %4511 = vmatprep.subr.bf16.mxu0 0
      %4512 = vmatpush1.bf16.xpose.msra.mxu0 0
      %4513 = vmatprep.subr.bf16.mxu0 0
      %4514 = vmatpush1.bf16.xpose.msra.mxu0 0
      %4515 = vmatprep.subr.bf16.mxu0 0
      %4516 = vmatpush1.bf16.xpose.msra.mxu0 0
      %4517 = vmatprep.subr.bf16.mxu0 0
      %4518 = vmatpush1.bf16.xpose.msra.mxu0 0
      %4519 = vmatprep.subr.bf16.mxu0 0
      %4520 = vmatpush1.bf16.xpose.msra.mxu0 0
      %4521 = vmatprep.mubr.bf16.mxu0 0
      %4522 = vmatmul.mubr.bf16.gmra.mrb[0].mxu0 %v4484
      %v4523 = vpop.f32.mrb[0].mxu0
      %v4524 = vadd.f32 0.0, %v4523
      %v4525 = vpop.f32.mrb[0].mxu0
      %v4526 = vpop.f32.mrb[0].mxu0
      %v4527 = vadd.f32 0.0, %v4526
      %v4528 = vpop.f32.mrb[0].mxu0
      %4529 = vdwg.mxu0
      %4530 = vrot.lane.b32.xlu0 %v1358, 32
      %v4531 = vpop.permute.xlu0 %4530
      %4532 = vrot.lane.b32.xlu0 %v1359, 32
      %v4533 = vpop.permute.xlu0 %4532
      %v4535 = vsel %vm1376, %v4531, 0
      %v4538 = vsel %vm1376, %v4533, 0
      %4540 = vmatprep.subr.bf16.mxu0 0
      %4541 = vmatpush1.bf16.xpose.msra.mxu0 %v4538
      %4542 = vmatprep.subr.bf16.mxu0 0
      %4543 = vmatpush1.bf16.xpose.msra.mxu0 0
      %4544 = vmatprep.subr.bf16.mxu0 0
      %4545 = vmatpush1.bf16.xpose.msra.mxu0 0
      %4546 = vmatprep.subr.bf16.mxu0 0
      %4547 = vmatpush1.bf16.xpose.msra.mxu0 0
      %4548 = vmatprep.subr.bf16.mxu0 0
      %4549 = vmatpush1.bf16.xpose.msra.mxu0 0
      %4550 = vmatprep.subr.bf16.mxu0 0
      %4551 = vmatpush1.bf16.xpose.msra.mxu0 0
      %4552 = vmatprep.subr.bf16.mxu0 0
      %4553 = vmatpush1.bf16.xpose.msra.mxu0 0
      %4554 = vmatprep.subr.bf16.mxu0 0
      %4555 = vmatpush1.bf16.xpose.msra.mxu0 0
      %4556 = vmatprep.subr.bf16.mxu0 0
      %4557 = vmatpush1.bf16.xpose.msra.mxu0 0
      %4558 = vmatprep.subr.bf16.mxu0 0
      %4559 = vmatpush1.bf16.xpose.msra.mxu0 0
      %4560 = vmatprep.subr.bf16.mxu0 0
      %4561 = vmatpush1.bf16.xpose.msra.mxu0 0
      %4562 = vmatprep.subr.bf16.mxu0 0
      %4563 = vmatpush1.bf16.xpose.msra.mxu0 0
      %4564 = vmatprep.subr.bf16.mxu0 0
      %4565 = vmatpush1.bf16.xpose.msra.mxu0 0
      %4566 = vmatprep.subr.bf16.mxu0 0
      %4567 = vmatpush1.bf16.xpose.msra.mxu0 0
      %4568 = vmatprep.subr.bf16.mxu0 0
      %4569 = vmatpush1.bf16.xpose.msra.mxu0 0
      %4570 = vmatprep.subr.bf16.mxu0 0
      %4571 = vmatpush1.bf16.xpose.msra.mxu0 0
      %4572 = vmatprep.mubr.bf16.mxu0 0
      %4573 = vmatmul.mubr.bf16.gmra.mrb[0].mxu0 %v4535
      %v4574 = vpop.f32.mrb[0].mxu0
      %v4575 = vadd.f32 0.0, %v4574
      %v4576 = vpop.f32.mrb[0].mxu0
      %v4577 = vpop.f32.mrb[0].mxu0
      %v4578 = vadd.f32 0.0, %v4577
      %v4579 = vpop.f32.mrb[0].mxu0
      %4580 = vdwg.mxu0
      %4581 = vrot.lane.b32.xlu0 %v1361, 32
      %v4582 = vpop.permute.xlu0 %4581
      %4583 = vrot.lane.b32.xlu0 %v1362, 32
      %v4584 = vpop.permute.xlu0 %4583
      %v4586 = vsel %vm1376, %v4582, 0
      %v4589 = vsel %vm1376, %v4584, 0
      %4591 = vmatprep.subr.bf16.mxu0 0
      %4592 = vmatpush1.bf16.xpose.msra.mxu0 %v4589
      %4593 = vmatprep.subr.bf16.mxu0 0
      %4594 = vmatpush1.bf16.xpose.msra.mxu0 0
      %4595 = vmatprep.subr.bf16.mxu0 0
      %4596 = vmatpush1.bf16.xpose.msra.mxu0 0
      %4597 = vmatprep.subr.bf16.mxu0 0
      %4598 = vmatpush1.bf16.xpose.msra.mxu0 0
      %4599 = vmatprep.subr.bf16.mxu0 0
      %4600 = vmatpush1.bf16.xpose.msra.mxu0 0
      %4601 = vmatprep.subr.bf16.mxu0 0
      %4602 = vmatpush1.bf16.xpose.msra.mxu0 0
      %4603 = vmatprep.subr.bf16.mxu0 0
      %4604 = vmatpush1.bf16.xpose.msra.mxu0 0
      %4605 = vmatprep.subr.bf16.mxu0 0
      %4606 = vmatpush1.bf16.xpose.msra.mxu0 0
      %4607 = vmatprep.subr.bf16.mxu0 0
      %4608 = vmatpush1.bf16.xpose.msra.mxu0 0
      %4609 = vmatprep.subr.bf16.mxu0 0
      %4610 = vmatpush1.bf16.xpose.msra.mxu0 0
      %4611 = vmatprep.subr.bf16.mxu0 0
      %4612 = vmatpush1.bf16.xpose.msra.mxu0 0
      %4613 = vmatprep.subr.bf16.mxu0 0
      %4614 = vmatpush1.bf16.xpose.msra.mxu0 0
      %4615 = vmatprep.subr.bf16.mxu0 0
      %4616 = vmatpush1.bf16.xpose.msra.mxu0 0
      %4617 = vmatprep.subr.bf16.mxu0 0
      %4618 = vmatpush1.bf16.xpose.msra.mxu0 0
      %4619 = vmatprep.subr.bf16.mxu0 0
      %4620 = vmatpush1.bf16.xpose.msra.mxu0 0
      %4621 = vmatprep.subr.bf16.mxu0 0
      %4622 = vmatpush1.bf16.xpose.msra.mxu0 0
      %4623 = vmatprep.mubr.bf16.mxu0 0
      %4624 = vmatmul.mubr.bf16.gmra.mrb[0].mxu0 %v4586
      %v4625 = vpop.f32.mrb[0].mxu0
      %v4626 = vadd.f32 0.0, %v4625
      %v4627 = vpop.f32.mrb[0].mxu0
      %v4628 = vpop.f32.mrb[0].mxu0
      %v4629 = vadd.f32 0.0, %v4628
      %v4630 = vpop.f32.mrb[0].mxu0
      %4631 = vdwg.mxu0
      %4632 = vrot.lane.b32.xlu0 %v1364, 32
      %v4633 = vpop.permute.xlu0 %4632
      %4634 = vrot.lane.b32.xlu0 %v1365, 32
      %v4635 = vpop.permute.xlu0 %4634
      %v4637 = vsel %vm1376, %v4633, 0
      %v4640 = vsel %vm1376, %v4635, 0
      %4642 = vmatprep.subr.bf16.mxu0 0
      %4643 = vmatpush1.bf16.xpose.msra.mxu0 %v4640
      %4644 = vmatprep.subr.bf16.mxu0 0
      %4645 = vmatpush1.bf16.xpose.msra.mxu0 0
      %4646 = vmatprep.subr.bf16.mxu0 0
      %4647 = vmatpush1.bf16.xpose.msra.mxu0 0
      %4648 = vmatprep.subr.bf16.mxu0 0
      %4649 = vmatpush1.bf16.xpose.msra.mxu0 0
      %4650 = vmatprep.subr.bf16.mxu0 0
      %4651 = vmatpush1.bf16.xpose.msra.mxu0 0
      %4652 = vmatprep.subr.bf16.mxu0 0
      %4653 = vmatpush1.bf16.xpose.msra.mxu0 0
      %4654 = vmatprep.subr.bf16.mxu0 0
      %4655 = vmatpush1.bf16.xpose.msra.mxu0 0
      %4656 = vmatprep.subr.bf16.mxu0 0
      %4657 = vmatpush1.bf16.xpose.msra.mxu0 0
      %4658 = vmatprep.subr.bf16.mxu0 0
      %4659 = vmatpush1.bf16.xpose.msra.mxu0 0
      %4660 = vmatprep.subr.bf16.mxu0 0
      %4661 = vmatpush1.bf16.xpose.msra.mxu0 0
      %4662 = vmatprep.subr.bf16.mxu0 0
      %4663 = vmatpush1.bf16.xpose.msra.mxu0 0
      %4664 = vmatprep.subr.bf16.mxu0 0
      %4665 = vmatpush1.bf16.xpose.msra.mxu0 0
      %4666 = vmatprep.subr.bf16.mxu0 0
      %4667 = vmatpush1.bf16.xpose.msra.mxu0 0
      %4668 = vmatprep.subr.bf16.mxu0 0
      %4669 = vmatpush1.bf16.xpose.msra.mxu0 0
      %4670 = vmatprep.subr.bf16.mxu0 0
      %4671 = vmatpush1.bf16.xpose.msra.mxu0 0
      %4672 = vmatprep.subr.bf16.mxu0 0
      %4673 = vmatpush1.bf16.xpose.msra.mxu0 0
      %4674 = vmatprep.mubr.bf16.mxu0 0
      %4675 = vmatmul.mubr.bf16.gmra.mrb[0].mxu0 %v4637
      %v4676 = vpop.f32.mrb[0].mxu0
      %v4677 = vadd.f32 0.0, %v4676
      %v4678 = vpop.f32.mrb[0].mxu0
      %v4679 = vpop.f32.mrb[0].mxu0
      %v4680 = vadd.f32 0.0, %v4679
      %v4681 = vpop.f32.mrb[0].mxu0
      %4682 = vdwg.mxu0
      %4683 = vrot.lane.b32.xlu0 %v1367, 32
      %v4684 = vpop.permute.xlu0 %4683
      %4685 = vrot.lane.b32.xlu0 %v1368, 32
      %v4686 = vpop.permute.xlu0 %4685
      %v4688 = vsel %vm1376, %v4684, 0
      %v4691 = vsel %vm1376, %v4686, 0
      %4693 = vmatprep.subr.bf16.mxu0 0
      %4694 = vmatpush1.bf16.xpose.msra.mxu0 %v4691
      %4695 = vmatprep.subr.bf16.mxu0 0
      %4696 = vmatpush1.bf16.xpose.msra.mxu0 0
      %4697 = vmatprep.subr.bf16.mxu0 0
      %4698 = vmatpush1.bf16.xpose.msra.mxu0 0
      %4699 = vmatprep.subr.bf16.mxu0 0
      %4700 = vmatpush1.bf16.xpose.msra.mxu0 0
      %4701 = vmatprep.subr.bf16.mxu0 0
      %4702 = vmatpush1.bf16.xpose.msra.mxu0 0
      %4703 = vmatprep.subr.bf16.mxu0 0
      %4704 = vmatpush1.bf16.xpose.msra.mxu0 0
      %4705 = vmatprep.subr.bf16.mxu0 0
      %4706 = vmatpush1.bf16.xpose.msra.mxu0 0
      %4707 = vmatprep.subr.bf16.mxu0 0
      %4708 = vmatpush1.bf16.xpose.msra.mxu0 0
      %4709 = vmatprep.subr.bf16.mxu0 0
      %4710 = vmatpush1.bf16.xpose.msra.mxu0 0
      %4711 = vmatprep.subr.bf16.mxu0 0
      %4712 = vmatpush1.bf16.xpose.msra.mxu0 0
      %4713 = vmatprep.subr.bf16.mxu0 0
      %4714 = vmatpush1.bf16.xpose.msra.mxu0 0
      %4715 = vmatprep.subr.bf16.mxu0 0
      %4716 = vmatpush1.bf16.xpose.msra.mxu0 0
      %4717 = vmatprep.subr.bf16.mxu0 0
      %4718 = vmatpush1.bf16.xpose.msra.mxu0 0
      %4719 = vmatprep.subr.bf16.mxu0 0
      %4720 = vmatpush1.bf16.xpose.msra.mxu0 0
      %4721 = vmatprep.subr.bf16.mxu0 0
      %4722 = vmatpush1.bf16.xpose.msra.mxu0 0
      %4723 = vmatprep.subr.bf16.mxu0 0
      %4724 = vmatpush1.bf16.xpose.msra.mxu0 0
      %4725 = vmatprep.mubr.bf16.mxu0 0
      %4726 = vmatmul.mubr.bf16.gmra.mrb[0].mxu0 %v4688
      %v4727 = vpop.f32.mrb[0].mxu0
      %v4728 = vadd.f32 0.0, %v4727
      %v4729 = vpop.f32.mrb[0].mxu0
      %v4730 = vpop.f32.mrb[0].mxu0
      %v4731 = vadd.f32 0.0, %v4730
      %v4732 = vpop.f32.mrb[0].mxu0
      %4733 = vdwg.mxu0
      %4734 = vrot.lane.b32.xlu0 %v1370, 32
      %v4735 = vpop.permute.xlu0 %4734
      %4736 = vrot.lane.b32.xlu0 %v1371, 32
      %v4737 = vpop.permute.xlu0 %4736
      %v4739 = vsel %vm1376, %v4735, 0
      %v4742 = vsel %vm1376, %v4737, 0
      %4744 = vmatprep.subr.bf16.mxu0 0
      %4745 = vmatpush1.bf16.xpose.msra.mxu0 %v4742
      %4746 = vmatprep.subr.bf16.mxu0 0
      %4747 = vmatpush1.bf16.xpose.msra.mxu0 0
      %4748 = vmatprep.subr.bf16.mxu0 0
      %4749 = vmatpush1.bf16.xpose.msra.mxu0 0
      %4750 = vmatprep.subr.bf16.mxu0 0
      %4751 = vmatpush1.bf16.xpose.msra.mxu0 0
      %4752 = vmatprep.subr.bf16.mxu0 0
      %4753 = vmatpush1.bf16.xpose.msra.mxu0 0
      %4754 = vmatprep.subr.bf16.mxu0 0
      %4755 = vmatpush1.bf16.xpose.msra.mxu0 0
      %4756 = vmatprep.subr.bf16.mxu0 0
      %4757 = vmatpush1.bf16.xpose.msra.mxu0 0
      %4758 = vmatprep.subr.bf16.mxu0 0
      %4759 = vmatpush1.bf16.xpose.msra.mxu0 0
      %4760 = vmatprep.subr.bf16.mxu0 0
      %4761 = vmatpush1.bf16.xpose.msra.mxu0 0
      %4762 = vmatprep.subr.bf16.mxu0 0
      %4763 = vmatpush1.bf16.xpose.msra.mxu0 0
      %4764 = vmatprep.subr.bf16.mxu0 0
      %4765 = vmatpush1.bf16.xpose.msra.mxu0 0
      %4766 = vmatprep.subr.bf16.mxu0 0
      %4767 = vmatpush1.bf16.xpose.msra.mxu0 0
      %4768 = vmatprep.subr.bf16.mxu0 0
      %4769 = vmatpush1.bf16.xpose.msra.mxu0 0
      %4770 = vmatprep.subr.bf16.mxu0 0
      %4771 = vmatpush1.bf16.xpose.msra.mxu0 0
      %4772 = vmatprep.subr.bf16.mxu0 0
      %4773 = vmatpush1.bf16.xpose.msra.mxu0 0
      %4774 = vmatprep.subr.bf16.mxu0 0
      %4775 = vmatpush1.bf16.xpose.msra.mxu0 0
      %4776 = vmatprep.mubr.bf16.mxu0 0
      %4777 = vmatmul.mubr.bf16.gmra.mrb[0].mxu0 %v4739
      %v4778 = vpop.f32.mrb[0].mxu0
      %v4779 = vadd.f32 0.0, %v4778
      %v4780 = vpop.f32.mrb[0].mxu0
      %v4781 = vpop.f32.mrb[0].mxu0
      %v4782 = vadd.f32 0.0, %v4781
      %v4783 = vpop.f32.mrb[0].mxu0
      %4784 = vdwg.mxu0
      %4785 = vrot.lane.b32.xlu0 %v1373, 32
      %v4786 = vpop.permute.xlu0 %4785
      %4787 = vrot.lane.b32.xlu0 %v1374, 32
      %v4788 = vpop.permute.xlu0 %4787
      %v4790 = vsel %vm1376, %v4786, 0
      %v4793 = vsel %vm1376, %v4788, 0
      %4795 = vmatprep.subr.bf16.mxu0 0
      %4796 = vmatpush1.bf16.xpose.msra.mxu0 %v4793
      %4797 = vmatprep.subr.bf16.mxu0 0
      %4798 = vmatpush1.bf16.xpose.msra.mxu0 0
      %4799 = vmatprep.subr.bf16.mxu0 0
      %4800 = vmatpush1.bf16.xpose.msra.mxu0 0
      %4801 = vmatprep.subr.bf16.mxu0 0
      %4802 = vmatpush1.bf16.xpose.msra.mxu0 0
      %4803 = vmatprep.subr.bf16.mxu0 0
      %4804 = vmatpush1.bf16.xpose.msra.mxu0 0
      %4805 = vmatprep.subr.bf16.mxu0 0
      %4806 = vmatpush1.bf16.xpose.msra.mxu0 0
      %4807 = vmatprep.subr.bf16.mxu0 0
      %4808 = vmatpush1.bf16.xpose.msra.mxu0 0
      %4809 = vmatprep.subr.bf16.mxu0 0
      %4810 = vmatpush1.bf16.xpose.msra.mxu0 0
      %4811 = vmatprep.subr.bf16.mxu0 0
      %4812 = vmatpush1.bf16.xpose.msra.mxu0 0
      %4813 = vmatprep.subr.bf16.mxu0 0
      %4814 = vmatpush1.bf16.xpose.msra.mxu0 0
      %4815 = vmatprep.subr.bf16.mxu0 0
      %4816 = vmatpush1.bf16.xpose.msra.mxu0 0
      %4817 = vmatprep.subr.bf16.mxu0 0
      %4818 = vmatpush1.bf16.xpose.msra.mxu0 0
      %4819 = vmatprep.subr.bf16.mxu0 0
      %4820 = vmatpush1.bf16.xpose.msra.mxu0 0
      %4821 = vmatprep.subr.bf16.mxu0 0
      %4822 = vmatpush1.bf16.xpose.msra.mxu0 0
      %4823 = vmatprep.subr.bf16.mxu0 0
      %4824 = vmatpush1.bf16.xpose.msra.mxu0 0
      %4825 = vmatprep.subr.bf16.mxu0 0
      %4826 = vmatpush1.bf16.xpose.msra.mxu0 0
      %4827 = vmatprep.mubr.bf16.mxu0 0
      %4828 = vmatmul.mubr.bf16.gmra.mrb[0].mxu0 %v4790
      %v4829 = vpop.f32.mrb[0].mxu0
      %v4830 = vadd.f32 0.0, %v4829
      %v4831 = vpop.f32.mrb[0].mxu0
      %v4832 = vpop.f32.mrb[0].mxu0
      %v4833 = vadd.f32 0.0, %v4832
      %v4834 = vpop.f32.mrb[0].mxu0
      %4835 = vdwg.mxu0
      %v4836 = vsel %vm1753, %v4473, -inf
      %4837 = vmax.xlane.f32.xlu0 %v4836
      %v4838 = vpop.xlane.xlu0 %4837
      %v4839 = vsel %vm1753, %v4476, -inf
      %4840 = vmax.xlane.f32.xlu0 %v4839
      %v4841 = vpop.xlane.xlu0 %4840
      %v4842 = vsel %vm1753, %v4524, -inf
      %4843 = vmax.xlane.f32.xlu0 %v4842
      %v4844 = vpop.xlane.xlu0 %4843
      %v4845 = vsel %vm1753, %v4527, -inf
      %4846 = vmax.xlane.f32.xlu0 %v4845
      %v4847 = vpop.xlane.xlu0 %4846
      %v4848 = vsel %vm1753, %v4575, -inf
      %4849 = vmax.xlane.f32.xlu0 %v4848
      %v4850 = vpop.xlane.xlu0 %4849
      %v4851 = vsel %vm1753, %v4578, -inf
      %4852 = vmax.xlane.f32.xlu0 %v4851
      %v4853 = vpop.xlane.xlu0 %4852
      %v4854 = vsel %vm1753, %v4626, -inf
      %4855 = vmax.xlane.f32.xlu0 %v4854
      %v4856 = vpop.xlane.xlu0 %4855
      %v4857 = vsel %vm1753, %v4629, -inf
      %4858 = vmax.xlane.f32.xlu0 %v4857
      %v4859 = vpop.xlane.xlu0 %4858
      %v4860 = vsel %vm1753, %v4677, -inf
      %4861 = vmax.xlane.f32.xlu0 %v4860
      %v4862 = vpop.xlane.xlu0 %4861
      %v4863 = vsel %vm1753, %v4680, -inf
      %4864 = vmax.xlane.f32.xlu0 %v4863
      %v4865 = vpop.xlane.xlu0 %4864
      %v4866 = vsel %vm1753, %v4728, -inf
      %4867 = vmax.xlane.f32.xlu0 %v4866
      %v4868 = vpop.xlane.xlu0 %4867
      %v4869 = vsel %vm1753, %v4731, -inf
      %4870 = vmax.xlane.f32.xlu0 %v4869
      %v4871 = vpop.xlane.xlu0 %4870
      %v4872 = vsel %vm1753, %v4779, -inf
      %4873 = vmax.xlane.f32.xlu0 %v4872
      %v4874 = vpop.xlane.xlu0 %4873
      %v4875 = vsel %vm1753, %v4782, -inf
      %4876 = vmax.xlane.f32.xlu0 %v4875
      %v4877 = vpop.xlane.xlu0 %4876
      %v4878 = vsel %vm1753, %v4830, -inf
      %4879 = vmax.xlane.f32.xlu0 %v4878
      %v4880 = vpop.xlane.xlu0 %4879
      %v4881 = vsel %vm1753, %v4833, -inf
      %4882 = vmax.xlane.f32.xlu0 %v4881
      %v4883 = vpop.xlane.xlu0 %4882
      %v4884 = vsub.f32 %v4473, %v4838
      %v4885 = vsub.f32 %v4476, %v4841
      %v4886 = vsub.f32 %v4524, %v4844
      %v4887 = vsub.f32 %v4527, %v4847
      %v4888 = vsub.f32 %v4575, %v4850
      %v4889 = vsub.f32 %v4578, %v4853
      %v4890 = vsub.f32 %v4626, %v4856
      %v4891 = vsub.f32 %v4629, %v4859
      %v4892 = vsub.f32 %v4677, %v4862
      %v4893 = vsub.f32 %v4680, %v4865
      %v4894 = vsub.f32 %v4728, %v4868
      %v4895 = vsub.f32 %v4731, %v4871
      %v4896 = vsub.f32 %v4779, %v4874
      %v4897 = vsub.f32 %v4782, %v4877
      %v4898 = vsub.f32 %v4830, %v4880
      %v4899 = vsub.f32 %v4833, %v4883
      %v4900 = vmul.f32 %v4884, 1.442695
      %v4901 = vpow.pop %v4900
      %v4902 = vmul.f32 %v4885, 1.442695
      %v4903 = vpow.pop %v4902
      %v4904 = vmul.f32 %v4886, 1.442695
      %v4905 = vpow.pop %v4904
      %v4906 = vmul.f32 %v4887, 1.442695
      %v4907 = vpow.pop %v4906
      %v4908 = vmul.f32 %v4888, 1.442695
      %v4909 = vpow.pop %v4908
      %v4910 = vmul.f32 %v4889, 1.442695
      %v4911 = vpow.pop %v4910
      %v4912 = vmul.f32 %v4890, 1.442695
      %v4913 = vpow.pop %v4912
      %v4914 = vmul.f32 %v4891, 1.442695
      %v4915 = vpow.pop %v4914
      %v4916 = vmul.f32 %v4892, 1.442695
      %v4917 = vpow.pop %v4916
      %v4918 = vmul.f32 %v4893, 1.442695
      %v4919 = vpow.pop %v4918
      %v4920 = vmul.f32 %v4894, 1.442695
      %v4921 = vpow.pop %v4920
      %v4922 = vmul.f32 %v4895, 1.442695
      %v4923 = vpow.pop %v4922
      %v4924 = vmul.f32 %v4896, 1.442695
      %v4925 = vpow.pop %v4924
      %v4926 = vmul.f32 %v4897, 1.442695
      %v4927 = vpow.pop %v4926
      %v4928 = vmul.f32 %v4898, 1.442695
      %v4929 = vpow.pop %v4928
      %v4930 = vmul.f32 %v4899, 1.442695
      %v4931 = vpow.pop %v4930
      %v4932 = vsel %vm1753, %v4901, 0.0
      %4933 = vadd.xlane.f32.xlu0 %v4932
      %v4934 = vpop.xlane.xlu0 %4933
      %v4935 = vsel %vm1753, %v4903, 0.0
      %4936 = vadd.xlane.f32.xlu0 %v4935
      %v4937 = vpop.xlane.xlu0 %4936
      %v4938 = vsel %vm1753, %v4905, 0.0
      %4939 = vadd.xlane.f32.xlu0 %v4938
      %v4940 = vpop.xlane.xlu0 %4939
      %v4941 = vsel %vm1753, %v4907, 0.0
      %4942 = vadd.xlane.f32.xlu0 %v4941
      %v4943 = vpop.xlane.xlu0 %4942
      %v4944 = vsel %vm1753, %v4909, 0.0
      %4945 = vadd.xlane.f32.xlu0 %v4944
      %v4946 = vpop.xlane.xlu0 %4945
      %v4947 = vsel %vm1753, %v4911, 0.0
      %4948 = vadd.xlane.f32.xlu0 %v4947
      %v4949 = vpop.xlane.xlu0 %4948
      %v4950 = vsel %vm1753, %v4913, 0.0
      %4951 = vadd.xlane.f32.xlu0 %v4950
      %v4952 = vpop.xlane.xlu0 %4951
      %v4953 = vsel %vm1753, %v4915, 0.0
      %4954 = vadd.xlane.f32.xlu0 %v4953
      %v4955 = vpop.xlane.xlu0 %4954
      %v4956 = vsel %vm1753, %v4917, 0.0
      %4957 = vadd.xlane.f32.xlu0 %v4956
      %v4958 = vpop.xlane.xlu0 %4957
      %v4959 = vsel %vm1753, %v4919, 0.0
      %4960 = vadd.xlane.f32.xlu0 %v4959
      %v4961 = vpop.xlane.xlu0 %4960
      %v4962 = vsel %vm1753, %v4921, 0.0
      %4963 = vadd.xlane.f32.xlu0 %v4962
      %v4964 = vpop.xlane.xlu0 %4963
      %v4965 = vsel %vm1753, %v4923, 0.0
      %4966 = vadd.xlane.f32.xlu0 %v4965
      %v4967 = vpop.xlane.xlu0 %4966
      %v4968 = vsel %vm1753, %v4925, 0.0
      %4969 = vadd.xlane.f32.xlu0 %v4968
      %v4970 = vpop.xlane.xlu0 %4969
      %v4971 = vsel %vm1753, %v4927, 0.0
      %4972 = vadd.xlane.f32.xlu0 %v4971
      %v4973 = vpop.xlane.xlu0 %4972
      %v4974 = vsel %vm1753, %v4929, 0.0
      %4975 = vadd.xlane.f32.xlu0 %v4974
      %v4976 = vpop.xlane.xlu0 %4975
      %v4977 = vsel %vm1753, %v4931, 0.0
      %4978 = vadd.xlane.f32.xlu0 %v4977
      %v4979 = vpop.xlane.xlu0 %4978
      %v4980 = vrcp.pop %v4934
      %v4981 = vrcp.pop %v4937
      %v4982 = vrcp.pop %v4940
      %v4983 = vrcp.pop %v4943
      %v4984 = vrcp.pop %v4946
      %v4985 = vrcp.pop %v4949
      %v4986 = vrcp.pop %v4952
      %v4987 = vrcp.pop %v4955
      %v4988 = vrcp.pop %v4958
      %v4989 = vrcp.pop %v4961
      %v4990 = vrcp.pop %v4964
      %v4991 = vrcp.pop %v4967
      %v4992 = vrcp.pop %v4970
      %v4993 = vrcp.pop %v4973
      %v4994 = vrcp.pop %v4976
      %v4995 = vrcp.pop %v4979
      %v4996 = vmul.f32 %v4901, %v4980
      %v4997 = vmul.f32 %v4903, %v4981
      %v4998 = vmul.f32 %v4905, %v4982
      %v4999 = vmul.f32 %v4907, %v4983
      %v5000 = vmul.f32 %v4909, %v4984
      %v5001 = vmul.f32 %v4911, %v4985
      %v5002 = vmul.f32 %v4913, %v4986
      %v5003 = vmul.f32 %v4915, %v4987
      %v5004 = vmul.f32 %v4917, %v4988
      %v5005 = vmul.f32 %v4919, %v4989
      %v5006 = vmul.f32 %v4921, %v4990
      %v5007 = vmul.f32 %v4923, %v4991
      %v5008 = vmul.f32 %v4925, %v4992
      %v5009 = vmul.f32 %v4927, %v4993
      %v5010 = vmul.f32 %v4929, %v4994
      %v5011 = vmul.f32 %v4931, %v4995
      %v5012 = vpack.c.bf16 %v4997, %v4996
      %v5013 = vpack.c.bf16 %v4999, %v4998
      %v5014 = vpack.c.bf16 %v5001, %v5000
      %v5015 = vpack.c.bf16 %v5003, %v5002
      %v5016 = vpack.c.bf16 %v5005, %v5004
      %v5017 = vpack.c.bf16 %v5007, %v5006
      %v5018 = vpack.c.bf16 %v5009, %v5008
      %v5019 = vpack.c.bf16 %v5011, %v5010
      %5020 = vrot.lane.b32.xlu0 %v1354, 32
      %v5021 = vpop.permute.xlu0 %5020
      %v5024 = vsel %vm1753, %v5012, 0
      %5026 = vmatprep.subr.bf16.mxu0 0
      %5027 = vmatpush1.bf16.msra.mxu0 %v5021
      %5028 = vmatprep.subr.bf16.mxu0 0
      %5029 = vmatpush1.bf16.msra.mxu0 0
      %5030 = vmatprep.subr.bf16.mxu0 0
      %5031 = vmatpush1.bf16.msra.mxu0 0
      %5032 = vmatprep.subr.bf16.mxu0 0
      %5033 = vmatpush1.bf16.msra.mxu0 0
      %5034 = vmatprep.subr.bf16.mxu0 0
      %5035 = vmatpush1.bf16.msra.mxu0 0
      %5036 = vmatprep.subr.bf16.mxu0 0
      %5037 = vmatpush1.bf16.msra.mxu0 0
      %5038 = vmatprep.subr.bf16.mxu0 0
      %5039 = vmatpush1.bf16.msra.mxu0 0
      %5040 = vmatprep.subr.bf16.mxu0 0
      %5041 = vmatpush1.bf16.msra.mxu0 0
      %5042 = vmatprep.subr.bf16.mxu0 0
      %5043 = vmatpush1.bf16.msra.mxu0 0
      %5044 = vmatprep.subr.bf16.mxu0 0
      %5045 = vmatpush1.bf16.msra.mxu0 0
      %5046 = vmatprep.subr.bf16.mxu0 0
      %5047 = vmatpush1.bf16.msra.mxu0 0
      %5048 = vmatprep.subr.bf16.mxu0 0
      %5049 = vmatpush1.bf16.msra.mxu0 0
      %5050 = vmatprep.subr.bf16.mxu0 0
      %5051 = vmatpush1.bf16.msra.mxu0 0
      %5052 = vmatprep.subr.bf16.mxu0 0
      %5053 = vmatpush1.bf16.msra.mxu0 0
      %5054 = vmatprep.subr.bf16.mxu0 0
      %5055 = vmatpush1.bf16.msra.mxu0 0
      %5056 = vmatprep.subr.bf16.mxu0 0
      %5057 = vmatpush1.bf16.msra.mxu0 0
      %5058 = vmatprep.mubr.bf16.mxu0 0
      %5059 = vmatmul.mubr.bf16.gmra.mrb[0].mxu0 %v5024
      %v5060 = vpop.f32.mrb[0].mxu0
      %v5061 = vadd.f32 0.0, %v5060
      %v5062 = vpop.f32.mrb[0].mxu0
      %v5063 = vpop.f32.mrb[0].mxu0
      %v5064 = vadd.f32 0.0, %v5063
      %v5065 = vpop.f32.mrb[0].mxu0
      %5066 = vdwg.mxu0
      %5067 = vrot.lane.b32.xlu0 %v1357, 32
      %v5068 = vpop.permute.xlu0 %5067
      %v5071 = vsel %vm1753, %v5013, 0
      %5073 = vmatprep.subr.bf16.mxu0 0
      %5074 = vmatpush1.bf16.msra.mxu0 %v5068
      %5075 = vmatprep.subr.bf16.mxu0 0
      %5076 = vmatpush1.bf16.msra.mxu0 0
      %5077 = vmatprep.subr.bf16.mxu0 0
      %5078 = vmatpush1.bf16.msra.mxu0 0
      %5079 = vmatprep.subr.bf16.mxu0 0
      %5080 = vmatpush1.bf16.msra.mxu0 0
      %5081 = vmatprep.subr.bf16.mxu0 0
      %5082 = vmatpush1.bf16.msra.mxu0 0
      %5083 = vmatprep.subr.bf16.mxu0 0
      %5084 = vmatpush1.bf16.msra.mxu0 0
      %5085 = vmatprep.subr.bf16.mxu0 0
      %5086 = vmatpush1.bf16.msra.mxu0 0
      %5087 = vmatprep.subr.bf16.mxu0 0
      %5088 = vmatpush1.bf16.msra.mxu0 0
      %5089 = vmatprep.subr.bf16.mxu0 0
      %5090 = vmatpush1.bf16.msra.mxu0 0
      %5091 = vmatprep.subr.bf16.mxu0 0
      %5092 = vmatpush1.bf16.msra.mxu0 0
      %5093 = vmatprep.subr.bf16.mxu0 0
      %5094 = vmatpush1.bf16.msra.mxu0 0
      %5095 = vmatprep.subr.bf16.mxu0 0
      %5096 = vmatpush1.bf16.msra.mxu0 0
      %5097 = vmatprep.subr.bf16.mxu0 0
      %5098 = vmatpush1.bf16.msra.mxu0 0
      %5099 = vmatprep.subr.bf16.mxu0 0
      %5100 = vmatpush1.bf16.msra.mxu0 0
      %5101 = vmatprep.subr.bf16.mxu0 0
      %5102 = vmatpush1.bf16.msra.mxu0 0
      %5103 = vmatprep.subr.bf16.mxu0 0
      %5104 = vmatpush1.bf16.msra.mxu0 0
      %5105 = vmatprep.mubr.bf16.mxu0 0
      %5106 = vmatmul.mubr.bf16.gmra.mrb[0].mxu0 %v5071
      %v5107 = vpop.f32.mrb[0].mxu0
      %v5108 = vadd.f32 0.0, %v5107
      %v5109 = vpop.f32.mrb[0].mxu0
      %v5110 = vpop.f32.mrb[0].mxu0
      %v5111 = vadd.f32 0.0, %v5110
      %v5112 = vpop.f32.mrb[0].mxu0
      %5113 = vdwg.mxu0
      %5114 = vrot.lane.b32.xlu0 %v1360, 32
      %v5115 = vpop.permute.xlu0 %5114
      %v5118 = vsel %vm1753, %v5014, 0
      %5120 = vmatprep.subr.bf16.mxu0 0
      %5121 = vmatpush1.bf16.msra.mxu0 %v5115
      %5122 = vmatprep.subr.bf16.mxu0 0
      %5123 = vmatpush1.bf16.msra.mxu0 0
      %5124 = vmatprep.subr.bf16.mxu0 0
      %5125 = vmatpush1.bf16.msra.mxu0 0
      %5126 = vmatprep.subr.bf16.mxu0 0
      %5127 = vmatpush1.bf16.msra.mxu0 0
      %5128 = vmatprep.subr.bf16.mxu0 0
      %5129 = vmatpush1.bf16.msra.mxu0 0
      %5130 = vmatprep.subr.bf16.mxu0 0
      %5131 = vmatpush1.bf16.msra.mxu0 0
      %5132 = vmatprep.subr.bf16.mxu0 0
      %5133 = vmatpush1.bf16.msra.mxu0 0
      %5134 = vmatprep.subr.bf16.mxu0 0
      %5135 = vmatpush1.bf16.msra.mxu0 0
      %5136 = vmatprep.subr.bf16.mxu0 0
      %5137 = vmatpush1.bf16.msra.mxu0 0
      %5138 = vmatprep.subr.bf16.mxu0 0
      %5139 = vmatpush1.bf16.msra.mxu0 0
      %5140 = vmatprep.subr.bf16.mxu0 0
      %5141 = vmatpush1.bf16.msra.mxu0 0
      %5142 = vmatprep.subr.bf16.mxu0 0
      %5143 = vmatpush1.bf16.msra.mxu0 0
      %5144 = vmatprep.subr.bf16.mxu0 0
      %5145 = vmatpush1.bf16.msra.mxu0 0
      %5146 = vmatprep.subr.bf16.mxu0 0
      %5147 = vmatpush1.bf16.msra.mxu0 0
      %5148 = vmatprep.subr.bf16.mxu0 0
      %5149 = vmatpush1.bf16.msra.mxu0 0
      %5150 = vmatprep.subr.bf16.mxu0 0
      %5151 = vmatpush1.bf16.msra.mxu0 0
      %5152 = vmatprep.mubr.bf16.mxu0 0
      %5153 = vmatmul.mubr.bf16.gmra.mrb[0].mxu0 %v5118
      %v5154 = vpop.f32.mrb[0].mxu0
      %v5155 = vadd.f32 0.0, %v5154
      %v5156 = vpop.f32.mrb[0].mxu0
      %v5157 = vpop.f32.mrb[0].mxu0
      %v5158 = vadd.f32 0.0, %v5157
      %v5159 = vpop.f32.mrb[0].mxu0
      %5160 = vdwg.mxu0
      %5161 = vrot.lane.b32.xlu0 %v1363, 32
      %v5162 = vpop.permute.xlu0 %5161
      %v5165 = vsel %vm1753, %v5015, 0
      %5167 = vmatprep.subr.bf16.mxu0 0
      %5168 = vmatpush1.bf16.msra.mxu0 %v5162
      %5169 = vmatprep.subr.bf16.mxu0 0
      %5170 = vmatpush1.bf16.msra.mxu0 0
      %5171 = vmatprep.subr.bf16.mxu0 0
      %5172 = vmatpush1.bf16.msra.mxu0 0
      %5173 = vmatprep.subr.bf16.mxu0 0
      %5174 = vmatpush1.bf16.msra.mxu0 0
      %5175 = vmatprep.subr.bf16.mxu0 0
      %5176 = vmatpush1.bf16.msra.mxu0 0
      %5177 = vmatprep.subr.bf16.mxu0 0
      %5178 = vmatpush1.bf16.msra.mxu0 0
      %5179 = vmatprep.subr.bf16.mxu0 0
      %5180 = vmatpush1.bf16.msra.mxu0 0
      %5181 = vmatprep.subr.bf16.mxu0 0
      %5182 = vmatpush1.bf16.msra.mxu0 0
      %5183 = vmatprep.subr.bf16.mxu0 0
      %5184 = vmatpush1.bf16.msra.mxu0 0
      %5185 = vmatprep.subr.bf16.mxu0 0
      %5186 = vmatpush1.bf16.msra.mxu0 0
      %5187 = vmatprep.subr.bf16.mxu0 0
      %5188 = vmatpush1.bf16.msra.mxu0 0
      %5189 = vmatprep.subr.bf16.mxu0 0
      %5190 = vmatpush1.bf16.msra.mxu0 0
      %5191 = vmatprep.subr.bf16.mxu0 0
      %5192 = vmatpush1.bf16.msra.mxu0 0
      %5193 = vmatprep.subr.bf16.mxu0 0
      %5194 = vmatpush1.bf16.msra.mxu0 0
      %5195 = vmatprep.subr.bf16.mxu0 0
      %5196 = vmatpush1.bf16.msra.mxu0 0
      %5197 = vmatprep.subr.bf16.mxu0 0
      %5198 = vmatpush1.bf16.msra.mxu0 0
      %5199 = vmatprep.mubr.bf16.mxu0 0
      %5200 = vmatmul.mubr.bf16.gmra.mrb[0].mxu0 %v5165
      %v5201 = vpop.f32.mrb[0].mxu0
      %v5202 = vadd.f32 0.0, %v5201
      %v5203 = vpop.f32.mrb[0].mxu0
      %v5204 = vpop.f32.mrb[0].mxu0
      %v5205 = vadd.f32 0.0, %v5204
      %v5206 = vpop.f32.mrb[0].mxu0
      %5207 = vdwg.mxu0
      %5208 = vrot.lane.b32.xlu0 %v1366, 32
      %v5209 = vpop.permute.xlu0 %5208
      %v5212 = vsel %vm1753, %v5016, 0
      %5214 = vmatprep.subr.bf16.mxu0 0
      %5215 = vmatpush1.bf16.msra.mxu0 %v5209
      %5216 = vmatprep.subr.bf16.mxu0 0
      %5217 = vmatpush1.bf16.msra.mxu0 0
      %5218 = vmatprep.subr.bf16.mxu0 0
      %5219 = vmatpush1.bf16.msra.mxu0 0
      %5220 = vmatprep.subr.bf16.mxu0 0
      %5221 = vmatpush1.bf16.msra.mxu0 0
      %5222 = vmatprep.subr.bf16.mxu0 0
      %5223 = vmatpush1.bf16.msra.mxu0 0
      %5224 = vmatprep.subr.bf16.mxu0 0
      %5225 = vmatpush1.bf16.msra.mxu0 0
      %5226 = vmatprep.subr.bf16.mxu0 0
      %5227 = vmatpush1.bf16.msra.mxu0 0
      %5228 = vmatprep.subr.bf16.mxu0 0
      %5229 = vmatpush1.bf16.msra.mxu0 0
      %5230 = vmatprep.subr.bf16.mxu0 0
      %5231 = vmatpush1.bf16.msra.mxu0 0
      %5232 = vmatprep.subr.bf16.mxu0 0
      %5233 = vmatpush1.bf16.msra.mxu0 0
      %5234 = vmatprep.subr.bf16.mxu0 0
      %5235 = vmatpush1.bf16.msra.mxu0 0
      %5236 = vmatprep.subr.bf16.mxu0 0
      %5237 = vmatpush1.bf16.msra.mxu0 0
      %5238 = vmatprep.subr.bf16.mxu0 0
      %5239 = vmatpush1.bf16.msra.mxu0 0
      %5240 = vmatprep.subr.bf16.mxu0 0
      %5241 = vmatpush1.bf16.msra.mxu0 0
      %5242 = vmatprep.subr.bf16.mxu0 0
      %5243 = vmatpush1.bf16.msra.mxu0 0
      %5244 = vmatprep.subr.bf16.mxu0 0
      %5245 = vmatpush1.bf16.msra.mxu0 0
      %5246 = vmatprep.mubr.bf16.mxu0 0
      %5247 = vmatmul.mubr.bf16.gmra.mrb[0].mxu0 %v5212
      %v5248 = vpop.f32.mrb[0].mxu0
      %v5249 = vadd.f32 0.0, %v5248
      %v5250 = vpop.f32.mrb[0].mxu0
      %v5251 = vpop.f32.mrb[0].mxu0
      %v5252 = vadd.f32 0.0, %v5251
      %v5253 = vpop.f32.mrb[0].mxu0
      %5254 = vdwg.mxu0
      %5255 = vrot.lane.b32.xlu0 %v1369, 32
      %v5256 = vpop.permute.xlu0 %5255
      %v5259 = vsel %vm1753, %v5017, 0
      %5261 = vmatprep.subr.bf16.mxu0 0
      %5262 = vmatpush1.bf16.msra.mxu0 %v5256
      %5263 = vmatprep.subr.bf16.mxu0 0
      %5264 = vmatpush1.bf16.msra.mxu0 0
      %5265 = vmatprep.subr.bf16.mxu0 0
      %5266 = vmatpush1.bf16.msra.mxu0 0
      %5267 = vmatprep.subr.bf16.mxu0 0
      %5268 = vmatpush1.bf16.msra.mxu0 0
      %5269 = vmatprep.subr.bf16.mxu0 0
      %5270 = vmatpush1.bf16.msra.mxu0 0
      %5271 = vmatprep.subr.bf16.mxu0 0
      %5272 = vmatpush1.bf16.msra.mxu0 0
      %5273 = vmatprep.subr.bf16.mxu0 0
      %5274 = vmatpush1.bf16.msra.mxu0 0
      %5275 = vmatprep.subr.bf16.mxu0 0
      %5276 = vmatpush1.bf16.msra.mxu0 0
      %5277 = vmatprep.subr.bf16.mxu0 0
      %5278 = vmatpush1.bf16.msra.mxu0 0
      %5279 = vmatprep.subr.bf16.mxu0 0
      %5280 = vmatpush1.bf16.msra.mxu0 0
      %5281 = vmatprep.subr.bf16.mxu0 0
      %5282 = vmatpush1.bf16.msra.mxu0 0
      %5283 = vmatprep.subr.bf16.mxu0 0
      %5284 = vmatpush1.bf16.msra.mxu0 0
      %5285 = vmatprep.subr.bf16.mxu0 0
      %5286 = vmatpush1.bf16.msra.mxu0 0
      %5287 = vmatprep.subr.bf16.mxu0 0
      %5288 = vmatpush1.bf16.msra.mxu0 0
      %5289 = vmatprep.subr.bf16.mxu0 0
      %5290 = vmatpush1.bf16.msra.mxu0 0
      %5291 = vmatprep.subr.bf16.mxu0 0
      %5292 = vmatpush1.bf16.msra.mxu0 0
      %5293 = vmatprep.mubr.bf16.mxu0 0
      %5294 = vmatmul.mubr.bf16.gmra.mrb[0].mxu0 %v5259
      %v5295 = vpop.f32.mrb[0].mxu0
      %v5296 = vadd.f32 0.0, %v5295
      %v5297 = vpop.f32.mrb[0].mxu0
      %v5298 = vpop.f32.mrb[0].mxu0
      %v5299 = vadd.f32 0.0, %v5298
      %v5300 = vpop.f32.mrb[0].mxu0
      %5301 = vdwg.mxu0
      %5302 = vrot.lane.b32.xlu0 %v1372, 32
      %v5303 = vpop.permute.xlu0 %5302
      %v5306 = vsel %vm1753, %v5018, 0
      %5308 = vmatprep.subr.bf16.mxu0 0
      %5309 = vmatpush1.bf16.msra.mxu0 %v5303
      %5310 = vmatprep.subr.bf16.mxu0 0
      %5311 = vmatpush1.bf16.msra.mxu0 0
      %5312 = vmatprep.subr.bf16.mxu0 0
      %5313 = vmatpush1.bf16.msra.mxu0 0
      %5314 = vmatprep.subr.bf16.mxu0 0
      %5315 = vmatpush1.bf16.msra.mxu0 0
      %5316 = vmatprep.subr.bf16.mxu0 0
      %5317 = vmatpush1.bf16.msra.mxu0 0
      %5318 = vmatprep.subr.bf16.mxu0 0
      %5319 = vmatpush1.bf16.msra.mxu0 0
      %5320 = vmatprep.subr.bf16.mxu0 0
      %5321 = vmatpush1.bf16.msra.mxu0 0
      %5322 = vmatprep.subr.bf16.mxu0 0
      %5323 = vmatpush1.bf16.msra.mxu0 0
      %5324 = vmatprep.subr.bf16.mxu0 0
      %5325 = vmatpush1.bf16.msra.mxu0 0
      %5326 = vmatprep.subr.bf16.mxu0 0
      %5327 = vmatpush1.bf16.msra.mxu0 0
      %5328 = vmatprep.subr.bf16.mxu0 0
      %5329 = vmatpush1.bf16.msra.mxu0 0
      %5330 = vmatprep.subr.bf16.mxu0 0
      %5331 = vmatpush1.bf16.msra.mxu0 0
      %5332 = vmatprep.subr.bf16.mxu0 0
      %5333 = vmatpush1.bf16.msra.mxu0 0
      %5334 = vmatprep.subr.bf16.mxu0 0
      %5335 = vmatpush1.bf16.msra.mxu0 0
      %5336 = vmatprep.subr.bf16.mxu0 0
      %5337 = vmatpush1.bf16.msra.mxu0 0
      %5338 = vmatprep.subr.bf16.mxu0 0
      %5339 = vmatpush1.bf16.msra.mxu0 0
      %5340 = vmatprep.mubr.bf16.mxu0 0
      %5341 = vmatmul.mubr.bf16.gmra.mrb[0].mxu0 %v5306
      %v5342 = vpop.f32.mrb[0].mxu0
      %v5343 = vadd.f32 0.0, %v5342
      %v5344 = vpop.f32.mrb[0].mxu0
      %v5345 = vpop.f32.mrb[0].mxu0
      %v5346 = vadd.f32 0.0, %v5345
      %v5347 = vpop.f32.mrb[0].mxu0
      %5348 = vdwg.mxu0
      %5349 = vrot.lane.b32.xlu0 %v1375, 32
      %v5350 = vpop.permute.xlu0 %5349
      %v5353 = vsel %vm1753, %v5019, 0
      %5355 = vmatprep.subr.bf16.mxu0 0
      %5356 = vmatpush1.bf16.msra.mxu0 %v5350
      %5357 = vmatprep.subr.bf16.mxu0 0
      %5358 = vmatpush1.bf16.msra.mxu0 0
      %5359 = vmatprep.subr.bf16.mxu0 0
      %5360 = vmatpush1.bf16.msra.mxu0 0
      %5361 = vmatprep.subr.bf16.mxu0 0
      %5362 = vmatpush1.bf16.msra.mxu0 0
      %5363 = vmatprep.subr.bf16.mxu0 0
      %5364 = vmatpush1.bf16.msra.mxu0 0
      %5365 = vmatprep.subr.bf16.mxu0 0
      %5366 = vmatpush1.bf16.msra.mxu0 0
      %5367 = vmatprep.subr.bf16.mxu0 0
      %5368 = vmatpush1.bf16.msra.mxu0 0
      %5369 = vmatprep.subr.bf16.mxu0 0
      %5370 = vmatpush1.bf16.msra.mxu0 0
      %5371 = vmatprep.subr.bf16.mxu0 0
      %5372 = vmatpush1.bf16.msra.mxu0 0
      %5373 = vmatprep.subr.bf16.mxu0 0
      %5374 = vmatpush1.bf16.msra.mxu0 0
      %5375 = vmatprep.subr.bf16.mxu0 0
      %5376 = vmatpush1.bf16.msra.mxu0 0
      %5377 = vmatprep.subr.bf16.mxu0 0
      %5378 = vmatpush1.bf16.msra.mxu0 0
      %5379 = vmatprep.subr.bf16.mxu0 0
      %5380 = vmatpush1.bf16.msra.mxu0 0
      %5381 = vmatprep.subr.bf16.mxu0 0
      %5382 = vmatpush1.bf16.msra.mxu0 0
      %5383 = vmatprep.subr.bf16.mxu0 0
      %5384 = vmatpush1.bf16.msra.mxu0 0
      %5385 = vmatprep.subr.bf16.mxu0 0
      %5386 = vmatpush1.bf16.msra.mxu0 0
      %5387 = vmatprep.mubr.bf16.mxu0 0
      %5388 = vmatmul.mubr.bf16.gmra.mrb[0].mxu0 %v5353
      %v5389 = vpop.f32.mrb[0].mxu0
      %v5390 = vadd.f32 0.0, %v5389
      %v5391 = vpop.f32.mrb[0].mxu0
      %v5392 = vpop.f32.mrb[0].mxu0
      %v5393 = vadd.f32 0.0, %v5392
      %v5394 = vpop.f32.mrb[0].mxu0
      %5395 = vdwg.mxu0
      %5412 = vrot.lane.b32.xlu0 %v5061, 96
      %v5413 = vpop.permute.xlu0 %5412
      %5414 = vrot.lane.b32.xlu0 %v5064, 96
      %v5415 = vpop.permute.xlu0 %5414
      %5416 = vrot.lane.b32.xlu0 %v5108, 96
      %v5417 = vpop.permute.xlu0 %5416
      %5418 = vrot.lane.b32.xlu0 %v5111, 96
      %v5419 = vpop.permute.xlu0 %5418
      %5420 = vrot.lane.b32.xlu0 %v5155, 96
      %v5421 = vpop.permute.xlu0 %5420
      %5422 = vrot.lane.b32.xlu0 %v5158, 96
      %v5423 = vpop.permute.xlu0 %5422
      %5424 = vrot.lane.b32.xlu0 %v5202, 96
      %v5425 = vpop.permute.xlu0 %5424
      %5426 = vrot.lane.b32.xlu0 %v5205, 96
      %v5427 = vpop.permute.xlu0 %5426
      %5428 = vrot.lane.b32.xlu0 %v5249, 96
      %v5429 = vpop.permute.xlu0 %5428
      %5430 = vrot.lane.b32.xlu0 %v5252, 96
      %v5431 = vpop.permute.xlu0 %5430
      %5432 = vrot.lane.b32.xlu0 %v5296, 96
      %v5433 = vpop.permute.xlu0 %5432
      %5434 = vrot.lane.b32.xlu0 %v5299, 96
      %v5435 = vpop.permute.xlu0 %5434
      %5436 = vrot.lane.b32.xlu0 %v5343, 96
      %v5437 = vpop.permute.xlu0 %5436
      %5438 = vrot.lane.b32.xlu0 %v5346, 96
      %v5439 = vpop.permute.xlu0 %5438
      %5440 = vrot.lane.b32.xlu0 %v5390, 96
      %v5441 = vpop.permute.xlu0 %5440
      %5442 = vrot.lane.b32.xlu0 %v5393, 96
      %v5443 = vpop.permute.xlu0 %5442
      %vm5460 = vcmask 1048320
      %5461 = vst.msk [vmem:[#allocation3] sm:$0xff] %vm5460, %v5413
      %5462 = vst.msk [vmem:[#allocation3 + $0x8] sm:$0xff] %vm5460, %v5415
      %5463 = vst.msk [vmem:[#allocation3 + $0x10] sm:$0xff] %vm5460, %v5417
      %5464 = vst.msk [vmem:[#allocation3 + $0x18] sm:$0xff] %vm5460, %v5419
      %5465 = vst.msk [vmem:[#allocation3 + $0x20] sm:$0xff] %vm5460, %v5421
      %5466 = vst.msk [vmem:[#allocation3 + $0x28] sm:$0xff] %vm5460, %v5423
      %5467 = vst.msk [vmem:[#allocation3 + $0x30] sm:$0xff] %vm5460, %v5425
      %5468 = vst.msk [vmem:[#allocation3 + $0x38] sm:$0xff] %vm5460, %v5427
      %5469 = vst.msk [vmem:[#allocation3 + $0x40] sm:$0xff] %vm5460, %v5429
      %5470 = vst.msk [vmem:[#allocation3 + $0x48] sm:$0xff] %vm5460, %v5431
      %5471 = vst.msk [vmem:[#allocation3 + $0x50] sm:$0xff] %vm5460, %v5433
      %5472 = vst.msk [vmem:[#allocation3 + $0x58] sm:$0xff] %vm5460, %v5435
      %5473 = vst.msk [vmem:[#allocation3 + $0x60] sm:$0xff] %vm5460, %v5437
      %5474 = vst.msk [vmem:[#allocation3 + $0x68] sm:$0xff] %vm5460, %v5439
      %5475 = vst.msk [vmem:[#allocation3 + $0x70] sm:$0xff] %vm5460, %v5441
      %5476 = vst.msk [vmem:[#allocation3 + $0x78] sm:$0xff] %vm5460, %v5443
      %v5477 = vld [vmem:[#allocation3] sm:$0xff]
      %v5478 = vld [vmem:[#allocation3 + $0x8] sm:$0xff]
      %v5479 = vld [vmem:[#allocation3 + $0x10] sm:$0xff]
      %v5480 = vld [vmem:[#allocation3 + $0x18] sm:$0xff]
      %v5481 = vld [vmem:[#allocation3 + $0x20] sm:$0xff]
      %v5482 = vld [vmem:[#allocation3 + $0x28] sm:$0xff]
      %v5483 = vld [vmem:[#allocation3 + $0x30] sm:$0xff]
      %v5484 = vld [vmem:[#allocation3 + $0x38] sm:$0xff]
      %v5485 = vld [vmem:[#allocation3 + $0x40] sm:$0xff]
      %v5486 = vld [vmem:[#allocation3 + $0x48] sm:$0xff]
      %v5487 = vld [vmem:[#allocation3 + $0x50] sm:$0xff]
      %v5488 = vld [vmem:[#allocation3 + $0x58] sm:$0xff]
      %v5489 = vld [vmem:[#allocation3 + $0x60] sm:$0xff]
      %v5490 = vld [vmem:[#allocation3 + $0x68] sm:$0xff]
      %v5491 = vld [vmem:[#allocation3 + $0x70] sm:$0xff]
      %v5492 = vld [vmem:[#allocation3 + $0x78] sm:$0xff]
      %v5493 = vpack.c.bf16 %v5478, %v5477
      %v5494 = vpack.c.bf16 %v5480, %v5479
      %v5495 = vpack.c.bf16 %v5482, %v5481
      %v5496 = vpack.c.bf16 %v5484, %v5483
      %v5497 = vpack.c.bf16 %v5486, %v5485
      %v5498 = vpack.c.bf16 %v5488, %v5487
      %v5499 = vpack.c.bf16 %v5490, %v5489
      %v5500 = vpack.c.bf16 %v5492, %v5491
      %v5501 = vld [vmem:[%s428] sm:$0xf]
      %v5502 = vld [vmem:[%s428 + $0x4] sm:$0xf]
      %v5503 = vld [vmem:[%s428 + $0x8] sm:$0xf]
      %v5504 = vld [vmem:[%s428 + $0xc] sm:$0xf]
      %v5505 = vld [vmem:[%s428 + $0x10] sm:$0xf]
      %v5506 = vld [vmem:[%s428 + $0x14] sm:$0xf]
      %v5507 = vld [vmem:[%s428 + $0x18] sm:$0xf]
      %v5508 = vld [vmem:[%s428 + $0x1c] sm:$0xf]
      %v5509 = vld [vmem:[%s428 + $0x20] sm:$0xf]
      %v5510 = vld [vmem:[%s428 + $0x24] sm:$0xf]
      %v5511 = vld [vmem:[%s428 + $0x28] sm:$0xf]
      %v5512 = vld [vmem:[%s428 + $0x2c] sm:$0xf]
      %v5513 = vld [vmem:[%s428 + $0x30] sm:$0xf]
      %v5514 = vld [vmem:[%s428 + $0x34] sm:$0xf]
      %v5515 = vld [vmem:[%s428 + $0x38] sm:$0xf]
      %v5516 = vld [vmem:[%s428 + $0x3c] sm:$0xf]
      %v5533 = vunpack.c.l.b16 %v5501
      %v5534 = vunpack.c.l.b16 %v5502
      %v5535 = vunpack.c.l.b16 %v5503
      %v5536 = vunpack.c.l.b16 %v5504
      %v5537 = vunpack.c.l.b16 %v5505
      %v5538 = vunpack.c.l.b16 %v5506
      %v5539 = vunpack.c.l.b16 %v5507
      %v5540 = vunpack.c.l.b16 %v5508
      %v5541 = vunpack.c.l.b16 %v5509
      %v5542 = vunpack.c.l.b16 %v5510
      %v5543 = vunpack.c.l.b16 %v5511
      %v5544 = vunpack.c.l.b16 %v5512
      %v5545 = vunpack.c.l.b16 %v5513
      %v5546 = vunpack.c.l.b16 %v5514
      %v5547 = vunpack.c.l.b16 %v5515
      %v5548 = vunpack.c.l.b16 %v5516
      %v5549 = vpack.c.b16 %v5534, %v5533
      %v5550 = vpack.c.b16 %v5536, %v5535
      %v5551 = vpack.c.b16 %v5538, %v5537
      %v5552 = vpack.c.b16 %v5540, %v5539
      %v5553 = vpack.c.b16 %v5542, %v5541
      %v5554 = vpack.c.b16 %v5544, %v5543
      %v5555 = vpack.c.b16 %v5546, %v5545
      %v5556 = vpack.c.b16 %v5548, %v5547
      %5565 = vmatprep.subr.bf16.mxu0 0
      %5566 = vmatpush1.bf16.msra.mxu0 %v5549
      %5567 = vmatprep.subr.bf16.mxu0 0
      %5568 = vmatpush1.bf16.msra.mxu0 %v5550
      %5569 = vmatprep.subr.bf16.mxu0 0
      %5570 = vmatpush1.bf16.msra.mxu0 %v5551
      %5571 = vmatprep.subr.bf16.mxu0 0
      %5572 = vmatpush1.bf16.msra.mxu0 %v5552
      %5573 = vmatprep.subr.bf16.mxu0 0
      %5574 = vmatpush1.bf16.msra.mxu0 %v5553
      %5575 = vmatprep.subr.bf16.mxu0 0
      %5576 = vmatpush1.bf16.msra.mxu0 %v5554
      %5577 = vmatprep.subr.bf16.mxu0 0
      %5578 = vmatpush1.bf16.msra.mxu0 %v5555
      %5579 = vmatprep.subr.bf16.mxu0 0
      %5580 = vmatpush1.bf16.msra.mxu0 %v5556
      %5581 = vmatprep.subr.bf16.mxu0 0
      %5582 = vmatpush1.bf16.msra.mxu0 0
      %5583 = vmatprep.subr.bf16.mxu0 0
      %5584 = vmatpush1.bf16.msra.mxu0 0
      %5585 = vmatprep.subr.bf16.mxu0 0
      %5586 = vmatpush1.bf16.msra.mxu0 0
      %5587 = vmatprep.subr.bf16.mxu0 0
      %5588 = vmatpush1.bf16.msra.mxu0 0
      %5589 = vmatprep.subr.bf16.mxu0 0
      %5590 = vmatpush1.bf16.msra.mxu0 0
      %5591 = vmatprep.subr.bf16.mxu0 0
      %5592 = vmatpush1.bf16.msra.mxu0 0
      %5593 = vmatprep.subr.bf16.mxu0 0
      %5594 = vmatpush1.bf16.msra.mxu0 0
      %5595 = vmatprep.subr.bf16.mxu0 0
      %5596 = vmatpush1.bf16.msra.mxu0 0
      %5597 = vmatprep.mubr.bf16.mxu0 0
      %5598 = vmatmul.mubr.bf16.gmra.mrb[0].mxu0 %v5493
      %v5599 = vpop.f32.mrb[0].mxu0
      %v5600 = vadd.f32 0.0, %v5599
      %v5601 = vpop.f32.mrb[0].mxu0
      %v5602 = vpop.f32.mrb[0].mxu0
      %v5603 = vadd.f32 0.0, %v5602
      %v5604 = vpop.f32.mrb[0].mxu0
      %5605 = vmatprep.mubr.bf16.mxu0 0
      %5606 = vmatmul.mubr.bf16.gmra.mrb[0].mxu0 %v5494
      %v5607 = vpop.f32.mrb[0].mxu0
      %v5608 = vadd.f32 0.0, %v5607
      %v5609 = vpop.f32.mrb[0].mxu0
      %v5610 = vpop.f32.mrb[0].mxu0
      %v5611 = vadd.f32 0.0, %v5610
      %v5612 = vpop.f32.mrb[0].mxu0
      %5613 = vmatprep.mubr.bf16.mxu0 0
      %5614 = vmatmul.mubr.bf16.gmra.mrb[0].mxu0 %v5495
      %v5615 = vpop.f32.mrb[0].mxu0
      %v5616 = vadd.f32 0.0, %v5615
      %v5617 = vpop.f32.mrb[0].mxu0
      %v5618 = vpop.f32.mrb[0].mxu0
      %v5619 = vadd.f32 0.0, %v5618
      %v5620 = vpop.f32.mrb[0].mxu0
      %5621 = vmatprep.mubr.bf16.mxu0 0
      %5622 = vmatmul.mubr.bf16.gmra.mrb[0].mxu0 %v5496
      %v5623 = vpop.f32.mrb[0].mxu0
      %v5624 = vadd.f32 0.0, %v5623
      %v5625 = vpop.f32.mrb[0].mxu0
      %v5626 = vpop.f32.mrb[0].mxu0
      %v5627 = vadd.f32 0.0, %v5626
      %v5628 = vpop.f32.mrb[0].mxu0
      %5629 = vmatprep.mubr.bf16.mxu0 0
      %5630 = vmatmul.mubr.bf16.gmra.mrb[0].mxu0 %v5497
      %v5631 = vpop.f32.mrb[0].mxu0
      %v5632 = vadd.f32 0.0, %v5631
      %v5633 = vpop.f32.mrb[0].mxu0
      %v5634 = vpop.f32.mrb[0].mxu0
      %v5635 = vadd.f32 0.0, %v5634
      %v5636 = vpop.f32.mrb[0].mxu0
      %5637 = vmatprep.mubr.bf16.mxu0 0
      %5638 = vmatmul.mubr.bf16.gmra.mrb[0].mxu0 %v5498
      %v5639 = vpop.f32.mrb[0].mxu0
      %v5640 = vadd.f32 0.0, %v5639
      %v5641 = vpop.f32.mrb[0].mxu0
      %v5642 = vpop.f32.mrb[0].mxu0
      %v5643 = vadd.f32 0.0, %v5642
      %v5644 = vpop.f32.mrb[0].mxu0
      %5645 = vmatprep.mubr.bf16.mxu0 0
      %5646 = vmatmul.mubr.bf16.gmra.mrb[0].mxu0 %v5499
      %v5647 = vpop.f32.mrb[0].mxu0
      %v5648 = vadd.f32 0.0, %v5647
      %v5649 = vpop.f32.mrb[0].mxu0
      %v5650 = vpop.f32.mrb[0].mxu0
      %v5651 = vadd.f32 0.0, %v5650
      %v5652 = vpop.f32.mrb[0].mxu0
      %5653 = vmatprep.mubr.bf16.mxu0 0
      %5654 = vmatmul.mubr.bf16.gmra.mrb[0].mxu0 %v5500
      %v5655 = vpop.f32.mrb[0].mxu0
      %v5656 = vadd.f32 0.0, %v5655
      %v5657 = vpop.f32.mrb[0].mxu0
      %v5658 = vpop.f32.mrb[0].mxu0
      %v5659 = vadd.f32 0.0, %v5658
      %v5660 = vpop.f32.mrb[0].mxu0
      %5661 = vdwg.mxu0
      %v5662 = vadd.f32 %v729, %v5600
      %v5663 = vadd.f32 %v730, %v5603
      %v5664 = vadd.f32 %v731, %v5608
      %v5665 = vadd.f32 %v732, %v5611
      %v5666 = vadd.f32 %v733, %v5616
      %v5667 = vadd.f32 %v734, %v5619
      %v5668 = vadd.f32 %v735, %v5624
      %v5669 = vadd.f32 %v736, %v5627
      %v5670 = vadd.f32 %v737, %v5632
      %v5671 = vadd.f32 %v738, %v5635
      %v5672 = vadd.f32 %v739, %v5640
      %v5673 = vadd.f32 %v740, %v5643
      %v5674 = vadd.f32 %v741, %v5648
      %v5675 = vadd.f32 %v742, %v5651
      %v5676 = vadd.f32 %v743, %v5656
      %v5677 = vadd.f32 %v744, %v5659
      %v5678 = vlaneseq
      %v5679 = vshrl.u32 %v5678, 7
      %v5680 = vsub.s32 3, %v5679
      %v5681 = vrot.slane %v726, %v5680
      %v5682 = vadd.f32 %v5662, %v5681
      %v5683 = vadd.f32 %v5663, %v5681
      %v5684 = vadd.f32 %v5664, %v5681
      %v5685 = vadd.f32 %v5665, %v5681
      %v5686 = vadd.f32 %v5666, %v5681
      %v5687 = vadd.f32 %v5667, %v5681
      %v5688 = vadd.f32 %v5668, %v5681
      %v5689 = vadd.f32 %v5669, %v5681
      %v5690 = vadd.f32 %v5670, %v5681
      %v5691 = vadd.f32 %v5671, %v5681
      %v5692 = vadd.f32 %v5672, %v5681
      %v5693 = vadd.f32 %v5673, %v5681
      %v5694 = vadd.f32 %v5674, %v5681
      %v5695 = vadd.f32 %v5675, %v5681
      %v5696 = vadd.f32 %v5676, %v5681
      %v5697 = vadd.f32 %v5677, %v5681
      %5698 = vadd.xlane.f32.xlu0 %v5682
      %v5699 = vpop.xlane.xlu0 %5698
      %5700 = vadd.xlane.f32.xlu0 %v5683
      %v5701 = vpop.xlane.xlu0 %5700
      %5702 = vadd.xlane.f32.xlu0 %v5684
      %v5703 = vpop.xlane.xlu0 %5702
      %5704 = vadd.xlane.f32.xlu0 %v5685
      %v5705 = vpop.xlane.xlu0 %5704
      %5706 = vadd.xlane.f32.xlu0 %v5686
      %v5707 = vpop.xlane.xlu0 %5706
      %5708 = vadd.xlane.f32.xlu0 %v5687
      %v5709 = vpop.xlane.xlu0 %5708
      %5710 = vadd.xlane.f32.xlu0 %v5688
      %v5711 = vpop.xlane.xlu0 %5710
      %5712 = vadd.xlane.f32.xlu0 %v5689
      %v5713 = vpop.xlane.xlu0 %5712
      %5714 = vadd.xlane.f32.xlu0 %v5690
      %v5715 = vpop.xlane.xlu0 %5714
      %5716 = vadd.xlane.f32.xlu0 %v5691
      %v5717 = vpop.xlane.xlu0 %5716
      %5718 = vadd.xlane.f32.xlu0 %v5692
      %v5719 = vpop.xlane.xlu0 %5718
      %5720 = vadd.xlane.f32.xlu0 %v5693
      %v5721 = vpop.xlane.xlu0 %5720
      %5722 = vadd.xlane.f32.xlu0 %v5694
      %v5723 = vpop.xlane.xlu0 %5722
      %5724 = vadd.xlane.f32.xlu0 %v5695
      %v5725 = vpop.xlane.xlu0 %5724
      %5726 = vadd.xlane.f32.xlu0 %v5696
      %v5727 = vpop.xlane.xlu0 %5726
      %5728 = vadd.xlane.f32.xlu0 %v5697
      %v5729 = vpop.xlane.xlu0 %5728
      %v5730 = vmul.f32 %v5699, %v777
      %v5731 = vmul.f32 %v5701, %v777
      %v5732 = vmul.f32 %v5703, %v777
      %v5733 = vmul.f32 %v5705, %v777
      %v5734 = vmul.f32 %v5707, %v777
      %v5735 = vmul.f32 %v5709, %v777
      %v5736 = vmul.f32 %v5711, %v777
      %v5737 = vmul.f32 %v5713, %v777
      %v5738 = vmul.f32 %v5715, %v777
      %v5739 = vmul.f32 %v5717, %v777
      %v5740 = vmul.f32 %v5719, %v777
      %v5741 = vmul.f32 %v5721, %v777
      %v5742 = vmul.f32 %v5723, %v777
      %v5743 = vmul.f32 %v5725, %v777
      %v5744 = vmul.f32 %v5727, %v777
      %v5745 = vmul.f32 %v5729, %v777
      %v5746 = vsub.f32 %v5682, %v5730
      %v5747 = vsub.f32 %v5683, %v5731
      %v5748 = vsub.f32 %v5684, %v5732
      %v5749 = vsub.f32 %v5685, %v5733
      %v5750 = vsub.f32 %v5686, %v5734
      %v5751 = vsub.f32 %v5687, %v5735
      %v5752 = vsub.f32 %v5688, %v5736
      %v5753 = vsub.f32 %v5689, %v5737
      %v5754 = vsub.f32 %v5690, %v5738
      %v5755 = vsub.f32 %v5691, %v5739
      %v5756 = vsub.f32 %v5692, %v5740
      %v5757 = vsub.f32 %v5693, %v5741
      %v5758 = vsub.f32 %v5694, %v5742
      %v5759 = vsub.f32 %v5695, %v5743
      %v5760 = vsub.f32 %v5696, %v5744
      %v5761 = vsub.f32 %v5697, %v5745
      %v5762 = vmul.f32 %v5746, %v5746
      %v5763 = vmul.f32 %v5747, %v5747
      %v5764 = vmul.f32 %v5748, %v5748
      %v5765 = vmul.f32 %v5749, %v5749
      %v5766 = vmul.f32 %v5750, %v5750
      %v5767 = vmul.f32 %v5751, %v5751
      %v5768 = vmul.f32 %v5752, %v5752
      %v5769 = vmul.f32 %v5753, %v5753
      %v5770 = vmul.f32 %v5754, %v5754
      %v5771 = vmul.f32 %v5755, %v5755
      %v5772 = vmul.f32 %v5756, %v5756
      %v5773 = vmul.f32 %v5757, %v5757
      %v5774 = vmul.f32 %v5758, %v5758
      %v5775 = vmul.f32 %v5759, %v5759
      %v5776 = vmul.f32 %v5760, %v5760
      %v5777 = vmul.f32 %v5761, %v5761
      %5778 = vadd.xlane.f32.xlu0 %v5762
      %v5779 = vpop.xlane.xlu0 %5778
      %5780 = vadd.xlane.f32.xlu0 %v5763
      %v5781 = vpop.xlane.xlu0 %5780
      %5782 = vadd.xlane.f32.xlu0 %v5764
      %v5783 = vpop.xlane.xlu0 %5782
      %5784 = vadd.xlane.f32.xlu0 %v5765
      %v5785 = vpop.xlane.xlu0 %5784
      %5786 = vadd.xlane.f32.xlu0 %v5766
      %v5787 = vpop.xlane.xlu0 %5786
      %5788 = vadd.xlane.f32.xlu0 %v5767
      %v5789 = vpop.xlane.xlu0 %5788
      %5790 = vadd.xlane.f32.xlu0 %v5768
      %v5791 = vpop.xlane.xlu0 %5790
      %5792 = vadd.xlane.f32.xlu0 %v5769
      %v5793 = vpop.xlane.xlu0 %5792
      %5794 = vadd.xlane.f32.xlu0 %v5770
      %v5795 = vpop.xlane.xlu0 %5794
      %5796 = vadd.xlane.f32.xlu0 %v5771
      %v5797 = vpop.xlane.xlu0 %5796
      %5798 = vadd.xlane.f32.xlu0 %v5772
      %v5799 = vpop.xlane.xlu0 %5798
      %5800 = vadd.xlane.f32.xlu0 %v5773
      %v5801 = vpop.xlane.xlu0 %5800
      %5802 = vadd.xlane.f32.xlu0 %v5774
      %v5803 = vpop.xlane.xlu0 %5802
      %5804 = vadd.xlane.f32.xlu0 %v5775
      %v5805 = vpop.xlane.xlu0 %5804
      %5806 = vadd.xlane.f32.xlu0 %v5776
      %v5807 = vpop.xlane.xlu0 %5806
      %5808 = vadd.xlane.f32.xlu0 %v5777
      %v5809 = vpop.xlane.xlu0 %5808
      %v5810 = vmul.f32 %v5779, %v777
      %v5811 = vmul.f32 %v5781, %v777
      %v5812 = vmul.f32 %v5783, %v777
      %v5813 = vmul.f32 %v5785, %v777
      %v5814 = vmul.f32 %v5787, %v777
      %v5815 = vmul.f32 %v5789, %v777
      %v5816 = vmul.f32 %v5791, %v777
      %v5817 = vmul.f32 %v5793, %v777
      %v5818 = vmul.f32 %v5795, %v777
      %v5819 = vmul.f32 %v5797, %v777
      %v5820 = vmul.f32 %v5799, %v777
      %v5821 = vmul.f32 %v5801, %v777
      %v5822 = vmul.f32 %v5803, %v777
      %v5823 = vmul.f32 %v5805, %v777
      %v5824 = vmul.f32 %v5807, %v777
      %v5825 = vmul.f32 %v5809, %v777
      %v5826 = vadd.f32 %v5810, 1e-06
      %v5827 = vadd.f32 %v5811, 1e-06
      %v5828 = vadd.f32 %v5812, 1e-06
      %v5829 = vadd.f32 %v5813, 1e-06
      %v5830 = vadd.f32 %v5814, 1e-06
      %v5831 = vadd.f32 %v5815, 1e-06
      %v5832 = vadd.f32 %v5816, 1e-06
      %v5833 = vadd.f32 %v5817, 1e-06
      %v5834 = vadd.f32 %v5818, 1e-06
      %v5835 = vadd.f32 %v5819, 1e-06
      %v5836 = vadd.f32 %v5820, 1e-06
      %v5837 = vadd.f32 %v5821, 1e-06
      %v5838 = vadd.f32 %v5822, 1e-06
      %v5839 = vadd.f32 %v5823, 1e-06
      %v5840 = vadd.f32 %v5824, 1e-06
      %v5841 = vadd.f32 %v5825, 1e-06
      %v5842 = vrsqrt.pop %v5826
      %v5843 = vrsqrt.pop %v5827
      %v5844 = vrsqrt.pop %v5828
      %v5845 = vrsqrt.pop %v5829
      %v5846 = vrsqrt.pop %v5830
      %v5847 = vrsqrt.pop %v5831
      %v5848 = vrsqrt.pop %v5832
      %v5849 = vrsqrt.pop %v5833
      %v5850 = vrsqrt.pop %v5834
      %v5851 = vrsqrt.pop %v5835
      %v5852 = vrsqrt.pop %v5836
      %v5853 = vrsqrt.pop %v5837
      %v5854 = vrsqrt.pop %v5838
      %v5855 = vrsqrt.pop %v5839
      %v5856 = vrsqrt.pop %v5840
      %v5857 = vrsqrt.pop %v5841
      %v5858 = vmul.f32 %v5746, %v5842
      %v5859 = vmul.f32 %v5747, %v5843
      %v5860 = vmul.f32 %v5748, %v5844
      %v5861 = vmul.f32 %v5749, %v5845
      %v5862 = vmul.f32 %v5750, %v5846
      %v5863 = vmul.f32 %v5751, %v5847
      %v5864 = vmul.f32 %v5752, %v5848
      %v5865 = vmul.f32 %v5753, %v5849
      %v5866 = vmul.f32 %v5754, %v5850
      %v5867 = vmul.f32 %v5755, %v5851
      %v5868 = vmul.f32 %v5756, %v5852
      %v5869 = vmul.f32 %v5757, %v5853
      %v5870 = vmul.f32 %v5758, %v5854
      %v5871 = vmul.f32 %v5759, %v5855
      %v5872 = vmul.f32 %v5760, %v5856
      %v5873 = vmul.f32 %v5761, %v5857
      %v5874 = vlaneseq
      %v5875 = vshrl.u32 %v5874, 7
      %v5876 = vsub.s32 4, %v5875
      %v5877 = vrot.slane %v726, %v5876
      %v5878 = vmul.f32 %v5858, %v5877
      %v5879 = vmul.f32 %v5859, %v5877
      %v5880 = vmul.f32 %v5860, %v5877
      %v5881 = vmul.f32 %v5861, %v5877
      %v5882 = vmul.f32 %v5862, %v5877
      %v5883 = vmul.f32 %v5863, %v5877
      %v5884 = vmul.f32 %v5864, %v5877
      %v5885 = vmul.f32 %v5865, %v5877
      %v5886 = vmul.f32 %v5866, %v5877
      %v5887 = vmul.f32 %v5867, %v5877
      %v5888 = vmul.f32 %v5868, %v5877
      %v5889 = vmul.f32 %v5869, %v5877
      %v5890 = vmul.f32 %v5870, %v5877
      %v5891 = vmul.f32 %v5871, %v5877
      %v5892 = vmul.f32 %v5872, %v5877
      %v5893 = vmul.f32 %v5873, %v5877
      %v5894 = vlaneseq
      %v5895 = vshrl.u32 %v5894, 7
      %v5896 = vsub.s32 5, %v5895
      %v5897 = vrot.slane %v726, %v5896
      %v5898 = vadd.f32 %v5878, %v5897
      %v5899 = vadd.f32 %v5879, %v5897
      %v5900 = vadd.f32 %v5880, %v5897
      %v5901 = vadd.f32 %v5881, %v5897
      %v5902 = vadd.f32 %v5882, %v5897
      %v5903 = vadd.f32 %v5883, %v5897
      %v5904 = vadd.f32 %v5884, %v5897
      %v5905 = vadd.f32 %v5885, %v5897
      %v5906 = vadd.f32 %v5886, %v5897
      %v5907 = vadd.f32 %v5887, %v5897
      %v5908 = vadd.f32 %v5888, %v5897
      %v5909 = vadd.f32 %v5889, %v5897
      %v5910 = vadd.f32 %v5890, %v5897
      %v5911 = vadd.f32 %v5891, %v5897
      %v5912 = vadd.f32 %v5892, %v5897
      %v5913 = vadd.f32 %v5893, %v5897
      %v5914 = vpack.c.bf16 %v5899, %v5898
      %v5915 = vpack.c.bf16 %v5901, %v5900
      %v5916 = vpack.c.bf16 %v5903, %v5902
      %v5917 = vpack.c.bf16 %v5905, %v5904
      %v5918 = vpack.c.bf16 %v5907, %v5906
      %v5919 = vpack.c.bf16 %v5909, %v5908
      %v5920 = vpack.c.bf16 %v5911, %v5910
      %v5921 = vpack.c.bf16 %v5913, %v5912
      %v5922 = vld [vmem:[%s433] sm:$0xff]
      %v5923 = vld [vmem:[%s433 + $0x8] sm:$0xff]
      %v5924 = vld [vmem:[%s433 + $0x10] sm:$0xff]
      %v5925 = vld [vmem:[%s433 + $0x18] sm:$0xff]
      %v5926 = vld [vmem:[%s433 + $0x20] sm:$0xff]
      %v5927 = vld [vmem:[%s433 + $0x28] sm:$0xff]
      %v5928 = vld [vmem:[%s433 + $0x30] sm:$0xff]
      %v5929 = vld [vmem:[%s433 + $0x38] sm:$0xff]
      %v5930 = vld [vmem:[%s433 + $0x40] sm:$0xff]
      %v5931 = vld [vmem:[%s433 + $0x48] sm:$0xff]
      %v5932 = vld [vmem:[%s433 + $0x50] sm:$0xff]
      %v5933 = vld [vmem:[%s433 + $0x58] sm:$0xff]
      %v5934 = vld [vmem:[%s433 + $0x60] sm:$0xff]
      %v5935 = vld [vmem:[%s433 + $0x68] sm:$0xff]
      %v5936 = vld [vmem:[%s433 + $0x70] sm:$0xff]
      %v5937 = vld [vmem:[%s433 + $0x78] sm:$0xff]
      %v5938 = vlaneseq
      %v5939 = vshrl.u32 %v5938, 7
      %v5940 = vsub.s32 6, %v5939
      %v5941 = vrot.slane %v726, %v5940
      %v5942 = vlaneseq
      %v5943 = vshrl.u32 %v5942, 7
      %v5944 = vsub.s32 6, %v5943
      %v5945 = vrot.slane %v727, %v5944
      %v5962 = vunpack.c.l.b16 %v5922
      %v5963 = vunpack.c.h.b16 %v5922
      %v5964 = vunpack.c.l.b16 %v5923
      %v5965 = vunpack.c.h.b16 %v5923
      %v5966 = vunpack.c.l.b16 %v5924
      %v5967 = vunpack.c.h.b16 %v5924
      %v5968 = vunpack.c.l.b16 %v5925
      %v5969 = vunpack.c.h.b16 %v5925
      %v5970 = vunpack.c.l.b16 %v5926
      %v5971 = vunpack.c.h.b16 %v5926
      %v5972 = vunpack.c.l.b16 %v5927
      %v5973 = vunpack.c.h.b16 %v5927
      %v5974 = vunpack.c.l.b16 %v5928
      %v5975 = vunpack.c.h.b16 %v5928
      %v5976 = vunpack.c.l.b16 %v5929
      %v5977 = vunpack.c.h.b16 %v5929
      %v5978 = vunpack.c.l.b16 %v5930
      %v5979 = vunpack.c.h.b16 %v5930
      %v5980 = vunpack.c.l.b16 %v5931
      %v5981 = vunpack.c.h.b16 %v5931
      %v5982 = vunpack.c.l.b16 %v5932
      %v5983 = vunpack.c.h.b16 %v5932
      %v5984 = vunpack.c.l.b16 %v5933
      %v5985 = vunpack.c.h.b16 %v5933
      %v5986 = vunpack.c.l.b16 %v5934
      %v5987 = vunpack.c.h.b16 %v5934
      %v5988 = vunpack.c.l.b16 %v5935
      %v5989 = vunpack.c.h.b16 %v5935
      %v5990 = vunpack.c.l.b16 %v5936
      %v5991 = vunpack.c.h.b16 %v5936
      %v5992 = vunpack.c.l.b16 %v5937
      %v5993 = vunpack.c.h.b16 %v5937
      %v5994 = vpack.c.b16 %v5964, %v5962
      %v5995 = vpack.c.b16 %v5965, %v5963
      %v5996 = vpack.c.b16 %v5968, %v5966
      %v5997 = vpack.c.b16 %v5969, %v5967
      %v5998 = vpack.c.b16 %v5972, %v5970
      %v5999 = vpack.c.b16 %v5973, %v5971
      %v6000 = vpack.c.b16 %v5976, %v5974
      %v6001 = vpack.c.b16 %v5977, %v5975
      %v6002 = vpack.c.b16 %v5980, %v5978
      %v6003 = vpack.c.b16 %v5981, %v5979
      %v6004 = vpack.c.b16 %v5984, %v5982
      %v6005 = vpack.c.b16 %v5985, %v5983
      %v6006 = vpack.c.b16 %v5988, %v5986
      %v6007 = vpack.c.b16 %v5989, %v5987
      %v6008 = vpack.c.b16 %v5992, %v5990
      %v6009 = vpack.c.b16 %v5993, %v5991
      %6026 = vmatprep.subr.bf16.mxu0 %v5995
      %6027 = vmatpush1.bf16.msra.mxu0 %v5994
      %6028 = vmatprep.subr.bf16.mxu0 %v5997
      %6029 = vmatpush1.bf16.msra.mxu0 %v5996
      %6030 = vmatprep.subr.bf16.mxu0 %v5999
      %6031 = vmatpush1.bf16.msra.mxu0 %v5998
      %6032 = vmatprep.subr.bf16.mxu0 %v6001
      %6033 = vmatpush1.bf16.msra.mxu0 %v6000
      %6034 = vmatprep.subr.bf16.mxu0 %v6003
      %6035 = vmatpush1.bf16.msra.mxu0 %v6002
      %6036 = vmatprep.subr.bf16.mxu0 %v6005
      %6037 = vmatpush1.bf16.msra.mxu0 %v6004
      %6038 = vmatprep.subr.bf16.mxu0 %v6007
      %6039 = vmatpush1.bf16.msra.mxu0 %v6006
      %6040 = vmatprep.subr.bf16.mxu0 %v6009
      %6041 = vmatpush1.bf16.msra.mxu0 %v6008
      %6042 = vmatprep.subr.bf16.mxu0 0
      %6043 = vmatpush1.bf16.msra.mxu0 0
      %6044 = vmatprep.subr.bf16.mxu0 0
      %6045 = vmatpush1.bf16.msra.mxu0 0
      %6046 = vmatprep.subr.bf16.mxu0 0
      %6047 = vmatpush1.bf16.msra.mxu0 0
      %6048 = vmatprep.subr.bf16.mxu0 0
      %6049 = vmatpush1.bf16.msra.mxu0 0
      %6050 = vmatprep.subr.bf16.mxu0 0
      %6051 = vmatpush1.bf16.msra.mxu0 0
      %6052 = vmatprep.subr.bf16.mxu0 0
      %6053 = vmatpush1.bf16.msra.mxu0 0
      %6054 = vmatprep.subr.bf16.mxu0 0
      %6055 = vmatpush1.bf16.msra.mxu0 0
      %6056 = vmatprep.subr.bf16.mxu0 0
      %6057 = vmatpush1.bf16.msra.mxu0 0
      %6058 = vmatprep.mubr.bf16.mxu0 0
      %6059 = vmatmul.mubr.bf16.gmra.mrb[0].mxu0 %v5914
      %v6060 = vpop.f32.mrb[0].mxu0
      %v6061 = vadd.f32 %v5941, %v6060
      %v6062 = vpop.f32.mrb[0].mxu0
      %v6063 = vadd.f32 %v5945, %v6062
      %v6064 = vpop.f32.mrb[0].mxu0
      %v6065 = vadd.f32 %v5941, %v6064
      %v6066 = vpop.f32.mrb[0].mxu0
      %v6067 = vadd.f32 %v5945, %v6066
      %6068 = vmatprep.mubr.bf16.mxu0 0
      %6069 = vmatmul.mubr.bf16.gmra.mrb[0].mxu0 %v5915
      %v6070 = vpop.f32.mrb[0].mxu0
      %v6071 = vadd.f32 %v5941, %v6070
      %v6072 = vpop.f32.mrb[0].mxu0
      %v6073 = vadd.f32 %v5945, %v6072
      %v6074 = vpop.f32.mrb[0].mxu0
      %v6075 = vadd.f32 %v5941, %v6074
      %v6076 = vpop.f32.mrb[0].mxu0
      %v6077 = vadd.f32 %v5945, %v6076
      %6078 = vmatprep.mubr.bf16.mxu0 0
      %6079 = vmatmul.mubr.bf16.gmra.mrb[0].mxu0 %v5916
      %v6080 = vpop.f32.mrb[0].mxu0
      %v6081 = vadd.f32 %v5941, %v6080
      %v6082 = vpop.f32.mrb[0].mxu0
      %v6083 = vadd.f32 %v5945, %v6082
      %v6084 = vpop.f32.mrb[0].mxu0
      %v6085 = vadd.f32 %v5941, %v6084
      %v6086 = vpop.f32.mrb[0].mxu0
      %v6087 = vadd.f32 %v5945, %v6086
      %6088 = vmatprep.mubr.bf16.mxu0 0
      %6089 = vmatmul.mubr.bf16.gmra.mrb[0].mxu0 %v5917
      %v6090 = vpop.f32.mrb[0].mxu0
      %v6091 = vadd.f32 %v5941, %v6090
      %v6092 = vpop.f32.mrb[0].mxu0
      %v6093 = vadd.f32 %v5945, %v6092
      %v6094 = vpop.f32.mrb[0].mxu0
      %v6095 = vadd.f32 %v5941, %v6094
      %v6096 = vpop.f32.mrb[0].mxu0
      %v6097 = vadd.f32 %v5945, %v6096
      %6098 = vmatprep.mubr.bf16.mxu0 0
      %6099 = vmatmul.mubr.bf16.gmra.mrb[0].mxu0 %v5918
      %v6100 = vpop.f32.mrb[0].mxu0
      %v6101 = vadd.f32 %v5941, %v6100
      %v6102 = vpop.f32.mrb[0].mxu0
      %v6103 = vadd.f32 %v5945, %v6102
      %v6104 = vpop.f32.mrb[0].mxu0
      %v6105 = vadd.f32 %v5941, %v6104
      %v6106 = vpop.f32.mrb[0].mxu0
      %v6107 = vadd.f32 %v5945, %v6106
      %6108 = vmatprep.mubr.bf16.mxu0 0
      %6109 = vmatmul.mubr.bf16.gmra.mrb[0].mxu0 %v5919
      %v6110 = vpop.f32.mrb[0].mxu0
      %v6111 = vadd.f32 %v5941, %v6110
      %v6112 = vpop.f32.mrb[0].mxu0
      %v6113 = vadd.f32 %v5945, %v6112
      %v6114 = vpop.f32.mrb[0].mxu0
      %v6115 = vadd.f32 %v5941, %v6114
      %v6116 = vpop.f32.mrb[0].mxu0
      %v6117 = vadd.f32 %v5945, %v6116
      %6118 = vmatprep.mubr.bf16.mxu0 0
      %6119 = vmatmul.mubr.bf16.gmra.mrb[0].mxu0 %v5920
      %v6120 = vpop.f32.mrb[0].mxu0
      %v6121 = vadd.f32 %v5941, %v6120
      %v6122 = vpop.f32.mrb[0].mxu0
      %v6123 = vadd.f32 %v5945, %v6122
      %v6124 = vpop.f32.mrb[0].mxu0
      %v6125 = vadd.f32 %v5941, %v6124
      %v6126 = vpop.f32.mrb[0].mxu0
      %v6127 = vadd.f32 %v5945, %v6126
      %6128 = vmatprep.mubr.bf16.mxu0 0
      %6129 = vmatmul.mubr.bf16.gmra.mrb[0].mxu0 %v5921
      %v6130 = vpop.f32.mrb[0].mxu0
      %v6131 = vadd.f32 %v5941, %v6130
      %v6132 = vpop.f32.mrb[0].mxu0
      %v6133 = vadd.f32 %v5945, %v6132
      %v6134 = vpop.f32.mrb[0].mxu0
      %v6135 = vadd.f32 %v5941, %v6134
      %v6136 = vpop.f32.mrb[0].mxu0
      %v6137 = vadd.f32 %v5945, %v6136
      %6138 = vdwg.mxu0
      %v6139 = vmul.f32 %v6061, %v6061
      %v6140 = vmul.f32 %v6063, %v6063
      %v6141 = vmul.f32 %v6065, %v6065
      %v6142 = vmul.f32 %v6067, %v6067
      %v6143 = vmul.f32 %v6071, %v6071
      %v6144 = vmul.f32 %v6073, %v6073
      %v6145 = vmul.f32 %v6075, %v6075
      %v6146 = vmul.f32 %v6077, %v6077
      %v6147 = vmul.f32 %v6081, %v6081
      %v6148 = vmul.f32 %v6083, %v6083
      %v6149 = vmul.f32 %v6085, %v6085
      %v6150 = vmul.f32 %v6087, %v6087
      %v6151 = vmul.f32 %v6091, %v6091
      %v6152 = vmul.f32 %v6093, %v6093
      %v6153 = vmul.f32 %v6095, %v6095
      %v6154 = vmul.f32 %v6097, %v6097
      %v6155 = vmul.f32 %v6101, %v6101
      %v6156 = vmul.f32 %v6103, %v6103
      %v6157 = vmul.f32 %v6105, %v6105
      %v6158 = vmul.f32 %v6107, %v6107
      %v6159 = vmul.f32 %v6111, %v6111
      %v6160 = vmul.f32 %v6113, %v6113
      %v6161 = vmul.f32 %v6115, %v6115
      %v6162 = vmul.f32 %v6117, %v6117
      %v6163 = vmul.f32 %v6121, %v6121
      %v6164 = vmul.f32 %v6123, %v6123
      %v6165 = vmul.f32 %v6125, %v6125
      %v6166 = vmul.f32 %v6127, %v6127
      %v6167 = vmul.f32 %v6131, %v6131
      %v6168 = vmul.f32 %v6133, %v6133
      %v6169 = vmul.f32 %v6135, %v6135
      %v6170 = vmul.f32 %v6137, %v6137
      %v6171 = vmul.f32 %v6061, %v6139
      %v6172 = vmul.f32 %v6063, %v6140
      %v6173 = vmul.f32 %v6065, %v6141
      %v6174 = vmul.f32 %v6067, %v6142
      %v6175 = vmul.f32 %v6071, %v6143
      %v6176 = vmul.f32 %v6073, %v6144
      %v6177 = vmul.f32 %v6075, %v6145
      %v6178 = vmul.f32 %v6077, %v6146
      %v6179 = vmul.f32 %v6081, %v6147
      %v6180 = vmul.f32 %v6083, %v6148
      %v6181 = vmul.f32 %v6085, %v6149
      %v6182 = vmul.f32 %v6087, %v6150
      %v6183 = vmul.f32 %v6091, %v6151
      %v6184 = vmul.f32 %v6093, %v6152
      %v6185 = vmul.f32 %v6095, %v6153
      %v6186 = vmul.f32 %v6097, %v6154
      %v6187 = vmul.f32 %v6101, %v6155
      %v6188 = vmul.f32 %v6103, %v6156
      %v6189 = vmul.f32 %v6105, %v6157
      %v6190 = vmul.f32 %v6107, %v6158
      %v6191 = vmul.f32 %v6111, %v6159
      %v6192 = vmul.f32 %v6113, %v6160
      %v6193 = vmul.f32 %v6115, %v6161
      %v6194 = vmul.f32 %v6117, %v6162
      %v6195 = vmul.f32 %v6121, %v6163
      %v6196 = vmul.f32 %v6123, %v6164
      %v6197 = vmul.f32 %v6125, %v6165
      %v6198 = vmul.f32 %v6127, %v6166
      %v6199 = vmul.f32 %v6131, %v6167
      %v6200 = vmul.f32 %v6133, %v6168
      %v6201 = vmul.f32 %v6135, %v6169
      %v6202 = vmul.f32 %v6137, %v6170
      %v6203 = vmul.f32 %v6171, 0.044715
      %v6204 = vmul.f32 %v6172, 0.044715
      %v6205 = vmul.f32 %v6173, 0.044715
      %v6206 = vmul.f32 %v6174, 0.044715
      %v6207 = vmul.f32 %v6175, 0.044715
      %v6208 = vmul.f32 %v6176, 0.044715
      %v6209 = vmul.f32 %v6177, 0.044715
      %v6210 = vmul.f32 %v6178, 0.044715
      %v6211 = vmul.f32 %v6179, 0.044715
      %v6212 = vmul.f32 %v6180, 0.044715
      %v6213 = vmul.f32 %v6181, 0.044715
      %v6214 = vmul.f32 %v6182, 0.044715
      %v6215 = vmul.f32 %v6183, 0.044715
      %v6216 = vmul.f32 %v6184, 0.044715
      %v6217 = vmul.f32 %v6185, 0.044715
      %v6218 = vmul.f32 %v6186, 0.044715
      %v6219 = vmul.f32 %v6187, 0.044715
      %v6220 = vmul.f32 %v6188, 0.044715
      %v6221 = vmul.f32 %v6189, 0.044715
      %v6222 = vmul.f32 %v6190, 0.044715
      %v6223 = vmul.f32 %v6191, 0.044715
      %v6224 = vmul.f32 %v6192, 0.044715
      %v6225 = vmul.f32 %v6193, 0.044715
      %v6226 = vmul.f32 %v6194, 0.044715
      %v6227 = vmul.f32 %v6195, 0.044715
      %v6228 = vmul.f32 %v6196, 0.044715
      %v6229 = vmul.f32 %v6197, 0.044715
      %v6230 = vmul.f32 %v6198, 0.044715
      %v6231 = vmul.f32 %v6199, 0.044715
      %v6232 = vmul.f32 %v6200, 0.044715
      %v6233 = vmul.f32 %v6201, 0.044715
      %v6234 = vmul.f32 %v6202, 0.044715
      %v6235 = vadd.f32 %v6061, %v6203
      %v6236 = vadd.f32 %v6063, %v6204
      %v6237 = vadd.f32 %v6065, %v6205
      %v6238 = vadd.f32 %v6067, %v6206
      %v6239 = vadd.f32 %v6071, %v6207
      %v6240 = vadd.f32 %v6073, %v6208
      %v6241 = vadd.f32 %v6075, %v6209
      %v6242 = vadd.f32 %v6077, %v6210
      %v6243 = vadd.f32 %v6081, %v6211
      %v6244 = vadd.f32 %v6083, %v6212
      %v6245 = vadd.f32 %v6085, %v6213
      %v6246 = vadd.f32 %v6087, %v6214
      %v6247 = vadd.f32 %v6091, %v6215
      %v6248 = vadd.f32 %v6093, %v6216
      %v6249 = vadd.f32 %v6095, %v6217
      %v6250 = vadd.f32 %v6097, %v6218
      %v6251 = vadd.f32 %v6101, %v6219
      %v6252 = vadd.f32 %v6103, %v6220
      %v6253 = vadd.f32 %v6105, %v6221
      %v6254 = vadd.f32 %v6107, %v6222
      %v6255 = vadd.f32 %v6111, %v6223
      %v6256 = vadd.f32 %v6113, %v6224
      %v6257 = vadd.f32 %v6115, %v6225
      %v6258 = vadd.f32 %v6117, %v6226
      %v6259 = vadd.f32 %v6121, %v6227
      %v6260 = vadd.f32 %v6123, %v6228
      %v6261 = vadd.f32 %v6125, %v6229
      %v6262 = vadd.f32 %v6127, %v6230
      %v6263 = vadd.f32 %v6131, %v6231
      %v6264 = vadd.f32 %v6133, %v6232
      %v6265 = vadd.f32 %v6135, %v6233
      %v6266 = vadd.f32 %v6137, %v6234
      %v6267 = vmul.f32 %v6235, 0.7978846
      %v6268 = vmul.f32 %v6236, 0.7978846
      %v6269 = vmul.f32 %v6237, 0.7978846
      %v6270 = vmul.f32 %v6238, 0.7978846
      %v6271 = vmul.f32 %v6239, 0.7978846
      %v6272 = vmul.f32 %v6240, 0.7978846
      %v6273 = vmul.f32 %v6241, 0.7978846
      %v6274 = vmul.f32 %v6242, 0.7978846
      %v6275 = vmul.f32 %v6243, 0.7978846
      %v6276 = vmul.f32 %v6244, 0.7978846
      %v6277 = vmul.f32 %v6245, 0.7978846
      %v6278 = vmul.f32 %v6246, 0.7978846
      %v6279 = vmul.f32 %v6247, 0.7978846
      %v6280 = vmul.f32 %v6248, 0.7978846
      %v6281 = vmul.f32 %v6249, 0.7978846
      %v6282 = vmul.f32 %v6250, 0.7978846
      %v6283 = vmul.f32 %v6251, 0.7978846
      %v6284 = vmul.f32 %v6252, 0.7978846
      %v6285 = vmul.f32 %v6253, 0.7978846
      %v6286 = vmul.f32 %v6254, 0.7978846
      %v6287 = vmul.f32 %v6255, 0.7978846
      %v6288 = vmul.f32 %v6256, 0.7978846
      %v6289 = vmul.f32 %v6257, 0.7978846
      %v6290 = vmul.f32 %v6258, 0.7978846
      %v6291 = vmul.f32 %v6259, 0.7978846
      %v6292 = vmul.f32 %v6260, 0.7978846
      %v6293 = vmul.f32 %v6261, 0.7978846
      %v6294 = vmul.f32 %v6262, 0.7978846
      %v6295 = vmul.f32 %v6263, 0.7978846
      %v6296 = vmul.f32 %v6264, 0.7978846
      %v6297 = vmul.f32 %v6265, 0.7978846
      %v6298 = vmul.f32 %v6266, 0.7978846
      %v6299 = vtanh.pop %v6267
      %v6300 = vtanh.pop %v6268
      %v6301 = vtanh.pop %v6269
      %v6302 = vtanh.pop %v6270
      %v6303 = vtanh.pop %v6271
      %v6304 = vtanh.pop %v6272
      %v6305 = vtanh.pop %v6273
      %v6306 = vtanh.pop %v6274
      %v6307 = vtanh.pop %v6275
      %v6308 = vtanh.pop %v6276
      %v6309 = vtanh.pop %v6277
      %v6310 = vtanh.pop %v6278
      %v6311 = vtanh.pop %v6279
      %v6312 = vtanh.pop %v6280
      %v6313 = vtanh.pop %v6281
      %v6314 = vtanh.pop %v6282
      %v6315 = vtanh.pop %v6283
      %v6316 = vtanh.pop %v6284
      %v6317 = vtanh.pop %v6285
      %v6318 = vtanh.pop %v6286
      %v6319 = vtanh.pop %v6287
      %v6320 = vtanh.pop %v6288
      %v6321 = vtanh.pop %v6289
      %v6322 = vtanh.pop %v6290
      %v6323 = vtanh.pop %v6291
      %v6324 = vtanh.pop %v6292
      %v6325 = vtanh.pop %v6293
      %v6326 = vtanh.pop %v6294
      %v6327 = vtanh.pop %v6295
      %v6328 = vtanh.pop %v6296
      %v6329 = vtanh.pop %v6297
      %v6330 = vtanh.pop %v6298
      %v6331 = vadd.f32 %v6299, 1.0
      %v6332 = vadd.f32 %v6300, 1.0
      %v6333 = vadd.f32 %v6301, 1.0
      %v6334 = vadd.f32 %v6302, 1.0
      %v6335 = vadd.f32 %v6303, 1.0
      %v6336 = vadd.f32 %v6304, 1.0
      %v6337 = vadd.f32 %v6305, 1.0
      %v6338 = vadd.f32 %v6306, 1.0
      %v6339 = vadd.f32 %v6307, 1.0
      %v6340 = vadd.f32 %v6308, 1.0
      %v6341 = vadd.f32 %v6309, 1.0
      %v6342 = vadd.f32 %v6310, 1.0
      %v6343 = vadd.f32 %v6311, 1.0
      %v6344 = vadd.f32 %v6312, 1.0
      %v6345 = vadd.f32 %v6313, 1.0
      %v6346 = vadd.f32 %v6314, 1.0
      %v6347 = vadd.f32 %v6315, 1.0
      %v6348 = vadd.f32 %v6316, 1.0
      %v6349 = vadd.f32 %v6317, 1.0
      %v6350 = vadd.f32 %v6318, 1.0
      %v6351 = vadd.f32 %v6319, 1.0
      %v6352 = vadd.f32 %v6320, 1.0
      %v6353 = vadd.f32 %v6321, 1.0
      %v6354 = vadd.f32 %v6322, 1.0
      %v6355 = vadd.f32 %v6323, 1.0
      %v6356 = vadd.f32 %v6324, 1.0
      %v6357 = vadd.f32 %v6325, 1.0
      %v6358 = vadd.f32 %v6326, 1.0
      %v6359 = vadd.f32 %v6327, 1.0
      %v6360 = vadd.f32 %v6328, 1.0
      %v6361 = vadd.f32 %v6329, 1.0
      %v6362 = vadd.f32 %v6330, 1.0
      %v6363 = vmul.f32 %v6331, 0.5
      %v6364 = vmul.f32 %v6332, 0.5
      %v6365 = vmul.f32 %v6333, 0.5
      %v6366 = vmul.f32 %v6334, 0.5
      %v6367 = vmul.f32 %v6335, 0.5
      %v6368 = vmul.f32 %v6336, 0.5
      %v6369 = vmul.f32 %v6337, 0.5
      %v6370 = vmul.f32 %v6338, 0.5
      %v6371 = vmul.f32 %v6339, 0.5
      %v6372 = vmul.f32 %v6340, 0.5
      %v6373 = vmul.f32 %v6341, 0.5
      %v6374 = vmul.f32 %v6342, 0.5
      %v6375 = vmul.f32 %v6343, 0.5
      %v6376 = vmul.f32 %v6344, 0.5
      %v6377 = vmul.f32 %v6345, 0.5
      %v6378 = vmul.f32 %v6346, 0.5
      %v6379 = vmul.f32 %v6347, 0.5
      %v6380 = vmul.f32 %v6348, 0.5
      %v6381 = vmul.f32 %v6349, 0.5
      %v6382 = vmul.f32 %v6350, 0.5
      %v6383 = vmul.f32 %v6351, 0.5
      %v6384 = vmul.f32 %v6352, 0.5
      %v6385 = vmul.f32 %v6353, 0.5
      %v6386 = vmul.f32 %v6354, 0.5
      %v6387 = vmul.f32 %v6355, 0.5
      %v6388 = vmul.f32 %v6356, 0.5
      %v6389 = vmul.f32 %v6357, 0.5
      %v6390 = vmul.f32 %v6358, 0.5
      %v6391 = vmul.f32 %v6359, 0.5
      %v6392 = vmul.f32 %v6360, 0.5
      %v6393 = vmul.f32 %v6361, 0.5
      %v6394 = vmul.f32 %v6362, 0.5
      %v6395 = vmul.f32 %v6061, %v6363
      %v6396 = vmul.f32 %v6063, %v6364
      %v6397 = vmul.f32 %v6065, %v6365
      %v6398 = vmul.f32 %v6067, %v6366
      %v6399 = vmul.f32 %v6071, %v6367
      %v6400 = vmul.f32 %v6073, %v6368
      %v6401 = vmul.f32 %v6075, %v6369
      %v6402 = vmul.f32 %v6077, %v6370
      %v6403 = vmul.f32 %v6081, %v6371
      %v6404 = vmul.f32 %v6083, %v6372
      %v6405 = vmul.f32 %v6085, %v6373
      %v6406 = vmul.f32 %v6087, %v6374
      %v6407 = vmul.f32 %v6091, %v6375
      %v6408 = vmul.f32 %v6093, %v6376
      %v6409 = vmul.f32 %v6095, %v6377
      %v6410 = vmul.f32 %v6097, %v6378
      %v6411 = vmul.f32 %v6101, %v6379
      %v6412 = vmul.f32 %v6103, %v6380
      %v6413 = vmul.f32 %v6105, %v6381
      %v6414 = vmul.f32 %v6107, %v6382
      %v6415 = vmul.f32 %v6111, %v6383
      %v6416 = vmul.f32 %v6113, %v6384
      %v6417 = vmul.f32 %v6115, %v6385
      %v6418 = vmul.f32 %v6117, %v6386
      %v6419 = vmul.f32 %v6121, %v6387
      %v6420 = vmul.f32 %v6123, %v6388
      %v6421 = vmul.f32 %v6125, %v6389
      %v6422 = vmul.f32 %v6127, %v6390
      %v6423 = vmul.f32 %v6131, %v6391
      %v6424 = vmul.f32 %v6133, %v6392
      %v6425 = vmul.f32 %v6135, %v6393
      %v6426 = vmul.f32 %v6137, %v6394
      %v6427 = vpack.c.bf16 %v6397, %v6395
      %v6428 = vpack.c.bf16 %v6398, %v6396
      %v6429 = vpack.c.bf16 %v6401, %v6399
      %v6430 = vpack.c.bf16 %v6402, %v6400
      %v6431 = vpack.c.bf16 %v6405, %v6403
      %v6432 = vpack.c.bf16 %v6406, %v6404
      %v6433 = vpack.c.bf16 %v6409, %v6407
      %v6434 = vpack.c.bf16 %v6410, %v6408
      %v6435 = vpack.c.bf16 %v6413, %v6411
      %v6436 = vpack.c.bf16 %v6414, %v6412
      %v6437 = vpack.c.bf16 %v6417, %v6415
      %v6438 = vpack.c.bf16 %v6418, %v6416
      %v6439 = vpack.c.bf16 %v6421, %v6419
      %v6440 = vpack.c.bf16 %v6422, %v6420
      %v6441 = vpack.c.bf16 %v6425, %v6423
      %v6442 = vpack.c.bf16 %v6426, %v6424
      %v6443 = vld [vmem:[%s438] sm:$0xf]
      %v6444 = vld [vmem:[%s438 + $0x4] sm:$0xf]
      %v6445 = vld [vmem:[%s438 + $0x8] sm:$0xf]
      %v6446 = vld [vmem:[%s438 + $0xc] sm:$0xf]
      %v6447 = vld [vmem:[%s438 + $0x10] sm:$0xf]
      %v6448 = vld [vmem:[%s438 + $0x14] sm:$0xf]
      %v6449 = vld [vmem:[%s438 + $0x18] sm:$0xf]
      %v6450 = vld [vmem:[%s438 + $0x1c] sm:$0xf]
      %v6451 = vld [vmem:[%s438 + $0x20] sm:$0xf]
      %v6452 = vld [vmem:[%s438 + $0x24] sm:$0xf]
      %v6453 = vld [vmem:[%s438 + $0x28] sm:$0xf]
      %v6454 = vld [vmem:[%s438 + $0x2c] sm:$0xf]
      %v6455 = vld [vmem:[%s438 + $0x30] sm:$0xf]
      %v6456 = vld [vmem:[%s438 + $0x34] sm:$0xf]
      %v6457 = vld [vmem:[%s438 + $0x38] sm:$0xf]
      %v6458 = vld [vmem:[%s438 + $0x3c] sm:$0xf]
      %v6459 = vld [vmem:[%s438 + $0x40] sm:$0xf]
      %v6460 = vld [vmem:[%s438 + $0x44] sm:$0xf]
      %v6461 = vld [vmem:[%s438 + $0x48] sm:$0xf]
      %v6462 = vld [vmem:[%s438 + $0x4c] sm:$0xf]
      %v6463 = vld [vmem:[%s438 + $0x50] sm:$0xf]
      %v6464 = vld [vmem:[%s438 + $0x54] sm:$0xf]
      %v6465 = vld [vmem:[%s438 + $0x58] sm:$0xf]
      %v6466 = vld [vmem:[%s438 + $0x5c] sm:$0xf]
      %v6467 = vld [vmem:[%s438 + $0x60] sm:$0xf]
      %v6468 = vld [vmem:[%s438 + $0x64] sm:$0xf]
      %v6469 = vld [vmem:[%s438 + $0x68] sm:$0xf]
      %v6470 = vld [vmem:[%s438 + $0x6c] sm:$0xf]
      %v6471 = vld [vmem:[%s438 + $0x70] sm:$0xf]
      %v6472 = vld [vmem:[%s438 + $0x74] sm:$0xf]
      %v6473 = vld [vmem:[%s438 + $0x78] sm:$0xf]
      %v6474 = vld [vmem:[%s438 + $0x7c] sm:$0xf]
      %v6475 = vlaneseq
      %v6476 = vshrl.u32 %v6475, 7
      %v6477 = vsub.s32 7, %v6476
      %v6478 = vrot.slane %v726, %v6477
      %v6511 = vunpack.c.l.b16 %v6443
      %v6512 = vunpack.c.l.b16 %v6444
      %v6513 = vunpack.c.l.b16 %v6445
      %v6514 = vunpack.c.l.b16 %v6446
      %v6515 = vunpack.c.l.b16 %v6447
      %v6516 = vunpack.c.l.b16 %v6448
      %v6517 = vunpack.c.l.b16 %v6449
      %v6518 = vunpack.c.l.b16 %v6450
      %v6519 = vunpack.c.l.b16 %v6451
      %v6520 = vunpack.c.l.b16 %v6452
      %v6521 = vunpack.c.l.b16 %v6453
      %v6522 = vunpack.c.l.b16 %v6454
      %v6523 = vunpack.c.l.b16 %v6455
      %v6524 = vunpack.c.l.b16 %v6456
      %v6525 = vunpack.c.l.b16 %v6457
      %v6526 = vunpack.c.l.b16 %v6458
      %v6527 = vunpack.c.l.b16 %v6459
      %v6528 = vunpack.c.l.b16 %v6460
      %v6529 = vunpack.c.l.b16 %v6461
      %v6530 = vunpack.c.l.b16 %v6462
      %v6531 = vunpack.c.l.b16 %v6463
      %v6532 = vunpack.c.l.b16 %v6464
      %v6533 = vunpack.c.l.b16 %v6465
      %v6534 = vunpack.c.l.b16 %v6466
      %v6535 = vunpack.c.l.b16 %v6467
      %v6536 = vunpack.c.l.b16 %v6468
      %v6537 = vunpack.c.l.b16 %v6469
      %v6538 = vunpack.c.l.b16 %v6470
      %v6539 = vunpack.c.l.b16 %v6471
      %v6540 = vunpack.c.l.b16 %v6472
      %v6541 = vunpack.c.l.b16 %v6473
      %v6542 = vunpack.c.l.b16 %v6474
      %v6543 = vpack.c.b16 %v6512, %v6511
      %v6544 = vpack.c.b16 %v6514, %v6513
      %v6545 = vpack.c.b16 %v6516, %v6515
      %v6546 = vpack.c.b16 %v6518, %v6517
      %v6547 = vpack.c.b16 %v6520, %v6519
      %v6548 = vpack.c.b16 %v6522, %v6521
      %v6549 = vpack.c.b16 %v6524, %v6523
      %v6550 = vpack.c.b16 %v6526, %v6525
      %v6551 = vpack.c.b16 %v6528, %v6527
      %v6552 = vpack.c.b16 %v6530, %v6529
      %v6553 = vpack.c.b16 %v6532, %v6531
      %v6554 = vpack.c.b16 %v6534, %v6533
      %v6555 = vpack.c.b16 %v6536, %v6535
      %v6556 = vpack.c.b16 %v6538, %v6537
      %v6557 = vpack.c.b16 %v6540, %v6539
      %v6558 = vpack.c.b16 %v6542, %v6541
      %6575 = vmatprep.subr.bf16.mxu0 0
      %6576 = vmatpush1.bf16.msra.mxu0 %v6543
      %6577 = vmatprep.subr.bf16.mxu0 0
      %6578 = vmatpush1.bf16.msra.mxu0 %v6544
      %6579 = vmatprep.subr.bf16.mxu0 0
      %6580 = vmatpush1.bf16.msra.mxu0 %v6545
      %6581 = vmatprep.subr.bf16.mxu0 0
      %6582 = vmatpush1.bf16.msra.mxu0 %v6546
      %6583 = vmatprep.subr.bf16.mxu0 0
      %6584 = vmatpush1.bf16.msra.mxu0 %v6547
      %6585 = vmatprep.subr.bf16.mxu0 0
      %6586 = vmatpush1.bf16.msra.mxu0 %v6548
      %6587 = vmatprep.subr.bf16.mxu0 0
      %6588 = vmatpush1.bf16.msra.mxu0 %v6549
      %6589 = vmatprep.subr.bf16.mxu0 0
      %6590 = vmatpush1.bf16.msra.mxu0 %v6550
      %6591 = vmatprep.subr.bf16.mxu0 0
      %6592 = vmatpush1.bf16.msra.mxu0 %v6551
      %6593 = vmatprep.subr.bf16.mxu0 0
      %6594 = vmatpush1.bf16.msra.mxu0 %v6552
      %6595 = vmatprep.subr.bf16.mxu0 0
      %6596 = vmatpush1.bf16.msra.mxu0 %v6553
      %6597 = vmatprep.subr.bf16.mxu0 0
      %6598 = vmatpush1.bf16.msra.mxu0 %v6554
      %6599 = vmatprep.subr.bf16.mxu0 0
      %6600 = vmatpush1.bf16.msra.mxu0 %v6555
      %6601 = vmatprep.subr.bf16.mxu0 0
      %6602 = vmatpush1.bf16.msra.mxu0 %v6556
      %6603 = vmatprep.subr.bf16.mxu0 0
      %6604 = vmatpush1.bf16.msra.mxu0 %v6557
      %6605 = vmatprep.subr.bf16.mxu0 0
      %6606 = vmatpush1.bf16.msra.mxu0 %v6558
      %6607 = vmatprep.mubr.bf16.mxu0 %v6428
      %6608 = vmatmul.mubr.bf16.gmra.mrb[0].mxu0 %v6427
      %v6609 = vpop.f32.mrb[0].mxu0
      %v6610 = vadd.f32 %v6478, %v6609
      %v6611 = vpop.f32.mrb[0].mxu0
      %v6612 = vpop.f32.mrb[0].mxu0
      %v6613 = vadd.f32 %v6478, %v6612
      %v6614 = vpop.f32.mrb[0].mxu0
      %6615 = vmatprep.mubr.bf16.mxu0 %v6430
      %6616 = vmatmul.mubr.bf16.gmra.mrb[0].mxu0 %v6429
      %v6617 = vpop.f32.mrb[0].mxu0
      %v6618 = vadd.f32 %v6478, %v6617
      %v6619 = vpop.f32.mrb[0].mxu0
      %v6620 = vpop.f32.mrb[0].mxu0
      %v6621 = vadd.f32 %v6478, %v6620
      %v6622 = vpop.f32.mrb[0].mxu0
      %6623 = vmatprep.mubr.bf16.mxu0 %v6432
      %6624 = vmatmul.mubr.bf16.gmra.mrb[0].mxu0 %v6431
      %v6625 = vpop.f32.mrb[0].mxu0
      %v6626 = vadd.f32 %v6478, %v6625
      %v6627 = vpop.f32.mrb[0].mxu0
      %v6628 = vpop.f32.mrb[0].mxu0
      %v6629 = vadd.f32 %v6478, %v6628
      %v6630 = vpop.f32.mrb[0].mxu0
      %6631 = vmatprep.mubr.bf16.mxu0 %v6434
      %6632 = vmatmul.mubr.bf16.gmra.mrb[0].mxu0 %v6433
      %v6633 = vpop.f32.mrb[0].mxu0
      %v6634 = vadd.f32 %v6478, %v6633
      %v6635 = vpop.f32.mrb[0].mxu0
      %v6636 = vpop.f32.mrb[0].mxu0
      %v6637 = vadd.f32 %v6478, %v6636
      %v6638 = vpop.f32.mrb[0].mxu0
      %6639 = vmatprep.mubr.bf16.mxu0 %v6436
      %6640 = vmatmul.mubr.bf16.gmra.mrb[0].mxu0 %v6435
      %v6641 = vpop.f32.mrb[0].mxu0
      %v6642 = vadd.f32 %v6478, %v6641
      %v6643 = vpop.f32.mrb[0].mxu0
      %v6644 = vpop.f32.mrb[0].mxu0
      %v6645 = vadd.f32 %v6478, %v6644
      %v6646 = vpop.f32.mrb[0].mxu0
      %6647 = vmatprep.mubr.bf16.mxu0 %v6438
      %6648 = vmatmul.mubr.bf16.gmra.mrb[0].mxu0 %v6437
      %v6649 = vpop.f32.mrb[0].mxu0
      %v6650 = vadd.f32 %v6478, %v6649
      %v6651 = vpop.f32.mrb[0].mxu0
      %v6652 = vpop.f32.mrb[0].mxu0
      %v6653 = vadd.f32 %v6478, %v6652
      %v6654 = vpop.f32.mrb[0].mxu0
      %6655 = vmatprep.mubr.bf16.mxu0 %v6440
      %6656 = vmatmul.mubr.bf16.gmra.mrb[0].mxu0 %v6439
      %v6657 = vpop.f32.mrb[0].mxu0
      %v6658 = vadd.f32 %v6478, %v6657
      %v6659 = vpop.f32.mrb[0].mxu0
      %v6660 = vpop.f32.mrb[0].mxu0
      %v6661 = vadd.f32 %v6478, %v6660
      %v6662 = vpop.f32.mrb[0].mxu0
      %6663 = vmatprep.mubr.bf16.mxu0 %v6442
      %6664 = vmatmul.mubr.bf16.gmra.mrb[0].mxu0 %v6441
      %v6665 = vpop.f32.mrb[0].mxu0
      %v6666 = vadd.f32 %v6478, %v6665
      %v6667 = vpop.f32.mrb[0].mxu0
      %v6668 = vpop.f32.mrb[0].mxu0
      %v6669 = vadd.f32 %v6478, %v6668
      %v6670 = vpop.f32.mrb[0].mxu0
      %6671 = vdwg.mxu0
      %v6672 = vadd.f32 %v5682, %v6610
      %v6673 = vadd.f32 %v5683, %v6613
      %v6674 = vadd.f32 %v5684, %v6618
      %v6675 = vadd.f32 %v5685, %v6621
      %v6676 = vadd.f32 %v5686, %v6626
      %v6677 = vadd.f32 %v5687, %v6629
      %v6678 = vadd.f32 %v5688, %v6634
      %v6679 = vadd.f32 %v5689, %v6637
      %v6680 = vadd.f32 %v5690, %v6642
      %v6681 = vadd.f32 %v5691, %v6645
      %v6682 = vadd.f32 %v5692, %v6650
      %v6683 = vadd.f32 %v5693, %v6653
      %v6684 = vadd.f32 %v5694, %v6658
      %v6685 = vadd.f32 %v5695, %v6661
      %v6686 = vadd.f32 %v5696, %v6666
      %v6687 = vadd.f32 %v5697, %v6669
      %6688 = vst [vmem:[#allocation2] sm:$0xff] %v6672
      %6689 = vst [vmem:[#allocation2 + $0x8] sm:$0xff] %v6673
      %6690 = vst [vmem:[#allocation2 + $0x10] sm:$0xff] %v6674
      %6691 = vst [vmem:[#allocation2 + $0x18] sm:$0xff] %v6675
      %6692 = vst [vmem:[#allocation2 + $0x20] sm:$0xff] %v6676
      %6693 = vst [vmem:[#allocation2 + $0x28] sm:$0xff] %v6677
      %6694 = vst [vmem:[#allocation2 + $0x30] sm:$0xff] %v6678
      %6695 = vst [vmem:[#allocation2 + $0x38] sm:$0xff] %v6679
      %6696 = vst [vmem:[#allocation2 + $0x40] sm:$0xff] %v6680
      %6697 = vst [vmem:[#allocation2 + $0x48] sm:$0xff] %v6681
      %6698 = vst [vmem:[#allocation2 + $0x50] sm:$0xff] %v6682
      %6699 = vst [vmem:[#allocation2 + $0x58] sm:$0xff] %v6683
      %6700 = vst [vmem:[#allocation2 + $0x60] sm:$0xff] %v6684
      %6701 = vst [vmem:[#allocation2 + $0x68] sm:$0xff] %v6685
      %6702 = vst [vmem:[#allocation2 + $0x70] sm:$0xff] %v6686
      %6703 = vst [vmem:[#allocation2 + $0x78] sm:$0xff] %v6687
      %p6704 = scmp.eq.s32.totalorder %s25, 1
      // Predicated region
      $region61: #{vit_model_forward.1} parent=55 // pred_check
        %p6705 = pneg %p6704
      $region62: #{vit_model_forward.1} parent=55 // pred_check_branch
        %6707 = sbr.rel (%p6705) target = $region64
      $region63: #{vit_model_forward.1} parent=55 // pred_region
        %v6708 = vld [vmem:[%s3 + $0x1] sm:$0x1]
        %v6709 = vld [vmem:[%s3 + $0x2] sm:$0x1]
        %6710 = vadd.xlane.f32.xlu0 %v6672
        %v6711 = vpop.xlane.xlu0 %6710
        %6712 = vadd.xlane.f32.xlu0 %v6673
        %v6713 = vpop.xlane.xlu0 %6712
        %6714 = vadd.xlane.f32.xlu0 %v6674
        %v6715 = vpop.xlane.xlu0 %6714
        %6716 = vadd.xlane.f32.xlu0 %v6675
        %v6717 = vpop.xlane.xlu0 %6716
        %6718 = vadd.xlane.f32.xlu0 %v6676
        %v6719 = vpop.xlane.xlu0 %6718
        %6720 = vadd.xlane.f32.xlu0 %v6677
        %v6721 = vpop.xlane.xlu0 %6720
        %6722 = vadd.xlane.f32.xlu0 %v6678
        %v6723 = vpop.xlane.xlu0 %6722
        %6724 = vadd.xlane.f32.xlu0 %v6679
        %v6725 = vpop.xlane.xlu0 %6724
        %6726 = vadd.xlane.f32.xlu0 %v6680
        %v6727 = vpop.xlane.xlu0 %6726
        %6728 = vadd.xlane.f32.xlu0 %v6681
        %v6729 = vpop.xlane.xlu0 %6728
        %6730 = vadd.xlane.f32.xlu0 %v6682
        %v6731 = vpop.xlane.xlu0 %6730
        %6732 = vadd.xlane.f32.xlu0 %v6683
        %v6733 = vpop.xlane.xlu0 %6732
        %6734 = vadd.xlane.f32.xlu0 %v6684
        %v6735 = vpop.xlane.xlu0 %6734
        %6736 = vadd.xlane.f32.xlu0 %v6685
        %v6737 = vpop.xlane.xlu0 %6736
        %6738 = vadd.xlane.f32.xlu0 %v6686
        %v6739 = vpop.xlane.xlu0 %6738
        %6740 = vadd.xlane.f32.xlu0 %v6687
        %v6741 = vpop.xlane.xlu0 %6740
        %v6742 = vmul.f32 %v6711, %v777
        %v6743 = vmul.f32 %v6713, %v777
        %v6744 = vmul.f32 %v6715, %v777
        %v6745 = vmul.f32 %v6717, %v777
        %v6746 = vmul.f32 %v6719, %v777
        %v6747 = vmul.f32 %v6721, %v777
        %v6748 = vmul.f32 %v6723, %v777
        %v6749 = vmul.f32 %v6725, %v777
        %v6750 = vmul.f32 %v6727, %v777
        %v6751 = vmul.f32 %v6729, %v777
        %v6752 = vmul.f32 %v6731, %v777
        %v6753 = vmul.f32 %v6733, %v777
        %v6754 = vmul.f32 %v6735, %v777
        %v6755 = vmul.f32 %v6737, %v777
        %v6756 = vmul.f32 %v6739, %v777
        %v6757 = vmul.f32 %v6741, %v777
        %v6758 = vsub.f32 %v6672, %v6742
        %v6759 = vsub.f32 %v6673, %v6743
        %v6760 = vsub.f32 %v6674, %v6744
        %v6761 = vsub.f32 %v6675, %v6745
        %v6762 = vsub.f32 %v6676, %v6746
        %v6763 = vsub.f32 %v6677, %v6747
        %v6764 = vsub.f32 %v6678, %v6748
        %v6765 = vsub.f32 %v6679, %v6749
        %v6766 = vsub.f32 %v6680, %v6750
        %v6767 = vsub.f32 %v6681, %v6751
        %v6768 = vsub.f32 %v6682, %v6752
        %v6769 = vsub.f32 %v6683, %v6753
        %v6770 = vsub.f32 %v6684, %v6754
        %v6771 = vsub.f32 %v6685, %v6755
        %v6772 = vsub.f32 %v6686, %v6756
        %v6773 = vsub.f32 %v6687, %v6757
        %v6774 = vmul.f32 %v6758, %v6758
        %v6775 = vmul.f32 %v6759, %v6759
        %v6776 = vmul.f32 %v6760, %v6760
        %v6777 = vmul.f32 %v6761, %v6761
        %v6778 = vmul.f32 %v6762, %v6762
        %v6779 = vmul.f32 %v6763, %v6763
        %v6780 = vmul.f32 %v6764, %v6764
        %v6781 = vmul.f32 %v6765, %v6765
        %v6782 = vmul.f32 %v6766, %v6766
        %v6783 = vmul.f32 %v6767, %v6767
        %v6784 = vmul.f32 %v6768, %v6768
        %v6785 = vmul.f32 %v6769, %v6769
        %v6786 = vmul.f32 %v6770, %v6770
        %v6787 = vmul.f32 %v6771, %v6771
        %v6788 = vmul.f32 %v6772, %v6772
        %v6789 = vmul.f32 %v6773, %v6773
        %6790 = vadd.xlane.f32.xlu0 %v6774
        %v6791 = vpop.xlane.xlu0 %6790
        %6792 = vadd.xlane.f32.xlu0 %v6775
        %v6793 = vpop.xlane.xlu0 %6792
        %6794 = vadd.xlane.f32.xlu0 %v6776
        %v6795 = vpop.xlane.xlu0 %6794
        %6796 = vadd.xlane.f32.xlu0 %v6777
        %v6797 = vpop.xlane.xlu0 %6796
        %6798 = vadd.xlane.f32.xlu0 %v6778
        %v6799 = vpop.xlane.xlu0 %6798
        %6800 = vadd.xlane.f32.xlu0 %v6779
        %v6801 = vpop.xlane.xlu0 %6800
        %6802 = vadd.xlane.f32.xlu0 %v6780
        %v6803 = vpop.xlane.xlu0 %6802
        %6804 = vadd.xlane.f32.xlu0 %v6781
        %v6805 = vpop.xlane.xlu0 %6804
        %6806 = vadd.xlane.f32.xlu0 %v6782
        %v6807 = vpop.xlane.xlu0 %6806
        %6808 = vadd.xlane.f32.xlu0 %v6783
        %v6809 = vpop.xlane.xlu0 %6808
        %6810 = vadd.xlane.f32.xlu0 %v6784
        %v6811 = vpop.xlane.xlu0 %6810
        %6812 = vadd.xlane.f32.xlu0 %v6785
        %v6813 = vpop.xlane.xlu0 %6812
        %6814 = vadd.xlane.f32.xlu0 %v6786
        %v6815 = vpop.xlane.xlu0 %6814
        %6816 = vadd.xlane.f32.xlu0 %v6787
        %v6817 = vpop.xlane.xlu0 %6816
        %6818 = vadd.xlane.f32.xlu0 %v6788
        %v6819 = vpop.xlane.xlu0 %6818
        %6820 = vadd.xlane.f32.xlu0 %v6789
        %v6821 = vpop.xlane.xlu0 %6820
        %v6822 = vmul.f32 %v6791, %v777
        %v6823 = vmul.f32 %v6793, %v777
        %v6824 = vmul.f32 %v6795, %v777
        %v6825 = vmul.f32 %v6797, %v777
        %v6826 = vmul.f32 %v6799, %v777
        %v6827 = vmul.f32 %v6801, %v777
        %v6828 = vmul.f32 %v6803, %v777
        %v6829 = vmul.f32 %v6805, %v777
        %v6830 = vmul.f32 %v6807, %v777
        %v6831 = vmul.f32 %v6809, %v777
        %v6832 = vmul.f32 %v6811, %v777
        %v6833 = vmul.f32 %v6813, %v777
        %v6834 = vmul.f32 %v6815, %v777
        %v6835 = vmul.f32 %v6817, %v777
        %v6836 = vmul.f32 %v6819, %v777
        %v6837 = vmul.f32 %v6821, %v777
        %v6838 = vadd.f32 %v6822, 1e-06
        %v6839 = vadd.f32 %v6823, 1e-06
        %v6840 = vadd.f32 %v6824, 1e-06
        %v6841 = vadd.f32 %v6825, 1e-06
        %v6842 = vadd.f32 %v6826, 1e-06
        %v6843 = vadd.f32 %v6827, 1e-06
        %v6844 = vadd.f32 %v6828, 1e-06
        %v6845 = vadd.f32 %v6829, 1e-06
        %v6846 = vadd.f32 %v6830, 1e-06
        %v6847 = vadd.f32 %v6831, 1e-06
        %v6848 = vadd.f32 %v6832, 1e-06
        %v6849 = vadd.f32 %v6833, 1e-06
        %v6850 = vadd.f32 %v6834, 1e-06
        %v6851 = vadd.f32 %v6835, 1e-06
        %v6852 = vadd.f32 %v6836, 1e-06
        %v6853 = vadd.f32 %v6837, 1e-06
        %v6854 = vrsqrt.pop %v6838
        %v6855 = vrsqrt.pop %v6839
        %v6856 = vrsqrt.pop %v6840
        %v6857 = vrsqrt.pop %v6841
        %v6858 = vrsqrt.pop %v6842
        %v6859 = vrsqrt.pop %v6843
        %v6860 = vrsqrt.pop %v6844
        %v6861 = vrsqrt.pop %v6845
        %v6862 = vrsqrt.pop %v6846
        %v6863 = vrsqrt.pop %v6847
        %v6864 = vrsqrt.pop %v6848
        %v6865 = vrsqrt.pop %v6849
        %v6866 = vrsqrt.pop %v6850
        %v6867 = vrsqrt.pop %v6851
        %v6868 = vrsqrt.pop %v6852
        %v6869 = vrsqrt.pop %v6853
        %v6870 = vmul.f32 %v6758, %v6854
        %v6871 = vmul.f32 %v6759, %v6855
        %v6872 = vmul.f32 %v6760, %v6856
        %v6873 = vmul.f32 %v6761, %v6857
        %v6874 = vmul.f32 %v6762, %v6858
        %v6875 = vmul.f32 %v6763, %v6859
        %v6876 = vmul.f32 %v6764, %v6860
        %v6877 = vmul.f32 %v6765, %v6861
        %v6878 = vmul.f32 %v6766, %v6862
        %v6879 = vmul.f32 %v6767, %v6863
        %v6880 = vmul.f32 %v6768, %v6864
        %v6881 = vmul.f32 %v6769, %v6865
        %v6882 = vmul.f32 %v6770, %v6866
        %v6883 = vmul.f32 %v6771, %v6867
        %v6884 = vmul.f32 %v6772, %v6868
        %v6885 = vmul.f32 %v6773, %v6869
        %v6886 = vlaneseq
        %v6887 = vshrl.u32 %v6886, 7
        %v6888 = vsub.s32 0, %v6887
        %v6889 = vrot.slane %v6708, %v6888
        %v6890 = vmul.f32 %v6870, %v6889
        %v6891 = vmul.f32 %v6871, %v6889
        %v6892 = vmul.f32 %v6872, %v6889
        %v6893 = vmul.f32 %v6873, %v6889
        %v6894 = vmul.f32 %v6874, %v6889
        %v6895 = vmul.f32 %v6875, %v6889
        %v6896 = vmul.f32 %v6876, %v6889
        %v6897 = vmul.f32 %v6877, %v6889
        %v6898 = vmul.f32 %v6878, %v6889
        %v6899 = vmul.f32 %v6879, %v6889
        %v6900 = vmul.f32 %v6880, %v6889
        %v6901 = vmul.f32 %v6881, %v6889
        %v6902 = vmul.f32 %v6882, %v6889
        %v6903 = vmul.f32 %v6883, %v6889
        %v6904 = vmul.f32 %v6884, %v6889
        %v6905 = vmul.f32 %v6885, %v6889
        %v6906 = vlaneseq
        %v6907 = vshrl.u32 %v6906, 7
        %v6908 = vsub.s32 0, %v6907
        %v6909 = vrot.slane %v6709, %v6908
        %v6910 = vadd.f32 %v6890, %v6909
        %v6911 = vadd.f32 %v6891, %v6909
        %v6912 = vadd.f32 %v6892, %v6909
        %v6913 = vadd.f32 %v6893, %v6909
        %v6914 = vadd.f32 %v6894, %v6909
        %v6915 = vadd.f32 %v6895, %v6909
        %v6916 = vadd.f32 %v6896, %v6909
        %v6917 = vadd.f32 %v6897, %v6909
        %v6918 = vadd.f32 %v6898, %v6909
        %v6919 = vadd.f32 %v6899, %v6909
        %v6920 = vadd.f32 %v6900, %v6909
        %v6921 = vadd.f32 %v6901, %v6909
        %v6922 = vadd.f32 %v6902, %v6909
        %v6923 = vadd.f32 %v6903, %v6909
        %v6924 = vadd.f32 %v6904, %v6909
        %v6925 = vadd.f32 %v6905, %v6909
        %v6926 = vadd.f32 %v6910, %v6911
        %v6927 = vrot.slane %v6926, 4
        %v6928 = vadd.f32 %v6926, %v6927
        %v6929 = vrot.slane %v6928, 2
        %v6930 = vadd.f32 %v6928, %v6929
        %v6931 = vrot.slane %v6930, 1
        %v6932 = vadd.f32 %v6930, %v6931
        %v6933 = vadd.f32 %v6912, %v6913
        %v6934 = vrot.slane %v6933, 4
        %v6935 = vadd.f32 %v6933, %v6934
        %v6936 = vrot.slane %v6935, 2
        %v6937 = vadd.f32 %v6935, %v6936
        %v6938 = vrot.slane %v6937, 1
        %v6939 = vadd.f32 %v6937, %v6938
        %v6940 = vadd.f32 %v6914, %v6915
        %v6941 = vrot.slane %v6940, 4
        %v6942 = vadd.f32 %v6940, %v6941
        %v6943 = vrot.slane %v6942, 2
        %v6944 = vadd.f32 %v6942, %v6943
        %v6945 = vrot.slane %v6944, 1
        %v6946 = vadd.f32 %v6944, %v6945
        %v6947 = vadd.f32 %v6916, %v6917
        %v6948 = vrot.slane %v6947, 4
        %v6949 = vadd.f32 %v6947, %v6948
        %v6950 = vrot.slane %v6949, 2
        %v6951 = vadd.f32 %v6949, %v6950
        %v6952 = vrot.slane %v6951, 1
        %v6953 = vadd.f32 %v6951, %v6952
        %v6954 = vadd.f32 %v6918, %v6919
        %v6955 = vrot.slane %v6954, 4
        %v6956 = vadd.f32 %v6954, %v6955
        %v6957 = vrot.slane %v6956, 2
        %v6958 = vadd.f32 %v6956, %v6957
        %v6959 = vrot.slane %v6958, 1
        %v6960 = vadd.f32 %v6958, %v6959
        %v6961 = vadd.f32 %v6920, %v6921
        %v6962 = vrot.slane %v6961, 4
        %v6963 = vadd.f32 %v6961, %v6962
        %v6964 = vrot.slane %v6963, 2
        %v6965 = vadd.f32 %v6963, %v6964
        %v6966 = vrot.slane %v6965, 1
        %v6967 = vadd.f32 %v6965, %v6966
        %v6968 = vadd.f32 %v6922, %v6923
        %v6969 = vrot.slane %v6968, 4
        %v6970 = vadd.f32 %v6968, %v6969
        %v6971 = vrot.slane %v6970, 2
        %v6972 = vadd.f32 %v6970, %v6971
        %v6973 = vrot.slane %v6972, 1
        %v6974 = vadd.f32 %v6972, %v6973
        %v6975 = vadd.f32 %v6924, %v6925
        %v6976 = vrot.slane %v6975, 4
        %v6977 = vadd.f32 %v6975, %v6976
        %v6978 = vrot.slane %v6977, 2
        %v6979 = vadd.f32 %v6977, %v6978
        %v6980 = vrot.slane %v6979, 1
        %v6981 = vadd.f32 %v6979, %v6980
        %v6982 = vrcp.pop 16.0
        %v6983 = vmul.f32 %v6932, %v6982
        %v6984 = vmul.f32 %v6939, %v6982
        %v6985 = vmul.f32 %v6946, %v6982
        %v6986 = vmul.f32 %v6953, %v6982
        %v6987 = vmul.f32 %v6960, %v6982
        %v6988 = vmul.f32 %v6967, %v6982
        %v6989 = vmul.f32 %v6974, %v6982
        %v6990 = vmul.f32 %v6981, %v6982
        %vm6999 = vcmask 1041409
        %v7000 = vsel %vm6999, %v6984, %v6983
        %vm7001 = vcmask 1042434
        %v7002 = vsel %vm7001, %v6985, %v7000
        %vm7003 = vcmask 1043459
        %v7004 = vsel %vm7003, %v6986, %v7002
        %vm7005 = vcmask 1044484
        %v7006 = vsel %vm7005, %v6987, %v7004
        %vm7007 = vcmask 1045509
        %v7008 = vsel %vm7007, %v6988, %v7006
        %vm7009 = vcmask 1046534
        %v7010 = vsel %vm7009, %v6989, %v7008
        %vm7011 = vcmask 1047559
        %v7012 = vsel %vm7011, %v6990, %v7010
        %7014 = vst [vmem:[%s442] sm:$0xff] %v7012
      $region64: #{vit_model_forward.1} parent=55 // pred_fallthru
        _
      %p7015 = scmp.lt.s32.totalorder %s24, 0
      %s7016 = scalar_select %p7015, %s24, 0
      %s7017 = smul.addr %s7016, 8
      %s7018 = scalar_lea.vmem %s9, %s7017
      // Predicated region
      $region65: #{vit_model_forward.1} parent=55 // pred_check
        %p7019 = pneg %p269
      $region66: #{vit_model_forward.1} parent=55 // pred_check_branch
        %7021 = sbr.rel (%p7019) target = $region68
      $region67: #{vit_model_forward.1} parent=55 // pred_region
        _
      $region68: #{vit_model_forward.1} parent=55 // pred_fallthru
        _
      // Predicated region
      $region69: #{vit_model_forward.1} parent=55 // pred_check
        %p7022 = pneg %p269
      $region70: #{vit_model_forward.1} parent=55 // pred_check_branch
        %7024 = sbr.rel (%p7022) target = $region72
      $region71: #{vit_model_forward.1} parent=55 // pred_region
        %p7025 = scmp.lt.s32.totalorder %s24, 0
        %s7026 = scalar_select %p7025, %s24, 0
        %s7027 = smul.addr %s7026, 8
        %s7028 = scalar_lea.vmem %s9, %s7027
      $region72: #{vit_model_forward.1} parent=55 // pred_fallthru
        _
    $region56: #{vit_model_forward.1} parent=5 // pred_fallthru
      _
    %p7029 = scmp.le.s32.totalorder 2, %s15
    // Predicated region
    $region73: #{vit_model_forward.1} parent=5 // pred_check
      %p7030 = pneg %p7029
    $region74: #{vit_model_forward.1} parent=5 // pred_check_branch
      %7032 = sbr.rel (%p7030) target = $region76
    $region75: #{vit_model_forward.1} parent=5 // pred_region
      %s7033 = ssub.s32 %s15, 2
    $region76: #{vit_model_forward.1} parent=5 // pred_fallthru
      _
  $region6: #{vit_model_forward.1} parent=0 // loop_footer
    %s19 = sadd.s32 1, %s15
  $region7: #{vit_model_forward.1} parent=0 // loop_footer_branch
    %14 = sbr.rel target = $region3
  $region8: #{vit_model_forward.1} parent=0 // loop_exit
    _

</llo_original>
